<compile_context>
chip_gen: v6e
topology: v6e:2x2x1
jax: 0.10.0
libtpu: 0.0.40
codegen_flags: <defaults>
</compile_context>

<pallas_src>
import functools

import jax
import jax.numpy as jnp
from jax import lax
from jax.experimental import pallas as pl
from jax.experimental.pallas import tpu as pltpu
import numpy as np


# ----------------------------------------------------------------------------
# Pallas kernel
# ----------------------------------------------------------------------------
def _fused_layer_kernel(*refs, KH, KW, W, M, pwl, act, pool):
    """Fused conv-as-one-GEMM + folded BN + activation (+ fused 2x2 max pool).

    refs (pool=False): x_ref (1, Cin_p, L), w_ref (Cout, K), b_ref (Cout, 1),
                       o_ref (1, Cout, M)
    refs (pool=True):  ... + sel_ref (4, M, M//4) before o_ref.

    The slab is one image with padded rows flattened onto the lane axis plus
    `pwl` leading / trailing zero lanes; the (ky, kx) im2col tap is then the
    contiguous lane window starting at ky*W + kx.  Lanes whose true column
    x + kx - pwl falls outside [0, W) are wrap-around reads and get masked.
    """
    if pool:
        x_ref, w_ref, b_ref, sel_ref, o_ref = refs
    else:
        x_ref, w_ref, b_ref, o_ref = refs
        sel_ref = None

    cin_p = x_ref.shape[1]
    # Work in f32 for the patch assembly (portable select, aligned concat);
    # cast once to bf16 right before the MXU GEMM.
    slab = x_ref[0].astype(jnp.float32)                       # (Cin_p, L)
    xcol = lax.broadcasted_iota(jnp.int32, (cin_p, M), 1) % W

    # Per-kx wrap-around masks, hoisted out of the tap loop (only boundary kx
    # need one; JAX does not CSE repeated comparisons).
    masks = {}
    for kx in range(KW):
        lo, hi = pwl - kx, W + pwl - kx
        if lo > 0 or hi < W:
            masks[kx] = (xcol >= lo) & (xcol < hi)

    chunks = []
    for ky in range(KH):
        for kx in range(KW):
            start = ky * W + kx
            c = slab[:, start:start + M]                      # (Cin_p, M) f32
            m = masks.get(kx)
            if m is not None:
                c = jnp.where(m, c, jnp.zeros_like(c))
            chunks.append(c)
    patches = jnp.concatenate(chunks, axis=0).astype(jnp.bfloat16)  # (K, M)

    # One fat GEMM: (Cout, K) @ (K, M), bf16 inputs, f32 accumulation.
    y = jnp.dot(w_ref[...], patches, preferred_element_type=jnp.float32)
    y = y + b_ref[...]                                        # folded BN bias
    if act == "relu":
        y = jnp.maximum(y, 0.0)
    else:  # sigmoid: EUP exp + approximate reciprocal
        y = pl.reciprocal(1.0 + jnp.exp(-y), approx=True)

    if pool:
        # Fused 2x2/stride-2 max pool: gather the 4 window elements of every
        # pooled pixel via 0/1 selection matmuls (bf16 MXU), then take the max.
        # (Rounding is monotone, so bf16-before-max == bf16-after-max here.)
        yb = y.astype(sel_ref.dtype)
        g00 = jnp.dot(yb, sel_ref[0], preferred_element_type=jnp.float32)
        g01 = jnp.dot(yb, sel_ref[1], preferred_element_type=jnp.float32)
        g10 = jnp.dot(yb, sel_ref[2], preferred_element_type=jnp.float32)
        g11 = jnp.dot(yb, sel_ref[3], preferred_element_type=jnp.float32)
        y = jnp.maximum(jnp.maximum(g00, g01), jnp.maximum(g10, g11))

    o_ref[0] = y.astype(o_ref.dtype)


def _run_fused_layer(slab, w_mat, bias, sel, *, KH, KW, W, M, pwl, act, pool,
                     out_dtype):
    N, cin_p, L = slab.shape
    Cout = w_mat.shape[0]
    M_out = M // 4 if pool else M
    kernel = functools.partial(_fused_layer_kernel, KH=KH, KW=KW, W=W, M=M,
                               pwl=pwl, act=act, pool=pool)
    in_specs = [
        pl.BlockSpec((1, cin_p, L), lambda n: (n, 0, 0)),
        pl.BlockSpec((Cout, w_mat.shape[1]), lambda n: (0, 0)),
        pl.BlockSpec((Cout, 1), lambda n: (0, 0)),
    ]
    args = [slab, w_mat, bias]
    if pool:
        in_specs.append(pl.BlockSpec(sel.shape, lambda n: (0, 0, 0)))
        args.append(sel)
    return pl.pallas_call(
        kernel,
        out_shape=jax.ShapeDtypeStruct((N, Cout, M_out), out_dtype),
        grid=(N,),
        in_specs=in_specs,
        out_specs=pl.BlockSpec((1, Cout, M_out), lambda n: (n, 0, 0)),
        compiler_params=pltpu.CompilerParams(
            dimension_semantics=("parallel",)),
    )(*args)


# ----------------------------------------------------------------------------
# Host-side layer preparation (weight folding, slab/selector construction)
# ----------------------------------------------------------------------------
def _ceil_to(x, m):
    return ((x + m - 1) // m) * m


def _build_slab(x_nchw, pt, pb, pwl, pwr, cin_p):
    """(N,C,H,W) -> (N, cin_p, pwl + (H+pt+pb)*W + pwr) bf16 flattened slab."""
    N, C, H, W = x_nchw.shape
    x = x_nchw
    if cin_p > C:
        x = jnp.pad(x, ((0, 0), (0, cin_p - C), (0, 0), (0, 0)))
    xp = jnp.pad(x, ((0, 0), (0, 0), (pt, pb), (0, 0)))
    flat = xp.reshape(N, cin_p, (H + pt + pb) * W)
    return jnp.pad(flat, ((0, 0), (0, 0), (pwl, pwr))).astype(jnp.bfloat16)


def _conv_weight_matrix(w_oihw, scale, cin_p):
    """Conv2d weight (Cout,Cin,KH,KW) -> (Cout, KH*KW*cin_p) bf16, BN folded."""
    Cout, Cin, KH, KW = w_oihw.shape
    w = w_oihw * scale.reshape(-1, 1, 1, 1)
    if cin_p > Cin:
        w = jnp.pad(w, ((0, 0), (0, cin_p - Cin), (0, 0), (0, 0)))
    wm = jnp.transpose(w, (0, 2, 3, 1)).reshape(Cout, KH * KW * cin_p)
    return wm.astype(jnp.bfloat16)


# ConvTranspose2d(k=3, s=2, p=1, op=1) sub-pixel decomposition:
#   output(2*py+ry, 2*px+rx) = sum over taps (dy,dx) in {0,1}^2 of
#   input(py+dy, px+dx) * W[:, :, ky(ry,dy), kx(rx,dx)]   (None => 0)
_KTAB = {(0, 0): 1, (0, 1): None, (1, 0): 2, (1, 1): 0}


def _convT_subpixel_weight(w_iohw, scale):
    """ConvT weight (Cin,Cout,3,3) -> combined (4*Cout, 4*Cin) bf16, BN folded."""
    Cin, Cout, _, _ = w_iohw.shape
    w = w_iohw * scale.reshape(1, -1, 1, 1)
    tap_rows = []
    for dy in range(2):
        for dx in range(2):
            phase_cols = []
            for ry in range(2):
                for rx in range(2):
                    ky = _KTAB[(ry, dy)]
                    kx = _KTAB[(rx, dx)]
                    if ky is None or kx is None:
                        phase_cols.append(jnp.zeros((Cin, Cout), w.dtype))
                    else:
                        phase_cols.append(w[:, :, ky, kx])
            tap_rows.append(jnp.concatenate(phase_cols, axis=1))  # (Cin, 4*Cout)
    wsub = jnp.concatenate(tap_rows, axis=0)                      # (4*Cin, 4*Cout)
    return wsub.T.astype(jnp.bfloat16)                            # (4*Cout, 4*Cin)


def _pool_selectors(H, W):
    """0/1 gather matrices for 2x2/stride-2 max pool: (4, H*W, H*W//4) bf16."""
    M, Mp = H * W, (H // 2) * (W // 2)
    sel = np.zeros((4, M, Mp), np.float32)
    for ph in range(H // 2):
        for pw in range(W // 2):
            p = ph * (W // 2) + pw
            for dy in range(2):
                for dx in range(2):
                    sel[dy * 2 + dx, (2 * ph + dy) * W + (2 * pw + dx), p] = 1.0
    return jnp.asarray(sel).astype(jnp.bfloat16)


def conv3x3_layer(x, w_oihw, scale, bias, act, pool=False,
                  out_dtype=jnp.bfloat16):
    """Conv2d(k=3,s=1,p=1) + folded BN + act (+ optional fused 2x2 maxpool)."""
    N, Cin, H, W = x.shape
    Cout = w_oihw.shape[0]
    cin_p = _ceil_to(Cin, 8)
    slab = _build_slab(x, pt=1, pb=1, pwl=1, pwr=1, cin_p=cin_p)
    wm = _conv_weight_matrix(w_oihw, scale, cin_p)
    b = bias.reshape(Cout, 1).astype(jnp.float32)
    sel = _pool_selectors(H, W) if pool else None
    M = H * W
    y = _run_fused_layer(slab, wm, b, sel, KH=3, KW=3, W=W, M=M, pwl=1,
                         act=act, pool=pool, out_dtype=out_dtype)
    if pool:
        return y.reshape(N, Cout, H // 2, W // 2)
    return y.reshape(N, Cout, H, W)


def convT3x3_s2_layer(x, w_iohw, scale, bias, act, out_dtype=jnp.bfloat16):
    """ConvTranspose2d(k=3,s=2,p=1,op=1) + folded BN + act (sub-pixel form)."""
    N, Cin, H, W = x.shape
    Cout = w_iohw.shape[1]
    slab = _build_slab(x, pt=0, pb=1, pwl=0, pwr=1, cin_p=Cin)
    wm = _convT_subpixel_weight(w_iohw, scale)                 # (4*Cout, 4*Cin)
    b = jnp.tile(bias, 4).reshape(4 * Cout, 1).astype(jnp.float32)
    M = H * W
    y = _run_fused_layer(slab, wm, b, None, KH=2, KW=2, W=W, M=M, pwl=0,
                         act=act, pool=False, out_dtype=out_dtype)
    # pixel shuffle: (N, (ry,rx,Cout), H*W) -> (N, Cout, 2H, 2W)
    y = y.reshape(N, 2, 2, Cout, H, W)
    y = jnp.transpose(y, (0, 3, 4, 1, 5, 2))
    return y.reshape(N, Cout, 2 * H, 2 * W)


def convT3x3_s1_layer(x, w_iohw, bias, act):
    """ConvTranspose2d(k=3,s=1,p=1) == conv with flipped, channel-swapped W."""
    Cout = w_iohw.shape[1]
    w_conv = jnp.transpose(w_iohw[:, :, ::-1, ::-1], (1, 0, 2, 3))
    scale = jnp.ones((Cout,), jnp.float32)
    return conv3x3_layer(x, w_conv, scale, bias, act, pool=False,
                         out_dtype=jnp.float32)


# ----------------------------------------------------------------------------
# Parameters (deterministic) and forward pass
# ----------------------------------------------------------------------------
def _fold_bn(conv_b, gamma, beta, mean, var, eps=1e-5):
    scale = gamma / jnp.sqrt(var + eps)
    bias = (conv_b - mean) * scale + beta
    return scale.astype(jnp.float32), bias.astype(jnp.float32)


def init_params(key):
    keys = jax.random.split(key, 40)
    kit = iter(keys)

    def w_init(shape, s=0.1):
        return (s * jax.random.normal(next(kit), shape)).astype(jnp.float32)

    def bn_init(c):
        gamma = (1.0 + 0.1 * jax.random.normal(next(kit), (c,))).astype(jnp.float32)
        beta = (0.1 * jax.random.normal(next(kit), (c,))).astype(jnp.float32)
        mean = (0.1 * jax.random.normal(next(kit), (c,))).astype(jnp.float32)
        var = (1.0 + 0.5 * jax.random.uniform(next(kit), (c,))).astype(jnp.float32)
        return (gamma, beta, mean, var)

    # Conv2d weights: (Cout, Cin, 3, 3); ConvTranspose2d weights: (Cin, Cout, 3, 3)
    p = {
        "w1": w_init((32, 3, 3, 3)),   "b1": w_init((32,), 0.01),  "bn1": bn_init(32),
        "w2": w_init((64, 32, 3, 3)),  "b2": w_init((64,), 0.01),  "bn2": bn_init(64),
        "w3": w_init((128, 64, 3, 3)), "b3": w_init((128,), 0.01), "bn3": bn_init(128),
        "w4": w_init((128, 64, 3, 3)), "b4": w_init((64,), 0.01),  "bn4": bn_init(64),
        "w5": w_init((64, 32, 3, 3)),  "b5": w_init((32,), 0.01),  "bn5": bn_init(32),
        "w6": w_init((32, 3, 3, 3)),   "b6": w_init((3,), 0.01),
    }
    return p


def autoencoder_forward(params, x_nchw):
    p = params
    x = x_nchw.astype(jnp.float32)

    # ---- encoder ----
    s, b = _fold_bn(p["b1"], *p["bn1"]); x = conv3x3_layer(x, p["w1"], s, b, "relu")
    s, b = _fold_bn(p["b2"], *p["bn2"]); x = conv3x3_layer(x, p["w2"], s, b, "relu", pool=True)
    s, b = _fold_bn(p["b3"], *p["bn3"]); x = conv3x3_layer(x, p["w3"], s, b, "relu", pool=True)

    # ---- decoder ----
    s, b = _fold_bn(p["b4"], *p["bn4"]); x = convT3x3_s2_layer(x, p["w4"], s, b, "relu")
    s, b = _fold_bn(p["b5"], *p["bn5"]); x = convT3x3_s2_layer(x, p["w5"], s, b, "relu")
    x = convT3x3_s1_layer(x, p["w6"], p["b6"].astype(jnp.float32), "sigmoid")
    return x  # NCHW, f32


# ----------------------------------------------------------------------------
# Pure-JAX reference (independent formulation, for a numerical sanity check)
# ----------------------------------------------------------------------------
def reference_forward(params, x_nchw):
    dn = ("NHWC", "HWIO", "NHWC")
    hp = lax.Precision.HIGHEST

    def conv(x, w_oihw, scale, bias, act):
        w = jnp.transpose(w_oihw, (2, 3, 1, 0))
        y = lax.conv_general_dilated(x, w, (1, 1), ((1, 1), (1, 1)),
                                     dimension_numbers=dn, precision=hp)
        y = y * scale.reshape(1, 1, 1, -1) + bias.reshape(1, 1, 1, -1)
        return jnp.maximum(y, 0.0) if act == "relu" else jax.nn.sigmoid(y)

    def convT(x, w_iohw, scale, bias, stride, act):
        op = stride - 1
        w = jnp.transpose(w_iohw[:, :, ::-1, ::-1], (2, 3, 0, 1))
        y = lax.conv_general_dilated(x, w, (1, 1),
                                     ((1, 1 + op), (1, 1 + op)),
                                     lhs_dilation=(stride, stride),
                                     dimension_numbers=dn, precision=hp)
        y = y * scale.reshape(1, 1, 1, -1) + bias.reshape(1, 1, 1, -1)
        return jnp.maximum(y, 0.0) if act == "relu" else jax.nn.sigmoid(y)

    def pool(x):
        return lax.reduce_window(x, jnp.array(-jnp.inf, x.dtype), lax.max,
                                 (1, 2, 2, 1), (1, 2, 2, 1), "VALID")

    p = params
    x = jnp.transpose(x_nchw, (0, 2, 3, 1)).astype(jnp.float32)
    s, b = _fold_bn(p["b1"], *p["bn1"]); x = conv(x, p["w1"], s, b, "relu")
    s, b = _fold_bn(p["b2"], *p["bn2"]); x = conv(x, p["w2"], s, b, "relu")
    x = pool(x)
    s, b = _fold_bn(p["b3"], *p["bn3"]); x = conv(x, p["w3"], s, b, "relu")
    x = pool(x)
    s, b = _fold_bn(p["b4"], *p["bn4"]); x = convT(x, p["w4"], s, b, 2, "relu")
    s, b = _fold_bn(p["b5"], *p["bn5"]); x = convT(x, p["w5"], s, b, 2, "relu")
    s6 = jnp.ones((3,), jnp.float32)
    x = convT(x, p["w6"], s6, p["b6"].astype(jnp.float32), 1, "sigmoid")
    return jnp.transpose(x, (0, 3, 1, 2))


# ----------------------------------------------------------------------------
if __name__ == "__main__":
    key = jax.random.PRNGKey(0)
    pkey, xkey = jax.random.split(key)
    params = init_params(pkey)
    x = jax.random.normal(xkey, (2, 3, 16, 16), dtype=jnp.float32)  # NCHW

    fwd = jax.jit(autoencoder_forward)
    out = jax.block_until_ready(fwd(params, x))

    assert out.shape == (2, 3, 16, 16), out.shape
    assert out.dtype == jnp.float32
    out_np = np.asarray(out)
    assert np.isfinite(out_np).all()

    ref = np.asarray(jax.block_until_ready(reference_forward(params, x)))
    err = float(np.max(np.abs(out_np - ref)))
    assert err < 5e-2, f"mismatch vs JAX reference: max abs err = {err}"

    print("KERNEL_OK")
</pallas_src>

<mosaic_0001>
module attributes {stable_mosaic.version = 11 : i64} {
  func.func @_fused_layer_kernel(%arg0: i32, %arg1: memref<1x8x290xbf16, #tpu.memory_space<vmem>>, %arg2: memref<32x72xbf16, #tpu.memory_space<vmem>>, %arg3: memref<32x1xf32, #tpu.memory_space<vmem>>, %arg4: memref<1x32x256xbf16, #tpu.memory_space<vmem>>) attributes {dimension_semantics = [#tpu.dimension_semantics<parallel>], iteration_bounds = array<i64: 2>, scalar_prefetch = 0 : i64, scratch_operands = 0 : i64, tpu.core_type = #tpu.core_type<tc>, window_params = [{transform_indices = @transform_0, window_bounds = array<i64: 1, 8, 290>}, {pipeline_mode = #tpu.pipeline_mode<synchronous>, transform_indices = @transform_1, window_bounds = array<i64: 32, 72>}, {pipeline_mode = #tpu.pipeline_mode<synchronous>, transform_indices = @transform_2, window_bounds = array<i64: 32, 1>}, {transform_indices = @transform_3, window_bounds = array<i64: 1, 32, 256>}]} {
    %c0 = arith.constant 0 : index
    %c0_0 = arith.constant 0 : index
    %c0_1 = arith.constant 0 : index
    %0 = vector.load %arg1[%c0, %c0_0, %c0_1] : memref<1x8x290xbf16, #tpu.memory_space<vmem>>, vector<1x8x290xbf16>
    %1 = vector.shape_cast %0 : vector<1x8x290xbf16> to vector<8x290xbf16>
    %2 = arith.extf %1 : vector<8x290xbf16> to vector<8x290xf32>
    %3 = tpu.iota {dimensions = array<i32: 1>} : vector<8x256xi32>
    %c16_i32 = arith.constant 16 : i32
    %c0_i32 = arith.constant 0 : i32
    %4 = arith.cmpi eq, %c16_i32, %c0_i32 : i32
    %c1_i32 = arith.constant 1 : i32
    %5 = arith.select %4, %c1_i32, %c16_i32 : i32
    %6 = vector.broadcast %5 : i32 to vector<8x256xi32>
    %7 = arith.remsi %3, %6 : vector<8x256xi32>
    %c0_i32_2 = arith.constant 0 : i32
    %8 = vector.broadcast %c0_i32_2 : i32 to vector<8x256xi32>
    %9 = arith.cmpi ne, %7, %8 : vector<8x256xi32>
    %c0_i32_3 = arith.constant 0 : i32
    %10 = vector.broadcast %c0_i32_3 : i32 to vector<8x256xi32>
    %11 = arith.cmpi slt, %7, %10 : vector<8x256xi32>
    %c0_i32_4 = arith.constant 0 : i32
    %12 = arith.cmpi slt, %5, %c0_i32_4 : i32
    %13 = vector.broadcast %12 : i1 to vector<8x256xi1>
    %14 = vector.broadcast %13 : vector<8x256xi1> to vector<8x256xi1>
    %15 = arith.xori %11, %14 : vector<8x256xi1>
    %16 = arith.andi %15, %9 : vector<8x256xi1>
    %17 = vector.broadcast %5 : i32 to vector<8x256xi32>
    %18 = arith.addi %7, %17 : vector<8x256xi32>
    %19 = arith.select %16, %18, %7 : vector<8x256xi1>, vector<8x256xi32>
    %c1_i32_5 = arith.constant 1 : i32
    %20 = vector.broadcast %c1_i32_5 : i32 to vector<8x256xi32>
    %21 = arith.cmpi sge, %19, %20 : vector<8x256xi32>
    %c17_i32 = arith.constant 17 : i32
    %22 = vector.broadcast %c17_i32 : i32 to vector<8x256xi32>
    %23 = arith.cmpi slt, %19, %22 : vector<8x256xi32>
    %24 = arith.andi %21, %23 : vector<8x256xi1>
    %c-1_i32 = arith.constant -1 : i32
    %25 = vector.broadcast %c-1_i32 : i32 to vector<8x256xi32>
    %26 = arith.cmpi sge, %19, %25 : vector<8x256xi32>
    %c15_i32 = arith.constant 15 : i32
    %27 = vector.broadcast %c15_i32 : i32 to vector<8x256xi32>
    %28 = arith.cmpi slt, %19, %27 : vector<8x256xi32>
    %29 = arith.andi %26, %28 : vector<8x256xi1>
    %30 = vector.extract_strided_slice %2 {offsets = [0, 0], sizes = [8, 256], strides = [1, 1]} : vector<8x290xf32> to vector<8x256xf32>
    %cst = arith.constant 0.000000e+00 : f32
    %31 = vector.broadcast %cst : f32 to vector<8x256xf32>
    %32 = arith.select %24, %30, %31 : vector<8x256xi1>, vector<8x256xf32>
    %33 = vector.extract_strided_slice %2 {offsets = [0, 1], sizes = [8, 256], strides = [1, 1]} : vector<8x290xf32> to vector<8x256xf32>
    %34 = vector.extract_strided_slice %2 {offsets = [0, 2], sizes = [8, 256], strides = [1, 1]} : vector<8x290xf32> to vector<8x256xf32>
    %cst_6 = arith.constant 0.000000e+00 : f32
    %35 = vector.broadcast %cst_6 : f32 to vector<8x256xf32>
    %36 = arith.select %29, %34, %35 : vector<8x256xi1>, vector<8x256xf32>
    %37 = vector.extract_strided_slice %2 {offsets = [0, 16], sizes = [8, 256], strides = [1, 1]} : vector<8x290xf32> to vector<8x256xf32>
    %cst_7 = arith.constant 0.000000e+00 : f32
    %38 = vector.broadcast %cst_7 : f32 to vector<8x256xf32>
    %39 = arith.select %24, %37, %38 : vector<8x256xi1>, vector<8x256xf32>
    %40 = vector.extract_strided_slice %2 {offsets = [0, 17], sizes = [8, 256], strides = [1, 1]} : vector<8x290xf32> to vector<8x256xf32>
    %41 = vector.extract_strided_slice %2 {offsets = [0, 18], sizes = [8, 256], strides = [1, 1]} : vector<8x290xf32> to vector<8x256xf32>
    %cst_8 = arith.constant 0.000000e+00 : f32
    %42 = vector.broadcast %cst_8 : f32 to vector<8x256xf32>
    %43 = arith.select %29, %41, %42 : vector<8x256xi1>, vector<8x256xf32>
    %44 = vector.extract_strided_slice %2 {offsets = [0, 32], sizes = [8, 256], strides = [1, 1]} : vector<8x290xf32> to vector<8x256xf32>
    %cst_9 = arith.constant 0.000000e+00 : f32
    %45 = vector.broadcast %cst_9 : f32 to vector<8x256xf32>
    %46 = arith.select %24, %44, %45 : vector<8x256xi1>, vector<8x256xf32>
    %47 = vector.extract_strided_slice %2 {offsets = [0, 33], sizes = [8, 256], strides = [1, 1]} : vector<8x290xf32> to vector<8x256xf32>
    %48 = vector.extract_strided_slice %2 {offsets = [0, 34], sizes = [8, 256], strides = [1, 1]} : vector<8x290xf32> to vector<8x256xf32>
    %cst_10 = arith.constant 0.000000e+00 : f32
    %49 = vector.broadcast %cst_10 : f32 to vector<8x256xf32>
    %50 = arith.select %29, %48, %49 : vector<8x256xi1>, vector<8x256xf32>
    %51 = tpu.concatenate %32, %33, %36, %39, %40, %43, %46, %47, %50 in 0 : vector<8x256xf32>, vector<8x256xf32>, vector<8x256xf32>, vector<8x256xf32>, vector<8x256xf32>, vector<8x256xf32>, vector<8x256xf32>, vector<8x256xf32>, vector<8x256xf32> -> vector<72x256xf32>
    %52 = arith.truncf %51 : vector<72x256xf32> to vector<72x256xbf16>
    %c0_11 = arith.constant 0 : index
    %c0_12 = arith.constant 0 : index
    %53 = vector.load %arg2[%c0_11, %c0_12] : memref<32x72xbf16, #tpu.memory_space<vmem>>, vector<32x72xbf16>
    %cst_13 = arith.constant dense<0.000000e+00> : vector<32x256xf32>
    %54 = tpu.matmul %53, %52, %cst_13 {dimension_numbers = #tpu.dot_dimension_numbers<[1], [0], [0], [1], [0, 0, 1, 1], [], []>} : vector<32x72xbf16>, vector<72x256xbf16>, vector<32x256xf32> -> vector<32x256xf32>
    %c0_14 = arith.constant 0 : index
    %c0_15 = arith.constant 0 : index
    %55 = vector.load %arg3[%c0_14, %c0_15] : memref<32x1xf32, #tpu.memory_space<vmem>>, vector<32x1xf32>
    %56 = vector.broadcast %55 : vector<32x1xf32> to vector<32x256xf32>
    %57 = arith.addf %54, %56 : vector<32x256xf32>
    %cst_16 = arith.constant 0.000000e+00 : f32
    %58 = vector.broadcast %cst_16 : f32 to vector<32x256xf32>
    %59 = arith.maximumf %57, %58 : vector<32x256xf32>
    %60 = arith.truncf %59 : vector<32x256xf32> to vector<32x256xbf16>
    %c0_17 = arith.constant 0 : index
    %c0_18 = arith.constant 0 : index
    %c0_19 = arith.constant 0 : index
    %61 = vector.load %arg4[%c0_17, %c0_18, %c0_19] : memref<1x32x256xbf16, #tpu.memory_space<vmem>>, vector<1x32x256xbf16>
    %62 = vector.shape_cast %61 : vector<1x32x256xbf16> to vector<32x256xbf16>
    %63 = vector.shape_cast %60 : vector<32x256xbf16> to vector<1x32x256xbf16>
    tpu.vector_store %arg4[%c0_17, %c0_18, %c0_19], %63 {strides = array<i32>} : memref<1x32x256xbf16, #tpu.memory_space<vmem>>, vector<1x32x256xbf16>,
    return
  }
  func.func @transform_0(%arg0: i32) -> (i32, i32, i32) {
    %c0_i32 = arith.constant 0 : i32
    %c0_i32_0 = arith.constant 0 : i32
    %c0_i32_1 = arith.constant 0 : i32
    return %arg0, %c0_i32, %c0_i32_0 : i32, i32, i32
  }
  func.func @transform_1(%arg0: i32) -> (i32, i32) {
    %c0_i32 = arith.constant 0 : i32
    %c0_i32_0 = arith.constant 0 : i32
    %c0_i32_1 = arith.constant 0 : i32
    return %c0_i32, %c0_i32_0 : i32, i32
  }
  func.func @transform_2(%arg0: i32) -> (i32, i32) {
    %c0_i32 = arith.constant 0 : i32
    %c0_i32_0 = arith.constant 0 : i32
    %c0_i32_1 = arith.constant 0 : i32
    return %c0_i32, %c0_i32_0 : i32, i32
  }
  func.func @transform_3(%arg0: i32) -> (i32, i32, i32) {
    %c0_i32 = arith.constant 0 : i32
    %c0_i32_0 = arith.constant 0 : i32
    %c0_i32_1 = arith.constant 0 : i32
    return %arg0, %c0_i32, %c0_i32_0 : i32, i32, i32
  }
}

module attributes {stable_mosaic.version = 11 : i64} {
  func.func @_fused_layer_kernel(%arg0: i32, %arg1: memref<1x32x290xbf16, #tpu.memory_space<vmem>>, %arg2: memref<64x288xbf16, #tpu.memory_space<vmem>>, %arg3: memref<64x1xf32, #tpu.memory_space<vmem>>, %arg4: memref<4x256x64xbf16, #tpu.memory_space<vmem>>, %arg5: memref<1x64x64xbf16, #tpu.memory_space<vmem>>) attributes {dimension_semantics = [#tpu.dimension_semantics<parallel>], iteration_bounds = array<i64: 2>, scalar_prefetch = 0 : i64, scratch_operands = 0 : i64, tpu.core_type = #tpu.core_type<tc>, window_params = [{transform_indices = @transform_0, window_bounds = array<i64: 1, 32, 290>}, {pipeline_mode = #tpu.pipeline_mode<synchronous>, transform_indices = @transform_1, window_bounds = array<i64: 64, 288>}, {pipeline_mode = #tpu.pipeline_mode<synchronous>, transform_indices = @transform_2, window_bounds = array<i64: 64, 1>}, {pipeline_mode = #tpu.pipeline_mode<synchronous>, transform_indices = @transform_3, window_bounds = array<i64: 4, 256, 64>}, {transform_indices = @transform_4, window_bounds = array<i64: 1, 64, 64>}]} {
    %c0 = arith.constant 0 : index
    %c0_0 = arith.constant 0 : index
    %c0_1 = arith.constant 0 : index
    %0 = vector.load %arg1[%c0, %c0_0, %c0_1] : memref<1x32x290xbf16, #tpu.memory_space<vmem>>, vector<1x32x290xbf16>
    %1 = vector.shape_cast %0 : vector<1x32x290xbf16> to vector<32x290xbf16>
    %2 = arith.extf %1 : vector<32x290xbf16> to vector<32x290xf32>
    %3 = tpu.iota {dimensions = array<i32: 1>} : vector<32x256xi32>
    %c16_i32 = arith.constant 16 : i32
    %c0_i32 = arith.constant 0 : i32
    %4 = arith.cmpi eq, %c16_i32, %c0_i32 : i32
    %c1_i32 = arith.constant 1 : i32
    %5 = arith.select %4, %c1_i32, %c16_i32 : i32
    %6 = vector.broadcast %5 : i32 to vector<32x256xi32>
    %7 = arith.remsi %3, %6 : vector<32x256xi32>
    %c0_i32_2 = arith.constant 0 : i32
    %8 = vector.broadcast %c0_i32_2 : i32 to vector<32x256xi32>
    %9 = arith.cmpi ne, %7, %8 : vector<32x256xi32>
    %c0_i32_3 = arith.constant 0 : i32
    %10 = vector.broadcast %c0_i32_3 : i32 to vector<32x256xi32>
    %11 = arith.cmpi slt, %7, %10 : vector<32x256xi32>
    %c0_i32_4 = arith.constant 0 : i32
    %12 = arith.cmpi slt, %5, %c0_i32_4 : i32
    %13 = vector.broadcast %12 : i1 to vector<32x256xi1>
    %14 = vector.broadcast %13 : vector<32x256xi1> to vector<32x256xi1>
    %15 = arith.xori %11, %14 : vector<32x256xi1>
    %16 = arith.andi %15, %9 : vector<32x256xi1>
    %17 = vector.broadcast %5 : i32 to vector<32x256xi32>
    %18 = arith.addi %7, %17 : vector<32x256xi32>
    %19 = arith.select %16, %18, %7 : vector<32x256xi1>, vector<32x256xi32>
    %c1_i32_5 = arith.constant 1 : i32
    %20 = vector.broadcast %c1_i32_5 : i32 to vector<32x256xi32>
    %21 = arith.cmpi sge, %19, %20 : vector<32x256xi32>
    %c17_i32 = arith.constant 17 : i32
    %22 = vector.broadcast %c17_i32 : i32 to vector<32x256xi32>
    %23 = arith.cmpi slt, %19, %22 : vector<32x256xi32>
    %24 = arith.andi %21, %23 : vector<32x256xi1>
    %c-1_i32 = arith.constant -1 : i32
    %25 = vector.broadcast %c-1_i32 : i32 to vector<32x256xi32>
    %26 = arith.cmpi sge, %19, %25 : vector<32x256xi32>
    %c15_i32 = arith.constant 15 : i32
    %27 = vector.broadcast %c15_i32 : i32 to vector<32x256xi32>
    %28 = arith.cmpi slt, %19, %27 : vector<32x256xi32>
    %29 = arith.andi %26, %28 : vector<32x256xi1>
    %30 = vector.extract_strided_slice %2 {offsets = [0, 0], sizes = [32, 256], strides = [1, 1]} : vector<32x290xf32> to vector<32x256xf32>
    %cst = arith.constant 0.000000e+00 : f32
    %31 = vector.broadcast %cst : f32 to vector<32x256xf32>
    %32 = arith.select %24, %30, %31 : vector<32x256xi1>, vector<32x256xf32>
    %33 = vector.extract_strided_slice %2 {offsets = [0, 1], sizes = [32, 256], strides = [1, 1]} : vector<32x290xf32> to vector<32x256xf32>
    %34 = vector.extract_strided_slice %2 {offsets = [0, 2], sizes = [32, 256], strides = [1, 1]} : vector<32x290xf32> to vector<32x256xf32>
    %cst_6 = arith.constant 0.000000e+00 : f32
    %35 = vector.broadcast %cst_6 : f32 to vector<32x256xf32>
    %36 = arith.select %29, %34, %35 : vector<32x256xi1>, vector<32x256xf32>
    %37 = vector.extract_strided_slice %2 {offsets = [0, 16], sizes = [32, 256], strides = [1, 1]} : vector<32x290xf32> to vector<32x256xf32>
    %cst_7 = arith.constant 0.000000e+00 : f32
    %38 = vector.broadcast %cst_7 : f32 to vector<32x256xf32>
    %39 = arith.select %24, %37, %38 : vector<32x256xi1>, vector<32x256xf32>
    %40 = vector.extract_strided_slice %2 {offsets = [0, 17], sizes = [32, 256], strides = [1, 1]} : vector<32x290xf32> to vector<32x256xf32>
    %41 = vector.extract_strided_slice %2 {offsets = [0, 18], sizes = [32, 256], strides = [1, 1]} : vector<32x290xf32> to vector<32x256xf32>
    %cst_8 = arith.constant 0.000000e+00 : f32
    %42 = vector.broadcast %cst_8 : f32 to vector<32x256xf32>
    %43 = arith.select %29, %41, %42 : vector<32x256xi1>, vector<32x256xf32>
    %44 = vector.extract_strided_slice %2 {offsets = [0, 32], sizes = [32, 256], strides = [1, 1]} : vector<32x290xf32> to vector<32x256xf32>
    %cst_9 = arith.constant 0.000000e+00 : f32
    %45 = vector.broadcast %cst_9 : f32 to vector<32x256xf32>
    %46 = arith.select %24, %44, %45 : vector<32x256xi1>, vector<32x256xf32>
    %47 = vector.extract_strided_slice %2 {offsets = [0, 33], sizes = [32, 256], strides = [1, 1]} : vector<32x290xf32> to vector<32x256xf32>
    %48 = vector.extract_strided_slice %2 {offsets = [0, 34], sizes = [32, 256], strides = [1, 1]} : vector<32x290xf32> to vector<32x256xf32>
    %cst_10 = arith.constant 0.000000e+00 : f32
    %49 = vector.broadcast %cst_10 : f32 to vector<32x256xf32>
    %50 = arith.select %29, %48, %49 : vector<32x256xi1>, vector<32x256xf32>
    %51 = tpu.concatenate %32, %33, %36, %39, %40, %43, %46, %47, %50 in 0 : vector<32x256xf32>, vector<32x256xf32>, vector<32x256xf32>, vector<32x256xf32>, vector<32x256xf32>, vector<32x256xf32>, vector<32x256xf32>, vector<32x256xf32>, vector<32x256xf32> -> vector<288x256xf32>
    %52 = arith.truncf %51 : vector<288x256xf32> to vector<288x256xbf16>
    %c0_11 = arith.constant 0 : index
    %c0_12 = arith.constant 0 : index
    %53 = vector.load %arg2[%c0_11, %c0_12] : memref<64x288xbf16, #tpu.memory_space<vmem>>, vector<64x288xbf16>
    %cst_13 = arith.constant dense<0.000000e+00> : vector<64x256xf32>
    %54 = tpu.matmul %53, %52, %cst_13 {dimension_numbers = #tpu.dot_dimension_numbers<[1], [0], [0], [1], [0, 0, 1, 1], [], []>} : vector<64x288xbf16>, vector<288x256xbf16>, vector<64x256xf32> -> vector<64x256xf32>
    %c0_14 = arith.constant 0 : index
    %c0_15 = arith.constant 0 : index
    %55 = vector.load %arg3[%c0_14, %c0_15] : memref<64x1xf32, #tpu.memory_space<vmem>>, vector<64x1xf32>
    %56 = vector.broadcast %55 : vector<64x1xf32> to vector<64x256xf32>
    %57 = arith.addf %54, %56 : vector<64x256xf32>
    %cst_16 = arith.constant 0.000000e+00 : f32
    %58 = vector.broadcast %cst_16 : f32 to vector<64x256xf32>
    %59 = arith.maximumf %57, %58 : vector<64x256xf32>
    %60 = arith.truncf %59 : vector<64x256xf32> to vector<64x256xbf16>
    %c0_17 = arith.constant 0 : index
    %c0_18 = arith.constant 0 : index
    %c0_19 = arith.constant 0 : index
    %61 = vector.load %arg4[%c0_17, %c0_18, %c0_19] : memref<4x256x64xbf16, #tpu.memory_space<vmem>>, vector<1x256x64xbf16>
    %62 = vector.shape_cast %61 : vector<1x256x64xbf16> to vector<256x64xbf16>
    %cst_20 = arith.constant dense<0.000000e+00> : vector<64x64xf32>
    %63 = tpu.matmul %60, %62, %cst_20 {dimension_numbers = #tpu.dot_dimension_numbers<[1], [0], [0], [1], [0, 0, 1, 1], [], []>} : vector<64x256xbf16>, vector<256x64xbf16>, vector<64x64xf32> -> vector<64x64xf32>
    %c1 = arith.constant 1 : index
    %c0_21 = arith.constant 0 : index
    %c0_22 = arith.constant 0 : index
    %64 = vector.load %arg4[%c1, %c0_21, %c0_22] : memref<4x256x64xbf16, #tpu.memory_space<vmem>>, vector<1x256x64xbf16>
    %65 = vector.shape_cast %64 : vector<1x256x64xbf16> to vector<256x64xbf16>
    %cst_23 = arith.constant dense<0.000000e+00> : vector<64x64xf32>
    %66 = tpu.matmul %60, %65, %cst_23 {dimension_numbers = #tpu.dot_dimension_numbers<[1], [0], [0], [1], [0, 0, 1, 1], [], []>} : vector<64x256xbf16>, vector<256x64xbf16>, vector<64x64xf32> -> vector<64x64xf32>
    %c2 = arith.constant 2 : index
    %c0_24 = arith.constant 0 : index
    %c0_25 = arith.constant 0 : index
    %67 = vector.load %arg4[%c2, %c0_24, %c0_25] : memref<4x256x64xbf16, #tpu.memory_space<vmem>>, vector<1x256x64xbf16>
    %68 = vector.shape_cast %67 : vector<1x256x64xbf16> to vector<256x64xbf16>
    %cst_26 = arith.constant dense<0.000000e+00> : vector<64x64xf32>
    %69 = tpu.matmul %60, %68, %cst_26 {dimension_numbers = #tpu.dot_dimension_numbers<[1], [0], [0], [1], [0, 0, 1, 1], [], []>} : vector<64x256xbf16>, vector<256x64xbf16>, vector<64x64xf32> -> vector<64x64xf32>
    %c3 = arith.constant 3 : index
    %c0_27 = arith.constant 0 : index
    %c0_28 = arith.constant 0 : index
    %70 = vector.load %arg4[%c3, %c0_27, %c0_28] : memref<4x256x64xbf16, #tpu.memory_space<vmem>>, vector<1x256x64xbf16>
    %71 = vector.shape_cast %70 : vector<1x256x64xbf16> to vector<256x64xbf16>
    %cst_29 = arith.constant dense<0.000000e+00> : vector<64x64xf32>
    %72 = tpu.matmul %60, %71, %cst_29 {dimension_numbers = #tpu.dot_dimension_numbers<[1], [0], [0], [1], [0, 0, 1, 1], [], []>} : vector<64x256xbf16>, vector<256x64xbf16>, vector<64x64xf32> -> vector<64x64xf32>
    %73 = arith.maximumf %63, %66 : vector<64x64xf32>
    %74 = arith.maximumf %69, %72 : vector<64x64xf32>
    %75 = arith.maximumf %73, %74 : vector<64x64xf32>
    %76 = arith.truncf %75 : vector<64x64xf32> to vector<64x64xbf16>
    %c0_30 = arith.constant 0 : index
    %c0_31 = arith.constant 0 : index
    %c0_32 = arith.constant 0 : index
    %77 = vector.load %arg5[%c0_30, %c0_31, %c0_32] : memref<1x64x64xbf16, #tpu.memory_space<vmem>>, vector<1x64x64xbf16>
    %78 = vector.shape_cast %77 : vector<1x64x64xbf16> to vector<64x64xbf16>
    %79 = vector.shape_cast %76 : vector<64x64xbf16> to vector<1x64x64xbf16>
    tpu.vector_store %arg5[%c0_30, %c0_31, %c0_32], %79 {strides = array<i32>} : memref<1x64x64xbf16, #tpu.memory_space<vmem>>, vector<1x64x64xbf16>,
    return
  }
  func.func @transform_0(%arg0: i32) -> (i32, i32, i32) {
    %c0_i32 = arith.constant 0 : i32
    %c0_i32_0 = arith.constant 0 : i32
    %c0_i32_1 = arith.constant 0 : i32
    return %arg0, %c0_i32, %c0_i32_0 : i32, i32, i32
  }
  func.func @transform_1(%arg0: i32) -> (i32, i32) {
    %c0_i32 = arith.constant 0 : i32
    %c0_i32_0 = arith.constant 0 : i32
    %c0_i32_1 = arith.constant 0 : i32
    return %c0_i32, %c0_i32_0 : i32, i32
  }
  func.func @transform_2(%arg0: i32) -> (i32, i32) {
    %c0_i32 = arith.constant 0 : i32
    %c0_i32_0 = arith.constant 0 : i32
    %c0_i32_1 = arith.constant 0 : i32
    return %c0_i32, %c0_i32_0 : i32, i32
  }
  func.func @transform_3(%arg0: i32) -> (i32, i32, i32) {
    %c0_i32 = arith.constant 0 : i32
    %c0_i32_0 = arith.constant 0 : i32
    %c0_i32_1 = arith.constant 0 : i32
    %c0_i32_2 = arith.constant 0 : i32
    return %c0_i32, %c0_i32_0, %c0_i32_1 : i32, i32, i32
  }
  func.func @transform_4(%arg0: i32) -> (i32, i32, i32) {
    %c0_i32 = arith.constant 0 : i32
    %c0_i32_0 = arith.constant 0 : i32
    %c0_i32_1 = arith.constant 0 : i32
    return %arg0, %c0_i32, %c0_i32_0 : i32, i32, i32
  }
}

module attributes {stable_mosaic.version = 11 : i64} {
  func.func @_fused_layer_kernel(%arg0: i32, %arg1: memref<1x64x82xbf16, #tpu.memory_space<vmem>>, %arg2: memref<128x576xbf16, #tpu.memory_space<vmem>>, %arg3: memref<128x1xf32, #tpu.memory_space<vmem>>, %arg4: memref<4x64x16xbf16, #tpu.memory_space<vmem>>, %arg5: memref<1x128x16xbf16, #tpu.memory_space<vmem>>) attributes {dimension_semantics = [#tpu.dimension_semantics<parallel>], iteration_bounds = array<i64: 2>, scalar_prefetch = 0 : i64, scratch_operands = 0 : i64, tpu.core_type = #tpu.core_type<tc>, window_params = [{transform_indices = @transform_0, window_bounds = array<i64: 1, 64, 82>}, {pipeline_mode = #tpu.pipeline_mode<synchronous>, transform_indices = @transform_1, window_bounds = array<i64: 128, 576>}, {pipeline_mode = #tpu.pipeline_mode<synchronous>, transform_indices = @transform_2, window_bounds = array<i64: 128, 1>}, {pipeline_mode = #tpu.pipeline_mode<synchronous>, transform_indices = @transform_3, window_bounds = array<i64: 4, 64, 16>}, {transform_indices = @transform_4, window_bounds = array<i64: 1, 128, 16>}]} {
    %c0 = arith.constant 0 : index
    %c0_0 = arith.constant 0 : index
    %c0_1 = arith.constant 0 : index
    %0 = vector.load %arg1[%c0, %c0_0, %c0_1] : memref<1x64x82xbf16, #tpu.memory_space<vmem>>, vector<1x64x82xbf16>
    %1 = vector.shape_cast %0 : vector<1x64x82xbf16> to vector<64x82xbf16>
    %2 = arith.extf %1 : vector<64x82xbf16> to vector<64x82xf32>
    %3 = tpu.iota {dimensions = array<i32: 1>} : vector<64x64xi32>
    %c8_i32 = arith.constant 8 : i32
    %c0_i32 = arith.constant 0 : i32
    %4 = arith.cmpi eq, %c8_i32, %c0_i32 : i32
    %c1_i32 = arith.constant 1 : i32
    %5 = arith.select %4, %c1_i32, %c8_i32 : i32
    %6 = vector.broadcast %5 : i32 to vector<64x64xi32>
    %7 = arith.remsi %3, %6 : vector<64x64xi32>
    %c0_i32_2 = arith.constant 0 : i32
    %8 = vector.broadcast %c0_i32_2 : i32 to vector<64x64xi32>
    %9 = arith.cmpi ne, %7, %8 : vector<64x64xi32>
    %c0_i32_3 = arith.constant 0 : i32
    %10 = vector.broadcast %c0_i32_3 : i32 to vector<64x64xi32>
    %11 = arith.cmpi slt, %7, %10 : vector<64x64xi32>
    %c0_i32_4 = arith.constant 0 : i32
    %12 = arith.cmpi slt, %5, %c0_i32_4 : i32
    %13 = vector.broadcast %12 : i1 to vector<64x64xi1>
    %14 = vector.broadcast %13 : vector<64x64xi1> to vector<64x64xi1>
    %15 = arith.xori %11, %14 : vector<64x64xi1>
    %16 = arith.andi %15, %9 : vector<64x64xi1>
    %17 = vector.broadcast %5 : i32 to vector<64x64xi32>
    %18 = arith.addi %7, %17 : vector<64x64xi32>
    %19 = arith.select %16, %18, %7 : vector<64x64xi1>, vector<64x64xi32>
    %c1_i32_5 = arith.constant 1 : i32
    %20 = vector.broadcast %c1_i32_5 : i32 to vector<64x64xi32>
    %21 = arith.cmpi sge, %19, %20 : vector<64x64xi32>
    %c9_i32 = arith.constant 9 : i32
    %22 = vector.broadcast %c9_i32 : i32 to vector<64x64xi32>
    %23 = arith.cmpi slt, %19, %22 : vector<64x64xi32>
    %24 = arith.andi %21, %23 : vector<64x64xi1>
    %c-1_i32 = arith.constant -1 : i32
    %25 = vector.broadcast %c-1_i32 : i32 to vector<64x64xi32>
    %26 = arith.cmpi sge, %19, %25 : vector<64x64xi32>
    %c7_i32 = arith.constant 7 : i32
    %27 = vector.broadcast %c7_i32 : i32 to vector<64x64xi32>
    %28 = arith.cmpi slt, %19, %27 : vector<64x64xi32>
    %29 = arith.andi %26, %28 : vector<64x64xi1>
    %30 = vector.extract_strided_slice %2 {offsets = [0, 0], sizes = [64, 64], strides = [1, 1]} : vector<64x82xf32> to vector<64x64xf32>
    %cst = arith.constant 0.000000e+00 : f32
    %31 = vector.broadcast %cst : f32 to vector<64x64xf32>
    %32 = arith.select %24, %30, %31 : vector<64x64xi1>, vector<64x64xf32>
    %33 = vector.extract_strided_slice %2 {offsets = [0, 1], sizes = [64, 64], strides = [1, 1]} : vector<64x82xf32> to vector<64x64xf32>
    %34 = vector.extract_strided_slice %2 {offsets = [0, 2], sizes = [64, 64], strides = [1, 1]} : vector<64x82xf32> to vector<64x64xf32>
    %cst_6 = arith.constant 0.000000e+00 : f32
    %35 = vector.broadcast %cst_6 : f32 to vector<64x64xf32>
    %36 = arith.select %29, %34, %35 : vector<64x64xi1>, vector<64x64xf32>
    %37 = vector.extract_strided_slice %2 {offsets = [0, 8], sizes = [64, 64], strides = [1, 1]} : vector<64x82xf32> to vector<64x64xf32>
    %cst_7 = arith.constant 0.000000e+00 : f32
    %38 = vector.broadcast %cst_7 : f32 to vector<64x64xf32>
    %39 = arith.select %24, %37, %38 : vector<64x64xi1>, vector<64x64xf32>
    %40 = vector.extract_strided_slice %2 {offsets = [0, 9], sizes = [64, 64], strides = [1, 1]} : vector<64x82xf32> to vector<64x64xf32>
    %41 = vector.extract_strided_slice %2 {offsets = [0, 10], sizes = [64, 64], strides = [1, 1]} : vector<64x82xf32> to vector<64x64xf32>
    %cst_8 = arith.constant 0.000000e+00 : f32
    %42 = vector.broadcast %cst_8 : f32 to vector<64x64xf32>
    %43 = arith.select %29, %41, %42 : vector<64x64xi1>, vector<64x64xf32>
    %44 = vector.extract_strided_slice %2 {offsets = [0, 16], sizes = [64, 64], strides = [1, 1]} : vector<64x82xf32> to vector<64x64xf32>
    %cst_9 = arith.constant 0.000000e+00 : f32
    %45 = vector.broadcast %cst_9 : f32 to vector<64x64xf32>
    %46 = arith.select %24, %44, %45 : vector<64x64xi1>, vector<64x64xf32>
    %47 = vector.extract_strided_slice %2 {offsets = [0, 17], sizes = [64, 64], strides = [1, 1]} : vector<64x82xf32> to vector<64x64xf32>
    %48 = vector.extract_strided_slice %2 {offsets = [0, 18], sizes = [64, 64], strides = [1, 1]} : vector<64x82xf32> to vector<64x64xf32>
    %cst_10 = arith.constant 0.000000e+00 : f32
    %49 = vector.broadcast %cst_10 : f32 to vector<64x64xf32>
    %50 = arith.select %29, %48, %49 : vector<64x64xi1>, vector<64x64xf32>
    %51 = tpu.concatenate %32, %33, %36, %39, %40, %43, %46, %47, %50 in 0 : vector<64x64xf32>, vector<64x64xf32>, vector<64x64xf32>, vector<64x64xf32>, vector<64x64xf32>, vector<64x64xf32>, vector<64x64xf32>, vector<64x64xf32>, vector<64x64xf32> -> vector<576x64xf32>
    %52 = arith.truncf %51 : vector<576x64xf32> to vector<576x64xbf16>
    %c0_11 = arith.constant 0 : index
    %c0_12 = arith.constant 0 : index
    %53 = vector.load %arg2[%c0_11, %c0_12] : memref<128x576xbf16, #tpu.memory_space<vmem>>, vector<128x576xbf16>
    %cst_13 = arith.constant dense<0.000000e+00> : vector<128x64xf32>
    %54 = tpu.matmul %53, %52, %cst_13 {dimension_numbers = #tpu.dot_dimension_numbers<[1], [0], [0], [1], [0, 0, 1, 1], [], []>} : vector<128x576xbf16>, vector<576x64xbf16>, vector<128x64xf32> -> vector<128x64xf32>
    %c0_14 = arith.constant 0 : index
    %c0_15 = arith.constant 0 : index
    %55 = vector.load %arg3[%c0_14, %c0_15] : memref<128x1xf32, #tpu.memory_space<vmem>>, vector<128x1xf32>
    %56 = vector.broadcast %55 : vector<128x1xf32> to vector<128x64xf32>
    %57 = arith.addf %54, %56 : vector<128x64xf32>
    %cst_16 = arith.constant 0.000000e+00 : f32
    %58 = vector.broadcast %cst_16 : f32 to vector<128x64xf32>
    %59 = arith.maximumf %57, %58 : vector<128x64xf32>
    %60 = arith.truncf %59 : vector<128x64xf32> to vector<128x64xbf16>
    %c0_17 = arith.constant 0 : index
    %c0_18 = arith.constant 0 : index
    %c0_19 = arith.constant 0 : index
    %61 = vector.load %arg4[%c0_17, %c0_18, %c0_19] : memref<4x64x16xbf16, #tpu.memory_space<vmem>>, vector<1x64x16xbf16>
    %62 = vector.shape_cast %61 : vector<1x64x16xbf16> to vector<64x16xbf16>
    %cst_20 = arith.constant dense<0.000000e+00> : vector<128x16xf32>
    %63 = tpu.matmul %60, %62, %cst_20 {dimension_numbers = #tpu.dot_dimension_numbers<[1], [0], [0], [1], [0, 0, 1, 1], [], []>} : vector<128x64xbf16>, vector<64x16xbf16>, vector<128x16xf32> -> vector<128x16xf32>
    %c1 = arith.constant 1 : index
    %c0_21 = arith.constant 0 : index
    %c0_22 = arith.constant 0 : index
    %64 = vector.load %arg4[%c1, %c0_21, %c0_22] : memref<4x64x16xbf16, #tpu.memory_space<vmem>>, vector<1x64x16xbf16>
    %65 = vector.shape_cast %64 : vector<1x64x16xbf16> to vector<64x16xbf16>
    %cst_23 = arith.constant dense<0.000000e+00> : vector<128x16xf32>
    %66 = tpu.matmul %60, %65, %cst_23 {dimension_numbers = #tpu.dot_dimension_numbers<[1], [0], [0], [1], [0, 0, 1, 1], [], []>} : vector<128x64xbf16>, vector<64x16xbf16>, vector<128x16xf32> -> vector<128x16xf32>
    %c2 = arith.constant 2 : index
    %c0_24 = arith.constant 0 : index
    %c0_25 = arith.constant 0 : index
    %67 = vector.load %arg4[%c2, %c0_24, %c0_25] : memref<4x64x16xbf16, #tpu.memory_space<vmem>>, vector<1x64x16xbf16>
    %68 = vector.shape_cast %67 : vector<1x64x16xbf16> to vector<64x16xbf16>
    %cst_26 = arith.constant dense<0.000000e+00> : vector<128x16xf32>
    %69 = tpu.matmul %60, %68, %cst_26 {dimension_numbers = #tpu.dot_dimension_numbers<[1], [0], [0], [1], [0, 0, 1, 1], [], []>} : vector<128x64xbf16>, vector<64x16xbf16>, vector<128x16xf32> -> vector<128x16xf32>
    %c3 = arith.constant 3 : index
    %c0_27 = arith.constant 0 : index
    %c0_28 = arith.constant 0 : index
    %70 = vector.load %arg4[%c3, %c0_27, %c0_28] : memref<4x64x16xbf16, #tpu.memory_space<vmem>>, vector<1x64x16xbf16>
    %71 = vector.shape_cast %70 : vector<1x64x16xbf16> to vector<64x16xbf16>
    %cst_29 = arith.constant dense<0.000000e+00> : vector<128x16xf32>
    %72 = tpu.matmul %60, %71, %cst_29 {dimension_numbers = #tpu.dot_dimension_numbers<[1], [0], [0], [1], [0, 0, 1, 1], [], []>} : vector<128x64xbf16>, vector<64x16xbf16>, vector<128x16xf32> -> vector<128x16xf32>
    %73 = arith.maximumf %63, %66 : vector<128x16xf32>
    %74 = arith.maximumf %69, %72 : vector<128x16xf32>
    %75 = arith.maximumf %73, %74 : vector<128x16xf32>
    %76 = arith.truncf %75 : vector<128x16xf32> to vector<128x16xbf16>
    %c0_30 = arith.constant 0 : index
    %c0_31 = arith.constant 0 : index
    %c0_32 = arith.constant 0 : index
    %77 = vector.load %arg5[%c0_30, %c0_31, %c0_32] : memref<1x128x16xbf16, #tpu.memory_space<vmem>>, vector<1x128x16xbf16>
    %78 = vector.shape_cast %77 : vector<1x128x16xbf16> to vector<128x16xbf16>
    %79 = vector.shape_cast %76 : vector<128x16xbf16> to vector<1x128x16xbf16>
    tpu.vector_store %arg5[%c0_30, %c0_31, %c0_32], %79 {strides = array<i32>} : memref<1x128x16xbf16, #tpu.memory_space<vmem>>, vector<1x128x16xbf16>,
    return
  }
  func.func @transform_0(%arg0: i32) -> (i32, i32, i32) {
    %c0_i32 = arith.constant 0 : i32
    %c0_i32_0 = arith.constant 0 : i32
    %c0_i32_1 = arith.constant 0 : i32
    return %arg0, %c0_i32, %c0_i32_0 : i32, i32, i32
  }
  func.func @transform_1(%arg0: i32) -> (i32, i32) {
    %c0_i32 = arith.constant 0 : i32
    %c0_i32_0 = arith.constant 0 : i32
    %c0_i32_1 = arith.constant 0 : i32
    return %c0_i32, %c0_i32_0 : i32, i32
  }
  func.func @transform_2(%arg0: i32) -> (i32, i32) {
    %c0_i32 = arith.constant 0 : i32
    %c0_i32_0 = arith.constant 0 : i32
    %c0_i32_1 = arith.constant 0 : i32
    return %c0_i32, %c0_i32_0 : i32, i32
  }
  func.func @transform_3(%arg0: i32) -> (i32, i32, i32) {
    %c0_i32 = arith.constant 0 : i32
    %c0_i32_0 = arith.constant 0 : i32
    %c0_i32_1 = arith.constant 0 : i32
    %c0_i32_2 = arith.constant 0 : i32
    return %c0_i32, %c0_i32_0, %c0_i32_1 : i32, i32, i32
  }
  func.func @transform_4(%arg0: i32) -> (i32, i32, i32) {
    %c0_i32 = arith.constant 0 : i32
    %c0_i32_0 = arith.constant 0 : i32
    %c0_i32_1 = arith.constant 0 : i32
    return %arg0, %c0_i32, %c0_i32_0 : i32, i32, i32
  }
}

module attributes {stable_mosaic.version = 11 : i64} {
  func.func @_fused_layer_kernel(%arg0: i32, %arg1: memref<1x128x21xbf16, #tpu.memory_space<vmem>>, %arg2: memref<256x512xbf16, #tpu.memory_space<vmem>>, %arg3: memref<256x1xf32, #tpu.memory_space<vmem>>, %arg4: memref<1x256x16xbf16, #tpu.memory_space<vmem>>) attributes {dimension_semantics = [#tpu.dimension_semantics<parallel>], iteration_bounds = array<i64: 2>, scalar_prefetch = 0 : i64, scratch_operands = 0 : i64, tpu.core_type = #tpu.core_type<tc>, window_params = [{transform_indices = @transform_0, window_bounds = array<i64: 1, 128, 21>}, {pipeline_mode = #tpu.pipeline_mode<synchronous>, transform_indices = @transform_1, window_bounds = array<i64: 256, 512>}, {pipeline_mode = #tpu.pipeline_mode<synchronous>, transform_indices = @transform_2, window_bounds = array<i64: 256, 1>}, {transform_indices = @transform_3, window_bounds = array<i64: 1, 256, 16>}]} {
    %c0 = arith.constant 0 : index
    %c0_0 = arith.constant 0 : index
    %c0_1 = arith.constant 0 : index
    %0 = vector.load %arg1[%c0, %c0_0, %c0_1] : memref<1x128x21xbf16, #tpu.memory_space<vmem>>, vector<1x128x21xbf16>
    %1 = vector.shape_cast %0 : vector<1x128x21xbf16> to vector<128x21xbf16>
    %2 = arith.extf %1 : vector<128x21xbf16> to vector<128x21xf32>
    %3 = tpu.iota {dimensions = array<i32: 1>} : vector<128x16xi32>
    %c4_i32 = arith.constant 4 : i32
    %c0_i32 = arith.constant 0 : i32
    %4 = arith.cmpi eq, %c4_i32, %c0_i32 : i32
    %c1_i32 = arith.constant 1 : i32
    %5 = arith.select %4, %c1_i32, %c4_i32 : i32
    %6 = vector.broadcast %5 : i32 to vector<128x16xi32>
    %7 = arith.remsi %3, %6 : vector<128x16xi32>
    %c0_i32_2 = arith.constant 0 : i32
    %8 = vector.broadcast %c0_i32_2 : i32 to vector<128x16xi32>
    %9 = arith.cmpi ne, %7, %8 : vector<128x16xi32>
    %c0_i32_3 = arith.constant 0 : i32
    %10 = vector.broadcast %c0_i32_3 : i32 to vector<128x16xi32>
    %11 = arith.cmpi slt, %7, %10 : vector<128x16xi32>
    %c0_i32_4 = arith.constant 0 : i32
    %12 = arith.cmpi slt, %5, %c0_i32_4 : i32
    %13 = vector.broadcast %12 : i1 to vector<128x16xi1>
    %14 = vector.broadcast %13 : vector<128x16xi1> to vector<128x16xi1>
    %15 = arith.xori %11, %14 : vector<128x16xi1>
    %16 = arith.andi %15, %9 : vector<128x16xi1>
    %17 = vector.broadcast %5 : i32 to vector<128x16xi32>
    %18 = arith.addi %7, %17 : vector<128x16xi32>
    %19 = arith.select %16, %18, %7 : vector<128x16xi1>, vector<128x16xi32>
    %c-1_i32 = arith.constant -1 : i32
    %20 = vector.broadcast %c-1_i32 : i32 to vector<128x16xi32>
    %21 = arith.cmpi sge, %19, %20 : vector<128x16xi32>
    %c3_i32 = arith.constant 3 : i32
    %22 = vector.broadcast %c3_i32 : i32 to vector<128x16xi32>
    %23 = arith.cmpi slt, %19, %22 : vector<128x16xi32>
    %24 = arith.andi %21, %23 : vector<128x16xi1>
    %25 = vector.extract_strided_slice %2 {offsets = [0, 0], sizes = [128, 16], strides = [1, 1]} : vector<128x21xf32> to vector<128x16xf32>
    %26 = vector.extract_strided_slice %2 {offsets = [0, 1], sizes = [128, 16], strides = [1, 1]} : vector<128x21xf32> to vector<128x16xf32>
    %cst = arith.constant 0.000000e+00 : f32
    %27 = vector.broadcast %cst : f32 to vector<128x16xf32>
    %28 = arith.select %24, %26, %27 : vector<128x16xi1>, vector<128x16xf32>
    %29 = vector.extract_strided_slice %2 {offsets = [0, 4], sizes = [128, 16], strides = [1, 1]} : vector<128x21xf32> to vector<128x16xf32>
    %30 = vector.extract_strided_slice %2 {offsets = [0, 5], sizes = [128, 16], strides = [1, 1]} : vector<128x21xf32> to vector<128x16xf32>
    %cst_5 = arith.constant 0.000000e+00 : f32
    %31 = vector.broadcast %cst_5 : f32 to vector<128x16xf32>
    %32 = arith.select %24, %30, %31 : vector<128x16xi1>, vector<128x16xf32>
    %33 = tpu.concatenate %25, %28, %29, %32 in 0 : vector<128x16xf32>, vector<128x16xf32>, vector<128x16xf32>, vector<128x16xf32> -> vector<512x16xf32>
    %34 = arith.truncf %33 : vector<512x16xf32> to vector<512x16xbf16>
    %c0_6 = arith.constant 0 : index
    %c0_7 = arith.constant 0 : index
    %35 = vector.load %arg2[%c0_6, %c0_7] : memref<256x512xbf16, #tpu.memory_space<vmem>>, vector<256x512xbf16>
    %cst_8 = arith.constant dense<0.000000e+00> : vector<256x16xf32>
    %36 = tpu.matmul %35, %34, %cst_8 {dimension_numbers = #tpu.dot_dimension_numbers<[1], [0], [0], [1], [0, 0, 1, 1], [], []>} : vector<256x512xbf16>, vector<512x16xbf16>, vector<256x16xf32> -> vector<256x16xf32>
    %c0_9 = arith.constant 0 : index
    %c0_10 = arith.constant 0 : index
    %37 = vector.load %arg3[%c0_9, %c0_10] : memref<256x1xf32, #tpu.memory_space<vmem>>, vector<256x1xf32>
    %38 = vector.broadcast %37 : vector<256x1xf32> to vector<256x16xf32>
    %39 = arith.addf %36, %38 : vector<256x16xf32>
    %cst_11 = arith.constant 0.000000e+00 : f32
    %40 = vector.broadcast %cst_11 : f32 to vector<256x16xf32>
    %41 = arith.maximumf %39, %40 : vector<256x16xf32>
    %42 = arith.truncf %41 : vector<256x16xf32> to vector<256x16xbf16>
    %c0_12 = arith.constant 0 : index
    %c0_13 = arith.constant 0 : index
    %c0_14 = arith.constant 0 : index
    %43 = vector.load %arg4[%c0_12, %c0_13, %c0_14] : memref<1x256x16xbf16, #tpu.memory_space<vmem>>, vector<1x256x16xbf16>
    %44 = vector.shape_cast %43 : vector<1x256x16xbf16> to vector<256x16xbf16>
    %45 = vector.shape_cast %42 : vector<256x16xbf16> to vector<1x256x16xbf16>
    tpu.vector_store %arg4[%c0_12, %c0_13, %c0_14], %45 {strides = array<i32>} : memref<1x256x16xbf16, #tpu.memory_space<vmem>>, vector<1x256x16xbf16>,
    return
  }
  func.func @transform_0(%arg0: i32) -> (i32, i32, i32) {
    %c0_i32 = arith.constant 0 : i32
    %c0_i32_0 = arith.constant 0 : i32
    %c0_i32_1 = arith.constant 0 : i32
    return %arg0, %c0_i32, %c0_i32_0 : i32, i32, i32
  }
  func.func @transform_1(%arg0: i32) -> (i32, i32) {
    %c0_i32 = arith.constant 0 : i32
    %c0_i32_0 = arith.constant 0 : i32
    %c0_i32_1 = arith.constant 0 : i32
    return %c0_i32, %c0_i32_0 : i32, i32
  }
  func.func @transform_2(%arg0: i32) -> (i32, i32) {
    %c0_i32 = arith.constant 0 : i32
    %c0_i32_0 = arith.constant 0 : i32
    %c0_i32_1 = arith.constant 0 : i32
    return %c0_i32, %c0_i32_0 : i32, i32
  }
  func.func @transform_3(%arg0: i32) -> (i32, i32, i32) {
    %c0_i32 = arith.constant 0 : i32
    %c0_i32_0 = arith.constant 0 : i32
    %c0_i32_1 = arith.constant 0 : i32
    return %arg0, %c0_i32, %c0_i32_0 : i32, i32, i32
  }
}

module attributes {stable_mosaic.version = 11 : i64} {
  func.func @_fused_layer_kernel(%arg0: i32, %arg1: memref<1x64x73xbf16, #tpu.memory_space<vmem>>, %arg2: memref<128x256xbf16, #tpu.memory_space<vmem>>, %arg3: memref<128x1xf32, #tpu.memory_space<vmem>>, %arg4: memref<1x128x64xbf16, #tpu.memory_space<vmem>>) attributes {dimension_semantics = [#tpu.dimension_semantics<parallel>], iteration_bounds = array<i64: 2>, scalar_prefetch = 0 : i64, scratch_operands = 0 : i64, tpu.core_type = #tpu.core_type<tc>, window_params = [{transform_indices = @transform_0, window_bounds = array<i64: 1, 64, 73>}, {pipeline_mode = #tpu.pipeline_mode<synchronous>, transform_indices = @transform_1, window_bounds = array<i64: 128, 256>}, {pipeline_mode = #tpu.pipeline_mode<synchronous>, transform_indices = @transform_2, window_bounds = array<i64: 128, 1>}, {transform_indices = @transform_3, window_bounds = array<i64: 1, 128, 64>}]} {
    %c0 = arith.constant 0 : index
    %c0_0 = arith.constant 0 : index
    %c0_1 = arith.constant 0 : index
    %0 = vector.load %arg1[%c0, %c0_0, %c0_1] : memref<1x64x73xbf16, #tpu.memory_space<vmem>>, vector<1x64x73xbf16>
    %1 = vector.shape_cast %0 : vector<1x64x73xbf16> to vector<64x73xbf16>
    %2 = arith.extf %1 : vector<64x73xbf16> to vector<64x73xf32>
    %3 = tpu.iota {dimensions = array<i32: 1>} : vector<64x64xi32>
    %c8_i32 = arith.constant 8 : i32
    %c0_i32 = arith.constant 0 : i32
    %4 = arith.cmpi eq, %c8_i32, %c0_i32 : i32
    %c1_i32 = arith.constant 1 : i32
    %5 = arith.select %4, %c1_i32, %c8_i32 : i32
    %6 = vector.broadcast %5 : i32 to vector<64x64xi32>
    %7 = arith.remsi %3, %6 : vector<64x64xi32>
    %c0_i32_2 = arith.constant 0 : i32
    %8 = vector.broadcast %c0_i32_2 : i32 to vector<64x64xi32>
    %9 = arith.cmpi ne, %7, %8 : vector<64x64xi32>
    %c0_i32_3 = arith.constant 0 : i32
    %10 = vector.broadcast %c0_i32_3 : i32 to vector<64x64xi32>
    %11 = arith.cmpi slt, %7, %10 : vector<64x64xi32>
    %c0_i32_4 = arith.constant 0 : i32
    %12 = arith.cmpi slt, %5, %c0_i32_4 : i32
    %13 = vector.broadcast %12 : i1 to vector<64x64xi1>
    %14 = vector.broadcast %13 : vector<64x64xi1> to vector<64x64xi1>
    %15 = arith.xori %11, %14 : vector<64x64xi1>
    %16 = arith.andi %15, %9 : vector<64x64xi1>
    %17 = vector.broadcast %5 : i32 to vector<64x64xi32>
    %18 = arith.addi %7, %17 : vector<64x64xi32>
    %19 = arith.select %16, %18, %7 : vector<64x64xi1>, vector<64x64xi32>
    %c-1_i32 = arith.constant -1 : i32
    %20 = vector.broadcast %c-1_i32 : i32 to vector<64x64xi32>
    %21 = arith.cmpi sge, %19, %20 : vector<64x64xi32>
    %c7_i32 = arith.constant 7 : i32
    %22 = vector.broadcast %c7_i32 : i32 to vector<64x64xi32>
    %23 = arith.cmpi slt, %19, %22 : vector<64x64xi32>
    %24 = arith.andi %21, %23 : vector<64x64xi1>
    %25 = vector.extract_strided_slice %2 {offsets = [0, 0], sizes = [64, 64], strides = [1, 1]} : vector<64x73xf32> to vector<64x64xf32>
    %26 = vector.extract_strided_slice %2 {offsets = [0, 1], sizes = [64, 64], strides = [1, 1]} : vector<64x73xf32> to vector<64x64xf32>
    %cst = arith.constant 0.000000e+00 : f32
    %27 = vector.broadcast %cst : f32 to vector<64x64xf32>
    %28 = arith.select %24, %26, %27 : vector<64x64xi1>, vector<64x64xf32>
    %29 = vector.extract_strided_slice %2 {offsets = [0, 8], sizes = [64, 64], strides = [1, 1]} : vector<64x73xf32> to vector<64x64xf32>
    %30 = vector.extract_strided_slice %2 {offsets = [0, 9], sizes = [64, 64], strides = [1, 1]} : vector<64x73xf32> to vector<64x64xf32>
    %cst_5 = arith.constant 0.000000e+00 : f32
    %31 = vector.broadcast %cst_5 : f32 to vector<64x64xf32>
    %32 = arith.select %24, %30, %31 : vector<64x64xi1>, vector<64x64xf32>
    %33 = tpu.concatenate %25, %28, %29, %32 in 0 : vector<64x64xf32>, vector<64x64xf32>, vector<64x64xf32>, vector<64x64xf32> -> vector<256x64xf32>
    %34 = arith.truncf %33 : vector<256x64xf32> to vector<256x64xbf16>
    %c0_6 = arith.constant 0 : index
    %c0_7 = arith.constant 0 : index
    %35 = vector.load %arg2[%c0_6, %c0_7] : memref<128x256xbf16, #tpu.memory_space<vmem>>, vector<128x256xbf16>
    %cst_8 = arith.constant dense<0.000000e+00> : vector<128x64xf32>
    %36 = tpu.matmul %35, %34, %cst_8 {dimension_numbers = #tpu.dot_dimension_numbers<[1], [0], [0], [1], [0, 0, 1, 1], [], []>} : vector<128x256xbf16>, vector<256x64xbf16>, vector<128x64xf32> -> vector<128x64xf32>
    %c0_9 = arith.constant 0 : index
    %c0_10 = arith.constant 0 : index
    %37 = vector.load %arg3[%c0_9, %c0_10] : memref<128x1xf32, #tpu.memory_space<vmem>>, vector<128x1xf32>
    %38 = vector.broadcast %37 : vector<128x1xf32> to vector<128x64xf32>
    %39 = arith.addf %36, %38 : vector<128x64xf32>
    %cst_11 = arith.constant 0.000000e+00 : f32
    %40 = vector.broadcast %cst_11 : f32 to vector<128x64xf32>
    %41 = arith.maximumf %39, %40 : vector<128x64xf32>
    %42 = arith.truncf %41 : vector<128x64xf32> to vector<128x64xbf16>
    %c0_12 = arith.constant 0 : index
    %c0_13 = arith.constant 0 : index
    %c0_14 = arith.constant 0 : index
    %43 = vector.load %arg4[%c0_12, %c0_13, %c0_14] : memref<1x128x64xbf16, #tpu.memory_space<vmem>>, vector<1x128x64xbf16>
    %44 = vector.shape_cast %43 : vector<1x128x64xbf16> to vector<128x64xbf16>
    %45 = vector.shape_cast %42 : vector<128x64xbf16> to vector<1x128x64xbf16>
    tpu.vector_store %arg4[%c0_12, %c0_13, %c0_14], %45 {strides = array<i32>} : memref<1x128x64xbf16, #tpu.memory_space<vmem>>, vector<1x128x64xbf16>,
    return
  }
  func.func @transform_0(%arg0: i32) -> (i32, i32, i32) {
    %c0_i32 = arith.constant 0 : i32
    %c0_i32_0 = arith.constant 0 : i32
    %c0_i32_1 = arith.constant 0 : i32
    return %arg0, %c0_i32, %c0_i32_0 : i32, i32, i32
  }
  func.func @transform_1(%arg0: i32) -> (i32, i32) {
    %c0_i32 = arith.constant 0 : i32
    %c0_i32_0 = arith.constant 0 : i32
    %c0_i32_1 = arith.constant 0 : i32
    return %c0_i32, %c0_i32_0 : i32, i32
  }
  func.func @transform_2(%arg0: i32) -> (i32, i32) {
    %c0_i32 = arith.constant 0 : i32
    %c0_i32_0 = arith.constant 0 : i32
    %c0_i32_1 = arith.constant 0 : i32
    return %c0_i32, %c0_i32_0 : i32, i32
  }
  func.func @transform_3(%arg0: i32) -> (i32, i32, i32) {
    %c0_i32 = arith.constant 0 : i32
    %c0_i32_0 = arith.constant 0 : i32
    %c0_i32_1 = arith.constant 0 : i32
    return %arg0, %c0_i32, %c0_i32_0 : i32, i32, i32
  }
}

module attributes {stable_mosaic.version = 11 : i64} {
  func.func @_fused_layer_kernel(%arg0: i32, %arg1: memref<1x32x290xbf16, #tpu.memory_space<vmem>>, %arg2: memref<3x288xbf16, #tpu.memory_space<vmem>>, %arg3: memref<3x1xf32, #tpu.memory_space<vmem>>, %arg4: memref<1x3x256xf32, #tpu.memory_space<vmem>>) attributes {dimension_semantics = [#tpu.dimension_semantics<parallel>], iteration_bounds = array<i64: 2>, scalar_prefetch = 0 : i64, scratch_operands = 0 : i64, tpu.core_type = #tpu.core_type<tc>, window_params = [{transform_indices = @transform_0, window_bounds = array<i64: 1, 32, 290>}, {pipeline_mode = #tpu.pipeline_mode<synchronous>, transform_indices = @transform_1, window_bounds = array<i64: 3, 288>}, {pipeline_mode = #tpu.pipeline_mode<synchronous>, transform_indices = @transform_2, window_bounds = array<i64: 3, 1>}, {transform_indices = @transform_3, window_bounds = array<i64: 1, 3, 256>}]} {
    %c0 = arith.constant 0 : index
    %c0_0 = arith.constant 0 : index
    %c0_1 = arith.constant 0 : index
    %0 = vector.load %arg1[%c0, %c0_0, %c0_1] : memref<1x32x290xbf16, #tpu.memory_space<vmem>>, vector<1x32x290xbf16>
    %1 = vector.shape_cast %0 : vector<1x32x290xbf16> to vector<32x290xbf16>
    %2 = arith.extf %1 : vector<32x290xbf16> to vector<32x290xf32>
    %3 = tpu.iota {dimensions = array<i32: 1>} : vector<32x256xi32>
    %c16_i32 = arith.constant 16 : i32
    %c0_i32 = arith.constant 0 : i32
    %4 = arith.cmpi eq, %c16_i32, %c0_i32 : i32
    %c1_i32 = arith.constant 1 : i32
    %5 = arith.select %4, %c1_i32, %c16_i32 : i32
    %6 = vector.broadcast %5 : i32 to vector<32x256xi32>
    %7 = arith.remsi %3, %6 : vector<32x256xi32>
    %c0_i32_2 = arith.constant 0 : i32
    %8 = vector.broadcast %c0_i32_2 : i32 to vector<32x256xi32>
    %9 = arith.cmpi ne, %7, %8 : vector<32x256xi32>
    %c0_i32_3 = arith.constant 0 : i32
    %10 = vector.broadcast %c0_i32_3 : i32 to vector<32x256xi32>
    %11 = arith.cmpi slt, %7, %10 : vector<32x256xi32>
    %c0_i32_4 = arith.constant 0 : i32
    %12 = arith.cmpi slt, %5, %c0_i32_4 : i32
    %13 = vector.broadcast %12 : i1 to vector<32x256xi1>
    %14 = vector.broadcast %13 : vector<32x256xi1> to vector<32x256xi1>
    %15 = arith.xori %11, %14 : vector<32x256xi1>
    %16 = arith.andi %15, %9 : vector<32x256xi1>
    %17 = vector.broadcast %5 : i32 to vector<32x256xi32>
    %18 = arith.addi %7, %17 : vector<32x256xi32>
    %19 = arith.select %16, %18, %7 : vector<32x256xi1>, vector<32x256xi32>
    %c1_i32_5 = arith.constant 1 : i32
    %20 = vector.broadcast %c1_i32_5 : i32 to vector<32x256xi32>
    %21 = arith.cmpi sge, %19, %20 : vector<32x256xi32>
    %c17_i32 = arith.constant 17 : i32
    %22 = vector.broadcast %c17_i32 : i32 to vector<32x256xi32>
    %23 = arith.cmpi slt, %19, %22 : vector<32x256xi32>
    %24 = arith.andi %21, %23 : vector<32x256xi1>
    %c-1_i32 = arith.constant -1 : i32
    %25 = vector.broadcast %c-1_i32 : i32 to vector<32x256xi32>
    %26 = arith.cmpi sge, %19, %25 : vector<32x256xi32>
    %c15_i32 = arith.constant 15 : i32
    %27 = vector.broadcast %c15_i32 : i32 to vector<32x256xi32>
    %28 = arith.cmpi slt, %19, %27 : vector<32x256xi32>
    %29 = arith.andi %26, %28 : vector<32x256xi1>
    %30 = vector.extract_strided_slice %2 {offsets = [0, 0], sizes = [32, 256], strides = [1, 1]} : vector<32x290xf32> to vector<32x256xf32>
    %cst = arith.constant 0.000000e+00 : f32
    %31 = vector.broadcast %cst : f32 to vector<32x256xf32>
    %32 = arith.select %24, %30, %31 : vector<32x256xi1>, vector<32x256xf32>
    %33 = vector.extract_strided_slice %2 {offsets = [0, 1], sizes = [32, 256], strides = [1, 1]} : vector<32x290xf32> to vector<32x256xf32>
    %34 = vector.extract_strided_slice %2 {offsets = [0, 2], sizes = [32, 256], strides = [1, 1]} : vector<32x290xf32> to vector<32x256xf32>
    %cst_6 = arith.constant 0.000000e+00 : f32
    %35 = vector.broadcast %cst_6 : f32 to vector<32x256xf32>
    %36 = arith.select %29, %34, %35 : vector<32x256xi1>, vector<32x256xf32>
    %37 = vector.extract_strided_slice %2 {offsets = [0, 16], sizes = [32, 256], strides = [1, 1]} : vector<32x290xf32> to vector<32x256xf32>
    %cst_7 = arith.constant 0.000000e+00 : f32
    %38 = vector.broadcast %cst_7 : f32 to vector<32x256xf32>
    %39 = arith.select %24, %37, %38 : vector<32x256xi1>, vector<32x256xf32>
    %40 = vector.extract_strided_slice %2 {offsets = [0, 17], sizes = [32, 256], strides = [1, 1]} : vector<32x290xf32> to vector<32x256xf32>
    %41 = vector.extract_strided_slice %2 {offsets = [0, 18], sizes = [32, 256], strides = [1, 1]} : vector<32x290xf32> to vector<32x256xf32>
    %cst_8 = arith.constant 0.000000e+00 : f32
    %42 = vector.broadcast %cst_8 : f32 to vector<32x256xf32>
    %43 = arith.select %29, %41, %42 : vector<32x256xi1>, vector<32x256xf32>
    %44 = vector.extract_strided_slice %2 {offsets = [0, 32], sizes = [32, 256], strides = [1, 1]} : vector<32x290xf32> to vector<32x256xf32>
    %cst_9 = arith.constant 0.000000e+00 : f32
    %45 = vector.broadcast %cst_9 : f32 to vector<32x256xf32>
    %46 = arith.select %24, %44, %45 : vector<32x256xi1>, vector<32x256xf32>
    %47 = vector.extract_strided_slice %2 {offsets = [0, 33], sizes = [32, 256], strides = [1, 1]} : vector<32x290xf32> to vector<32x256xf32>
    %48 = vector.extract_strided_slice %2 {offsets = [0, 34], sizes = [32, 256], strides = [1, 1]} : vector<32x290xf32> to vector<32x256xf32>
    %cst_10 = arith.constant 0.000000e+00 : f32
    %49 = vector.broadcast %cst_10 : f32 to vector<32x256xf32>
    %50 = arith.select %29, %48, %49 : vector<32x256xi1>, vector<32x256xf32>
    %51 = tpu.concatenate %32, %33, %36, %39, %40, %43, %46, %47, %50 in 0 : vector<32x256xf32>, vector<32x256xf32>, vector<32x256xf32>, vector<32x256xf32>, vector<32x256xf32>, vector<32x256xf32>, vector<32x256xf32>, vector<32x256xf32>, vector<32x256xf32> -> vector<288x256xf32>
    %52 = arith.truncf %51 : vector<288x256xf32> to vector<288x256xbf16>
    %c0_11 = arith.constant 0 : index
    %c0_12 = arith.constant 0 : index
    %53 = vector.load %arg2[%c0_11, %c0_12] : memref<3x288xbf16, #tpu.memory_space<vmem>>, vector<3x288xbf16>
    %cst_13 = arith.constant dense<0.000000e+00> : vector<3x256xf32>
    %54 = tpu.matmul %53, %52, %cst_13 {dimension_numbers = #tpu.dot_dimension_numbers<[1], [0], [0], [1], [0, 0, 1, 1], [], []>} : vector<3x288xbf16>, vector<288x256xbf16>, vector<3x256xf32> -> vector<3x256xf32>
    %c0_14 = arith.constant 0 : index
    %c0_15 = arith.constant 0 : index
    %55 = vector.load %arg3[%c0_14, %c0_15] : memref<3x1xf32, #tpu.memory_space<vmem>>, vector<3x1xf32>
    %56 = vector.broadcast %55 : vector<3x1xf32> to vector<3x256xf32>
    %57 = arith.addf %54, %56 : vector<3x256xf32>
    %cst_16 = arith.constant 0.000000e+00 : f32
    %58 = vector.broadcast %cst_16 : f32 to vector<3x256xf32>
    %59 = arith.subf %58, %57 : vector<3x256xf32>
    %60 = math.exp %59 : vector<3x256xf32>
    %cst_17 = arith.constant 1.000000e+00 : f32
    %61 = vector.broadcast %cst_17 : f32 to vector<3x256xf32>
    %62 = arith.addf %61, %60 : vector<3x256xf32>
    %63 = tpu.reciprocal %62 {approx = true} : vector<3x256xf32> -> vector<3x256xf32>
    %c0_18 = arith.constant 0 : index
    %c0_19 = arith.constant 0 : index
    %c0_20 = arith.constant 0 : index
    %64 = vector.load %arg4[%c0_18, %c0_19, %c0_20] : memref<1x3x256xf32, #tpu.memory_space<vmem>>, vector<1x3x256xf32>
    %65 = vector.shape_cast %64 : vector<1x3x256xf32> to vector<3x256xf32>
    %66 = vector.shape_cast %63 : vector<3x256xf32> to vector<1x3x256xf32>
    tpu.vector_store %arg4[%c0_18, %c0_19, %c0_20], %66 {strides = array<i32>} : memref<1x3x256xf32, #tpu.memory_space<vmem>>, vector<1x3x256xf32>,
    return
  }
  func.func @transform_0(%arg0: i32) -> (i32, i32, i32) {
    %c0_i32 = arith.constant 0 : i32
    %c0_i32_0 = arith.constant 0 : i32
    %c0_i32_1 = arith.constant 0 : i32
    return %arg0, %c0_i32, %c0_i32_0 : i32, i32, i32
  }
  func.func @transform_1(%arg0: i32) -> (i32, i32) {
    %c0_i32 = arith.constant 0 : i32
    %c0_i32_0 = arith.constant 0 : i32
    %c0_i32_1 = arith.constant 0 : i32
    return %c0_i32, %c0_i32_0 : i32, i32
  }
  func.func @transform_2(%arg0: i32) -> (i32, i32) {
    %c0_i32 = arith.constant 0 : i32
    %c0_i32_0 = arith.constant 0 : i32
    %c0_i32_1 = arith.constant 0 : i32
    return %c0_i32, %c0_i32_0 : i32, i32
  }
  func.func @transform_3(%arg0: i32) -> (i32, i32, i32) {
    %c0_i32 = arith.constant 0 : i32
    %c0_i32_0 = arith.constant 0 : i32
    %c0_i32_1 = arith.constant 0 : i32
    return %arg0, %c0_i32, %c0_i32_0 : i32, i32, i32
  }
}

</mosaic_0001>

<llo_original>
// kernel: autoencoder_forward.6
$region0: #{autoencoder_forward.6}
  #allocation0 [shape = 'u32[]', space=smem, size = 0x4, offset = 0x4, fixed_abs, tag = 'smem constant byte address 0x4 - core index']
  #allocation1 [shape = 'u32[144,128]{1,0:T(1,128)}', space=vmem, size = 0x12000, scoped, tag = 'internal scratch']
  %s0 = inlined_call_operand.vmem [shape: bf16[2,8,290], index: 0, kind: input, shape index: {}]
  %s1 = inlined_call_operand.vmem [shape: bf16[32,72], index: 1, kind: input, shape index: {}]
  %s2 = inlined_call_operand.vmem [shape: f32[32,1], index: 2, kind: input, shape index: {}]
  %s3 = inlined_call_operand.vmem [shape: bf16[2,32,256], index: 3, kind: output, shape index: {}]
  %s4 = sld [smem:[#allocation0]]
  $region45: #{autoencoder_forward.6} parent=0
    _
  %s6 = ssub.s32 1, %s4
  %s7 = scalar_select 0, %s6, %s4
  loop: start=0, step=1, limit=4
  $region2: #{autoencoder_forward.6} parent=0 // loop_pre_header
    _
  $region3: #{autoencoder_forward.6} parent=0 // loop_header
    %s9 = sphi 0, %s13
    %p10 = scmp.ge.s32.totalorder %s9, 4
    %s19 = sphi 0, %s21
    %s22 = sphi 0, %s19
    %s23 = sphi 0, %s22
    %s39 = sphi 0, %s23
    %s43 = sphi 0, %s43
    %s45 = sphi 0, %s43
    %s46 = sphi 0, %s45
    %s60 = sphi 0, %s46
    %s64 = sphi 0, %s64
    %s66 = sphi 0, %s64
    %s67 = sphi 0, %s66
    %s81 = sphi 0, %s67
    %s87 = sphi 0, %s89
    %s90 = sphi 0, %s87
    %s91 = sphi 0, %s90
    %s107 = sphi 0, %s91
  $region4: #{autoencoder_forward.6} parent=0 // loop_header_branch
    %12 = sbr.rel (%p10) target = $region8
  $region5: #{autoencoder_forward.6} parent=0 // loop_body
    %s14 = ssub.s32 %s9, 1
    %s15 = ssub.s32 %s9, 2
    %s16 = sadd.s32 %s9, 1
    %s17 = ssub.s32 %s9, %s16
    %p18 = scmp.eq.s32.totalorder %s17, 0
    %s20 = sadd.s32 %s19, 1
    %s21 = scalar_select %p18, %s19, %s20
    %p24 = pneg %p18
    %p25 = scmp.eq.s32.totalorder %s9, 1
    %p26 = por %p24, %p25
    %p27 = scmp.ne.s32.totalorder %s19, %s22
    %p28 = scmp.eq.s32.totalorder %s9, 0
    %p29 = por %p27, %p28
    %p30 = scmp.ne.s32.totalorder %s19, %s22
    %p31 = scmp.eq.s32.totalorder %s14, 1
    %p32 = por %p30, %p31
    %p33 = scmp.ne.s32.totalorder %s22, %s23
    %p34 = scmp.eq.s32.totalorder %s14, 0
    %p35 = por %p33, %p34
    %p36 = scmp.ne.s32.totalorder %s22, %s23
    %p37 = scmp.eq.s32.totalorder %s15, 1
    %p38 = por %p36, %p37
    %p40 = scmp.ne.s32.totalorder %s23, %s39
    %p41 = scmp.eq.s32.totalorder %s15, 0
    %p42 = por %p40, %p41
    %s44 = sadd.s32 %s43, 1
    %p47 = scmp.eq.s32.totalorder %s9, 1
    %p48 = scmp.ne.s32.totalorder %s43, %s45
    %p49 = scmp.eq.s32.totalorder %s9, 0
    %p50 = por %p48, %p49
    %p51 = scmp.ne.s32.totalorder %s43, %s45
    %p52 = scmp.eq.s32.totalorder %s14, 1
    %p53 = por %p51, %p52
    %p54 = scmp.ne.s32.totalorder %s45, %s46
    %p55 = scmp.eq.s32.totalorder %s14, 0
    %p56 = por %p54, %p55
    %p57 = scmp.ne.s32.totalorder %s45, %s46
    %p58 = scmp.eq.s32.totalorder %s15, 1
    %p59 = por %p57, %p58
    %p61 = scmp.ne.s32.totalorder %s46, %s60
    %p62 = scmp.eq.s32.totalorder %s15, 0
    %p63 = por %p61, %p62
    %s65 = sadd.s32 %s64, 1
    %p68 = scmp.eq.s32.totalorder %s9, 1
    %p69 = scmp.ne.s32.totalorder %s64, %s66
    %p70 = scmp.eq.s32.totalorder %s9, 0
    %p71 = por %p69, %p70
    %p72 = scmp.ne.s32.totalorder %s64, %s66
    %p73 = scmp.eq.s32.totalorder %s14, 1
    %p74 = por %p72, %p73
    %p75 = scmp.ne.s32.totalorder %s66, %s67
    %p76 = scmp.eq.s32.totalorder %s14, 0
    %p77 = por %p75, %p76
    %p78 = scmp.ne.s32.totalorder %s66, %s67
    %p79 = scmp.eq.s32.totalorder %s15, 1
    %p80 = por %p78, %p79
    %p82 = scmp.ne.s32.totalorder %s67, %s81
    %p83 = scmp.eq.s32.totalorder %s15, 0
    %p84 = por %p82, %p83
    %s85 = ssub.s32 %s9, %s16
    %p86 = scmp.eq.s32.totalorder %s85, 0
    %s88 = sadd.s32 %s87, 1
    %s89 = scalar_select %p86, %s87, %s88
    %p92 = pneg %p86
    %p93 = scmp.eq.s32.totalorder %s9, 1
    %p94 = por %p92, %p93
    %p95 = scmp.ne.s32.totalorder %s87, %s90
    %p96 = scmp.eq.s32.totalorder %s9, 0
    %p97 = por %p95, %p96
    %p98 = scmp.ne.s32.totalorder %s87, %s90
    %p99 = scmp.eq.s32.totalorder %s14, 1
    %p100 = por %p98, %p99
    %p101 = scmp.ne.s32.totalorder %s90, %s91
    %p102 = scmp.eq.s32.totalorder %s14, 0
    %p103 = por %p101, %p102
    %p104 = scmp.ne.s32.totalorder %s90, %s91
    %p105 = scmp.eq.s32.totalorder %s15, 1
    %p106 = por %p104, %p105
    %p108 = scmp.ne.s32.totalorder %s91, %s107
    %p109 = scmp.eq.s32.totalorder %s15, 0
    %p110 = por %p108, %p109
    %p111 = scmp.le.s32.totalorder 1, %s9
    %p112 = scmp.lt.s32.totalorder %s9, 3
    %p113 = pnand %p111, %p112
    %p114 = pneg %p113
    // Predicated region
    $region9: #{autoencoder_forward.6} parent=5 // pred_check
      _
    $region10: #{autoencoder_forward.6} parent=5 // pred_check_branch
      %116 = sbr.rel (%p113) target = $region12
    $region11: #{autoencoder_forward.6} parent=5 // pred_region
      %s117 = ssub.s32 %s9, 1
      // Predicated region
      $region13: #{autoencoder_forward.6} parent=11 // pred_check
        %p118 = pneg %p56
      $region14: #{autoencoder_forward.6} parent=11 // pred_check_branch
        %120 = sbr.rel (%p118) target = $region16
      $region15: #{autoencoder_forward.6} parent=11 // pred_region
        _
      $region16: #{autoencoder_forward.6} parent=11 // pred_fallthru
        _
      // Predicated region
      $region17: #{autoencoder_forward.6} parent=11 // pred_check
        %p121 = pneg %p77
      $region18: #{autoencoder_forward.6} parent=11 // pred_check_branch
        %123 = sbr.rel (%p121) target = $region20
      $region19: #{autoencoder_forward.6} parent=11 // pred_region
        _
      $region20: #{autoencoder_forward.6} parent=11 // pred_fallthru
        _
    $region12: #{autoencoder_forward.6} parent=5 // pred_fallthru
      _
    %p124 = scmp.lt.s32.totalorder %s9, 2
    // Predicated region
    $region21: #{autoencoder_forward.6} parent=5 // pred_check
      %p125 = pneg %p124
    $region22: #{autoencoder_forward.6} parent=5 // pred_check_branch
      %127 = sbr.rel (%p125) target = $region24
    $region23: #{autoencoder_forward.6} parent=5 // pred_region
      // Predicated region
      $region25: #{autoencoder_forward.6} parent=23 // pred_check
        %p128 = pneg %p29
      $region26: #{autoencoder_forward.6} parent=23 // pred_check_branch
        %130 = sbr.rel (%p128) target = $region28
      $region27: #{autoencoder_forward.6} parent=23 // pred_region
        %p131 = scmp.lt.s32.totalorder %s9, 1
        %s132 = scalar_select %p131, %s9, 1
        %s133 = smul.addr %s132, 3
        %s134 = smul.addr %s133, 4
        %s135 = scalar_lea.vmem %s0, %s134
      $region28: #{autoencoder_forward.6} parent=23 // pred_fallthru
        _
    $region24: #{autoencoder_forward.6} parent=5 // pred_fallthru
      _
    %p136 = scmp.le.s32.totalorder 1, %s9
    %p137 = scmp.lt.s32.totalorder %s9, 3
    %p138 = pnand %p136, %p137
    %p139 = pneg %p138
    // Predicated region
    $region29: #{autoencoder_forward.6} parent=5 // pred_check
      _
    $region30: #{autoencoder_forward.6} parent=5 // pred_check_branch
      %141 = sbr.rel (%p138) target = $region32
    $region31: #{autoencoder_forward.6} parent=5 // pred_region
      %s142 = ssub.s32 %s9, 1
      %p143 = scmp.lt.s32.totalorder %s14, 1
      %s144 = scalar_select %p143, %s14, 1
      %s145 = smul.addr %s144, 3
      %s146 = smul.addr %s145, 4
      %s147 = scalar_lea.vmem %s0, %s146
      %p148 = pneg %p35
      %p149 = pneg %p32
      %p150 = pneg %p56
      %p151 = pneg %p53
      %p152 = pneg %p77
      %p153 = pneg %p74
      %p154 = pneg %p103
      %p155 = pneg %p100
      %p156 = scmp.lt.s32.totalorder %s14, 1
      %s157 = scalar_select %p156, %s14, 1
      %s158 = smul.addr %s157, 8
      %s159 = smul.addr %s158, 4
      %s160 = scalar_lea.vmem %s3, %s159
      %p161 = scmp.lt.s32.totalorder %s14, 1
      %s162 = scalar_select %p161, %s14, 1
      %s163 = smul.addr %s162, 3
      %s164 = smul.addr %s163, 4
      %s165 = scalar_lea.vmem %s0, %s164
      %p166 = scmp.lt.s32.totalorder %s14, 1
      %s167 = scalar_select %p166, %s14, 1
      %s168 = smul.addr %s167, 8
      %s169 = smul.addr %s168, 4
      %s170 = scalar_lea.vmem %s3, %s169
      %v172 = vld [vmem:[%s165] sm:$0xff]
      %v173 = vld [vmem:[%s165 + $0x8] sm:$0xf]
      %v174 = vunpack.c.l.bf16 %v172
      %v175 = vunpack.c.h.bf16 %v172
      %v176 = vunpack.c.l.bf16 %v173
      %v177 = vlaneseq
      %v178 = vand.u32 %v177, 127
      %v179 = vadd.s32 %v178, 128
      %vm180 = vcmp.lt.s32.totalorder %v178, 0
      %v181 = vsub.s32 0, %v178
      %v182 = vsel %vm180, %v181, %v178
      %v183 = vshrl.u32 %v182, 4
      %v184 = vand.u32 %v182, 15
      %v185 = vsub.s32 0, %v184
      %v186 = vsel %vm180, %v185, %v184
      %vm187 = vcmp.lt.s32.totalorder %v179, 0
      %v188 = vsub.s32 0, %v179
      %v189 = vsel %vm187, %v188, %v179
      %v190 = vshrl.u32 %v189, 4
      %v191 = vand.u32 %v189, 15
      %v192 = vsub.s32 0, %v191
      %v193 = vsel %vm187, %v192, %v191
      %vm194 = vcmp.ne.s32.totalorder %v186, 0
      %vm195 = vcmp.ne.s32.totalorder %v193, 0
      %vm196 = vcmp.lt.s32.totalorder %v186, 0
      %vm197 = vcmp.lt.s32.totalorder %v193, 0
      %vm198 = vmand %vm196, %vm194
      %vm199 = vmand %vm197, %vm195
      %v200 = vadd.s32 %v186, 16
      %v201 = vadd.s32 %v193, 16
      %v202 = vsel %vm198, %v200, %v186
      %v203 = vsel %vm199, %v201, %v193
      %vm204 = vcmp.ge.s32.totalorder %v202, 1
      %vm205 = vcmp.ge.s32.totalorder %v203, 1
      %vm206 = vcmp.lt.s32.totalorder %v202, 17
      %vm207 = vcmp.lt.s32.totalorder %v203, 17
      %vm208 = vmand %vm204, %vm206
      %vm209 = vmand %vm205, %vm207
      %vm210 = vcmp.ge.s32.totalorder %v202, 4294967295
      %vm211 = vcmp.ge.s32.totalorder %v203, 4294967295
      %vm212 = vcmp.lt.s32.totalorder %v202, 15
      %vm213 = vcmp.lt.s32.totalorder %v203, 15
      %vm214 = vmand %vm210, %vm212
      %vm215 = vmand %vm211, %vm213
      %v216 = vsel %vm208, %v174, 0.0
      %v217 = vsel %vm209, %v175, 0.0
      %221 = vrot.lane.b32.xlu0 %v174, 126
      %v222 = vpop.permute.xlu0 %221
      %223 = vrot.lane.b32.xlu0 %v175, 126
      %v224 = vpop.permute.xlu0 %223
      %225 = vrot.lane.b32.xlu0 %v176, 126
      %v226 = vpop.permute.xlu0 %225
      %vm227 = vcmask 1031168
      %v228 = vsel %vm227, %v222, %v224
      %v229 = vsel %vm227, %v224, %v226
      %v232 = vsel %vm214, %v228, 0.0
      %v233 = vsel %vm215, %v229, 0.0
      %234 = vrot.lane.b32.xlu0 %v174, 112
      %v235 = vpop.permute.xlu0 %234
      %236 = vrot.lane.b32.xlu0 %v175, 112
      %v237 = vpop.permute.xlu0 %236
      %238 = vrot.lane.b32.xlu0 %v176, 112
      %v239 = vpop.permute.xlu0 %238
      %vm240 = vcmask 916480
      %v241 = vsel %vm240, %v235, %v237
      %v242 = vsel %vm240, %v237, %v239
      %v245 = vsel %vm208, %v241, 0.0
      %v246 = vsel %vm209, %v242, 0.0
      %247 = vrot.lane.b32.xlu0 %v174, 110
      %v248 = vpop.permute.xlu0 %247
      %249 = vrot.lane.b32.xlu0 %v175, 110
      %v250 = vpop.permute.xlu0 %249
      %251 = vrot.lane.b32.xlu0 %v176, 110
      %v252 = vpop.permute.xlu0 %251
      %vm253 = vcmask 900096
      %v254 = vsel %vm253, %v248, %v250
      %v255 = vsel %vm253, %v250, %v252
      %v258 = vsel %vm214, %v254, 0.0
      %v259 = vsel %vm215, %v255, 0.0
      %260 = vrot.lane.b32.xlu0 %v174, 96
      %v261 = vpop.permute.xlu0 %260
      %262 = vrot.lane.b32.xlu0 %v175, 96
      %v263 = vpop.permute.xlu0 %262
      %264 = vrot.lane.b32.xlu0 %v176, 96
      %v265 = vpop.permute.xlu0 %264
      %vm266 = vcmask 785408
      %v267 = vsel %vm266, %v261, %v263
      %v268 = vsel %vm266, %v263, %v265
      %v271 = vsel %vm208, %v267, 0.0
      %v272 = vsel %vm209, %v268, 0.0
      %273 = vrot.lane.b32.xlu0 %v174, 94
      %v274 = vpop.permute.xlu0 %273
      %275 = vrot.lane.b32.xlu0 %v175, 94
      %v276 = vpop.permute.xlu0 %275
      %277 = vrot.lane.b32.xlu0 %v176, 94
      %v278 = vpop.permute.xlu0 %277
      %vm279 = vcmask 769024
      %v280 = vsel %vm279, %v274, %v276
      %v281 = vsel %vm279, %v276, %v278
      %v284 = vsel %vm214, %v280, 0.0
      %v285 = vsel %vm215, %v281, 0.0
      %286 = vrot.lane.b32.xlu0 %v174, 127
      %v287 = vpop.permute.xlu0 %286
      %288 = vrot.lane.b32.xlu0 %v175, 127
      %v289 = vpop.permute.xlu0 %288
      %290 = vrot.lane.b32.xlu0 %v176, 127
      %v291 = vpop.permute.xlu0 %290
      %vm292 = vcmask 1039360
      %v293 = vsel %vm292, %v287, %v289
      %v294 = vsel %vm292, %v289, %v291
      %297 = vrot.lane.b32.xlu0 %v174, 111
      %v298 = vpop.permute.xlu0 %297
      %299 = vrot.lane.b32.xlu0 %v175, 111
      %v300 = vpop.permute.xlu0 %299
      %301 = vrot.lane.b32.xlu0 %v176, 111
      %v302 = vpop.permute.xlu0 %301
      %vm303 = vcmask 908288
      %v304 = vsel %vm303, %v298, %v300
      %v305 = vsel %vm303, %v300, %v302
      %308 = vrot.lane.b32.xlu0 %v174, 95
      %v309 = vpop.permute.xlu0 %308
      %310 = vrot.lane.b32.xlu0 %v175, 95
      %v311 = vpop.permute.xlu0 %310
      %312 = vrot.lane.b32.xlu0 %v176, 95
      %v313 = vpop.permute.xlu0 %312
      %vm314 = vcmask 777216
      %v315 = vsel %vm314, %v309, %v311
      %v316 = vsel %vm314, %v311, %v313
      %v319 = vpack.c.bf16 %v293, %v216
      %v320 = vpack.c.bf16 %v294, %v217
      %v321 = vpack.c.bf16 %v245, %v232
      %v322 = vpack.c.bf16 %v246, %v233
      %v323 = vpack.c.bf16 %v258, %v304
      %v324 = vpack.c.bf16 %v259, %v305
      %v325 = vpack.c.bf16 %v315, %v271
      %v326 = vpack.c.bf16 %v316, %v272
      %v327 = vpack.c.bf16 %v284, %v284
      %v328 = vpack.c.bf16 %v285, %v285
      %v329 = vld [vmem:[%s1] sm:$0xf]
      %v330 = vld [vmem:[%s1 + $0x4] sm:$0xf]
      %v331 = vld [vmem:[%s1 + $0x8] sm:$0xf]
      %v332 = vld [vmem:[%s1 + $0xc] sm:$0xf]
      %v333 = vld [vmem:[%s2] sm:$0xff]
      %v334 = vld [vmem:[%s2 + $0x8] sm:$0xff]
      %v335 = vld [vmem:[%s2 + $0x10] sm:$0xff]
      %v336 = vld [vmem:[%s2 + $0x18] sm:$0xff]
      %338 = vset.pattern.permute.xlu0 0
      %339 = vperm.xlu0 %338, %v333
      %v340 = vpop.permute.xlu0 %339
      %343 = vset.pattern.permute.xlu0 0
      %344 = vperm.xlu0 %343, %v334
      %v345 = vpop.permute.xlu0 %344
      %348 = vset.pattern.permute.xlu0 0
      %349 = vperm.xlu0 %348, %v335
      %v350 = vpop.permute.xlu0 %349
      %353 = vset.pattern.permute.xlu0 0
      %354 = vperm.xlu0 %353, %v336
      %v355 = vpop.permute.xlu0 %354
      %v361 = vunpack.c.l.b16 %v329
      %v362 = vunpack.c.l.b16 %v330
      %v363 = vunpack.c.l.b16 %v331
      %v364 = vunpack.c.l.b16 %v332
      %v365 = vpack.c.b16 %v362, %v361
      %v366 = vpack.c.b16 %v364, %v363
      %vm367 = vcmask 588800
      %v369 = vsel %vm367, %v365, 0
      %v372 = vsel %vm367, %v366, 0
      %vm374 = vcmask 1043456
      %v376 = vsel %vm374, %v327, 0
      %v379 = vsel %vm374, %v328, 0
      %381 = vmatprep.subr.bf16.mxu0 0
      %382 = vmatpush1.bf16.msra.mxu0 0
      %383 = vmatprep.subr.bf16.mxu0 0
      %384 = vmatpush1.bf16.msra.mxu0 0
      %385 = vmatprep.subr.bf16.mxu0 0
      %386 = vmatpush1.bf16.msra.mxu0 0
      %387 = vmatprep.subr.bf16.mxu0 %v379
      %388 = vmatpush1.bf16.msra.mxu0 %v376
      %389 = vmatprep.subr.bf16.mxu0 %v326
      %390 = vmatpush1.bf16.msra.mxu0 %v325
      %391 = vmatprep.subr.bf16.mxu0 %v324
      %392 = vmatpush1.bf16.msra.mxu0 %v323
      %393 = vmatprep.subr.bf16.mxu0 %v322
      %394 = vmatpush1.bf16.msra.mxu0 %v321
      %395 = vmatprep.subr.bf16.mxu0 %v320
      %396 = vmatpush1.bf16.msra.mxu0 %v319
      %397 = vmatprep.subr.bf16.mxu0 0
      %398 = vmatpush2.bf16.msra.mxu0 0
      %399 = vmatprep.subr.bf16.mxu0 0
      %400 = vmatpush2.bf16.msra.mxu0 0
      %401 = vmatprep.subr.bf16.mxu0 0
      %402 = vmatpush2.bf16.msra.mxu0 0
      %403 = vmatprep.subr.bf16.mxu0 0
      %404 = vmatpush2.bf16.msra.mxu0 0
      %405 = vmatprep.subr.bf16.mxu0 0
      %406 = vmatpush2.bf16.msra.mxu0 0
      %407 = vmatprep.subr.bf16.mxu0 0
      %408 = vmatpush2.bf16.msra.mxu0 0
      %409 = vmatprep.subr.bf16.mxu0 0
      %410 = vmatpush2.bf16.msra.mxu0 0
      %411 = vmatprep.subr.bf16.mxu0 0
      %412 = vmatpush2.bf16.msra.mxu0 0
      %413 = vmatprep.mubr.bf16.mxu0 0
      %414 = vmatmul.mubr.bf16.gmra.mxu0 %v369
      %v415 = vpop.f32.mrf.mxu0
      %v416 = vadd.f32 %v340, %v415
      %v417 = vpop.f32.mrf.mxu0
      %v418 = vadd.f32 %v340, %v417
      %v419 = vpop.f32.mrf.mxu0
      %v420 = vadd.f32 %v345, %v419
      %v421 = vpop.f32.mrf.mxu0
      %v422 = vadd.f32 %v345, %v421
      %423 = vmatprep.mubr.bf16.mxu0 0
      %424 = vmatmul.mubr.bf16.gmra.mxu0 %v372
      %v425 = vpop.f32.mrf.mxu0
      %v426 = vadd.f32 %v350, %v425
      %v427 = vpop.f32.mrf.mxu0
      %v428 = vadd.f32 %v350, %v427
      %v429 = vpop.f32.mrf.mxu0
      %v430 = vadd.f32 %v355, %v429
      %v431 = vpop.f32.mrf.mxu0
      %v432 = vadd.f32 %v355, %v431
      %433 = vdwg.mxu0
      %v434 = vmax.f32 %v416, 0.0
      %v435 = vmax.f32 %v418, 0.0
      %v436 = vmax.f32 %v420, 0.0
      %v437 = vmax.f32 %v422, 0.0
      %v438 = vmax.f32 %v426, 0.0
      %v439 = vmax.f32 %v428, 0.0
      %v440 = vmax.f32 %v430, 0.0
      %v441 = vmax.f32 %v432, 0.0
      %v442 = vpack.c.bf16 %v436, %v434
      %v443 = vpack.c.bf16 %v437, %v435
      %v444 = vpack.c.bf16 %v440, %v438
      %v445 = vpack.c.bf16 %v441, %v439
      %v450 = vunpack.c.l.b16 %v442
      %v451 = vunpack.c.l.b16 %v443
      %v452 = vunpack.c.h.b16 %v442
      %v453 = vunpack.c.h.b16 %v443
      %v454 = vunpack.c.l.b16 %v444
      %v455 = vunpack.c.l.b16 %v445
      %v456 = vunpack.c.h.b16 %v444
      %v457 = vunpack.c.h.b16 %v445
      %v458 = vpack.c.b16 %v451, %v450
      %v459 = vpack.c.b16 %v453, %v452
      %v460 = vpack.c.b16 %v455, %v454
      %v461 = vpack.c.b16 %v457, %v456
      %466 = vst [vmem:[%s170] sm:$0xff] %v458
      %467 = vst [vmem:[%s170 + $0x8] sm:$0xff] %v459
      %468 = vst [vmem:[%s170 + $0x10] sm:$0xff] %v460
      %469 = vst [vmem:[%s170 + $0x18] sm:$0xff] %v461
      %p470 = scmp.lt.s32.totalorder %s14, 1
      %s471 = scalar_select %p470, %s14, 1
      %s472 = smul.addr %s471, 8
      %s473 = smul.addr %s472, 4
      %s474 = scalar_lea.vmem %s3, %s473
      // Predicated region
      $region33: #{autoencoder_forward.6} parent=31 // pred_check
        %p475 = pneg %p100
      $region34: #{autoencoder_forward.6} parent=31 // pred_check_branch
        %477 = sbr.rel (%p475) target = $region36
      $region35: #{autoencoder_forward.6} parent=31 // pred_region
        _
      $region36: #{autoencoder_forward.6} parent=31 // pred_fallthru
        _
    $region32: #{autoencoder_forward.6} parent=5 // pred_fallthru
      _
    %p478 = scmp.le.s32.totalorder 2, %s9
    // Predicated region
    $region37: #{autoencoder_forward.6} parent=5 // pred_check
      %p479 = pneg %p478
    $region38: #{autoencoder_forward.6} parent=5 // pred_check_branch
      %481 = sbr.rel (%p479) target = $region40
    $region39: #{autoencoder_forward.6} parent=5 // pred_region
      %s482 = ssub.s32 %s9, 2
      // Predicated region
      $region41: #{autoencoder_forward.6} parent=39 // pred_check
        %p483 = pneg %p106
      $region42: #{autoencoder_forward.6} parent=39 // pred_check_branch
        %485 = sbr.rel (%p483) target = $region44
      $region43: #{autoencoder_forward.6} parent=39 // pred_region
        %p486 = scmp.lt.s32.totalorder %s15, 1
        %s487 = scalar_select %p486, %s15, 1
        %s488 = smul.addr %s487, 8
        %s489 = smul.addr %s488, 4
        %s490 = scalar_lea.vmem %s3, %s489
      $region44: #{autoencoder_forward.6} parent=39 // pred_fallthru
        _
    $region40: #{autoencoder_forward.6} parent=5 // pred_fallthru
      _
  $region6: #{autoencoder_forward.6} parent=0 // loop_footer
    %s13 = sadd.s32 1, %s9
  $region7: #{autoencoder_forward.6} parent=0 // loop_footer_branch
    %8 = sbr.rel target = $region3
  $region8: #{autoencoder_forward.6} parent=0 // loop_exit
    _

// kernel: tile.13
$region0: #{tile.13}
  #allocation0 [shape = 's32[1]{0}', space=sflag, size = 0x4, scoped, tag = 'scoped memory for tile.13']
  %s0 = inlined_call_operand.vmem [shape: f32[64], index: 0, kind: input, shape index: {}]
  %s1 = inlined_call_operand.vmem [shape: f32[4,64], index: 1, kind: output, shape index: {}]
  // Predicated region
  $region2: #{tile.13} parent=0 // pred_check
    _
  $region3: #{tile.13} parent=0 // pred_check_branch
    %3 = sbr.rel (0) target = $region5
  $region4: #{tile.13} parent=0 // pred_region
    _
  $region5: #{tile.13} parent=0 // pred_fallthru
    _
  %v4 = vld [vmem:[%s0] ss:$0 sm:$0xff]
  %5 = vst [vmem:[%s1] sm:$0xf] %v4

// kernel: tile.0
$region0: #{tile.0}
  %s0 = inlined_call_operand.vmem [shape: f32[4,64], index: 0, kind: input, shape index: {}]
  %s1 = inlined_call_operand.vmem [shape: f32[256,1], index: 1, kind: output, shape index: {}]
  $region1: #{tile.0} parent=0
    #allocation0 [shape = 'u8[4096]{0}', space=vmem, size = 0x1000, scoped, tag = 'scoped mem for input reshape']
    %s3 = sshll.u32 1, 4
    %s4 = ssub.s32 %s3, 1
    %v5 = vld [vmem:[%s0] sm:%s4]
    %6 = vst [vmem:[#allocation0] sm:%s4] %v5
    %v7 = vld [vmem:[#allocation0] sm:$0xf]
    %vm8 = vcmask 7168
    %9 = vst.msk [vmem:[%s1] sm:$0x1] %vm8, %v7
    %s10 = scalar_lea.vmem %s1, 63
    %11 = vst.msk [vmem:[%s10] sm:$0x2] %vm8, %v7
    %s12 = scalar_lea.vmem %s1, 126
    %13 = vst.msk [vmem:[%s12] sm:$0x4] %vm8, %v7
    %s14 = scalar_lea.vmem %s1, 189
    %15 = vst.msk [vmem:[%s14] sm:$0x8] %vm8, %v7
    %v16 = vld [vmem:[#allocation0] sm:$0xf]
    %17 = vrot.lane.b32.xlu0 %v16, 127
    %v18 = vpop.permute.xlu0 %17
    %vm19 = vcmask 7168
    %s20 = scalar_lea.vmem %s1, 1
    %21 = vst.msk [vmem:[%s20] sm:$0x1] %vm19, %v18
    %s22 = scalar_lea.vmem %s1, 64
    %23 = vst.msk [vmem:[%s22] sm:$0x2] %vm19, %v18
    %s24 = scalar_lea.vmem %s1, 127
    %25 = vst.msk [vmem:[%s24] sm:$0x4] %vm19, %v18
    %s26 = scalar_lea.vmem %s1, 190
    %27 = vst.msk [vmem:[%s26] sm:$0x8] %vm19, %v18
    %v28 = vld [vmem:[#allocation0] sm:$0xf]
    %29 = vrot.lane.b32.xlu0 %v28, 126
    %v30 = vpop.permute.xlu0 %29
    %vm31 = vcmask 7168
    %s32 = scalar_lea.vmem %s1, 2
    %33 = vst.msk [vmem:[%s32] sm:$0x1] %vm31, %v30
    %s34 = scalar_lea.vmem %s1, 65
    %35 = vst.msk [vmem:[%s34] sm:$0x2] %vm31, %v30
    %s36 = scalar_lea.vmem %s1, 128
    %37 = vst.msk [vmem:[%s36] sm:$0x4] %vm31, %v30
    %s38 = scalar_lea.vmem %s1, 191
    %39 = vst.msk [vmem:[%s38] sm:$0x8] %vm31, %v30
    %v40 = vld [vmem:[#allocation0] sm:$0xf]
    %41 = vrot.lane.b32.xlu0 %v40, 125
    %v42 = vpop.permute.xlu0 %41
    %vm43 = vcmask 7168
    %s44 = scalar_lea.vmem %s1, 3
    %45 = vst.msk [vmem:[%s44] sm:$0x1] %vm43, %v42
    %s46 = scalar_lea.vmem %s1, 66
    %47 = vst.msk [vmem:[%s46] sm:$0x2] %vm43, %v42
    %s48 = scalar_lea.vmem %s1, 129
    %49 = vst.msk [vmem:[%s48] sm:$0x4] %vm43, %v42
    %s50 = scalar_lea.vmem %s1, 192
    %51 = vst.msk [vmem:[%s50] sm:$0x8] %vm43, %v42
    %v52 = vld [vmem:[#allocation0] sm:$0xf]
    %53 = vrot.lane.b32.xlu0 %v52, 124
    %v54 = vpop.permute.xlu0 %53
    %vm55 = vcmask 7168
    %s56 = scalar_lea.vmem %s1, 4
    %57 = vst.msk [vmem:[%s56] sm:$0x1] %vm55, %v54
    %s58 = scalar_lea.vmem %s1, 67
    %59 = vst.msk [vmem:[%s58] sm:$0x2] %vm55, %v54
    %s60 = scalar_lea.vmem %s1, 130
    %61 = vst.msk [vmem:[%s60] sm:$0x4] %vm55, %v54
    %s62 = scalar_lea.vmem %s1, 193
    %63 = vst.msk [vmem:[%s62] sm:$0x8] %vm55, %v54
    %v64 = vld [vmem:[#allocation0] sm:$0xf]
    %65 = vrot.lane.b32.xlu0 %v64, 123
    %v66 = vpop.permute.xlu0 %65
    %vm67 = vcmask 7168
    %s68 = scalar_lea.vmem %s1, 5
    %69 = vst.msk [vmem:[%s68] sm:$0x1] %vm67, %v66
    %s70 = scalar_lea.vmem %s1, 68
    %71 = vst.msk [vmem:[%s70] sm:$0x2] %vm67, %v66
    %s72 = scalar_lea.vmem %s1, 131
    %73 = vst.msk [vmem:[%s72] sm:$0x4] %vm67, %v66
    %s74 = scalar_lea.vmem %s1, 194
    %75 = vst.msk [vmem:[%s74] sm:$0x8] %vm67, %v66
    %v76 = vld [vmem:[#allocation0] sm:$0xf]
    %77 = vrot.lane.b32.xlu0 %v76, 122
    %v78 = vpop.permute.xlu0 %77
    %vm79 = vcmask 7168
    %s80 = scalar_lea.vmem %s1, 6
    %81 = vst.msk [vmem:[%s80] sm:$0x1] %vm79, %v78
    %s82 = scalar_lea.vmem %s1, 69
    %83 = vst.msk [vmem:[%s82] sm:$0x2] %vm79, %v78
    %s84 = scalar_lea.vmem %s1, 132
    %85 = vst.msk [vmem:[%s84] sm:$0x4] %vm79, %v78
    %s86 = scalar_lea.vmem %s1, 195
    %87 = vst.msk [vmem:[%s86] sm:$0x8] %vm79, %v78
    %v88 = vld [vmem:[#allocation0] sm:$0xf]
    %89 = vrot.lane.b32.xlu0 %v88, 121
    %v90 = vpop.permute.xlu0 %89
    %vm91 = vcmask 7168
    %s92 = scalar_lea.vmem %s1, 7
    %93 = vst.msk [vmem:[%s92] sm:$0x1] %vm91, %v90
    %s94 = scalar_lea.vmem %s1, 70
    %95 = vst.msk [vmem:[%s94] sm:$0x2] %vm91, %v90
    %s96 = scalar_lea.vmem %s1, 133
    %97 = vst.msk [vmem:[%s96] sm:$0x4] %vm91, %v90
    %s98 = scalar_lea.vmem %s1, 196
    %99 = vst.msk [vmem:[%s98] sm:$0x8] %vm91, %v90
    %v100 = vld [vmem:[#allocation0] sm:$0xf]
    %101 = vrot.lane.b32.xlu0 %v100, 120
    %v102 = vpop.permute.xlu0 %101
    %vm103 = vcmask 7168
    %s104 = scalar_lea.vmem %s1, 8
    %105 = vst.msk [vmem:[%s104] sm:$0x1] %vm103, %v102
    %s106 = scalar_lea.vmem %s1, 71
    %107 = vst.msk [vmem:[%s106] sm:$0x2] %vm103, %v102
    %s108 = scalar_lea.vmem %s1, 134
    %109 = vst.msk [vmem:[%s108] sm:$0x4] %vm103, %v102
    %s110 = scalar_lea.vmem %s1, 197
    %111 = vst.msk [vmem:[%s110] sm:$0x8] %vm103, %v102
    %v112 = vld [vmem:[#allocation0] sm:$0xf]
    %113 = vrot.lane.b32.xlu0 %v112, 119
    %v114 = vpop.permute.xlu0 %113
    %vm115 = vcmask 7168
    %s116 = scalar_lea.vmem %s1, 9
    %117 = vst.msk [vmem:[%s116] sm:$0x1] %vm115, %v114
    %s118 = scalar_lea.vmem %s1, 72
    %119 = vst.msk [vmem:[%s118] sm:$0x2] %vm115, %v114
    %s120 = scalar_lea.vmem %s1, 135
    %121 = vst.msk [vmem:[%s120] sm:$0x4] %vm115, %v114
    %s122 = scalar_lea.vmem %s1, 198
    %123 = vst.msk [vmem:[%s122] sm:$0x8] %vm115, %v114
    %v124 = vld [vmem:[#allocation0] sm:$0xf]
    %125 = vrot.lane.b32.xlu0 %v124, 118
    %v126 = vpop.permute.xlu0 %125
    %vm127 = vcmask 7168
    %s128 = scalar_lea.vmem %s1, 10
    %129 = vst.msk [vmem:[%s128] sm:$0x1] %vm127, %v126
    %s130 = scalar_lea.vmem %s1, 73
    %131 = vst.msk [vmem:[%s130] sm:$0x2] %vm127, %v126
    %s132 = scalar_lea.vmem %s1, 136
    %133 = vst.msk [vmem:[%s132] sm:$0x4] %vm127, %v126
    %s134 = scalar_lea.vmem %s1, 199
    %135 = vst.msk [vmem:[%s134] sm:$0x8] %vm127, %v126
    %v136 = vld [vmem:[#allocation0] sm:$0xf]
    %137 = vrot.lane.b32.xlu0 %v136, 117
    %v138 = vpop.permute.xlu0 %137
    %vm139 = vcmask 7168
    %s140 = scalar_lea.vmem %s1, 11
    %141 = vst.msk [vmem:[%s140] sm:$0x1] %vm139, %v138
    %s142 = scalar_lea.vmem %s1, 74
    %143 = vst.msk [vmem:[%s142] sm:$0x2] %vm139, %v138
    %s144 = scalar_lea.vmem %s1, 137
    %145 = vst.msk [vmem:[%s144] sm:$0x4] %vm139, %v138
    %s146 = scalar_lea.vmem %s1, 200
    %147 = vst.msk [vmem:[%s146] sm:$0x8] %vm139, %v138
    %v148 = vld [vmem:[#allocation0] sm:$0xf]
    %149 = vrot.lane.b32.xlu0 %v148, 116
    %v150 = vpop.permute.xlu0 %149
    %vm151 = vcmask 7168
    %s152 = scalar_lea.vmem %s1, 12
    %153 = vst.msk [vmem:[%s152] sm:$0x1] %vm151, %v150
    %s154 = scalar_lea.vmem %s1, 75
    %155 = vst.msk [vmem:[%s154] sm:$0x2] %vm151, %v150
    %s156 = scalar_lea.vmem %s1, 138
    %157 = vst.msk [vmem:[%s156] sm:$0x4] %vm151, %v150
    %s158 = scalar_lea.vmem %s1, 201
    %159 = vst.msk [vmem:[%s158] sm:$0x8] %vm151, %v150
    %v160 = vld [vmem:[#allocation0] sm:$0xf]
    %161 = vrot.lane.b32.xlu0 %v160, 115
    %v162 = vpop.permute.xlu0 %161
    %vm163 = vcmask 7168
    %s164 = scalar_lea.vmem %s1, 13
    %165 = vst.msk [vmem:[%s164] sm:$0x1] %vm163, %v162
    %s166 = scalar_lea.vmem %s1, 76
    %167 = vst.msk [vmem:[%s166] sm:$0x2] %vm163, %v162
    %s168 = scalar_lea.vmem %s1, 139
    %169 = vst.msk [vmem:[%s168] sm:$0x4] %vm163, %v162
    %s170 = scalar_lea.vmem %s1, 202
    %171 = vst.msk [vmem:[%s170] sm:$0x8] %vm163, %v162
    %v172 = vld [vmem:[#allocation0] sm:$0xf]
    %173 = vrot.lane.b32.xlu0 %v172, 114
    %v174 = vpop.permute.xlu0 %173
    %vm175 = vcmask 7168
    %s176 = scalar_lea.vmem %s1, 14
    %177 = vst.msk [vmem:[%s176] sm:$0x1] %vm175, %v174
    %s178 = scalar_lea.vmem %s1, 77
    %179 = vst.msk [vmem:[%s178] sm:$0x2] %vm175, %v174
    %s180 = scalar_lea.vmem %s1, 140
    %181 = vst.msk [vmem:[%s180] sm:$0x4] %vm175, %v174
    %s182 = scalar_lea.vmem %s1, 203
    %183 = vst.msk [vmem:[%s182] sm:$0x8] %vm175, %v174
    %v184 = vld [vmem:[#allocation0] sm:$0xf]
    %185 = vrot.lane.b32.xlu0 %v184, 113
    %v186 = vpop.permute.xlu0 %185
    %vm187 = vcmask 7168
    %s188 = scalar_lea.vmem %s1, 15
    %189 = vst.msk [vmem:[%s188] sm:$0x1] %vm187, %v186
    %s190 = scalar_lea.vmem %s1, 78
    %191 = vst.msk [vmem:[%s190] sm:$0x2] %vm187, %v186
    %s192 = scalar_lea.vmem %s1, 141
    %193 = vst.msk [vmem:[%s192] sm:$0x4] %vm187, %v186
    %s194 = scalar_lea.vmem %s1, 204
    %195 = vst.msk [vmem:[%s194] sm:$0x8] %vm187, %v186
    %v196 = vld [vmem:[#allocation0] sm:$0xf]
    %197 = vrot.lane.b32.xlu0 %v196, 112
    %v198 = vpop.permute.xlu0 %197
    %vm199 = vcmask 7168
    %s200 = scalar_lea.vmem %s1, 16
    %201 = vst.msk [vmem:[%s200] sm:$0x1] %vm199, %v198
    %s202 = scalar_lea.vmem %s1, 79
    %203 = vst.msk [vmem:[%s202] sm:$0x2] %vm199, %v198
    %s204 = scalar_lea.vmem %s1, 142
    %205 = vst.msk [vmem:[%s204] sm:$0x4] %vm199, %v198
    %s206 = scalar_lea.vmem %s1, 205
    %207 = vst.msk [vmem:[%s206] sm:$0x8] %vm199, %v198
    %v208 = vld [vmem:[#allocation0] sm:$0xf]
    %209 = vrot.lane.b32.xlu0 %v208, 111
    %v210 = vpop.permute.xlu0 %209
    %vm211 = vcmask 7168
    %s212 = scalar_lea.vmem %s1, 17
    %213 = vst.msk [vmem:[%s212] sm:$0x1] %vm211, %v210
    %s214 = scalar_lea.vmem %s1, 80
    %215 = vst.msk [vmem:[%s214] sm:$0x2] %vm211, %v210
    %s216 = scalar_lea.vmem %s1, 143
    %217 = vst.msk [vmem:[%s216] sm:$0x4] %vm211, %v210
    %s218 = scalar_lea.vmem %s1, 206
    %219 = vst.msk [vmem:[%s218] sm:$0x8] %vm211, %v210
    %v220 = vld [vmem:[#allocation0] sm:$0xf]
    %221 = vrot.lane.b32.xlu0 %v220, 110
    %v222 = vpop.permute.xlu0 %221
    %vm223 = vcmask 7168
    %s224 = scalar_lea.vmem %s1, 18
    %225 = vst.msk [vmem:[%s224] sm:$0x1] %vm223, %v222
    %s226 = scalar_lea.vmem %s1, 81
    %227 = vst.msk [vmem:[%s226] sm:$0x2] %vm223, %v222
    %s228 = scalar_lea.vmem %s1, 144
    %229 = vst.msk [vmem:[%s228] sm:$0x4] %vm223, %v222
    %s230 = scalar_lea.vmem %s1, 207
    %231 = vst.msk [vmem:[%s230] sm:$0x8] %vm223, %v222
    %v232 = vld [vmem:[#allocation0] sm:$0xf]
    %233 = vrot.lane.b32.xlu0 %v232, 109
    %v234 = vpop.permute.xlu0 %233
    %vm235 = vcmask 7168
    %s236 = scalar_lea.vmem %s1, 19
    %237 = vst.msk [vmem:[%s236] sm:$0x1] %vm235, %v234
    %s238 = scalar_lea.vmem %s1, 82
    %239 = vst.msk [vmem:[%s238] sm:$0x2] %vm235, %v234
    %s240 = scalar_lea.vmem %s1, 145
    %241 = vst.msk [vmem:[%s240] sm:$0x4] %vm235, %v234
    %s242 = scalar_lea.vmem %s1, 208
    %243 = vst.msk [vmem:[%s242] sm:$0x8] %vm235, %v234
    %v244 = vld [vmem:[#allocation0] sm:$0xf]
    %245 = vrot.lane.b32.xlu0 %v244, 108
    %v246 = vpop.permute.xlu0 %245
    %vm247 = vcmask 7168
    %s248 = scalar_lea.vmem %s1, 20
    %249 = vst.msk [vmem:[%s248] sm:$0x1] %vm247, %v246
    %s250 = scalar_lea.vmem %s1, 83
    %251 = vst.msk [vmem:[%s250] sm:$0x2] %vm247, %v246
    %s252 = scalar_lea.vmem %s1, 146
    %253 = vst.msk [vmem:[%s252] sm:$0x4] %vm247, %v246
    %s254 = scalar_lea.vmem %s1, 209
    %255 = vst.msk [vmem:[%s254] sm:$0x8] %vm247, %v246
    %v256 = vld [vmem:[#allocation0] sm:$0xf]
    %257 = vrot.lane.b32.xlu0 %v256, 107
    %v258 = vpop.permute.xlu0 %257
    %vm259 = vcmask 7168
    %s260 = scalar_lea.vmem %s1, 21
    %261 = vst.msk [vmem:[%s260] sm:$0x1] %vm259, %v258
    %s262 = scalar_lea.vmem %s1, 84
    %263 = vst.msk [vmem:[%s262] sm:$0x2] %vm259, %v258
    %s264 = scalar_lea.vmem %s1, 147
    %265 = vst.msk [vmem:[%s264] sm:$0x4] %vm259, %v258
    %s266 = scalar_lea.vmem %s1, 210
    %267 = vst.msk [vmem:[%s266] sm:$0x8] %vm259, %v258
    %v268 = vld [vmem:[#allocation0] sm:$0xf]
    %269 = vrot.lane.b32.xlu0 %v268, 106
    %v270 = vpop.permute.xlu0 %269
    %vm271 = vcmask 7168
    %s272 = scalar_lea.vmem %s1, 22
    %273 = vst.msk [vmem:[%s272] sm:$0x1] %vm271, %v270
    %s274 = scalar_lea.vmem %s1, 85
    %275 = vst.msk [vmem:[%s274] sm:$0x2] %vm271, %v270
    %s276 = scalar_lea.vmem %s1, 148
    %277 = vst.msk [vmem:[%s276] sm:$0x4] %vm271, %v270
    %s278 = scalar_lea.vmem %s1, 211
    %279 = vst.msk [vmem:[%s278] sm:$0x8] %vm271, %v270
    %v280 = vld [vmem:[#allocation0] sm:$0xf]
    %281 = vrot.lane.b32.xlu0 %v280, 105
    %v282 = vpop.permute.xlu0 %281
    %vm283 = vcmask 7168
    %s284 = scalar_lea.vmem %s1, 23
    %285 = vst.msk [vmem:[%s284] sm:$0x1] %vm283, %v282
    %s286 = scalar_lea.vmem %s1, 86
    %287 = vst.msk [vmem:[%s286] sm:$0x2] %vm283, %v282
    %s288 = scalar_lea.vmem %s1, 149
    %289 = vst.msk [vmem:[%s288] sm:$0x4] %vm283, %v282
    %s290 = scalar_lea.vmem %s1, 212
    %291 = vst.msk [vmem:[%s290] sm:$0x8] %vm283, %v282
    %v292 = vld [vmem:[#allocation0] sm:$0xf]
    %293 = vrot.lane.b32.xlu0 %v292, 104
    %v294 = vpop.permute.xlu0 %293
    %vm295 = vcmask 7168
    %s296 = scalar_lea.vmem %s1, 24
    %297 = vst.msk [vmem:[%s296] sm:$0x1] %vm295, %v294
    %s298 = scalar_lea.vmem %s1, 87
    %299 = vst.msk [vmem:[%s298] sm:$0x2] %vm295, %v294
    %s300 = scalar_lea.vmem %s1, 150
    %301 = vst.msk [vmem:[%s300] sm:$0x4] %vm295, %v294
    %s302 = scalar_lea.vmem %s1, 213
    %303 = vst.msk [vmem:[%s302] sm:$0x8] %vm295, %v294
    %v304 = vld [vmem:[#allocation0] sm:$0xf]
    %305 = vrot.lane.b32.xlu0 %v304, 103
    %v306 = vpop.permute.xlu0 %305
    %vm307 = vcmask 7168
    %s308 = scalar_lea.vmem %s1, 25
    %309 = vst.msk [vmem:[%s308] sm:$0x1] %vm307, %v306
    %s310 = scalar_lea.vmem %s1, 88
    %311 = vst.msk [vmem:[%s310] sm:$0x2] %vm307, %v306
    %s312 = scalar_lea.vmem %s1, 151
    %313 = vst.msk [vmem:[%s312] sm:$0x4] %vm307, %v306
    %s314 = scalar_lea.vmem %s1, 214
    %315 = vst.msk [vmem:[%s314] sm:$0x8] %vm307, %v306
    %v316 = vld [vmem:[#allocation0] sm:$0xf]
    %317 = vrot.lane.b32.xlu0 %v316, 102
    %v318 = vpop.permute.xlu0 %317
    %vm319 = vcmask 7168
    %s320 = scalar_lea.vmem %s1, 26
    %321 = vst.msk [vmem:[%s320] sm:$0x1] %vm319, %v318
    %s322 = scalar_lea.vmem %s1, 89
    %323 = vst.msk [vmem:[%s322] sm:$0x2] %vm319, %v318
    %s324 = scalar_lea.vmem %s1, 152
    %325 = vst.msk [vmem:[%s324] sm:$0x4] %vm319, %v318
    %s326 = scalar_lea.vmem %s1, 215
    %327 = vst.msk [vmem:[%s326] sm:$0x8] %vm319, %v318
    %v328 = vld [vmem:[#allocation0] sm:$0xf]
    %329 = vrot.lane.b32.xlu0 %v328, 101
    %v330 = vpop.permute.xlu0 %329
    %vm331 = vcmask 7168
    %s332 = scalar_lea.vmem %s1, 27
    %333 = vst.msk [vmem:[%s332] sm:$0x1] %vm331, %v330
    %s334 = scalar_lea.vmem %s1, 90
    %335 = vst.msk [vmem:[%s334] sm:$0x2] %vm331, %v330
    %s336 = scalar_lea.vmem %s1, 153
    %337 = vst.msk [vmem:[%s336] sm:$0x4] %vm331, %v330
    %s338 = scalar_lea.vmem %s1, 216
    %339 = vst.msk [vmem:[%s338] sm:$0x8] %vm331, %v330
    %v340 = vld [vmem:[#allocation0] sm:$0xf]
    %341 = vrot.lane.b32.xlu0 %v340, 100
    %v342 = vpop.permute.xlu0 %341
    %vm343 = vcmask 7168
    %s344 = scalar_lea.vmem %s1, 28
    %345 = vst.msk [vmem:[%s344] sm:$0x1] %vm343, %v342
    %s346 = scalar_lea.vmem %s1, 91
    %347 = vst.msk [vmem:[%s346] sm:$0x2] %vm343, %v342
    %s348 = scalar_lea.vmem %s1, 154
    %349 = vst.msk [vmem:[%s348] sm:$0x4] %vm343, %v342
    %s350 = scalar_lea.vmem %s1, 217
    %351 = vst.msk [vmem:[%s350] sm:$0x8] %vm343, %v342
    %v352 = vld [vmem:[#allocation0] sm:$0xf]
    %353 = vrot.lane.b32.xlu0 %v352, 99
    %v354 = vpop.permute.xlu0 %353
    %vm355 = vcmask 7168
    %s356 = scalar_lea.vmem %s1, 29
    %357 = vst.msk [vmem:[%s356] sm:$0x1] %vm355, %v354
    %s358 = scalar_lea.vmem %s1, 92
    %359 = vst.msk [vmem:[%s358] sm:$0x2] %vm355, %v354
    %s360 = scalar_lea.vmem %s1, 155
    %361 = vst.msk [vmem:[%s360] sm:$0x4] %vm355, %v354
    %s362 = scalar_lea.vmem %s1, 218
    %363 = vst.msk [vmem:[%s362] sm:$0x8] %vm355, %v354
    %v364 = vld [vmem:[#allocation0] sm:$0xf]
    %365 = vrot.lane.b32.xlu0 %v364, 98
    %v366 = vpop.permute.xlu0 %365
    %vm367 = vcmask 7168
    %s368 = scalar_lea.vmem %s1, 30
    %369 = vst.msk [vmem:[%s368] sm:$0x1] %vm367, %v366
    %s370 = scalar_lea.vmem %s1, 93
    %371 = vst.msk [vmem:[%s370] sm:$0x2] %vm367, %v366
    %s372 = scalar_lea.vmem %s1, 156
    %373 = vst.msk [vmem:[%s372] sm:$0x4] %vm367, %v366
    %s374 = scalar_lea.vmem %s1, 219
    %375 = vst.msk [vmem:[%s374] sm:$0x8] %vm367, %v366
    %v376 = vld [vmem:[#allocation0] sm:$0xf]
    %377 = vrot.lane.b32.xlu0 %v376, 97
    %v378 = vpop.permute.xlu0 %377
    %vm379 = vcmask 7168
    %s380 = scalar_lea.vmem %s1, 31
    %381 = vst.msk [vmem:[%s380] sm:$0x1] %vm379, %v378
    %s382 = scalar_lea.vmem %s1, 94
    %383 = vst.msk [vmem:[%s382] sm:$0x2] %vm379, %v378
    %s384 = scalar_lea.vmem %s1, 157
    %385 = vst.msk [vmem:[%s384] sm:$0x4] %vm379, %v378
    %s386 = scalar_lea.vmem %s1, 220
    %387 = vst.msk [vmem:[%s386] sm:$0x8] %vm379, %v378
    %v388 = vld [vmem:[#allocation0] sm:$0xf]
    %389 = vrot.lane.b32.xlu0 %v388, 96
    %v390 = vpop.permute.xlu0 %389
    %vm391 = vcmask 7168
    %s392 = scalar_lea.vmem %s1, 32
    %393 = vst.msk [vmem:[%s392] sm:$0x1] %vm391, %v390
    %s394 = scalar_lea.vmem %s1, 95
    %395 = vst.msk [vmem:[%s394] sm:$0x2] %vm391, %v390
    %s396 = scalar_lea.vmem %s1, 158
    %397 = vst.msk [vmem:[%s396] sm:$0x4] %vm391, %v390
    %s398 = scalar_lea.vmem %s1, 221
    %399 = vst.msk [vmem:[%s398] sm:$0x8] %vm391, %v390
    %v400 = vld [vmem:[#allocation0] sm:$0xf]
    %401 = vrot.lane.b32.xlu0 %v400, 95
    %v402 = vpop.permute.xlu0 %401
    %vm403 = vcmask 7168
    %s404 = scalar_lea.vmem %s1, 33
    %405 = vst.msk [vmem:[%s404] sm:$0x1] %vm403, %v402
    %s406 = scalar_lea.vmem %s1, 96
    %407 = vst.msk [vmem:[%s406] sm:$0x2] %vm403, %v402
    %s408 = scalar_lea.vmem %s1, 159
    %409 = vst.msk [vmem:[%s408] sm:$0x4] %vm403, %v402
    %s410 = scalar_lea.vmem %s1, 222
    %411 = vst.msk [vmem:[%s410] sm:$0x8] %vm403, %v402
    %v412 = vld [vmem:[#allocation0] sm:$0xf]
    %413 = vrot.lane.b32.xlu0 %v412, 94
    %v414 = vpop.permute.xlu0 %413
    %vm415 = vcmask 7168
    %s416 = scalar_lea.vmem %s1, 34
    %417 = vst.msk [vmem:[%s416] sm:$0x1] %vm415, %v414
    %s418 = scalar_lea.vmem %s1, 97
    %419 = vst.msk [vmem:[%s418] sm:$0x2] %vm415, %v414
    %s420 = scalar_lea.vmem %s1, 160
    %421 = vst.msk [vmem:[%s420] sm:$0x4] %vm415, %v414
    %s422 = scalar_lea.vmem %s1, 223
    %423 = vst.msk [vmem:[%s422] sm:$0x8] %vm415, %v414
    %v424 = vld [vmem:[#allocation0] sm:$0xf]
    %425 = vrot.lane.b32.xlu0 %v424, 93
    %v426 = vpop.permute.xlu0 %425
    %vm427 = vcmask 7168
    %s428 = scalar_lea.vmem %s1, 35
    %429 = vst.msk [vmem:[%s428] sm:$0x1] %vm427, %v426
    %s430 = scalar_lea.vmem %s1, 98
    %431 = vst.msk [vmem:[%s430] sm:$0x2] %vm427, %v426
    %s432 = scalar_lea.vmem %s1, 161
    %433 = vst.msk [vmem:[%s432] sm:$0x4] %vm427, %v426
    %s434 = scalar_lea.vmem %s1, 224
    %435 = vst.msk [vmem:[%s434] sm:$0x8] %vm427, %v426
    %v436 = vld [vmem:[#allocation0] sm:$0xf]
    %437 = vrot.lane.b32.xlu0 %v436, 92
    %v438 = vpop.permute.xlu0 %437
    %vm439 = vcmask 7168
    %s440 = scalar_lea.vmem %s1, 36
    %441 = vst.msk [vmem:[%s440] sm:$0x1] %vm439, %v438
    %s442 = scalar_lea.vmem %s1, 99
    %443 = vst.msk [vmem:[%s442] sm:$0x2] %vm439, %v438
    %s444 = scalar_lea.vmem %s1, 162
    %445 = vst.msk [vmem:[%s444] sm:$0x4] %vm439, %v438
    %s446 = scalar_lea.vmem %s1, 225
    %447 = vst.msk [vmem:[%s446] sm:$0x8] %vm439, %v438
    %v448 = vld [vmem:[#allocation0] sm:$0xf]
    %449 = vrot.lane.b32.xlu0 %v448, 91
    %v450 = vpop.permute.xlu0 %449
    %vm451 = vcmask 7168
    %s452 = scalar_lea.vmem %s1, 37
    %453 = vst.msk [vmem:[%s452] sm:$0x1] %vm451, %v450
    %s454 = scalar_lea.vmem %s1, 100
    %455 = vst.msk [vmem:[%s454] sm:$0x2] %vm451, %v450
    %s456 = scalar_lea.vmem %s1, 163
    %457 = vst.msk [vmem:[%s456] sm:$0x4] %vm451, %v450
    %s458 = scalar_lea.vmem %s1, 226
    %459 = vst.msk [vmem:[%s458] sm:$0x8] %vm451, %v450
    %v460 = vld [vmem:[#allocation0] sm:$0xf]
    %461 = vrot.lane.b32.xlu0 %v460, 90
    %v462 = vpop.permute.xlu0 %461
    %vm463 = vcmask 7168
    %s464 = scalar_lea.vmem %s1, 38
    %465 = vst.msk [vmem:[%s464] sm:$0x1] %vm463, %v462
    %s466 = scalar_lea.vmem %s1, 101
    %467 = vst.msk [vmem:[%s466] sm:$0x2] %vm463, %v462
    %s468 = scalar_lea.vmem %s1, 164
    %469 = vst.msk [vmem:[%s468] sm:$0x4] %vm463, %v462
    %s470 = scalar_lea.vmem %s1, 227
    %471 = vst.msk [vmem:[%s470] sm:$0x8] %vm463, %v462
    %v472 = vld [vmem:[#allocation0] sm:$0xf]
    %473 = vrot.lane.b32.xlu0 %v472, 89
    %v474 = vpop.permute.xlu0 %473
    %vm475 = vcmask 7168
    %s476 = scalar_lea.vmem %s1, 39
    %477 = vst.msk [vmem:[%s476] sm:$0x1] %vm475, %v474
    %s478 = scalar_lea.vmem %s1, 102
    %479 = vst.msk [vmem:[%s478] sm:$0x2] %vm475, %v474
    %s480 = scalar_lea.vmem %s1, 165
    %481 = vst.msk [vmem:[%s480] sm:$0x4] %vm475, %v474
    %s482 = scalar_lea.vmem %s1, 228
    %483 = vst.msk [vmem:[%s482] sm:$0x8] %vm475, %v474
    %v484 = vld [vmem:[#allocation0] sm:$0xf]
    %485 = vrot.lane.b32.xlu0 %v484, 88
    %v486 = vpop.permute.xlu0 %485
    %vm487 = vcmask 7168
    %s488 = scalar_lea.vmem %s1, 40
    %489 = vst.msk [vmem:[%s488] sm:$0x1] %vm487, %v486
    %s490 = scalar_lea.vmem %s1, 103
    %491 = vst.msk [vmem:[%s490] sm:$0x2] %vm487, %v486
    %s492 = scalar_lea.vmem %s1, 166
    %493 = vst.msk [vmem:[%s492] sm:$0x4] %vm487, %v486
    %s494 = scalar_lea.vmem %s1, 229
    %495 = vst.msk [vmem:[%s494] sm:$0x8] %vm487, %v486
    %v496 = vld [vmem:[#allocation0] sm:$0xf]
    %497 = vrot.lane.b32.xlu0 %v496, 87
    %v498 = vpop.permute.xlu0 %497
    %vm499 = vcmask 7168
    %s500 = scalar_lea.vmem %s1, 41
    %501 = vst.msk [vmem:[%s500] sm:$0x1] %vm499, %v498
    %s502 = scalar_lea.vmem %s1, 104
    %503 = vst.msk [vmem:[%s502] sm:$0x2] %vm499, %v498
    %s504 = scalar_lea.vmem %s1, 167
    %505 = vst.msk [vmem:[%s504] sm:$0x4] %vm499, %v498
    %s506 = scalar_lea.vmem %s1, 230
    %507 = vst.msk [vmem:[%s506] sm:$0x8] %vm499, %v498
    %v508 = vld [vmem:[#allocation0] sm:$0xf]
    %509 = vrot.lane.b32.xlu0 %v508, 86
    %v510 = vpop.permute.xlu0 %509
    %vm511 = vcmask 7168
    %s512 = scalar_lea.vmem %s1, 42
    %513 = vst.msk [vmem:[%s512] sm:$0x1] %vm511, %v510
    %s514 = scalar_lea.vmem %s1, 105
    %515 = vst.msk [vmem:[%s514] sm:$0x2] %vm511, %v510
    %s516 = scalar_lea.vmem %s1, 168
    %517 = vst.msk [vmem:[%s516] sm:$0x4] %vm511, %v510
    %s518 = scalar_lea.vmem %s1, 231
    %519 = vst.msk [vmem:[%s518] sm:$0x8] %vm511, %v510
    %v520 = vld [vmem:[#allocation0] sm:$0xf]
    %521 = vrot.lane.b32.xlu0 %v520, 85
    %v522 = vpop.permute.xlu0 %521
    %vm523 = vcmask 7168
    %s524 = scalar_lea.vmem %s1, 43
    %525 = vst.msk [vmem:[%s524] sm:$0x1] %vm523, %v522
    %s526 = scalar_lea.vmem %s1, 106
    %527 = vst.msk [vmem:[%s526] sm:$0x2] %vm523, %v522
    %s528 = scalar_lea.vmem %s1, 169
    %529 = vst.msk [vmem:[%s528] sm:$0x4] %vm523, %v522
    %s530 = scalar_lea.vmem %s1, 232
    %531 = vst.msk [vmem:[%s530] sm:$0x8] %vm523, %v522
    %v532 = vld [vmem:[#allocation0] sm:$0xf]
    %533 = vrot.lane.b32.xlu0 %v532, 84
    %v534 = vpop.permute.xlu0 %533
    %vm535 = vcmask 7168
    %s536 = scalar_lea.vmem %s1, 44
    %537 = vst.msk [vmem:[%s536] sm:$0x1] %vm535, %v534
    %s538 = scalar_lea.vmem %s1, 107
    %539 = vst.msk [vmem:[%s538] sm:$0x2] %vm535, %v534
    %s540 = scalar_lea.vmem %s1, 170
    %541 = vst.msk [vmem:[%s540] sm:$0x4] %vm535, %v534
    %s542 = scalar_lea.vmem %s1, 233
    %543 = vst.msk [vmem:[%s542] sm:$0x8] %vm535, %v534
    %v544 = vld [vmem:[#allocation0] sm:$0xf]
    %545 = vrot.lane.b32.xlu0 %v544, 83
    %v546 = vpop.permute.xlu0 %545
    %vm547 = vcmask 7168
    %s548 = scalar_lea.vmem %s1, 45
    %549 = vst.msk [vmem:[%s548] sm:$0x1] %vm547, %v546
    %s550 = scalar_lea.vmem %s1, 108
    %551 = vst.msk [vmem:[%s550] sm:$0x2] %vm547, %v546
    %s552 = scalar_lea.vmem %s1, 171
    %553 = vst.msk [vmem:[%s552] sm:$0x4] %vm547, %v546
    %s554 = scalar_lea.vmem %s1, 234
    %555 = vst.msk [vmem:[%s554] sm:$0x8] %vm547, %v546
    %v556 = vld [vmem:[#allocation0] sm:$0xf]
    %557 = vrot.lane.b32.xlu0 %v556, 82
    %v558 = vpop.permute.xlu0 %557
    %vm559 = vcmask 7168
    %s560 = scalar_lea.vmem %s1, 46
    %561 = vst.msk [vmem:[%s560] sm:$0x1] %vm559, %v558
    %s562 = scalar_lea.vmem %s1, 109
    %563 = vst.msk [vmem:[%s562] sm:$0x2] %vm559, %v558
    %s564 = scalar_lea.vmem %s1, 172
    %565 = vst.msk [vmem:[%s564] sm:$0x4] %vm559, %v558
    %s566 = scalar_lea.vmem %s1, 235
    %567 = vst.msk [vmem:[%s566] sm:$0x8] %vm559, %v558
    %v568 = vld [vmem:[#allocation0] sm:$0xf]
    %569 = vrot.lane.b32.xlu0 %v568, 81
    %v570 = vpop.permute.xlu0 %569
    %vm571 = vcmask 7168
    %s572 = scalar_lea.vmem %s1, 47
    %573 = vst.msk [vmem:[%s572] sm:$0x1] %vm571, %v570
    %s574 = scalar_lea.vmem %s1, 110
    %575 = vst.msk [vmem:[%s574] sm:$0x2] %vm571, %v570
    %s576 = scalar_lea.vmem %s1, 173
    %577 = vst.msk [vmem:[%s576] sm:$0x4] %vm571, %v570
    %s578 = scalar_lea.vmem %s1, 236
    %579 = vst.msk [vmem:[%s578] sm:$0x8] %vm571, %v570
    %v580 = vld [vmem:[#allocation0] sm:$0xf]
    %581 = vrot.lane.b32.xlu0 %v580, 80
    %v582 = vpop.permute.xlu0 %581
    %vm583 = vcmask 7168
    %s584 = scalar_lea.vmem %s1, 48
    %585 = vst.msk [vmem:[%s584] sm:$0x1] %vm583, %v582
    %s586 = scalar_lea.vmem %s1, 111
    %587 = vst.msk [vmem:[%s586] sm:$0x2] %vm583, %v582
    %s588 = scalar_lea.vmem %s1, 174
    %589 = vst.msk [vmem:[%s588] sm:$0x4] %vm583, %v582
    %s590 = scalar_lea.vmem %s1, 237
    %591 = vst.msk [vmem:[%s590] sm:$0x8] %vm583, %v582
    %v592 = vld [vmem:[#allocation0] sm:$0xf]
    %593 = vrot.lane.b32.xlu0 %v592, 79
    %v594 = vpop.permute.xlu0 %593
    %vm595 = vcmask 7168
    %s596 = scalar_lea.vmem %s1, 49
    %597 = vst.msk [vmem:[%s596] sm:$0x1] %vm595, %v594
    %s598 = scalar_lea.vmem %s1, 112
    %599 = vst.msk [vmem:[%s598] sm:$0x2] %vm595, %v594
    %s600 = scalar_lea.vmem %s1, 175
    %601 = vst.msk [vmem:[%s600] sm:$0x4] %vm595, %v594
    %s602 = scalar_lea.vmem %s1, 238
    %603 = vst.msk [vmem:[%s602] sm:$0x8] %vm595, %v594
    %v604 = vld [vmem:[#allocation0] sm:$0xf]
    %605 = vrot.lane.b32.xlu0 %v604, 78
    %v606 = vpop.permute.xlu0 %605
    %vm607 = vcmask 7168
    %s608 = scalar_lea.vmem %s1, 50
    %609 = vst.msk [vmem:[%s608] sm:$0x1] %vm607, %v606
    %s610 = scalar_lea.vmem %s1, 113
    %611 = vst.msk [vmem:[%s610] sm:$0x2] %vm607, %v606
    %s612 = scalar_lea.vmem %s1, 176
    %613 = vst.msk [vmem:[%s612] sm:$0x4] %vm607, %v606
    %s614 = scalar_lea.vmem %s1, 239
    %615 = vst.msk [vmem:[%s614] sm:$0x8] %vm607, %v606
    %v616 = vld [vmem:[#allocation0] sm:$0xf]
    %617 = vrot.lane.b32.xlu0 %v616, 77
    %v618 = vpop.permute.xlu0 %617
    %vm619 = vcmask 7168
    %s620 = scalar_lea.vmem %s1, 51
    %621 = vst.msk [vmem:[%s620] sm:$0x1] %vm619, %v618
    %s622 = scalar_lea.vmem %s1, 114
    %623 = vst.msk [vmem:[%s622] sm:$0x2] %vm619, %v618
    %s624 = scalar_lea.vmem %s1, 177
    %625 = vst.msk [vmem:[%s624] sm:$0x4] %vm619, %v618
    %s626 = scalar_lea.vmem %s1, 240
    %627 = vst.msk [vmem:[%s626] sm:$0x8] %vm619, %v618
    %v628 = vld [vmem:[#allocation0] sm:$0xf]
    %629 = vrot.lane.b32.xlu0 %v628, 76
    %v630 = vpop.permute.xlu0 %629
    %vm631 = vcmask 7168
    %s632 = scalar_lea.vmem %s1, 52
    %633 = vst.msk [vmem:[%s632] sm:$0x1] %vm631, %v630
    %s634 = scalar_lea.vmem %s1, 115
    %635 = vst.msk [vmem:[%s634] sm:$0x2] %vm631, %v630
    %s636 = scalar_lea.vmem %s1, 178
    %637 = vst.msk [vmem:[%s636] sm:$0x4] %vm631, %v630
    %s638 = scalar_lea.vmem %s1, 241
    %639 = vst.msk [vmem:[%s638] sm:$0x8] %vm631, %v630
    %v640 = vld [vmem:[#allocation0] sm:$0xf]
    %641 = vrot.lane.b32.xlu0 %v640, 75
    %v642 = vpop.permute.xlu0 %641
    %vm643 = vcmask 7168
    %s644 = scalar_lea.vmem %s1, 53
    %645 = vst.msk [vmem:[%s644] sm:$0x1] %vm643, %v642
    %s646 = scalar_lea.vmem %s1, 116
    %647 = vst.msk [vmem:[%s646] sm:$0x2] %vm643, %v642
    %s648 = scalar_lea.vmem %s1, 179
    %649 = vst.msk [vmem:[%s648] sm:$0x4] %vm643, %v642
    %s650 = scalar_lea.vmem %s1, 242
    %651 = vst.msk [vmem:[%s650] sm:$0x8] %vm643, %v642
    %v652 = vld [vmem:[#allocation0] sm:$0xf]
    %653 = vrot.lane.b32.xlu0 %v652, 74
    %v654 = vpop.permute.xlu0 %653
    %vm655 = vcmask 7168
    %s656 = scalar_lea.vmem %s1, 54
    %657 = vst.msk [vmem:[%s656] sm:$0x1] %vm655, %v654
    %s658 = scalar_lea.vmem %s1, 117
    %659 = vst.msk [vmem:[%s658] sm:$0x2] %vm655, %v654
    %s660 = scalar_lea.vmem %s1, 180
    %661 = vst.msk [vmem:[%s660] sm:$0x4] %vm655, %v654
    %s662 = scalar_lea.vmem %s1, 243
    %663 = vst.msk [vmem:[%s662] sm:$0x8] %vm655, %v654
    %v664 = vld [vmem:[#allocation0] sm:$0xf]
    %665 = vrot.lane.b32.xlu0 %v664, 73
    %v666 = vpop.permute.xlu0 %665
    %vm667 = vcmask 7168
    %s668 = scalar_lea.vmem %s1, 55
    %669 = vst.msk [vmem:[%s668] sm:$0x1] %vm667, %v666
    %s670 = scalar_lea.vmem %s1, 118
    %671 = vst.msk [vmem:[%s670] sm:$0x2] %vm667, %v666
    %s672 = scalar_lea.vmem %s1, 181
    %673 = vst.msk [vmem:[%s672] sm:$0x4] %vm667, %v666
    %s674 = scalar_lea.vmem %s1, 244
    %675 = vst.msk [vmem:[%s674] sm:$0x8] %vm667, %v666
    %v676 = vld [vmem:[#allocation0] sm:$0xf]
    %677 = vrot.lane.b32.xlu0 %v676, 72
    %v678 = vpop.permute.xlu0 %677
    %vm679 = vcmask 7168
    %s680 = scalar_lea.vmem %s1, 56
    %681 = vst.msk [vmem:[%s680] sm:$0x1] %vm679, %v678
    %s682 = scalar_lea.vmem %s1, 119
    %683 = vst.msk [vmem:[%s682] sm:$0x2] %vm679, %v678
    %s684 = scalar_lea.vmem %s1, 182
    %685 = vst.msk [vmem:[%s684] sm:$0x4] %vm679, %v678
    %s686 = scalar_lea.vmem %s1, 245
    %687 = vst.msk [vmem:[%s686] sm:$0x8] %vm679, %v678
    %v688 = vld [vmem:[#allocation0] sm:$0xf]
    %689 = vrot.lane.b32.xlu0 %v688, 71
    %v690 = vpop.permute.xlu0 %689
    %vm691 = vcmask 7168
    %s692 = scalar_lea.vmem %s1, 57
    %693 = vst.msk [vmem:[%s692] sm:$0x1] %vm691, %v690
    %s694 = scalar_lea.vmem %s1, 120
    %695 = vst.msk [vmem:[%s694] sm:$0x2] %vm691, %v690
    %s696 = scalar_lea.vmem %s1, 183
    %697 = vst.msk [vmem:[%s696] sm:$0x4] %vm691, %v690
    %s698 = scalar_lea.vmem %s1, 246
    %699 = vst.msk [vmem:[%s698] sm:$0x8] %vm691, %v690
    %v700 = vld [vmem:[#allocation0] sm:$0xf]
    %701 = vrot.lane.b32.xlu0 %v700, 70
    %v702 = vpop.permute.xlu0 %701
    %vm703 = vcmask 7168
    %s704 = scalar_lea.vmem %s1, 58
    %705 = vst.msk [vmem:[%s704] sm:$0x1] %vm703, %v702
    %s706 = scalar_lea.vmem %s1, 121
    %707 = vst.msk [vmem:[%s706] sm:$0x2] %vm703, %v702
    %s708 = scalar_lea.vmem %s1, 184
    %709 = vst.msk [vmem:[%s708] sm:$0x4] %vm703, %v702
    %s710 = scalar_lea.vmem %s1, 247
    %711 = vst.msk [vmem:[%s710] sm:$0x8] %vm703, %v702
    %v712 = vld [vmem:[#allocation0] sm:$0xf]
    %713 = vrot.lane.b32.xlu0 %v712, 69
    %v714 = vpop.permute.xlu0 %713
    %vm715 = vcmask 7168
    %s716 = scalar_lea.vmem %s1, 59
    %717 = vst.msk [vmem:[%s716] sm:$0x1] %vm715, %v714
    %s718 = scalar_lea.vmem %s1, 122
    %719 = vst.msk [vmem:[%s718] sm:$0x2] %vm715, %v714
    %s720 = scalar_lea.vmem %s1, 185
    %721 = vst.msk [vmem:[%s720] sm:$0x4] %vm715, %v714
    %s722 = scalar_lea.vmem %s1, 248
    %723 = vst.msk [vmem:[%s722] sm:$0x8] %vm715, %v714
    %v724 = vld [vmem:[#allocation0] sm:$0xf]
    %725 = vrot.lane.b32.xlu0 %v724, 68
    %v726 = vpop.permute.xlu0 %725
    %vm727 = vcmask 7168
    %s728 = scalar_lea.vmem %s1, 60
    %729 = vst.msk [vmem:[%s728] sm:$0x1] %vm727, %v726
    %s730 = scalar_lea.vmem %s1, 123
    %731 = vst.msk [vmem:[%s730] sm:$0x2] %vm727, %v726
    %s732 = scalar_lea.vmem %s1, 186
    %733 = vst.msk [vmem:[%s732] sm:$0x4] %vm727, %v726
    %s734 = scalar_lea.vmem %s1, 249
    %735 = vst.msk [vmem:[%s734] sm:$0x8] %vm727, %v726
    %v736 = vld [vmem:[#allocation0] sm:$0xf]
    %737 = vrot.lane.b32.xlu0 %v736, 67
    %v738 = vpop.permute.xlu0 %737
    %vm739 = vcmask 7168
    %s740 = scalar_lea.vmem %s1, 61
    %741 = vst.msk [vmem:[%s740] sm:$0x1] %vm739, %v738
    %s742 = scalar_lea.vmem %s1, 124
    %743 = vst.msk [vmem:[%s742] sm:$0x2] %vm739, %v738
    %s744 = scalar_lea.vmem %s1, 187
    %745 = vst.msk [vmem:[%s744] sm:$0x4] %vm739, %v738
    %s746 = scalar_lea.vmem %s1, 250
    %747 = vst.msk [vmem:[%s746] sm:$0x8] %vm739, %v738
    %v748 = vld [vmem:[#allocation0] sm:$0xf]
    %749 = vrot.lane.b32.xlu0 %v748, 66
    %v750 = vpop.permute.xlu0 %749
    %vm751 = vcmask 7168
    %s752 = scalar_lea.vmem %s1, 62
    %753 = vst.msk [vmem:[%s752] sm:$0x1] %vm751, %v750
    %s754 = scalar_lea.vmem %s1, 125
    %755 = vst.msk [vmem:[%s754] sm:$0x2] %vm751, %v750
    %s756 = scalar_lea.vmem %s1, 188
    %757 = vst.msk [vmem:[%s756] sm:$0x4] %vm751, %v750
    %s758 = scalar_lea.vmem %s1, 251
    %759 = vst.msk [vmem:[%s758] sm:$0x8] %vm751, %v750
    %v760 = vld [vmem:[#allocation0] sm:$0xf]
    %761 = vrot.lane.b32.xlu0 %v760, 65
    %v762 = vpop.permute.xlu0 %761
    %vm763 = vcmask 7168
    %s764 = scalar_lea.vmem %s1, 63
    %765 = vst.msk [vmem:[%s764] sm:$0x1] %vm763, %v762
    %s766 = scalar_lea.vmem %s1, 126
    %767 = vst.msk [vmem:[%s766] sm:$0x2] %vm763, %v762
    %s768 = scalar_lea.vmem %s1, 189
    %769 = vst.msk [vmem:[%s768] sm:$0x4] %vm763, %v762
    %s770 = scalar_lea.vmem %s1, 252
    %771 = vst.msk [vmem:[%s770] sm:$0x8] %vm763, %v762

// kernel: autoencoder_forward.7
$region0: #{autoencoder_forward.7}
  #allocation0 [shape = 'u32[]', space=smem, size = 0x4, offset = 0x4, fixed_abs, tag = 'smem constant byte address 0x4 - core index']
  #allocation1 [shape = 'u32[144,128]{1,0:T(1,128)}', space=vmem, size = 0x12000, scoped, tag = 'internal scratch']
  %s0 = inlined_call_operand.vmem [shape: bf16[2,32,290], index: 0, kind: input, shape index: {}]
  %s1 = inlined_call_operand.vmem [shape: bf16[64,288], index: 1, kind: input, shape index: {}]
  %s2 = inlined_call_operand.vmem [shape: f32[64,1], index: 2, kind: input, shape index: {}]
  %s3 = inlined_call_operand.vmem [shape: bf16[4,256,64], index: 3, kind: input, shape index: {}]
  %s4 = inlined_call_operand.vmem [shape: bf16[2,64,64], index: 4, kind: output, shape index: {}]
  %s5 = sld [smem:[#allocation0]]
  $region49: #{autoencoder_forward.7} parent=0
    _
  %s7 = ssub.s32 1, %s5
  %s8 = scalar_select 0, %s7, %s5
  loop: start=0, step=1, limit=4
  $region2: #{autoencoder_forward.7} parent=0 // loop_pre_header
    _
  $region3: #{autoencoder_forward.7} parent=0 // loop_header
    %s10 = sphi 0, %s14
    %p11 = scmp.ge.s32.totalorder %s10, 4
    %s20 = sphi 0, %s22
    %s23 = sphi 0, %s20
    %s24 = sphi 0, %s23
    %s40 = sphi 0, %s24
    %s44 = sphi 0, %s44
    %s46 = sphi 0, %s44
    %s47 = sphi 0, %s46
    %s61 = sphi 0, %s47
    %s65 = sphi 0, %s65
    %s67 = sphi 0, %s65
    %s68 = sphi 0, %s67
    %s82 = sphi 0, %s68
    %s86 = sphi 0, %s86
    %s88 = sphi 0, %s86
    %s89 = sphi 0, %s88
    %s103 = sphi 0, %s89
    %s109 = sphi 0, %s111
    %s112 = sphi 0, %s109
    %s113 = sphi 0, %s112
    %s129 = sphi 0, %s113
  $region4: #{autoencoder_forward.7} parent=0 // loop_header_branch
    %13 = sbr.rel (%p11) target = $region8
  $region5: #{autoencoder_forward.7} parent=0 // loop_body
    %s15 = ssub.s32 %s10, 1
    %s16 = ssub.s32 %s10, 2
    %s17 = sadd.s32 %s10, 1
    %s18 = ssub.s32 %s10, %s17
    %p19 = scmp.eq.s32.totalorder %s18, 0
    %s21 = sadd.s32 %s20, 1
    %s22 = scalar_select %p19, %s20, %s21
    %p25 = pneg %p19
    %p26 = scmp.eq.s32.totalorder %s10, 1
    %p27 = por %p25, %p26
    %p28 = scmp.ne.s32.totalorder %s20, %s23
    %p29 = scmp.eq.s32.totalorder %s10, 0
    %p30 = por %p28, %p29
    %p31 = scmp.ne.s32.totalorder %s20, %s23
    %p32 = scmp.eq.s32.totalorder %s15, 1
    %p33 = por %p31, %p32
    %p34 = scmp.ne.s32.totalorder %s23, %s24
    %p35 = scmp.eq.s32.totalorder %s15, 0
    %p36 = por %p34, %p35
    %p37 = scmp.ne.s32.totalorder %s23, %s24
    %p38 = scmp.eq.s32.totalorder %s16, 1
    %p39 = por %p37, %p38
    %p41 = scmp.ne.s32.totalorder %s24, %s40
    %p42 = scmp.eq.s32.totalorder %s16, 0
    %p43 = por %p41, %p42
    %s45 = sadd.s32 %s44, 1
    %p48 = scmp.eq.s32.totalorder %s10, 1
    %p49 = scmp.ne.s32.totalorder %s44, %s46
    %p50 = scmp.eq.s32.totalorder %s10, 0
    %p51 = por %p49, %p50
    %p52 = scmp.ne.s32.totalorder %s44, %s46
    %p53 = scmp.eq.s32.totalorder %s15, 1
    %p54 = por %p52, %p53
    %p55 = scmp.ne.s32.totalorder %s46, %s47
    %p56 = scmp.eq.s32.totalorder %s15, 0
    %p57 = por %p55, %p56
    %p58 = scmp.ne.s32.totalorder %s46, %s47
    %p59 = scmp.eq.s32.totalorder %s16, 1
    %p60 = por %p58, %p59
    %p62 = scmp.ne.s32.totalorder %s47, %s61
    %p63 = scmp.eq.s32.totalorder %s16, 0
    %p64 = por %p62, %p63
    %s66 = sadd.s32 %s65, 1
    %p69 = scmp.eq.s32.totalorder %s10, 1
    %p70 = scmp.ne.s32.totalorder %s65, %s67
    %p71 = scmp.eq.s32.totalorder %s10, 0
    %p72 = por %p70, %p71
    %p73 = scmp.ne.s32.totalorder %s65, %s67
    %p74 = scmp.eq.s32.totalorder %s15, 1
    %p75 = por %p73, %p74
    %p76 = scmp.ne.s32.totalorder %s67, %s68
    %p77 = scmp.eq.s32.totalorder %s15, 0
    %p78 = por %p76, %p77
    %p79 = scmp.ne.s32.totalorder %s67, %s68
    %p80 = scmp.eq.s32.totalorder %s16, 1
    %p81 = por %p79, %p80
    %p83 = scmp.ne.s32.totalorder %s68, %s82
    %p84 = scmp.eq.s32.totalorder %s16, 0
    %p85 = por %p83, %p84
    %s87 = sadd.s32 %s86, 1
    %p90 = scmp.eq.s32.totalorder %s10, 1
    %p91 = scmp.ne.s32.totalorder %s86, %s88
    %p92 = scmp.eq.s32.totalorder %s10, 0
    %p93 = por %p91, %p92
    %p94 = scmp.ne.s32.totalorder %s86, %s88
    %p95 = scmp.eq.s32.totalorder %s15, 1
    %p96 = por %p94, %p95
    %p97 = scmp.ne.s32.totalorder %s88, %s89
    %p98 = scmp.eq.s32.totalorder %s15, 0
    %p99 = por %p97, %p98
    %p100 = scmp.ne.s32.totalorder %s88, %s89
    %p101 = scmp.eq.s32.totalorder %s16, 1
    %p102 = por %p100, %p101
    %p104 = scmp.ne.s32.totalorder %s89, %s103
    %p105 = scmp.eq.s32.totalorder %s16, 0
    %p106 = por %p104, %p105
    %s107 = ssub.s32 %s10, %s17
    %p108 = scmp.eq.s32.totalorder %s107, 0
    %s110 = sadd.s32 %s109, 1
    %s111 = scalar_select %p108, %s109, %s110
    %p114 = pneg %p108
    %p115 = scmp.eq.s32.totalorder %s10, 1
    %p116 = por %p114, %p115
    %p117 = scmp.ne.s32.totalorder %s109, %s112
    %p118 = scmp.eq.s32.totalorder %s10, 0
    %p119 = por %p117, %p118
    %p120 = scmp.ne.s32.totalorder %s109, %s112
    %p121 = scmp.eq.s32.totalorder %s15, 1
    %p122 = por %p120, %p121
    %p123 = scmp.ne.s32.totalorder %s112, %s113
    %p124 = scmp.eq.s32.totalorder %s15, 0
    %p125 = por %p123, %p124
    %p126 = scmp.ne.s32.totalorder %s112, %s113
    %p127 = scmp.eq.s32.totalorder %s16, 1
    %p128 = por %p126, %p127
    %p130 = scmp.ne.s32.totalorder %s113, %s129
    %p131 = scmp.eq.s32.totalorder %s16, 0
    %p132 = por %p130, %p131
    %p133 = scmp.le.s32.totalorder 1, %s10
    %p134 = scmp.lt.s32.totalorder %s10, 3
    %p135 = pnand %p133, %p134
    %p136 = pneg %p135
    // Predicated region
    $region9: #{autoencoder_forward.7} parent=5 // pred_check
      _
    $region10: #{autoencoder_forward.7} parent=5 // pred_check_branch
      %138 = sbr.rel (%p135) target = $region12
    $region11: #{autoencoder_forward.7} parent=5 // pred_region
      %s139 = ssub.s32 %s10, 1
      // Predicated region
      $region13: #{autoencoder_forward.7} parent=11 // pred_check
        %p140 = pneg %p57
      $region14: #{autoencoder_forward.7} parent=11 // pred_check_branch
        %142 = sbr.rel (%p140) target = $region16
      $region15: #{autoencoder_forward.7} parent=11 // pred_region
        _
      $region16: #{autoencoder_forward.7} parent=11 // pred_fallthru
        _
      // Predicated region
      $region17: #{autoencoder_forward.7} parent=11 // pred_check
        %p143 = pneg %p78
      $region18: #{autoencoder_forward.7} parent=11 // pred_check_branch
        %145 = sbr.rel (%p143) target = $region20
      $region19: #{autoencoder_forward.7} parent=11 // pred_region
        _
      $region20: #{autoencoder_forward.7} parent=11 // pred_fallthru
        _
      // Predicated region
      $region21: #{autoencoder_forward.7} parent=11 // pred_check
        %p146 = pneg %p99
      $region22: #{autoencoder_forward.7} parent=11 // pred_check_branch
        %148 = sbr.rel (%p146) target = $region24
      $region23: #{autoencoder_forward.7} parent=11 // pred_region
        _
      $region24: #{autoencoder_forward.7} parent=11 // pred_fallthru
        _
    $region12: #{autoencoder_forward.7} parent=5 // pred_fallthru
      _
    %p149 = scmp.lt.s32.totalorder %s10, 2
    // Predicated region
    $region25: #{autoencoder_forward.7} parent=5 // pred_check
      %p150 = pneg %p149
    $region26: #{autoencoder_forward.7} parent=5 // pred_check_branch
      %152 = sbr.rel (%p150) target = $region28
    $region27: #{autoencoder_forward.7} parent=5 // pred_region
      // Predicated region
      $region29: #{autoencoder_forward.7} parent=27 // pred_check
        %p153 = pneg %p30
      $region30: #{autoencoder_forward.7} parent=27 // pred_check_branch
        %155 = sbr.rel (%p153) target = $region32
      $region31: #{autoencoder_forward.7} parent=27 // pred_region
        %p156 = scmp.lt.s32.totalorder %s10, 1
        %s157 = scalar_select %p156, %s10, 1
        %s158 = smul.addr %s157, 12
        %s159 = smul.addr %s158, 4
        %s160 = scalar_lea.vmem %s0, %s159
      $region32: #{autoencoder_forward.7} parent=27 // pred_fallthru
        _
    $region28: #{autoencoder_forward.7} parent=5 // pred_fallthru
      _
    %p161 = scmp.le.s32.totalorder 1, %s10
    %p162 = scmp.lt.s32.totalorder %s10, 3
    %p163 = pnand %p161, %p162
    %p164 = pneg %p163
    // Predicated region
    $region33: #{autoencoder_forward.7} parent=5 // pred_check
      _
    $region34: #{autoencoder_forward.7} parent=5 // pred_check_branch
      %166 = sbr.rel (%p163) target = $region36
    $region35: #{autoencoder_forward.7} parent=5 // pred_region
      %s167 = ssub.s32 %s10, 1
      %p168 = scmp.lt.s32.totalorder %s15, 1
      %s169 = scalar_select %p168, %s15, 1
      %s170 = smul.addr %s169, 12
      %s171 = smul.addr %s170, 4
      %s172 = scalar_lea.vmem %s0, %s171
      %p173 = pneg %p36
      %p174 = pneg %p33
      %p175 = pneg %p57
      %p176 = pneg %p54
      %p177 = pneg %p78
      %p178 = pneg %p75
      %p179 = pneg %p99
      %p180 = pneg %p96
      %p181 = pneg %p125
      %p182 = pneg %p122
      %p183 = scmp.lt.s32.totalorder %s15, 1
      %s184 = scalar_select %p183, %s15, 1
      %s185 = smul.addr %s184, 8
      %s186 = smul.addr %s185, 4
      %s187 = scalar_lea.vmem %s4, %s186
      %p188 = scmp.lt.s32.totalorder %s15, 1
      %s189 = scalar_select %p188, %s15, 1
      %s190 = smul.addr %s189, 12
      %s191 = smul.addr %s190, 4
      %s192 = scalar_lea.vmem %s0, %s191
      %p193 = scmp.lt.s32.totalorder %s15, 1
      %s194 = scalar_select %p193, %s15, 1
      %s195 = smul.addr %s194, 8
      %s196 = smul.addr %s195, 4
      %s197 = scalar_lea.vmem %s4, %s196
      %v199 = vld [vmem:[%s192] sm:$0xff]
      %v200 = vld [vmem:[%s192 + $0x8] sm:$0xf]
      %v201 = vld [vmem:[%s192 + $0xc] sm:$0xff]
      %v202 = vld [vmem:[%s192 + $0x14] sm:$0xf]
      %v203 = vld [vmem:[%s192 + $0x18] sm:$0xff]
      %v204 = vld [vmem:[%s192 + $0x20] sm:$0xf]
      %v205 = vld [vmem:[%s192 + $0x24] sm:$0xff]
      %v206 = vld [vmem:[%s192 + $0x2c] sm:$0xf]
      %v207 = vunpack.c.l.bf16 %v199
      %v208 = vunpack.c.h.bf16 %v199
      %v209 = vunpack.c.l.bf16 %v200
      %v210 = vunpack.c.l.bf16 %v201
      %v211 = vunpack.c.h.bf16 %v201
      %v212 = vunpack.c.l.bf16 %v202
      %v213 = vunpack.c.l.bf16 %v203
      %v214 = vunpack.c.h.bf16 %v203
      %v215 = vunpack.c.l.bf16 %v204
      %v216 = vunpack.c.l.bf16 %v205
      %v217 = vunpack.c.h.bf16 %v205
      %v218 = vunpack.c.l.bf16 %v206
      %v219 = vlaneseq
      %v220 = vand.u32 %v219, 127
      %v221 = vadd.s32 %v220, 128
      %vm222 = vcmp.lt.s32.totalorder %v220, 0
      %v223 = vsub.s32 0, %v220
      %v224 = vsel %vm222, %v223, %v220
      %v225 = vshrl.u32 %v224, 4
      %v226 = vand.u32 %v224, 15
      %v227 = vsub.s32 0, %v226
      %v228 = vsel %vm222, %v227, %v226
      %vm229 = vcmp.lt.s32.totalorder %v221, 0
      %v230 = vsub.s32 0, %v221
      %v231 = vsel %vm229, %v230, %v221
      %v232 = vshrl.u32 %v231, 4
      %v233 = vand.u32 %v231, 15
      %v234 = vsub.s32 0, %v233
      %v235 = vsel %vm229, %v234, %v233
      %vm236 = vcmp.ne.s32.totalorder %v228, 0
      %vm237 = vcmp.ne.s32.totalorder %v235, 0
      %vm238 = vcmp.lt.s32.totalorder %v228, 0
      %vm239 = vcmp.lt.s32.totalorder %v235, 0
      %vm240 = vmand %vm238, %vm236
      %vm241 = vmand %vm239, %vm237
      %v242 = vadd.s32 %v228, 16
      %v243 = vadd.s32 %v235, 16
      %v244 = vsel %vm240, %v242, %v228
      %v245 = vsel %vm241, %v243, %v235
      %vm246 = vcmp.ge.s32.totalorder %v244, 1
      %vm247 = vcmp.ge.s32.totalorder %v245, 1
      %vm248 = vcmp.lt.s32.totalorder %v244, 17
      %vm249 = vcmp.lt.s32.totalorder %v245, 17
      %vm250 = vmand %vm246, %vm248
      %vm251 = vmand %vm247, %vm249
      %vm252 = vcmp.ge.s32.totalorder %v244, 4294967295
      %vm253 = vcmp.ge.s32.totalorder %v245, 4294967295
      %vm254 = vcmp.lt.s32.totalorder %v244, 15
      %vm255 = vcmp.lt.s32.totalorder %v245, 15
      %vm256 = vmand %vm252, %vm254
      %vm257 = vmand %vm253, %vm255
      %v258 = vsel %vm250, %v207, 0.0
      %v259 = vsel %vm251, %v208, 0.0
      %v260 = vsel %vm250, %v210, 0.0
      %v261 = vsel %vm251, %v211, 0.0
      %v262 = vsel %vm250, %v213, 0.0
      %v263 = vsel %vm251, %v214, 0.0
      %v264 = vsel %vm250, %v216, 0.0
      %v265 = vsel %vm251, %v217, 0.0
      %278 = vrot.lane.b32.xlu0 %v207, 126
      %v279 = vpop.permute.xlu0 %278
      %280 = vrot.lane.b32.xlu0 %v208, 126
      %v281 = vpop.permute.xlu0 %280
      %282 = vrot.lane.b32.xlu0 %v209, 126
      %v283 = vpop.permute.xlu0 %282
      %284 = vrot.lane.b32.xlu0 %v210, 126
      %v285 = vpop.permute.xlu0 %284
      %286 = vrot.lane.b32.xlu0 %v211, 126
      %v287 = vpop.permute.xlu0 %286
      %288 = vrot.lane.b32.xlu0 %v212, 126
      %v289 = vpop.permute.xlu0 %288
      %290 = vrot.lane.b32.xlu0 %v213, 126
      %v291 = vpop.permute.xlu0 %290
      %292 = vrot.lane.b32.xlu0 %v214, 126
      %v293 = vpop.permute.xlu0 %292
      %294 = vrot.lane.b32.xlu0 %v215, 126
      %v295 = vpop.permute.xlu0 %294
      %296 = vrot.lane.b32.xlu0 %v216, 126
      %v297 = vpop.permute.xlu0 %296
      %298 = vrot.lane.b32.xlu0 %v217, 126
      %v299 = vpop.permute.xlu0 %298
      %300 = vrot.lane.b32.xlu0 %v218, 126
      %v301 = vpop.permute.xlu0 %300
      %vm302 = vcmask 1031168
      %v303 = vsel %vm302, %v279, %v281
      %v304 = vsel %vm302, %v281, %v283
      %v305 = vsel %vm302, %v285, %v287
      %v306 = vsel %vm302, %v287, %v289
      %v307 = vsel %vm302, %v291, %v293
      %v308 = vsel %vm302, %v293, %v295
      %v309 = vsel %vm302, %v297, %v299
      %v310 = vsel %vm302, %v299, %v301
      %v319 = vsel %vm256, %v303, 0.0
      %v320 = vsel %vm257, %v304, 0.0
      %v321 = vsel %vm256, %v305, 0.0
      %v322 = vsel %vm257, %v306, 0.0
      %v323 = vsel %vm256, %v307, 0.0
      %v324 = vsel %vm257, %v308, 0.0
      %v325 = vsel %vm256, %v309, 0.0
      %v326 = vsel %vm257, %v310, 0.0
      %327 = vrot.lane.b32.xlu0 %v207, 112
      %v328 = vpop.permute.xlu0 %327
      %329 = vrot.lane.b32.xlu0 %v208, 112
      %v330 = vpop.permute.xlu0 %329
      %331 = vrot.lane.b32.xlu0 %v209, 112
      %v332 = vpop.permute.xlu0 %331
      %333 = vrot.lane.b32.xlu0 %v210, 112
      %v334 = vpop.permute.xlu0 %333
      %335 = vrot.lane.b32.xlu0 %v211, 112
      %v336 = vpop.permute.xlu0 %335
      %337 = vrot.lane.b32.xlu0 %v212, 112
      %v338 = vpop.permute.xlu0 %337
      %339 = vrot.lane.b32.xlu0 %v213, 112
      %v340 = vpop.permute.xlu0 %339
      %341 = vrot.lane.b32.xlu0 %v214, 112
      %v342 = vpop.permute.xlu0 %341
      %343 = vrot.lane.b32.xlu0 %v215, 112
      %v344 = vpop.permute.xlu0 %343
      %345 = vrot.lane.b32.xlu0 %v216, 112
      %v346 = vpop.permute.xlu0 %345
      %347 = vrot.lane.b32.xlu0 %v217, 112
      %v348 = vpop.permute.xlu0 %347
      %349 = vrot.lane.b32.xlu0 %v218, 112
      %v350 = vpop.permute.xlu0 %349
      %vm351 = vcmask 916480
      %v352 = vsel %vm351, %v328, %v330
      %v353 = vsel %vm351, %v330, %v332
      %v354 = vsel %vm351, %v334, %v336
      %v355 = vsel %vm351, %v336, %v338
      %v356 = vsel %vm351, %v340, %v342
      %v357 = vsel %vm351, %v342, %v344
      %v358 = vsel %vm351, %v346, %v348
      %v359 = vsel %vm351, %v348, %v350
      %v368 = vsel %vm250, %v352, 0.0
      %v369 = vsel %vm251, %v353, 0.0
      %v370 = vsel %vm250, %v354, 0.0
      %v371 = vsel %vm251, %v355, 0.0
      %v372 = vsel %vm250, %v356, 0.0
      %v373 = vsel %vm251, %v357, 0.0
      %v374 = vsel %vm250, %v358, 0.0
      %v375 = vsel %vm251, %v359, 0.0
      %376 = vrot.lane.b32.xlu0 %v207, 110
      %v377 = vpop.permute.xlu0 %376
      %378 = vrot.lane.b32.xlu0 %v208, 110
      %v379 = vpop.permute.xlu0 %378
      %380 = vrot.lane.b32.xlu0 %v209, 110
      %v381 = vpop.permute.xlu0 %380
      %382 = vrot.lane.b32.xlu0 %v210, 110
      %v383 = vpop.permute.xlu0 %382
      %384 = vrot.lane.b32.xlu0 %v211, 110
      %v385 = vpop.permute.xlu0 %384
      %386 = vrot.lane.b32.xlu0 %v212, 110
      %v387 = vpop.permute.xlu0 %386
      %388 = vrot.lane.b32.xlu0 %v213, 110
      %v389 = vpop.permute.xlu0 %388
      %390 = vrot.lane.b32.xlu0 %v214, 110
      %v391 = vpop.permute.xlu0 %390
      %392 = vrot.lane.b32.xlu0 %v215, 110
      %v393 = vpop.permute.xlu0 %392
      %394 = vrot.lane.b32.xlu0 %v216, 110
      %v395 = vpop.permute.xlu0 %394
      %396 = vrot.lane.b32.xlu0 %v217, 110
      %v397 = vpop.permute.xlu0 %396
      %398 = vrot.lane.b32.xlu0 %v218, 110
      %v399 = vpop.permute.xlu0 %398
      %vm400 = vcmask 900096
      %v401 = vsel %vm400, %v377, %v379
      %v402 = vsel %vm400, %v379, %v381
      %v403 = vsel %vm400, %v383, %v385
      %v404 = vsel %vm400, %v385, %v387
      %v405 = vsel %vm400, %v389, %v391
      %v406 = vsel %vm400, %v391, %v393
      %v407 = vsel %vm400, %v395, %v397
      %v408 = vsel %vm400, %v397, %v399
      %v417 = vsel %vm256, %v401, 0.0
      %v418 = vsel %vm257, %v402, 0.0
      %v419 = vsel %vm256, %v403, 0.0
      %v420 = vsel %vm257, %v404, 0.0
      %v421 = vsel %vm256, %v405, 0.0
      %v422 = vsel %vm257, %v406, 0.0
      %v423 = vsel %vm256, %v407, 0.0
      %v424 = vsel %vm257, %v408, 0.0
      %425 = vrot.lane.b32.xlu0 %v207, 96
      %v426 = vpop.permute.xlu0 %425
      %427 = vrot.lane.b32.xlu0 %v208, 96
      %v428 = vpop.permute.xlu0 %427
      %429 = vrot.lane.b32.xlu0 %v209, 96
      %v430 = vpop.permute.xlu0 %429
      %431 = vrot.lane.b32.xlu0 %v210, 96
      %v432 = vpop.permute.xlu0 %431
      %433 = vrot.lane.b32.xlu0 %v211, 96
      %v434 = vpop.permute.xlu0 %433
      %435 = vrot.lane.b32.xlu0 %v212, 96
      %v436 = vpop.permute.xlu0 %435
      %437 = vrot.lane.b32.xlu0 %v213, 96
      %v438 = vpop.permute.xlu0 %437
      %439 = vrot.lane.b32.xlu0 %v214, 96
      %v440 = vpop.permute.xlu0 %439
      %441 = vrot.lane.b32.xlu0 %v215, 96
      %v442 = vpop.permute.xlu0 %441
      %443 = vrot.lane.b32.xlu0 %v216, 96
      %v444 = vpop.permute.xlu0 %443
      %445 = vrot.lane.b32.xlu0 %v217, 96
      %v446 = vpop.permute.xlu0 %445
      %447 = vrot.lane.b32.xlu0 %v218, 96
      %v448 = vpop.permute.xlu0 %447
      %vm449 = vcmask 785408
      %v450 = vsel %vm449, %v426, %v428
      %v451 = vsel %vm449, %v428, %v430
      %v452 = vsel %vm449, %v432, %v434
      %v453 = vsel %vm449, %v434, %v436
      %v454 = vsel %vm449, %v438, %v440
      %v455 = vsel %vm449, %v440, %v442
      %v456 = vsel %vm449, %v444, %v446
      %v457 = vsel %vm449, %v446, %v448
      %v466 = vsel %vm250, %v450, 0.0
      %v467 = vsel %vm251, %v451, 0.0
      %v468 = vsel %vm250, %v452, 0.0
      %v469 = vsel %vm251, %v453, 0.0
      %v470 = vsel %vm250, %v454, 0.0
      %v471 = vsel %vm251, %v455, 0.0
      %v472 = vsel %vm250, %v456, 0.0
      %v473 = vsel %vm251, %v457, 0.0
      %474 = vrot.lane.b32.xlu0 %v207, 94
      %v475 = vpop.permute.xlu0 %474
      %476 = vrot.lane.b32.xlu0 %v208, 94
      %v477 = vpop.permute.xlu0 %476
      %478 = vrot.lane.b32.xlu0 %v209, 94
      %v479 = vpop.permute.xlu0 %478
      %480 = vrot.lane.b32.xlu0 %v210, 94
      %v481 = vpop.permute.xlu0 %480
      %482 = vrot.lane.b32.xlu0 %v211, 94
      %v483 = vpop.permute.xlu0 %482
      %484 = vrot.lane.b32.xlu0 %v212, 94
      %v485 = vpop.permute.xlu0 %484
      %486 = vrot.lane.b32.xlu0 %v213, 94
      %v487 = vpop.permute.xlu0 %486
      %488 = vrot.lane.b32.xlu0 %v214, 94
      %v489 = vpop.permute.xlu0 %488
      %490 = vrot.lane.b32.xlu0 %v215, 94
      %v491 = vpop.permute.xlu0 %490
      %492 = vrot.lane.b32.xlu0 %v216, 94
      %v493 = vpop.permute.xlu0 %492
      %494 = vrot.lane.b32.xlu0 %v217, 94
      %v495 = vpop.permute.xlu0 %494
      %496 = vrot.lane.b32.xlu0 %v218, 94
      %v497 = vpop.permute.xlu0 %496
      %vm498 = vcmask 769024
      %v499 = vsel %vm498, %v475, %v477
      %v500 = vsel %vm498, %v477, %v479
      %v501 = vsel %vm498, %v481, %v483
      %v502 = vsel %vm498, %v483, %v485
      %v503 = vsel %vm498, %v487, %v489
      %v504 = vsel %vm498, %v489, %v491
      %v505 = vsel %vm498, %v493, %v495
      %v506 = vsel %vm498, %v495, %v497
      %v515 = vsel %vm256, %v499, 0.0
      %v516 = vsel %vm257, %v500, 0.0
      %v517 = vsel %vm256, %v501, 0.0
      %v518 = vsel %vm257, %v502, 0.0
      %v519 = vsel %vm256, %v503, 0.0
      %v520 = vsel %vm257, %v504, 0.0
      %v521 = vsel %vm256, %v505, 0.0
      %v522 = vsel %vm257, %v506, 0.0
      %523 = vrot.lane.b32.xlu0 %v207, 127
      %v524 = vpop.permute.xlu0 %523
      %525 = vrot.lane.b32.xlu0 %v208, 127
      %v526 = vpop.permute.xlu0 %525
      %527 = vrot.lane.b32.xlu0 %v209, 127
      %v528 = vpop.permute.xlu0 %527
      %529 = vrot.lane.b32.xlu0 %v210, 127
      %v530 = vpop.permute.xlu0 %529
      %531 = vrot.lane.b32.xlu0 %v211, 127
      %v532 = vpop.permute.xlu0 %531
      %533 = vrot.lane.b32.xlu0 %v212, 127
      %v534 = vpop.permute.xlu0 %533
      %535 = vrot.lane.b32.xlu0 %v213, 127
      %v536 = vpop.permute.xlu0 %535
      %537 = vrot.lane.b32.xlu0 %v214, 127
      %v538 = vpop.permute.xlu0 %537
      %539 = vrot.lane.b32.xlu0 %v215, 127
      %v540 = vpop.permute.xlu0 %539
      %541 = vrot.lane.b32.xlu0 %v216, 127
      %v542 = vpop.permute.xlu0 %541
      %543 = vrot.lane.b32.xlu0 %v217, 127
      %v544 = vpop.permute.xlu0 %543
      %545 = vrot.lane.b32.xlu0 %v218, 127
      %v546 = vpop.permute.xlu0 %545
      %vm547 = vcmask 1039360
      %v548 = vsel %vm547, %v524, %v526
      %v549 = vsel %vm547, %v526, %v528
      %v550 = vsel %vm547, %v530, %v532
      %v551 = vsel %vm547, %v532, %v534
      %v552 = vsel %vm547, %v536, %v538
      %v553 = vsel %vm547, %v538, %v540
      %v554 = vsel %vm547, %v542, %v544
      %v555 = vsel %vm547, %v544, %v546
      %564 = vrot.lane.b32.xlu0 %v207, 111
      %v565 = vpop.permute.xlu0 %564
      %566 = vrot.lane.b32.xlu0 %v208, 111
      %v567 = vpop.permute.xlu0 %566
      %568 = vrot.lane.b32.xlu0 %v209, 111
      %v569 = vpop.permute.xlu0 %568
      %570 = vrot.lane.b32.xlu0 %v210, 111
      %v571 = vpop.permute.xlu0 %570
      %572 = vrot.lane.b32.xlu0 %v211, 111
      %v573 = vpop.permute.xlu0 %572
      %574 = vrot.lane.b32.xlu0 %v212, 111
      %v575 = vpop.permute.xlu0 %574
      %576 = vrot.lane.b32.xlu0 %v213, 111
      %v577 = vpop.permute.xlu0 %576
      %578 = vrot.lane.b32.xlu0 %v214, 111
      %v579 = vpop.permute.xlu0 %578
      %580 = vrot.lane.b32.xlu0 %v215, 111
      %v581 = vpop.permute.xlu0 %580
      %582 = vrot.lane.b32.xlu0 %v216, 111
      %v583 = vpop.permute.xlu0 %582
      %584 = vrot.lane.b32.xlu0 %v217, 111
      %v585 = vpop.permute.xlu0 %584
      %586 = vrot.lane.b32.xlu0 %v218, 111
      %v587 = vpop.permute.xlu0 %586
      %vm588 = vcmask 908288
      %v589 = vsel %vm588, %v565, %v567
      %v590 = vsel %vm588, %v567, %v569
      %v591 = vsel %vm588, %v571, %v573
      %v592 = vsel %vm588, %v573, %v575
      %v593 = vsel %vm588, %v577, %v579
      %v594 = vsel %vm588, %v579, %v581
      %v595 = vsel %vm588, %v583, %v585
      %v596 = vsel %vm588, %v585, %v587
      %605 = vrot.lane.b32.xlu0 %v207, 95
      %v606 = vpop.permute.xlu0 %605
      %607 = vrot.lane.b32.xlu0 %v208, 95
      %v608 = vpop.permute.xlu0 %607
      %609 = vrot.lane.b32.xlu0 %v209, 95
      %v610 = vpop.permute.xlu0 %609
      %611 = vrot.lane.b32.xlu0 %v210, 95
      %v612 = vpop.permute.xlu0 %611
      %613 = vrot.lane.b32.xlu0 %v211, 95
      %v614 = vpop.permute.xlu0 %613
      %615 = vrot.lane.b32.xlu0 %v212, 95
      %v616 = vpop.permute.xlu0 %615
      %617 = vrot.lane.b32.xlu0 %v213, 95
      %v618 = vpop.permute.xlu0 %617
      %619 = vrot.lane.b32.xlu0 %v214, 95
      %v620 = vpop.permute.xlu0 %619
      %621 = vrot.lane.b32.xlu0 %v215, 95
      %v622 = vpop.permute.xlu0 %621
      %623 = vrot.lane.b32.xlu0 %v216, 95
      %v624 = vpop.permute.xlu0 %623
      %625 = vrot.lane.b32.xlu0 %v217, 95
      %v626 = vpop.permute.xlu0 %625
      %627 = vrot.lane.b32.xlu0 %v218, 95
      %v628 = vpop.permute.xlu0 %627
      %vm629 = vcmask 777216
      %v630 = vsel %vm629, %v606, %v608
      %v631 = vsel %vm629, %v608, %v610
      %v632 = vsel %vm629, %v612, %v614
      %v633 = vsel %vm629, %v614, %v616
      %v634 = vsel %vm629, %v618, %v620
      %v635 = vsel %vm629, %v620, %v622
      %v636 = vsel %vm629, %v624, %v626
      %v637 = vsel %vm629, %v626, %v628
      %v646 = vpack.c.bf16 %v260, %v258
      %v647 = vpack.c.bf16 %v261, %v259
      %v648 = vpack.c.bf16 %v264, %v262
      %v649 = vpack.c.bf16 %v265, %v263
      %v650 = vpack.c.bf16 %v550, %v548
      %v651 = vpack.c.bf16 %v551, %v549
      %v652 = vpack.c.bf16 %v554, %v552
      %v653 = vpack.c.bf16 %v555, %v553
      %v654 = vpack.c.bf16 %v321, %v319
      %v655 = vpack.c.bf16 %v322, %v320
      %v656 = vpack.c.bf16 %v325, %v323
      %v657 = vpack.c.bf16 %v326, %v324
      %v658 = vpack.c.bf16 %v370, %v368
      %v659 = vpack.c.bf16 %v371, %v369
      %v660 = vpack.c.bf16 %v374, %v372
      %v661 = vpack.c.bf16 %v375, %v373
      %v662 = vpack.c.bf16 %v591, %v589
      %v663 = vpack.c.bf16 %v592, %v590
      %v664 = vpack.c.bf16 %v595, %v593
      %v665 = vpack.c.bf16 %v596, %v594
      %v666 = vpack.c.bf16 %v419, %v417
      %v667 = vpack.c.bf16 %v420, %v418
      %v668 = vpack.c.bf16 %v423, %v421
      %v669 = vpack.c.bf16 %v424, %v422
      %v670 = vpack.c.bf16 %v468, %v466
      %v671 = vpack.c.bf16 %v469, %v467
      %v672 = vpack.c.bf16 %v472, %v470
      %v673 = vpack.c.bf16 %v473, %v471
      %v674 = vpack.c.bf16 %v632, %v630
      %v675 = vpack.c.bf16 %v633, %v631
      %v676 = vpack.c.bf16 %v636, %v634
      %v677 = vpack.c.bf16 %v637, %v635
      %v678 = vpack.c.bf16 %v517, %v515
      %v679 = vpack.c.bf16 %v518, %v516
      %v680 = vpack.c.bf16 %v521, %v519
      %v681 = vpack.c.bf16 %v522, %v520
      %v682 = vld [vmem:[%s1] sm:$0xff]
      %v683 = vld [vmem:[%s1 + $0x8] sm:$0xf]
      %v684 = vld [vmem:[%s1 + $0xc] sm:$0xff]
      %v685 = vld [vmem:[%s1 + $0x14] sm:$0xf]
      %v686 = vld [vmem:[%s1 + $0x18] sm:$0xff]
      %v687 = vld [vmem:[%s1 + $0x20] sm:$0xf]
      %v688 = vld [vmem:[%s1 + $0x24] sm:$0xff]
      %v689 = vld [vmem:[%s1 + $0x2c] sm:$0xf]
      %v690 = vld [vmem:[%s1 + $0x30] sm:$0xff]
      %v691 = vld [vmem:[%s1 + $0x38] sm:$0xf]
      %v692 = vld [vmem:[%s1 + $0x3c] sm:$0xff]
      %v693 = vld [vmem:[%s1 + $0x44] sm:$0xf]
      %v694 = vld [vmem:[%s1 + $0x48] sm:$0xff]
      %v695 = vld [vmem:[%s1 + $0x50] sm:$0xf]
      %v696 = vld [vmem:[%s1 + $0x54] sm:$0xff]
      %v697 = vld [vmem:[%s1 + $0x5c] sm:$0xf]
      %v698 = vld [vmem:[%s2] sm:$0xff]
      %v699 = vld [vmem:[%s2 + $0x8] sm:$0xff]
      %v700 = vld [vmem:[%s2 + $0x10] sm:$0xff]
      %v701 = vld [vmem:[%s2 + $0x18] sm:$0xff]
      %v702 = vld [vmem:[%s2 + $0x20] sm:$0xff]
      %v703 = vld [vmem:[%s2 + $0x28] sm:$0xff]
      %v704 = vld [vmem:[%s2 + $0x30] sm:$0xff]
      %v705 = vld [vmem:[%s2 + $0x38] sm:$0xff]
      %707 = vset.pattern.permute.xlu0 0
      %708 = vperm.xlu0 %707, %v698
      %v709 = vpop.permute.xlu0 %708
      %712 = vset.pattern.permute.xlu0 0
      %713 = vperm.xlu0 %712, %v699
      %v714 = vpop.permute.xlu0 %713
      %717 = vset.pattern.permute.xlu0 0
      %718 = vperm.xlu0 %717, %v700
      %v719 = vpop.permute.xlu0 %718
      %722 = vset.pattern.permute.xlu0 0
      %723 = vperm.xlu0 %722, %v701
      %v724 = vpop.permute.xlu0 %723
      %727 = vset.pattern.permute.xlu0 0
      %728 = vperm.xlu0 %727, %v702
      %v729 = vpop.permute.xlu0 %728
      %732 = vset.pattern.permute.xlu0 0
      %733 = vperm.xlu0 %732, %v703
      %v734 = vpop.permute.xlu0 %733
      %737 = vset.pattern.permute.xlu0 0
      %738 = vperm.xlu0 %737, %v704
      %v739 = vpop.permute.xlu0 %738
      %742 = vset.pattern.permute.xlu0 0
      %743 = vperm.xlu0 %742, %v705
      %v744 = vpop.permute.xlu0 %743
      %v762 = vunpack.c.l.b16 %v682
      %v763 = vunpack.c.h.b16 %v682
      %v764 = vunpack.c.l.b16 %v683
      %v765 = vunpack.c.l.b16 %v684
      %v766 = vunpack.c.h.b16 %v684
      %v767 = vunpack.c.l.b16 %v685
      %v768 = vunpack.c.l.b16 %v686
      %v769 = vunpack.c.h.b16 %v686
      %v770 = vunpack.c.l.b16 %v687
      %v771 = vunpack.c.l.b16 %v688
      %v772 = vunpack.c.h.b16 %v688
      %v773 = vunpack.c.l.b16 %v689
      %v774 = vunpack.c.l.b16 %v690
      %v775 = vunpack.c.h.b16 %v690
      %v776 = vunpack.c.l.b16 %v691
      %v777 = vunpack.c.l.b16 %v692
      %v778 = vunpack.c.h.b16 %v692
      %v779 = vunpack.c.l.b16 %v693
      %v780 = vunpack.c.l.b16 %v694
      %v781 = vunpack.c.h.b16 %v694
      %v782 = vunpack.c.l.b16 %v695
      %v783 = vunpack.c.l.b16 %v696
      %v784 = vunpack.c.h.b16 %v696
      %v785 = vunpack.c.l.b16 %v697
      %v786 = vpack.c.b16 %v765, %v762
      %v787 = vpack.c.b16 %v766, %v763
      %v788 = vpack.c.b16 %v767, %v764
      %v789 = vpack.c.b16 %v771, %v768
      %v790 = vpack.c.b16 %v772, %v769
      %v791 = vpack.c.b16 %v773, %v770
      %v792 = vpack.c.b16 %v777, %v774
      %v793 = vpack.c.b16 %v778, %v775
      %v794 = vpack.c.b16 %v779, %v776
      %v795 = vpack.c.b16 %v783, %v780
      %v796 = vpack.c.b16 %v784, %v781
      %v797 = vpack.c.b16 %v785, %v782
      %vm806 = vcmask 261120
      %v808 = vsel %vm806, %v788, 0
      %v811 = vsel %vm806, %v791, 0
      %v814 = vsel %vm806, %v794, 0
      %v817 = vsel %vm806, %v797, 0
      %819 = vmatprep.subr.bf16.mxu0 %v661
      %820 = vmatpush1.bf16.msra.mxu0 %v660
      %821 = vmatprep.subr.bf16.mxu0 %v659
      %822 = vmatpush1.bf16.msra.mxu0 %v658
      %823 = vmatprep.subr.bf16.mxu0 %v657
      %824 = vmatpush1.bf16.msra.mxu0 %v656
      %825 = vmatprep.subr.bf16.mxu0 %v655
      %826 = vmatpush1.bf16.msra.mxu0 %v654
      %827 = vmatprep.subr.bf16.mxu0 %v653
      %828 = vmatpush1.bf16.msra.mxu0 %v652
      %829 = vmatprep.subr.bf16.mxu0 %v651
      %830 = vmatpush1.bf16.msra.mxu0 %v650
      %831 = vmatprep.subr.bf16.mxu0 %v649
      %832 = vmatpush1.bf16.msra.mxu0 %v648
      %833 = vmatprep.subr.bf16.mxu0 %v647
      %834 = vmatpush1.bf16.msra.mxu0 %v646
      %835 = vmatprep.subr.bf16.mxu0 %v677
      %836 = vmatpush2.bf16.msra.mxu0 %v676
      %837 = vmatprep.subr.bf16.mxu0 %v675
      %838 = vmatpush2.bf16.msra.mxu0 %v674
      %839 = vmatprep.subr.bf16.mxu0 %v673
      %840 = vmatpush2.bf16.msra.mxu0 %v672
      %841 = vmatprep.subr.bf16.mxu0 %v671
      %842 = vmatpush2.bf16.msra.mxu0 %v670
      %843 = vmatprep.subr.bf16.mxu0 %v669
      %844 = vmatpush2.bf16.msra.mxu0 %v668
      %845 = vmatprep.subr.bf16.mxu0 %v667
      %846 = vmatpush2.bf16.msra.mxu0 %v666
      %847 = vmatprep.subr.bf16.mxu0 %v665
      %848 = vmatpush2.bf16.msra.mxu0 %v664
      %849 = vmatprep.subr.bf16.mxu0 %v663
      %850 = vmatpush2.bf16.msra.mxu0 %v662
      %851 = vmatprep.mubr.bf16.mxu0 %v787
      %852 = vmatmul.mubr.bf16.gmra.mxu0 %v786
      %v853 = vpop.f32.mrf.mxu0
      %v854 = vadd.f32 %v709, %v853
      %v855 = vpop.f32.mrf.mxu0
      %v856 = vadd.f32 %v709, %v855
      %v857 = vpop.f32.mrf.mxu0
      %v858 = vadd.f32 %v714, %v857
      %v859 = vpop.f32.mrf.mxu0
      %v860 = vadd.f32 %v714, %v859
      %861 = vmatprep.mubr.bf16.mxu0 %v790
      %862 = vmatmul.mubr.bf16.gmra.mxu0 %v789
      %v863 = vpop.f32.mrf.mxu0
      %v864 = vadd.f32 %v719, %v863
      %v865 = vpop.f32.mrf.mxu0
      %v866 = vadd.f32 %v719, %v865
      %v867 = vpop.f32.mrf.mxu0
      %v868 = vadd.f32 %v724, %v867
      %v869 = vpop.f32.mrf.mxu0
      %v870 = vadd.f32 %v724, %v869
      %871 = vmatprep.mubr.bf16.mxu0 %v793
      %872 = vmatmul.mubr.bf16.gmra.mxu0 %v792
      %v873 = vpop.f32.mrf.mxu0
      %v874 = vadd.f32 %v729, %v873
      %v875 = vpop.f32.mrf.mxu0
      %v876 = vadd.f32 %v729, %v875
      %v877 = vpop.f32.mrf.mxu0
      %v878 = vadd.f32 %v734, %v877
      %v879 = vpop.f32.mrf.mxu0
      %v880 = vadd.f32 %v734, %v879
      %881 = vmatprep.mubr.bf16.mxu0 %v796
      %882 = vmatmul.mubr.bf16.gmra.mxu0 %v795
      %v883 = vpop.f32.mrf.mxu0
      %v884 = vadd.f32 %v739, %v883
      %v885 = vpop.f32.mrf.mxu0
      %v886 = vadd.f32 %v739, %v885
      %v887 = vpop.f32.mrf.mxu0
      %v888 = vadd.f32 %v744, %v887
      %v889 = vpop.f32.mrf.mxu0
      %v890 = vadd.f32 %v744, %v889
      %891 = vdwg.mxu0
      %892 = vmatprep.subr.bf16.mxu0 0
      %893 = vmatpush1.bf16.msra.mxu0 0
      %894 = vmatprep.subr.bf16.mxu0 0
      %895 = vmatpush1.bf16.msra.mxu0 0
      %896 = vmatprep.subr.bf16.mxu0 0
      %897 = vmatpush1.bf16.msra.mxu0 0
      %898 = vmatprep.subr.bf16.mxu0 0
      %899 = vmatpush1.bf16.msra.mxu0 0
      %900 = vmatprep.subr.bf16.mxu0 0
      %901 = vmatpush1.bf16.msra.mxu0 0
      %902 = vmatprep.subr.bf16.mxu0 0
      %903 = vmatpush1.bf16.msra.mxu0 0
      %904 = vmatprep.subr.bf16.mxu0 %v681
      %905 = vmatpush1.bf16.msra.mxu0 %v680
      %906 = vmatprep.subr.bf16.mxu0 %v679
      %907 = vmatpush1.bf16.msra.mxu0 %v678
      %908 = vmatprep.subr.bf16.mxu0 0
      %909 = vmatpush2.bf16.msra.mxu0 0
      %910 = vmatprep.subr.bf16.mxu0 0
      %911 = vmatpush2.bf16.msra.mxu0 0
      %912 = vmatprep.subr.bf16.mxu0 0
      %913 = vmatpush2.bf16.msra.mxu0 0
      %914 = vmatprep.subr.bf16.mxu0 0
      %915 = vmatpush2.bf16.msra.mxu0 0
      %916 = vmatprep.subr.bf16.mxu0 0
      %917 = vmatpush2.bf16.msra.mxu0 0
      %918 = vmatprep.subr.bf16.mxu0 0
      %919 = vmatpush2.bf16.msra.mxu0 0
      %920 = vmatprep.subr.bf16.mxu0 0
      %921 = vmatpush2.bf16.msra.mxu0 0
      %922 = vmatprep.subr.bf16.mxu0 0
      %923 = vmatpush2.bf16.msra.mxu0 0
      %924 = vmatprep.mubr.bf16.mxu0 0
      %925 = vmatmul.mubr.bf16.gmra.mxu0 %v808
      %v926 = vpop.f32.mrf.mxu0
      %v927 = vadd.f32 %v854, %v926
      %v928 = vpop.f32.mrf.mxu0
      %v929 = vadd.f32 %v856, %v928
      %v930 = vpop.f32.mrf.mxu0
      %v931 = vadd.f32 %v858, %v930
      %v932 = vpop.f32.mrf.mxu0
      %v933 = vadd.f32 %v860, %v932
      %934 = vmatprep.mubr.bf16.mxu0 0
      %935 = vmatmul.mubr.bf16.gmra.mxu0 %v811
      %v936 = vpop.f32.mrf.mxu0
      %v937 = vadd.f32 %v864, %v936
      %v938 = vpop.f32.mrf.mxu0
      %v939 = vadd.f32 %v866, %v938
      %v940 = vpop.f32.mrf.mxu0
      %v941 = vadd.f32 %v868, %v940
      %v942 = vpop.f32.mrf.mxu0
      %v943 = vadd.f32 %v870, %v942
      %944 = vmatprep.mubr.bf16.mxu0 0
      %945 = vmatmul.mubr.bf16.gmra.mxu0 %v814
      %v946 = vpop.f32.mrf.mxu0
      %v947 = vadd.f32 %v874, %v946
      %v948 = vpop.f32.mrf.mxu0
      %v949 = vadd.f32 %v876, %v948
      %v950 = vpop.f32.mrf.mxu0
      %v951 = vadd.f32 %v878, %v950
      %v952 = vpop.f32.mrf.mxu0
      %v953 = vadd.f32 %v880, %v952
      %954 = vmatprep.mubr.bf16.mxu0 0
      %955 = vmatmul.mubr.bf16.gmra.mxu0 %v817
      %v956 = vpop.f32.mrf.mxu0
      %v957 = vadd.f32 %v884, %v956
      %v958 = vpop.f32.mrf.mxu0
      %v959 = vadd.f32 %v886, %v958
      %v960 = vpop.f32.mrf.mxu0
      %v961 = vadd.f32 %v888, %v960
      %v962 = vpop.f32.mrf.mxu0
      %v963 = vadd.f32 %v890, %v962
      %964 = vdwg.mxu0
      %v965 = vmax.f32 %v927, 0.0
      %v966 = vmax.f32 %v929, 0.0
      %v967 = vmax.f32 %v931, 0.0
      %v968 = vmax.f32 %v933, 0.0
      %v969 = vmax.f32 %v937, 0.0
      %v970 = vmax.f32 %v939, 0.0
      %v971 = vmax.f32 %v941, 0.0
      %v972 = vmax.f32 %v943, 0.0
      %v973 = vmax.f32 %v947, 0.0
      %v974 = vmax.f32 %v949, 0.0
      %v975 = vmax.f32 %v951, 0.0
      %v976 = vmax.f32 %v953, 0.0
      %v977 = vmax.f32 %v957, 0.0
      %v978 = vmax.f32 %v959, 0.0
      %v979 = vmax.f32 %v961, 0.0
      %v980 = vmax.f32 %v963, 0.0
      %v981 = vpack.c.bf16 %v967, %v965
      %v982 = vpack.c.bf16 %v968, %v966
      %v983 = vpack.c.bf16 %v971, %v969
      %v984 = vpack.c.bf16 %v972, %v970
      %v985 = vpack.c.bf16 %v975, %v973
      %v986 = vpack.c.bf16 %v976, %v974
      %v987 = vpack.c.bf16 %v979, %v977
      %v988 = vpack.c.bf16 %v980, %v978
      %v989 = vld [vmem:[%s3] sm:$0xf]
      %v990 = vld [vmem:[%s3 + $0x4] sm:$0xf]
      %v991 = vld [vmem:[%s3 + $0x8] sm:$0xf]
      %v992 = vld [vmem:[%s3 + $0xc] sm:$0xf]
      %v993 = vld [vmem:[%s3 + $0x10] sm:$0xf]
      %v994 = vld [vmem:[%s3 + $0x14] sm:$0xf]
      %v995 = vld [vmem:[%s3 + $0x18] sm:$0xf]
      %v996 = vld [vmem:[%s3 + $0x1c] sm:$0xf]
      %v997 = vld [vmem:[%s3 + $0x20] sm:$0xf]
      %v998 = vld [vmem:[%s3 + $0x24] sm:$0xf]
      %v999 = vld [vmem:[%s3 + $0x28] sm:$0xf]
      %v1000 = vld [vmem:[%s3 + $0x2c] sm:$0xf]
      %v1001 = vld [vmem:[%s3 + $0x30] sm:$0xf]
      %v1002 = vld [vmem:[%s3 + $0x34] sm:$0xf]
      %v1003 = vld [vmem:[%s3 + $0x38] sm:$0xf]
      %v1004 = vld [vmem:[%s3 + $0x3c] sm:$0xf]
      %v1005 = vld [vmem:[%s3 + $0x40] sm:$0xf]
      %v1006 = vld [vmem:[%s3 + $0x44] sm:$0xf]
      %v1007 = vld [vmem:[%s3 + $0x48] sm:$0xf]
      %v1008 = vld [vmem:[%s3 + $0x4c] sm:$0xf]
      %v1009 = vld [vmem:[%s3 + $0x50] sm:$0xf]
      %v1010 = vld [vmem:[%s3 + $0x54] sm:$0xf]
      %v1011 = vld [vmem:[%s3 + $0x58] sm:$0xf]
      %v1012 = vld [vmem:[%s3 + $0x5c] sm:$0xf]
      %v1013 = vld [vmem:[%s3 + $0x60] sm:$0xf]
      %v1014 = vld [vmem:[%s3 + $0x64] sm:$0xf]
      %v1015 = vld [vmem:[%s3 + $0x68] sm:$0xf]
      %v1016 = vld [vmem:[%s3 + $0x6c] sm:$0xf]
      %v1017 = vld [vmem:[%s3 + $0x70] sm:$0xf]
      %v1018 = vld [vmem:[%s3 + $0x74] sm:$0xf]
      %v1019 = vld [vmem:[%s3 + $0x78] sm:$0xf]
      %v1020 = vld [vmem:[%s3 + $0x7c] sm:$0xf]
      %v1053 = vunpack.c.l.b16 %v989
      %v1054 = vunpack.c.l.b16 %v990
      %v1055 = vunpack.c.l.b16 %v991
      %v1056 = vunpack.c.l.b16 %v992
      %v1057 = vunpack.c.l.b16 %v993
      %v1058 = vunpack.c.l.b16 %v994
      %v1059 = vunpack.c.l.b16 %v995
      %v1060 = vunpack.c.l.b16 %v996
      %v1061 = vunpack.c.l.b16 %v997
      %v1062 = vunpack.c.l.b16 %v998
      %v1063 = vunpack.c.l.b16 %v999
      %v1064 = vunpack.c.l.b16 %v1000
      %v1065 = vunpack.c.l.b16 %v1001
      %v1066 = vunpack.c.l.b16 %v1002
      %v1067 = vunpack.c.l.b16 %v1003
      %v1068 = vunpack.c.l.b16 %v1004
      %v1069 = vunpack.c.l.b16 %v1005
      %v1070 = vunpack.c.l.b16 %v1006
      %v1071 = vunpack.c.l.b16 %v1007
      %v1072 = vunpack.c.l.b16 %v1008
      %v1073 = vunpack.c.l.b16 %v1009
      %v1074 = vunpack.c.l.b16 %v1010
      %v1075 = vunpack.c.l.b16 %v1011
      %v1076 = vunpack.c.l.b16 %v1012
      %v1077 = vunpack.c.l.b16 %v1013
      %v1078 = vunpack.c.l.b16 %v1014
      %v1079 = vunpack.c.l.b16 %v1015
      %v1080 = vunpack.c.l.b16 %v1016
      %v1081 = vunpack.c.l.b16 %v1017
      %v1082 = vunpack.c.l.b16 %v1018
      %v1083 = vunpack.c.l.b16 %v1019
      %v1084 = vunpack.c.l.b16 %v1020
      %v1085 = vpack.c.b16 %v1054, %v1053
      %v1086 = vpack.c.b16 %v1056, %v1055
      %v1087 = vpack.c.b16 %v1058, %v1057
      %v1088 = vpack.c.b16 %v1060, %v1059
      %v1089 = vpack.c.b16 %v1062, %v1061
      %v1090 = vpack.c.b16 %v1064, %v1063
      %v1091 = vpack.c.b16 %v1066, %v1065
      %v1092 = vpack.c.b16 %v1068, %v1067
      %v1093 = vpack.c.b16 %v1070, %v1069
      %v1094 = vpack.c.b16 %v1072, %v1071
      %v1095 = vpack.c.b16 %v1074, %v1073
      %v1096 = vpack.c.b16 %v1076, %v1075
      %v1097 = vpack.c.b16 %v1078, %v1077
      %v1098 = vpack.c.b16 %v1080, %v1079
      %v1099 = vpack.c.b16 %v1082, %v1081
      %v1100 = vpack.c.b16 %v1084, %v1083
      %1117 = vmatprep.subr.bf16.mxu0 0
      %1118 = vmatpush1.bf16.msra.mxu0 %v1092
      %1119 = vmatprep.subr.bf16.mxu0 0
      %1120 = vmatpush1.bf16.msra.mxu0 %v1091
      %1121 = vmatprep.subr.bf16.mxu0 0
      %1122 = vmatpush1.bf16.msra.mxu0 %v1090
      %1123 = vmatprep.subr.bf16.mxu0 0
      %1124 = vmatpush1.bf16.msra.mxu0 %v1089
      %1125 = vmatprep.subr.bf16.mxu0 0
      %1126 = vmatpush1.bf16.msra.mxu0 %v1088
      %1127 = vmatprep.subr.bf16.mxu0 0
      %1128 = vmatpush1.bf16.msra.mxu0 %v1087
      %1129 = vmatprep.subr.bf16.mxu0 0
      %1130 = vmatpush1.bf16.msra.mxu0 %v1086
      %1131 = vmatprep.subr.bf16.mxu0 0
      %1132 = vmatpush1.bf16.msra.mxu0 %v1085
      %1133 = vmatprep.subr.bf16.mxu0 0
      %1134 = vmatpush2.bf16.msra.mxu0 %v1100
      %1135 = vmatprep.subr.bf16.mxu0 0
      %1136 = vmatpush2.bf16.msra.mxu0 %v1099
      %1137 = vmatprep.subr.bf16.mxu0 0
      %1138 = vmatpush2.bf16.msra.mxu0 %v1098
      %1139 = vmatprep.subr.bf16.mxu0 0
      %1140 = vmatpush2.bf16.msra.mxu0 %v1097
      %1141 = vmatprep.subr.bf16.mxu0 0
      %1142 = vmatpush2.bf16.msra.mxu0 %v1096
      %1143 = vmatprep.subr.bf16.mxu0 0
      %1144 = vmatpush2.bf16.msra.mxu0 %v1095
      %1145 = vmatprep.subr.bf16.mxu0 0
      %1146 = vmatpush2.bf16.msra.mxu0 %v1094
      %1147 = vmatprep.subr.bf16.mxu0 0
      %1148 = vmatpush2.bf16.msra.mxu0 %v1093
      %1149 = vmatprep.mubr.bf16.mxu0 %v982
      %1150 = vmatmul.mubr.bf16.gmra.mxu0 %v981
      %v1151 = vpop.f32.mrf.mxu0
      %v1152 = vadd.f32 0.0, %v1151
      %v1153 = vpop.f32.mrf.mxu0
      %v1154 = vpop.f32.mrf.mxu0
      %v1155 = vadd.f32 0.0, %v1154
      %v1156 = vpop.f32.mrf.mxu0
      %1157 = vmatprep.mubr.bf16.mxu0 %v984
      %1158 = vmatmul.mubr.bf16.gmra.mxu0 %v983
      %v1159 = vpop.f32.mrf.mxu0
      %v1160 = vadd.f32 0.0, %v1159
      %v1161 = vpop.f32.mrf.mxu0
      %v1162 = vpop.f32.mrf.mxu0
      %v1163 = vadd.f32 0.0, %v1162
      %v1164 = vpop.f32.mrf.mxu0
      %1165 = vmatprep.mubr.bf16.mxu0 %v986
      %1166 = vmatmul.mubr.bf16.gmra.mxu0 %v985
      %v1167 = vpop.f32.mrf.mxu0
      %v1168 = vadd.f32 0.0, %v1167
      %v1169 = vpop.f32.mrf.mxu0
      %v1170 = vpop.f32.mrf.mxu0
      %v1171 = vadd.f32 0.0, %v1170
      %v1172 = vpop.f32.mrf.mxu0
      %1173 = vmatprep.mubr.bf16.mxu0 %v988
      %1174 = vmatmul.mubr.bf16.gmra.mxu0 %v987
      %v1175 = vpop.f32.mrf.mxu0
      %v1176 = vadd.f32 0.0, %v1175
      %v1177 = vpop.f32.mrf.mxu0
      %v1178 = vpop.f32.mrf.mxu0
      %v1179 = vadd.f32 0.0, %v1178
      %v1180 = vpop.f32.mrf.mxu0
      %1181 = vdwg.mxu0
      %s1182 = scalar_lea.vmem %s3, 128
      %v1183 = vld [vmem:[%s1182] sm:$0xf]
      %v1184 = vld [vmem:[%s1182 + $0x4] sm:$0xf]
      %v1185 = vld [vmem:[%s1182 + $0x8] sm:$0xf]
      %v1186 = vld [vmem:[%s1182 + $0xc] sm:$0xf]
      %v1187 = vld [vmem:[%s1182 + $0x10] sm:$0xf]
      %v1188 = vld [vmem:[%s1182 + $0x14] sm:$0xf]
      %v1189 = vld [vmem:[%s1182 + $0x18] sm:$0xf]
      %v1190 = vld [vmem:[%s1182 + $0x1c] sm:$0xf]
      %v1191 = vld [vmem:[%s1182 + $0x20] sm:$0xf]
      %v1192 = vld [vmem:[%s1182 + $0x24] sm:$0xf]
      %v1193 = vld [vmem:[%s1182 + $0x28] sm:$0xf]
      %v1194 = vld [vmem:[%s1182 + $0x2c] sm:$0xf]
      %v1195 = vld [vmem:[%s1182 + $0x30] sm:$0xf]
      %v1196 = vld [vmem:[%s1182 + $0x34] sm:$0xf]
      %v1197 = vld [vmem:[%s1182 + $0x38] sm:$0xf]
      %v1198 = vld [vmem:[%s1182 + $0x3c] sm:$0xf]
      %v1199 = vld [vmem:[%s1182 + $0x40] sm:$0xf]
      %v1200 = vld [vmem:[%s1182 + $0x44] sm:$0xf]
      %v1201 = vld [vmem:[%s1182 + $0x48] sm:$0xf]
      %v1202 = vld [vmem:[%s1182 + $0x4c] sm:$0xf]
      %v1203 = vld [vmem:[%s1182 + $0x50] sm:$0xf]
      %v1204 = vld [vmem:[%s1182 + $0x54] sm:$0xf]
      %v1205 = vld [vmem:[%s1182 + $0x58] sm:$0xf]
      %v1206 = vld [vmem:[%s1182 + $0x5c] sm:$0xf]
      %v1207 = vld [vmem:[%s1182 + $0x60] sm:$0xf]
      %v1208 = vld [vmem:[%s1182 + $0x64] sm:$0xf]
      %v1209 = vld [vmem:[%s1182 + $0x68] sm:$0xf]
      %v1210 = vld [vmem:[%s1182 + $0x6c] sm:$0xf]
      %v1211 = vld [vmem:[%s1182 + $0x70] sm:$0xf]
      %v1212 = vld [vmem:[%s1182 + $0x74] sm:$0xf]
      %v1213 = vld [vmem:[%s1182 + $0x78] sm:$0xf]
      %v1214 = vld [vmem:[%s1182 + $0x7c] sm:$0xf]
      %v1247 = vunpack.c.l.b16 %v1183
      %v1248 = vunpack.c.l.b16 %v1184
      %v1249 = vunpack.c.l.b16 %v1185
      %v1250 = vunpack.c.l.b16 %v1186
      %v1251 = vunpack.c.l.b16 %v1187
      %v1252 = vunpack.c.l.b16 %v1188
      %v1253 = vunpack.c.l.b16 %v1189
      %v1254 = vunpack.c.l.b16 %v1190
      %v1255 = vunpack.c.l.b16 %v1191
      %v1256 = vunpack.c.l.b16 %v1192
      %v1257 = vunpack.c.l.b16 %v1193
      %v1258 = vunpack.c.l.b16 %v1194
      %v1259 = vunpack.c.l.b16 %v1195
      %v1260 = vunpack.c.l.b16 %v1196
      %v1261 = vunpack.c.l.b16 %v1197
      %v1262 = vunpack.c.l.b16 %v1198
      %v1263 = vunpack.c.l.b16 %v1199
      %v1264 = vunpack.c.l.b16 %v1200
      %v1265 = vunpack.c.l.b16 %v1201
      %v1266 = vunpack.c.l.b16 %v1202
      %v1267 = vunpack.c.l.b16 %v1203
      %v1268 = vunpack.c.l.b16 %v1204
      %v1269 = vunpack.c.l.b16 %v1205
      %v1270 = vunpack.c.l.b16 %v1206
      %v1271 = vunpack.c.l.b16 %v1207
      %v1272 = vunpack.c.l.b16 %v1208
      %v1273 = vunpack.c.l.b16 %v1209
      %v1274 = vunpack.c.l.b16 %v1210
      %v1275 = vunpack.c.l.b16 %v1211
      %v1276 = vunpack.c.l.b16 %v1212
      %v1277 = vunpack.c.l.b16 %v1213
      %v1278 = vunpack.c.l.b16 %v1214
      %v1279 = vpack.c.b16 %v1248, %v1247
      %v1280 = vpack.c.b16 %v1250, %v1249
      %v1281 = vpack.c.b16 %v1252, %v1251
      %v1282 = vpack.c.b16 %v1254, %v1253
      %v1283 = vpack.c.b16 %v1256, %v1255
      %v1284 = vpack.c.b16 %v1258, %v1257
      %v1285 = vpack.c.b16 %v1260, %v1259
      %v1286 = vpack.c.b16 %v1262, %v1261
      %v1287 = vpack.c.b16 %v1264, %v1263
      %v1288 = vpack.c.b16 %v1266, %v1265
      %v1289 = vpack.c.b16 %v1268, %v1267
      %v1290 = vpack.c.b16 %v1270, %v1269
      %v1291 = vpack.c.b16 %v1272, %v1271
      %v1292 = vpack.c.b16 %v1274, %v1273
      %v1293 = vpack.c.b16 %v1276, %v1275
      %v1294 = vpack.c.b16 %v1278, %v1277
      %1311 = vmatprep.subr.bf16.mxu0 0
      %1312 = vmatpush1.bf16.msra.mxu0 %v1286
      %1313 = vmatprep.subr.bf16.mxu0 0
      %1314 = vmatpush1.bf16.msra.mxu0 %v1285
      %1315 = vmatprep.subr.bf16.mxu0 0
      %1316 = vmatpush1.bf16.msra.mxu0 %v1284
      %1317 = vmatprep.subr.bf16.mxu0 0
      %1318 = vmatpush1.bf16.msra.mxu0 %v1283
      %1319 = vmatprep.subr.bf16.mxu0 0
      %1320 = vmatpush1.bf16.msra.mxu0 %v1282
      %1321 = vmatprep.subr.bf16.mxu0 0
      %1322 = vmatpush1.bf16.msra.mxu0 %v1281
      %1323 = vmatprep.subr.bf16.mxu0 0
      %1324 = vmatpush1.bf16.msra.mxu0 %v1280
      %1325 = vmatprep.subr.bf16.mxu0 0
      %1326 = vmatpush1.bf16.msra.mxu0 %v1279
      %1327 = vmatprep.subr.bf16.mxu0 0
      %1328 = vmatpush2.bf16.msra.mxu0 %v1294
      %1329 = vmatprep.subr.bf16.mxu0 0
      %1330 = vmatpush2.bf16.msra.mxu0 %v1293
      %1331 = vmatprep.subr.bf16.mxu0 0
      %1332 = vmatpush2.bf16.msra.mxu0 %v1292
      %1333 = vmatprep.subr.bf16.mxu0 0
      %1334 = vmatpush2.bf16.msra.mxu0 %v1291
      %1335 = vmatprep.subr.bf16.mxu0 0
      %1336 = vmatpush2.bf16.msra.mxu0 %v1290
      %1337 = vmatprep.subr.bf16.mxu0 0
      %1338 = vmatpush2.bf16.msra.mxu0 %v1289
      %1339 = vmatprep.subr.bf16.mxu0 0
      %1340 = vmatpush2.bf16.msra.mxu0 %v1288
      %1341 = vmatprep.subr.bf16.mxu0 0
      %1342 = vmatpush2.bf16.msra.mxu0 %v1287
      %1343 = vmatprep.mubr.bf16.mxu0 %v982
      %1344 = vmatmul.mubr.bf16.gmra.mxu0 %v981
      %v1345 = vpop.f32.mrf.mxu0
      %v1346 = vadd.f32 0.0, %v1345
      %v1347 = vpop.f32.mrf.mxu0
      %v1348 = vpop.f32.mrf.mxu0
      %v1349 = vadd.f32 0.0, %v1348
      %v1350 = vpop.f32.mrf.mxu0
      %1351 = vmatprep.mubr.bf16.mxu0 %v984
      %1352 = vmatmul.mubr.bf16.gmra.mxu0 %v983
      %v1353 = vpop.f32.mrf.mxu0
      %v1354 = vadd.f32 0.0, %v1353
      %v1355 = vpop.f32.mrf.mxu0
      %v1356 = vpop.f32.mrf.mxu0
      %v1357 = vadd.f32 0.0, %v1356
      %v1358 = vpop.f32.mrf.mxu0
      %1359 = vmatprep.mubr.bf16.mxu0 %v986
      %1360 = vmatmul.mubr.bf16.gmra.mxu0 %v985
      %v1361 = vpop.f32.mrf.mxu0
      %v1362 = vadd.f32 0.0, %v1361
      %v1363 = vpop.f32.mrf.mxu0
      %v1364 = vpop.f32.mrf.mxu0
      %v1365 = vadd.f32 0.0, %v1364
      %v1366 = vpop.f32.mrf.mxu0
      %1367 = vmatprep.mubr.bf16.mxu0 %v988
      %1368 = vmatmul.mubr.bf16.gmra.mxu0 %v987
      %v1369 = vpop.f32.mrf.mxu0
      %v1370 = vadd.f32 0.0, %v1369
      %v1371 = vpop.f32.mrf.mxu0
      %v1372 = vpop.f32.mrf.mxu0
      %v1373 = vadd.f32 0.0, %v1372
      %v1374 = vpop.f32.mrf.mxu0
      %1375 = vdwg.mxu0
      %s1376 = scalar_lea.vmem %s3, 256
      %v1377 = vld [vmem:[%s1376] sm:$0xf]
      %v1378 = vld [vmem:[%s1376 + $0x4] sm:$0xf]
      %v1379 = vld [vmem:[%s1376 + $0x8] sm:$0xf]
      %v1380 = vld [vmem:[%s1376 + $0xc] sm:$0xf]
      %v1381 = vld [vmem:[%s1376 + $0x10] sm:$0xf]
      %v1382 = vld [vmem:[%s1376 + $0x14] sm:$0xf]
      %v1383 = vld [vmem:[%s1376 + $0x18] sm:$0xf]
      %v1384 = vld [vmem:[%s1376 + $0x1c] sm:$0xf]
      %v1385 = vld [vmem:[%s1376 + $0x20] sm:$0xf]
      %v1386 = vld [vmem:[%s1376 + $0x24] sm:$0xf]
      %v1387 = vld [vmem:[%s1376 + $0x28] sm:$0xf]
      %v1388 = vld [vmem:[%s1376 + $0x2c] sm:$0xf]
      %v1389 = vld [vmem:[%s1376 + $0x30] sm:$0xf]
      %v1390 = vld [vmem:[%s1376 + $0x34] sm:$0xf]
      %v1391 = vld [vmem:[%s1376 + $0x38] sm:$0xf]
      %v1392 = vld [vmem:[%s1376 + $0x3c] sm:$0xf]
      %v1393 = vld [vmem:[%s1376 + $0x40] sm:$0xf]
      %v1394 = vld [vmem:[%s1376 + $0x44] sm:$0xf]
      %v1395 = vld [vmem:[%s1376 + $0x48] sm:$0xf]
      %v1396 = vld [vmem:[%s1376 + $0x4c] sm:$0xf]
      %v1397 = vld [vmem:[%s1376 + $0x50] sm:$0xf]
      %v1398 = vld [vmem:[%s1376 + $0x54] sm:$0xf]
      %v1399 = vld [vmem:[%s1376 + $0x58] sm:$0xf]
      %v1400 = vld [vmem:[%s1376 + $0x5c] sm:$0xf]
      %v1401 = vld [vmem:[%s1376 + $0x60] sm:$0xf]
      %v1402 = vld [vmem:[%s1376 + $0x64] sm:$0xf]
      %v1403 = vld [vmem:[%s1376 + $0x68] sm:$0xf]
      %v1404 = vld [vmem:[%s1376 + $0x6c] sm:$0xf]
      %v1405 = vld [vmem:[%s1376 + $0x70] sm:$0xf]
      %v1406 = vld [vmem:[%s1376 + $0x74] sm:$0xf]
      %v1407 = vld [vmem:[%s1376 + $0x78] sm:$0xf]
      %v1408 = vld [vmem:[%s1376 + $0x7c] sm:$0xf]
      %v1441 = vunpack.c.l.b16 %v1377
      %v1442 = vunpack.c.l.b16 %v1378
      %v1443 = vunpack.c.l.b16 %v1379
      %v1444 = vunpack.c.l.b16 %v1380
      %v1445 = vunpack.c.l.b16 %v1381
      %v1446 = vunpack.c.l.b16 %v1382
      %v1447 = vunpack.c.l.b16 %v1383
      %v1448 = vunpack.c.l.b16 %v1384
      %v1449 = vunpack.c.l.b16 %v1385
      %v1450 = vunpack.c.l.b16 %v1386
      %v1451 = vunpack.c.l.b16 %v1387
      %v1452 = vunpack.c.l.b16 %v1388
      %v1453 = vunpack.c.l.b16 %v1389
      %v1454 = vunpack.c.l.b16 %v1390
      %v1455 = vunpack.c.l.b16 %v1391
      %v1456 = vunpack.c.l.b16 %v1392
      %v1457 = vunpack.c.l.b16 %v1393
      %v1458 = vunpack.c.l.b16 %v1394
      %v1459 = vunpack.c.l.b16 %v1395
      %v1460 = vunpack.c.l.b16 %v1396
      %v1461 = vunpack.c.l.b16 %v1397
      %v1462 = vunpack.c.l.b16 %v1398
      %v1463 = vunpack.c.l.b16 %v1399
      %v1464 = vunpack.c.l.b16 %v1400
      %v1465 = vunpack.c.l.b16 %v1401
      %v1466 = vunpack.c.l.b16 %v1402
      %v1467 = vunpack.c.l.b16 %v1403
      %v1468 = vunpack.c.l.b16 %v1404
      %v1469 = vunpack.c.l.b16 %v1405
      %v1470 = vunpack.c.l.b16 %v1406
      %v1471 = vunpack.c.l.b16 %v1407
      %v1472 = vunpack.c.l.b16 %v1408
      %v1473 = vpack.c.b16 %v1442, %v1441
      %v1474 = vpack.c.b16 %v1444, %v1443
      %v1475 = vpack.c.b16 %v1446, %v1445
      %v1476 = vpack.c.b16 %v1448, %v1447
      %v1477 = vpack.c.b16 %v1450, %v1449
      %v1478 = vpack.c.b16 %v1452, %v1451
      %v1479 = vpack.c.b16 %v1454, %v1453
      %v1480 = vpack.c.b16 %v1456, %v1455
      %v1481 = vpack.c.b16 %v1458, %v1457
      %v1482 = vpack.c.b16 %v1460, %v1459
      %v1483 = vpack.c.b16 %v1462, %v1461
      %v1484 = vpack.c.b16 %v1464, %v1463
      %v1485 = vpack.c.b16 %v1466, %v1465
      %v1486 = vpack.c.b16 %v1468, %v1467
      %v1487 = vpack.c.b16 %v1470, %v1469
      %v1488 = vpack.c.b16 %v1472, %v1471
      %1505 = vmatprep.subr.bf16.mxu0 0
      %1506 = vmatpush1.bf16.msra.mxu0 %v1480
      %1507 = vmatprep.subr.bf16.mxu0 0
      %1508 = vmatpush1.bf16.msra.mxu0 %v1479
      %1509 = vmatprep.subr.bf16.mxu0 0
      %1510 = vmatpush1.bf16.msra.mxu0 %v1478
      %1511 = vmatprep.subr.bf16.mxu0 0
      %1512 = vmatpush1.bf16.msra.mxu0 %v1477
      %1513 = vmatprep.subr.bf16.mxu0 0
      %1514 = vmatpush1.bf16.msra.mxu0 %v1476
      %1515 = vmatprep.subr.bf16.mxu0 0
      %1516 = vmatpush1.bf16.msra.mxu0 %v1475
      %1517 = vmatprep.subr.bf16.mxu0 0
      %1518 = vmatpush1.bf16.msra.mxu0 %v1474
      %1519 = vmatprep.subr.bf16.mxu0 0
      %1520 = vmatpush1.bf16.msra.mxu0 %v1473
      %1521 = vmatprep.subr.bf16.mxu0 0
      %1522 = vmatpush2.bf16.msra.mxu0 %v1488
      %1523 = vmatprep.subr.bf16.mxu0 0
      %1524 = vmatpush2.bf16.msra.mxu0 %v1487
      %1525 = vmatprep.subr.bf16.mxu0 0
      %1526 = vmatpush2.bf16.msra.mxu0 %v1486
      %1527 = vmatprep.subr.bf16.mxu0 0
      %1528 = vmatpush2.bf16.msra.mxu0 %v1485
      %1529 = vmatprep.subr.bf16.mxu0 0
      %1530 = vmatpush2.bf16.msra.mxu0 %v1484
      %1531 = vmatprep.subr.bf16.mxu0 0
      %1532 = vmatpush2.bf16.msra.mxu0 %v1483
      %1533 = vmatprep.subr.bf16.mxu0 0
      %1534 = vmatpush2.bf16.msra.mxu0 %v1482
      %1535 = vmatprep.subr.bf16.mxu0 0
      %1536 = vmatpush2.bf16.msra.mxu0 %v1481
      %1537 = vmatprep.mubr.bf16.mxu0 %v982
      %1538 = vmatmul.mubr.bf16.gmra.mxu0 %v981
      %v1539 = vpop.f32.mrf.mxu0
      %v1540 = vadd.f32 0.0, %v1539
      %v1541 = vpop.f32.mrf.mxu0
      %v1542 = vpop.f32.mrf.mxu0
      %v1543 = vadd.f32 0.0, %v1542
      %v1544 = vpop.f32.mrf.mxu0
      %1545 = vmatprep.mubr.bf16.mxu0 %v984
      %1546 = vmatmul.mubr.bf16.gmra.mxu0 %v983
      %v1547 = vpop.f32.mrf.mxu0
      %v1548 = vadd.f32 0.0, %v1547
      %v1549 = vpop.f32.mrf.mxu0
      %v1550 = vpop.f32.mrf.mxu0
      %v1551 = vadd.f32 0.0, %v1550
      %v1552 = vpop.f32.mrf.mxu0
      %1553 = vmatprep.mubr.bf16.mxu0 %v986
      %1554 = vmatmul.mubr.bf16.gmra.mxu0 %v985
      %v1555 = vpop.f32.mrf.mxu0
      %v1556 = vadd.f32 0.0, %v1555
      %v1557 = vpop.f32.mrf.mxu0
      %v1558 = vpop.f32.mrf.mxu0
      %v1559 = vadd.f32 0.0, %v1558
      %v1560 = vpop.f32.mrf.mxu0
      %1561 = vmatprep.mubr.bf16.mxu0 %v988
      %1562 = vmatmul.mubr.bf16.gmra.mxu0 %v987
      %v1563 = vpop.f32.mrf.mxu0
      %v1564 = vadd.f32 0.0, %v1563
      %v1565 = vpop.f32.mrf.mxu0
      %v1566 = vpop.f32.mrf.mxu0
      %v1567 = vadd.f32 0.0, %v1566
      %v1568 = vpop.f32.mrf.mxu0
      %1569 = vdwg.mxu0
      %s1570 = scalar_lea.vmem %s3, 384
      %v1571 = vld [vmem:[%s1570] sm:$0xf]
      %v1572 = vld [vmem:[%s1570 + $0x4] sm:$0xf]
      %v1573 = vld [vmem:[%s1570 + $0x8] sm:$0xf]
      %v1574 = vld [vmem:[%s1570 + $0xc] sm:$0xf]
      %v1575 = vld [vmem:[%s1570 + $0x10] sm:$0xf]
      %v1576 = vld [vmem:[%s1570 + $0x14] sm:$0xf]
      %v1577 = vld [vmem:[%s1570 + $0x18] sm:$0xf]
      %v1578 = vld [vmem:[%s1570 + $0x1c] sm:$0xf]
      %v1579 = vld [vmem:[%s1570 + $0x20] sm:$0xf]
      %v1580 = vld [vmem:[%s1570 + $0x24] sm:$0xf]
      %v1581 = vld [vmem:[%s1570 + $0x28] sm:$0xf]
      %v1582 = vld [vmem:[%s1570 + $0x2c] sm:$0xf]
      %v1583 = vld [vmem:[%s1570 + $0x30] sm:$0xf]
      %v1584 = vld [vmem:[%s1570 + $0x34] sm:$0xf]
      %v1585 = vld [vmem:[%s1570 + $0x38] sm:$0xf]
      %v1586 = vld [vmem:[%s1570 + $0x3c] sm:$0xf]
      %v1587 = vld [vmem:[%s1570 + $0x40] sm:$0xf]
      %v1588 = vld [vmem:[%s1570 + $0x44] sm:$0xf]
      %v1589 = vld [vmem:[%s1570 + $0x48] sm:$0xf]
      %v1590 = vld [vmem:[%s1570 + $0x4c] sm:$0xf]
      %v1591 = vld [vmem:[%s1570 + $0x50] sm:$0xf]
      %v1592 = vld [vmem:[%s1570 + $0x54] sm:$0xf]
      %v1593 = vld [vmem:[%s1570 + $0x58] sm:$0xf]
      %v1594 = vld [vmem:[%s1570 + $0x5c] sm:$0xf]
      %v1595 = vld [vmem:[%s1570 + $0x60] sm:$0xf]
      %v1596 = vld [vmem:[%s1570 + $0x64] sm:$0xf]
      %v1597 = vld [vmem:[%s1570 + $0x68] sm:$0xf]
      %v1598 = vld [vmem:[%s1570 + $0x6c] sm:$0xf]
      %v1599 = vld [vmem:[%s1570 + $0x70] sm:$0xf]
      %v1600 = vld [vmem:[%s1570 + $0x74] sm:$0xf]
      %v1601 = vld [vmem:[%s1570 + $0x78] sm:$0xf]
      %v1602 = vld [vmem:[%s1570 + $0x7c] sm:$0xf]
      %v1635 = vunpack.c.l.b16 %v1571
      %v1636 = vunpack.c.l.b16 %v1572
      %v1637 = vunpack.c.l.b16 %v1573
      %v1638 = vunpack.c.l.b16 %v1574
      %v1639 = vunpack.c.l.b16 %v1575
      %v1640 = vunpack.c.l.b16 %v1576
      %v1641 = vunpack.c.l.b16 %v1577
      %v1642 = vunpack.c.l.b16 %v1578
      %v1643 = vunpack.c.l.b16 %v1579
      %v1644 = vunpack.c.l.b16 %v1580
      %v1645 = vunpack.c.l.b16 %v1581
      %v1646 = vunpack.c.l.b16 %v1582
      %v1647 = vunpack.c.l.b16 %v1583
      %v1648 = vunpack.c.l.b16 %v1584
      %v1649 = vunpack.c.l.b16 %v1585
      %v1650 = vunpack.c.l.b16 %v1586
      %v1651 = vunpack.c.l.b16 %v1587
      %v1652 = vunpack.c.l.b16 %v1588
      %v1653 = vunpack.c.l.b16 %v1589
      %v1654 = vunpack.c.l.b16 %v1590
      %v1655 = vunpack.c.l.b16 %v1591
      %v1656 = vunpack.c.l.b16 %v1592
      %v1657 = vunpack.c.l.b16 %v1593
      %v1658 = vunpack.c.l.b16 %v1594
      %v1659 = vunpack.c.l.b16 %v1595
      %v1660 = vunpack.c.l.b16 %v1596
      %v1661 = vunpack.c.l.b16 %v1597
      %v1662 = vunpack.c.l.b16 %v1598
      %v1663 = vunpack.c.l.b16 %v1599
      %v1664 = vunpack.c.l.b16 %v1600
      %v1665 = vunpack.c.l.b16 %v1601
      %v1666 = vunpack.c.l.b16 %v1602
      %v1667 = vpack.c.b16 %v1636, %v1635
      %v1668 = vpack.c.b16 %v1638, %v1637
      %v1669 = vpack.c.b16 %v1640, %v1639
      %v1670 = vpack.c.b16 %v1642, %v1641
      %v1671 = vpack.c.b16 %v1644, %v1643
      %v1672 = vpack.c.b16 %v1646, %v1645
      %v1673 = vpack.c.b16 %v1648, %v1647
      %v1674 = vpack.c.b16 %v1650, %v1649
      %v1675 = vpack.c.b16 %v1652, %v1651
      %v1676 = vpack.c.b16 %v1654, %v1653
      %v1677 = vpack.c.b16 %v1656, %v1655
      %v1678 = vpack.c.b16 %v1658, %v1657
      %v1679 = vpack.c.b16 %v1660, %v1659
      %v1680 = vpack.c.b16 %v1662, %v1661
      %v1681 = vpack.c.b16 %v1664, %v1663
      %v1682 = vpack.c.b16 %v1666, %v1665
      %1699 = vmatprep.subr.bf16.mxu0 0
      %1700 = vmatpush1.bf16.msra.mxu0 %v1674
      %1701 = vmatprep.subr.bf16.mxu0 0
      %1702 = vmatpush1.bf16.msra.mxu0 %v1673
      %1703 = vmatprep.subr.bf16.mxu0 0
      %1704 = vmatpush1.bf16.msra.mxu0 %v1672
      %1705 = vmatprep.subr.bf16.mxu0 0
      %1706 = vmatpush1.bf16.msra.mxu0 %v1671
      %1707 = vmatprep.subr.bf16.mxu0 0
      %1708 = vmatpush1.bf16.msra.mxu0 %v1670
      %1709 = vmatprep.subr.bf16.mxu0 0
      %1710 = vmatpush1.bf16.msra.mxu0 %v1669
      %1711 = vmatprep.subr.bf16.mxu0 0
      %1712 = vmatpush1.bf16.msra.mxu0 %v1668
      %1713 = vmatprep.subr.bf16.mxu0 0
      %1714 = vmatpush1.bf16.msra.mxu0 %v1667
      %1715 = vmatprep.subr.bf16.mxu0 0
      %1716 = vmatpush2.bf16.msra.mxu0 %v1682
      %1717 = vmatprep.subr.bf16.mxu0 0
      %1718 = vmatpush2.bf16.msra.mxu0 %v1681
      %1719 = vmatprep.subr.bf16.mxu0 0
      %1720 = vmatpush2.bf16.msra.mxu0 %v1680
      %1721 = vmatprep.subr.bf16.mxu0 0
      %1722 = vmatpush2.bf16.msra.mxu0 %v1679
      %1723 = vmatprep.subr.bf16.mxu0 0
      %1724 = vmatpush2.bf16.msra.mxu0 %v1678
      %1725 = vmatprep.subr.bf16.mxu0 0
      %1726 = vmatpush2.bf16.msra.mxu0 %v1677
      %1727 = vmatprep.subr.bf16.mxu0 0
      %1728 = vmatpush2.bf16.msra.mxu0 %v1676
      %1729 = vmatprep.subr.bf16.mxu0 0
      %1730 = vmatpush2.bf16.msra.mxu0 %v1675
      %1731 = vmatprep.mubr.bf16.mxu0 %v982
      %1732 = vmatmul.mubr.bf16.gmra.mxu0 %v981
      %v1733 = vpop.f32.mrf.mxu0
      %v1734 = vadd.f32 0.0, %v1733
      %v1735 = vpop.f32.mrf.mxu0
      %v1736 = vpop.f32.mrf.mxu0
      %v1737 = vadd.f32 0.0, %v1736
      %v1738 = vpop.f32.mrf.mxu0
      %1739 = vmatprep.mubr.bf16.mxu0 %v984
      %1740 = vmatmul.mubr.bf16.gmra.mxu0 %v983
      %v1741 = vpop.f32.mrf.mxu0
      %v1742 = vadd.f32 0.0, %v1741
      %v1743 = vpop.f32.mrf.mxu0
      %v1744 = vpop.f32.mrf.mxu0
      %v1745 = vadd.f32 0.0, %v1744
      %v1746 = vpop.f32.mrf.mxu0
      %1747 = vmatprep.mubr.bf16.mxu0 %v986
      %1748 = vmatmul.mubr.bf16.gmra.mxu0 %v985
      %v1749 = vpop.f32.mrf.mxu0
      %v1750 = vadd.f32 0.0, %v1749
      %v1751 = vpop.f32.mrf.mxu0
      %v1752 = vpop.f32.mrf.mxu0
      %v1753 = vadd.f32 0.0, %v1752
      %v1754 = vpop.f32.mrf.mxu0
      %1755 = vmatprep.mubr.bf16.mxu0 %v988
      %1756 = vmatmul.mubr.bf16.gmra.mxu0 %v987
      %v1757 = vpop.f32.mrf.mxu0
      %v1758 = vadd.f32 0.0, %v1757
      %v1759 = vpop.f32.mrf.mxu0
      %v1760 = vpop.f32.mrf.mxu0
      %v1761 = vadd.f32 0.0, %v1760
      %v1762 = vpop.f32.mrf.mxu0
      %1763 = vdwg.mxu0
      %v1764 = vmax.f32 %v1152, %v1346
      %v1765 = vmax.f32 %v1155, %v1349
      %v1766 = vmax.f32 %v1160, %v1354
      %v1767 = vmax.f32 %v1163, %v1357
      %v1768 = vmax.f32 %v1168, %v1362
      %v1769 = vmax.f32 %v1171, %v1365
      %v1770 = vmax.f32 %v1176, %v1370
      %v1771 = vmax.f32 %v1179, %v1373
      %v1772 = vmax.f32 %v1540, %v1734
      %v1773 = vmax.f32 %v1543, %v1737
      %v1774 = vmax.f32 %v1548, %v1742
      %v1775 = vmax.f32 %v1551, %v1745
      %v1776 = vmax.f32 %v1556, %v1750
      %v1777 = vmax.f32 %v1559, %v1753
      %v1778 = vmax.f32 %v1564, %v1758
      %v1779 = vmax.f32 %v1567, %v1761
      %v1780 = vmax.f32 %v1764, %v1772
      %v1781 = vmax.f32 %v1765, %v1773
      %v1782 = vmax.f32 %v1766, %v1774
      %v1783 = vmax.f32 %v1767, %v1775
      %v1784 = vmax.f32 %v1768, %v1776
      %v1785 = vmax.f32 %v1769, %v1777
      %v1786 = vmax.f32 %v1770, %v1778
      %v1787 = vmax.f32 %v1771, %v1779
      %v1788 = vpack.c.bf16 %v1781, %v1780
      %v1789 = vpack.c.bf16 %v1783, %v1782
      %v1790 = vpack.c.bf16 %v1785, %v1784
      %v1791 = vpack.c.bf16 %v1787, %v1786
      %v1796 = vunpack.c.l.b16 %v1788
      %v1797 = vunpack.c.h.b16 %v1788
      %v1798 = vunpack.c.l.b16 %v1789
      %v1799 = vunpack.c.h.b16 %v1789
      %v1800 = vunpack.c.l.b16 %v1790
      %v1801 = vunpack.c.h.b16 %v1790
      %v1802 = vunpack.c.l.b16 %v1791
      %v1803 = vunpack.c.h.b16 %v1791
      %v1804 = vpack.c.b16 %v1796, %v1796
      %v1805 = vpack.c.b16 %v1797, %v1797
      %v1806 = vpack.c.b16 %v1798, %v1798
      %v1807 = vpack.c.b16 %v1799, %v1799
      %v1808 = vpack.c.b16 %v1800, %v1800
      %v1809 = vpack.c.b16 %v1801, %v1801
      %v1810 = vpack.c.b16 %v1802, %v1802
      %v1811 = vpack.c.b16 %v1803, %v1803
      %vm1820 = vcmask 519168
      %1821 = vst.msk [vmem:[%s197] sm:$0xf] %vm1820, %v1804
      %1822 = vst.msk [vmem:[%s197 + $0x4] sm:$0xf] %vm1820, %v1805
      %1823 = vst.msk [vmem:[%s197 + $0x8] sm:$0xf] %vm1820, %v1806
      %1824 = vst.msk [vmem:[%s197 + $0xc] sm:$0xf] %vm1820, %v1807
      %1825 = vst.msk [vmem:[%s197 + $0x10] sm:$0xf] %vm1820, %v1808
      %1826 = vst.msk [vmem:[%s197 + $0x14] sm:$0xf] %vm1820, %v1809
      %1827 = vst.msk [vmem:[%s197 + $0x18] sm:$0xf] %vm1820, %v1810
      %1828 = vst.msk [vmem:[%s197 + $0x1c] sm:$0xf] %vm1820, %v1811
      %p1829 = scmp.lt.s32.totalorder %s15, 1
      %s1830 = scalar_select %p1829, %s15, 1
      %s1831 = smul.addr %s1830, 8
      %s1832 = smul.addr %s1831, 4
      %s1833 = scalar_lea.vmem %s4, %s1832
      // Predicated region
      $region37: #{autoencoder_forward.7} parent=35 // pred_check
        %p1834 = pneg %p122
      $region38: #{autoencoder_forward.7} parent=35 // pred_check_branch
        %1836 = sbr.rel (%p1834) target = $region40
      $region39: #{autoencoder_forward.7} parent=35 // pred_region
        _
      $region40: #{autoencoder_forward.7} parent=35 // pred_fallthru
        _
    $region36: #{autoencoder_forward.7} parent=5 // pred_fallthru
      _
    %p1837 = scmp.le.s32.totalorder 2, %s10
    // Predicated region
    $region41: #{autoencoder_forward.7} parent=5 // pred_check
      %p1838 = pneg %p1837
    $region42: #{autoencoder_forward.7} parent=5 // pred_check_branch
      %1840 = sbr.rel (%p1838) target = $region44
    $region43: #{autoencoder_forward.7} parent=5 // pred_region
      %s1841 = ssub.s32 %s10, 2
      // Predicated region
      $region45: #{autoencoder_forward.7} parent=43 // pred_check
        %p1842 = pneg %p128
      $region46: #{autoencoder_forward.7} parent=43 // pred_check_branch
        %1844 = sbr.rel (%p1842) target = $region48
      $region47: #{autoencoder_forward.7} parent=43 // pred_region
        %p1845 = scmp.lt.s32.totalorder %s16, 1
        %s1846 = scalar_select %p1845, %s16, 1
        %s1847 = smul.addr %s1846, 8
        %s1848 = smul.addr %s1847, 4
        %s1849 = scalar_lea.vmem %s4, %s1848
      $region48: #{autoencoder_forward.7} parent=43 // pred_fallthru
        _
    $region44: #{autoencoder_forward.7} parent=5 // pred_fallthru
      _
  $region6: #{autoencoder_forward.7} parent=0 // loop_footer
    %s14 = sadd.s32 1, %s10
  $region7: #{autoencoder_forward.7} parent=0 // loop_footer_branch
    %9 = sbr.rel target = $region3
  $region8: #{autoencoder_forward.7} parent=0 // loop_exit
    _

// kernel: autoencoder_forward.8
$region0: #{autoencoder_forward.8}
  #allocation0 [shape = 'u32[]', space=smem, size = 0x4, offset = 0x4, fixed_abs, tag = 'smem constant byte address 0x4 - core index']
  #allocation1 [shape = 'u32[144,128]{1,0:T(1,128)}', space=vmem, size = 0x12000, scoped, tag = 'internal scratch']
  %s0 = inlined_call_operand.vmem [shape: bf16[2,64,82], index: 0, kind: input, shape index: {}]
  %s1 = inlined_call_operand.vmem [shape: bf16[128,576], index: 1, kind: input, shape index: {}]
  %s2 = inlined_call_operand.vmem [shape: f32[128,1], index: 2, kind: input, shape index: {}]
  %s3 = inlined_call_operand.vmem [shape: bf16[4,64,16], index: 3, kind: input, shape index: {}]
  %s4 = inlined_call_operand.vmem [shape: bf16[2,128,16], index: 4, kind: output, shape index: {}]
  %s5 = sld [smem:[#allocation0]]
  $region49: #{autoencoder_forward.8} parent=0
    _
  %s7 = ssub.s32 1, %s5
  %s8 = scalar_select 0, %s7, %s5
  loop: start=0, step=1, limit=4
  $region2: #{autoencoder_forward.8} parent=0 // loop_pre_header
    _
  $region3: #{autoencoder_forward.8} parent=0 // loop_header
    %s10 = sphi 0, %s14
    %p11 = scmp.ge.s32.totalorder %s10, 4
    %s20 = sphi 0, %s22
    %s23 = sphi 0, %s20
    %s24 = sphi 0, %s23
    %s40 = sphi 0, %s24
    %s44 = sphi 0, %s44
    %s46 = sphi 0, %s44
    %s47 = sphi 0, %s46
    %s61 = sphi 0, %s47
    %s65 = sphi 0, %s65
    %s67 = sphi 0, %s65
    %s68 = sphi 0, %s67
    %s82 = sphi 0, %s68
    %s86 = sphi 0, %s86
    %s88 = sphi 0, %s86
    %s89 = sphi 0, %s88
    %s103 = sphi 0, %s89
    %s109 = sphi 0, %s111
    %s112 = sphi 0, %s109
    %s113 = sphi 0, %s112
    %s129 = sphi 0, %s113
  $region4: #{autoencoder_forward.8} parent=0 // loop_header_branch
    %13 = sbr.rel (%p11) target = $region8
  $region5: #{autoencoder_forward.8} parent=0 // loop_body
    %s15 = ssub.s32 %s10, 1
    %s16 = ssub.s32 %s10, 2
    %s17 = sadd.s32 %s10, 1
    %s18 = ssub.s32 %s10, %s17
    %p19 = scmp.eq.s32.totalorder %s18, 0
    %s21 = sadd.s32 %s20, 1
    %s22 = scalar_select %p19, %s20, %s21
    %p25 = pneg %p19
    %p26 = scmp.eq.s32.totalorder %s10, 1
    %p27 = por %p25, %p26
    %p28 = scmp.ne.s32.totalorder %s20, %s23
    %p29 = scmp.eq.s32.totalorder %s10, 0
    %p30 = por %p28, %p29
    %p31 = scmp.ne.s32.totalorder %s20, %s23
    %p32 = scmp.eq.s32.totalorder %s15, 1
    %p33 = por %p31, %p32
    %p34 = scmp.ne.s32.totalorder %s23, %s24
    %p35 = scmp.eq.s32.totalorder %s15, 0
    %p36 = por %p34, %p35
    %p37 = scmp.ne.s32.totalorder %s23, %s24
    %p38 = scmp.eq.s32.totalorder %s16, 1
    %p39 = por %p37, %p38
    %p41 = scmp.ne.s32.totalorder %s24, %s40
    %p42 = scmp.eq.s32.totalorder %s16, 0
    %p43 = por %p41, %p42
    %s45 = sadd.s32 %s44, 1
    %p48 = scmp.eq.s32.totalorder %s10, 1
    %p49 = scmp.ne.s32.totalorder %s44, %s46
    %p50 = scmp.eq.s32.totalorder %s10, 0
    %p51 = por %p49, %p50
    %p52 = scmp.ne.s32.totalorder %s44, %s46
    %p53 = scmp.eq.s32.totalorder %s15, 1
    %p54 = por %p52, %p53
    %p55 = scmp.ne.s32.totalorder %s46, %s47
    %p56 = scmp.eq.s32.totalorder %s15, 0
    %p57 = por %p55, %p56
    %p58 = scmp.ne.s32.totalorder %s46, %s47
    %p59 = scmp.eq.s32.totalorder %s16, 1
    %p60 = por %p58, %p59
    %p62 = scmp.ne.s32.totalorder %s47, %s61
    %p63 = scmp.eq.s32.totalorder %s16, 0
    %p64 = por %p62, %p63
    %s66 = sadd.s32 %s65, 1
    %p69 = scmp.eq.s32.totalorder %s10, 1
    %p70 = scmp.ne.s32.totalorder %s65, %s67
    %p71 = scmp.eq.s32.totalorder %s10, 0
    %p72 = por %p70, %p71
    %p73 = scmp.ne.s32.totalorder %s65, %s67
    %p74 = scmp.eq.s32.totalorder %s15, 1
    %p75 = por %p73, %p74
    %p76 = scmp.ne.s32.totalorder %s67, %s68
    %p77 = scmp.eq.s32.totalorder %s15, 0
    %p78 = por %p76, %p77
    %p79 = scmp.ne.s32.totalorder %s67, %s68
    %p80 = scmp.eq.s32.totalorder %s16, 1
    %p81 = por %p79, %p80
    %p83 = scmp.ne.s32.totalorder %s68, %s82
    %p84 = scmp.eq.s32.totalorder %s16, 0
    %p85 = por %p83, %p84
    %s87 = sadd.s32 %s86, 1
    %p90 = scmp.eq.s32.totalorder %s10, 1
    %p91 = scmp.ne.s32.totalorder %s86, %s88
    %p92 = scmp.eq.s32.totalorder %s10, 0
    %p93 = por %p91, %p92
    %p94 = scmp.ne.s32.totalorder %s86, %s88
    %p95 = scmp.eq.s32.totalorder %s15, 1
    %p96 = por %p94, %p95
    %p97 = scmp.ne.s32.totalorder %s88, %s89
    %p98 = scmp.eq.s32.totalorder %s15, 0
    %p99 = por %p97, %p98
    %p100 = scmp.ne.s32.totalorder %s88, %s89
    %p101 = scmp.eq.s32.totalorder %s16, 1
    %p102 = por %p100, %p101
    %p104 = scmp.ne.s32.totalorder %s89, %s103
    %p105 = scmp.eq.s32.totalorder %s16, 0
    %p106 = por %p104, %p105
    %s107 = ssub.s32 %s10, %s17
    %p108 = scmp.eq.s32.totalorder %s107, 0
    %s110 = sadd.s32 %s109, 1
    %s111 = scalar_select %p108, %s109, %s110
    %p114 = pneg %p108
    %p115 = scmp.eq.s32.totalorder %s10, 1
    %p116 = por %p114, %p115
    %p117 = scmp.ne.s32.totalorder %s109, %s112
    %p118 = scmp.eq.s32.totalorder %s10, 0
    %p119 = por %p117, %p118
    %p120 = scmp.ne.s32.totalorder %s109, %s112
    %p121 = scmp.eq.s32.totalorder %s15, 1
    %p122 = por %p120, %p121
    %p123 = scmp.ne.s32.totalorder %s112, %s113
    %p124 = scmp.eq.s32.totalorder %s15, 0
    %p125 = por %p123, %p124
    %p126 = scmp.ne.s32.totalorder %s112, %s113
    %p127 = scmp.eq.s32.totalorder %s16, 1
    %p128 = por %p126, %p127
    %p130 = scmp.ne.s32.totalorder %s113, %s129
    %p131 = scmp.eq.s32.totalorder %s16, 0
    %p132 = por %p130, %p131
    %p133 = scmp.le.s32.totalorder 1, %s10
    %p134 = scmp.lt.s32.totalorder %s10, 3
    %p135 = pnand %p133, %p134
    %p136 = pneg %p135
    // Predicated region
    $region9: #{autoencoder_forward.8} parent=5 // pred_check
      _
    $region10: #{autoencoder_forward.8} parent=5 // pred_check_branch
      %138 = sbr.rel (%p135) target = $region12
    $region11: #{autoencoder_forward.8} parent=5 // pred_region
      %s139 = ssub.s32 %s10, 1
      // Predicated region
      $region13: #{autoencoder_forward.8} parent=11 // pred_check
        %p140 = pneg %p57
      $region14: #{autoencoder_forward.8} parent=11 // pred_check_branch
        %142 = sbr.rel (%p140) target = $region16
      $region15: #{autoencoder_forward.8} parent=11 // pred_region
        _
      $region16: #{autoencoder_forward.8} parent=11 // pred_fallthru
        _
      // Predicated region
      $region17: #{autoencoder_forward.8} parent=11 // pred_check
        %p143 = pneg %p78
      $region18: #{autoencoder_forward.8} parent=11 // pred_check_branch
        %145 = sbr.rel (%p143) target = $region20
      $region19: #{autoencoder_forward.8} parent=11 // pred_region
        _
      $region20: #{autoencoder_forward.8} parent=11 // pred_fallthru
        _
      // Predicated region
      $region21: #{autoencoder_forward.8} parent=11 // pred_check
        %p146 = pneg %p99
      $region22: #{autoencoder_forward.8} parent=11 // pred_check_branch
        %148 = sbr.rel (%p146) target = $region24
      $region23: #{autoencoder_forward.8} parent=11 // pred_region
        _
      $region24: #{autoencoder_forward.8} parent=11 // pred_fallthru
        _
    $region12: #{autoencoder_forward.8} parent=5 // pred_fallthru
      _
    %p149 = scmp.lt.s32.totalorder %s10, 2
    // Predicated region
    $region25: #{autoencoder_forward.8} parent=5 // pred_check
      %p150 = pneg %p149
    $region26: #{autoencoder_forward.8} parent=5 // pred_check_branch
      %152 = sbr.rel (%p150) target = $region28
    $region27: #{autoencoder_forward.8} parent=5 // pred_region
      // Predicated region
      $region29: #{autoencoder_forward.8} parent=27 // pred_check
        %p153 = pneg %p30
      $region30: #{autoencoder_forward.8} parent=27 // pred_check_branch
        %155 = sbr.rel (%p153) target = $region32
      $region31: #{autoencoder_forward.8} parent=27 // pred_region
        %p156 = scmp.lt.s32.totalorder %s10, 1
        %s157 = scalar_select %p156, %s10, 1
        %s158 = smul.addr %s157, 8
        %s159 = smul.addr %s158, 4
        %s160 = scalar_lea.vmem %s0, %s159
      $region32: #{autoencoder_forward.8} parent=27 // pred_fallthru
        _
    $region28: #{autoencoder_forward.8} parent=5 // pred_fallthru
      _
    %p161 = scmp.le.s32.totalorder 1, %s10
    %p162 = scmp.lt.s32.totalorder %s10, 3
    %p163 = pnand %p161, %p162
    %p164 = pneg %p163
    // Predicated region
    $region33: #{autoencoder_forward.8} parent=5 // pred_check
      _
    $region34: #{autoencoder_forward.8} parent=5 // pred_check_branch
      %166 = sbr.rel (%p163) target = $region36
    $region35: #{autoencoder_forward.8} parent=5 // pred_region
      %s167 = ssub.s32 %s10, 1
      %p168 = scmp.lt.s32.totalorder %s15, 1
      %s169 = scalar_select %p168, %s15, 1
      %s170 = smul.addr %s169, 8
      %s171 = smul.addr %s170, 4
      %s172 = scalar_lea.vmem %s0, %s171
      %p173 = pneg %p36
      %p174 = pneg %p33
      %p175 = pneg %p57
      %p176 = pneg %p54
      %p177 = pneg %p78
      %p178 = pneg %p75
      %p179 = pneg %p99
      %p180 = pneg %p96
      %p181 = pneg %p125
      %p182 = pneg %p122
      %p183 = scmp.lt.s32.totalorder %s15, 1
      %s184 = scalar_select %p183, %s15, 1
      %s185 = smul.addr %s184, 16
      %s186 = smul.addr %s185, 4
      %s187 = scalar_lea.vmem %s4, %s186
      %p188 = scmp.lt.s32.totalorder %s15, 1
      %s189 = scalar_select %p188, %s15, 1
      %s190 = smul.addr %s189, 8
      %s191 = smul.addr %s190, 4
      %s192 = scalar_lea.vmem %s0, %s191
      %p193 = scmp.lt.s32.totalorder %s15, 1
      %s194 = scalar_select %p193, %s15, 1
      %s195 = smul.addr %s194, 16
      %s196 = smul.addr %s195, 4
      %s197 = scalar_lea.vmem %s4, %s196
      %v199 = vld [vmem:[%s192] sm:$0xf]
      %v200 = vld [vmem:[%s192 + $0x4] sm:$0xf]
      %v201 = vld [vmem:[%s192 + $0x8] sm:$0xf]
      %v202 = vld [vmem:[%s192 + $0xc] sm:$0xf]
      %v203 = vld [vmem:[%s192 + $0x10] sm:$0xf]
      %v204 = vld [vmem:[%s192 + $0x14] sm:$0xf]
      %v205 = vld [vmem:[%s192 + $0x18] sm:$0xf]
      %v206 = vld [vmem:[%s192 + $0x1c] sm:$0xf]
      %v207 = vunpack.c.l.bf16 %v199
      %v208 = vunpack.c.l.bf16 %v200
      %v209 = vunpack.c.l.bf16 %v201
      %v210 = vunpack.c.l.bf16 %v202
      %v211 = vunpack.c.l.bf16 %v203
      %v212 = vunpack.c.l.bf16 %v204
      %v213 = vunpack.c.l.bf16 %v205
      %v214 = vunpack.c.l.bf16 %v206
      %v215 = vlaneseq
      %v216 = vand.u32 %v215, 127
      %vm217 = vcmp.lt.s32.totalorder %v216, 0
      %v218 = vsub.s32 0, %v216
      %v219 = vsel %vm217, %v218, %v216
      %v220 = vshrl.u32 %v219, 3
      %v221 = vand.u32 %v219, 7
      %v222 = vsub.s32 0, %v221
      %v223 = vsel %vm217, %v222, %v221
      %vm224 = vcmp.ne.s32.totalorder %v223, 0
      %vm225 = vcmp.lt.s32.totalorder %v223, 0
      %vm226 = vmand %vm225, %vm224
      %v227 = vadd.s32 %v223, 8
      %v228 = vsel %vm226, %v227, %v223
      %vm229 = vcmp.ge.s32.totalorder %v228, 1
      %vm230 = vcmp.lt.s32.totalorder %v228, 9
      %vm231 = vmand %vm229, %vm230
      %vm232 = vcmp.ge.s32.totalorder %v228, 4294967295
      %vm233 = vcmp.lt.s32.totalorder %v228, 7
      %vm234 = vmand %vm232, %vm233
      %v235 = vsel %vm231, %v207, 0.0
      %v236 = vsel %vm231, %v208, 0.0
      %v237 = vsel %vm231, %v209, 0.0
      %v238 = vsel %vm231, %v210, 0.0
      %v239 = vsel %vm231, %v211, 0.0
      %v240 = vsel %vm231, %v212, 0.0
      %v241 = vsel %vm231, %v213, 0.0
      %v242 = vsel %vm231, %v214, 0.0
      %251 = vrot.lane.b32.xlu0 %v207, 126
      %v252 = vpop.permute.xlu0 %251
      %253 = vrot.lane.b32.xlu0 %v208, 126
      %v254 = vpop.permute.xlu0 %253
      %255 = vrot.lane.b32.xlu0 %v209, 126
      %v256 = vpop.permute.xlu0 %255
      %257 = vrot.lane.b32.xlu0 %v210, 126
      %v258 = vpop.permute.xlu0 %257
      %259 = vrot.lane.b32.xlu0 %v211, 126
      %v260 = vpop.permute.xlu0 %259
      %261 = vrot.lane.b32.xlu0 %v212, 126
      %v262 = vpop.permute.xlu0 %261
      %263 = vrot.lane.b32.xlu0 %v213, 126
      %v264 = vpop.permute.xlu0 %263
      %265 = vrot.lane.b32.xlu0 %v214, 126
      %v266 = vpop.permute.xlu0 %265
      %v275 = vsel %vm234, %v252, 0.0
      %v276 = vsel %vm234, %v254, 0.0
      %v277 = vsel %vm234, %v256, 0.0
      %v278 = vsel %vm234, %v258, 0.0
      %v279 = vsel %vm234, %v260, 0.0
      %v280 = vsel %vm234, %v262, 0.0
      %v281 = vsel %vm234, %v264, 0.0
      %v282 = vsel %vm234, %v266, 0.0
      %283 = vrot.lane.b32.xlu0 %v207, 120
      %v284 = vpop.permute.xlu0 %283
      %285 = vrot.lane.b32.xlu0 %v208, 120
      %v286 = vpop.permute.xlu0 %285
      %287 = vrot.lane.b32.xlu0 %v209, 120
      %v288 = vpop.permute.xlu0 %287
      %289 = vrot.lane.b32.xlu0 %v210, 120
      %v290 = vpop.permute.xlu0 %289
      %291 = vrot.lane.b32.xlu0 %v211, 120
      %v292 = vpop.permute.xlu0 %291
      %293 = vrot.lane.b32.xlu0 %v212, 120
      %v294 = vpop.permute.xlu0 %293
      %295 = vrot.lane.b32.xlu0 %v213, 120
      %v296 = vpop.permute.xlu0 %295
      %297 = vrot.lane.b32.xlu0 %v214, 120
      %v298 = vpop.permute.xlu0 %297
      %v307 = vsel %vm231, %v284, 0.0
      %v308 = vsel %vm231, %v286, 0.0
      %v309 = vsel %vm231, %v288, 0.0
      %v310 = vsel %vm231, %v290, 0.0
      %v311 = vsel %vm231, %v292, 0.0
      %v312 = vsel %vm231, %v294, 0.0
      %v313 = vsel %vm231, %v296, 0.0
      %v314 = vsel %vm231, %v298, 0.0
      %315 = vrot.lane.b32.xlu0 %v207, 118
      %v316 = vpop.permute.xlu0 %315
      %317 = vrot.lane.b32.xlu0 %v208, 118
      %v318 = vpop.permute.xlu0 %317
      %319 = vrot.lane.b32.xlu0 %v209, 118
      %v320 = vpop.permute.xlu0 %319
      %321 = vrot.lane.b32.xlu0 %v210, 118
      %v322 = vpop.permute.xlu0 %321
      %323 = vrot.lane.b32.xlu0 %v211, 118
      %v324 = vpop.permute.xlu0 %323
      %325 = vrot.lane.b32.xlu0 %v212, 118
      %v326 = vpop.permute.xlu0 %325
      %327 = vrot.lane.b32.xlu0 %v213, 118
      %v328 = vpop.permute.xlu0 %327
      %329 = vrot.lane.b32.xlu0 %v214, 118
      %v330 = vpop.permute.xlu0 %329
      %v339 = vsel %vm234, %v316, 0.0
      %v340 = vsel %vm234, %v318, 0.0
      %v341 = vsel %vm234, %v320, 0.0
      %v342 = vsel %vm234, %v322, 0.0
      %v343 = vsel %vm234, %v324, 0.0
      %v344 = vsel %vm234, %v326, 0.0
      %v345 = vsel %vm234, %v328, 0.0
      %v346 = vsel %vm234, %v330, 0.0
      %347 = vrot.lane.b32.xlu0 %v207, 112
      %v348 = vpop.permute.xlu0 %347
      %349 = vrot.lane.b32.xlu0 %v208, 112
      %v350 = vpop.permute.xlu0 %349
      %351 = vrot.lane.b32.xlu0 %v209, 112
      %v352 = vpop.permute.xlu0 %351
      %353 = vrot.lane.b32.xlu0 %v210, 112
      %v354 = vpop.permute.xlu0 %353
      %355 = vrot.lane.b32.xlu0 %v211, 112
      %v356 = vpop.permute.xlu0 %355
      %357 = vrot.lane.b32.xlu0 %v212, 112
      %v358 = vpop.permute.xlu0 %357
      %359 = vrot.lane.b32.xlu0 %v213, 112
      %v360 = vpop.permute.xlu0 %359
      %361 = vrot.lane.b32.xlu0 %v214, 112
      %v362 = vpop.permute.xlu0 %361
      %v371 = vsel %vm231, %v348, 0.0
      %v372 = vsel %vm231, %v350, 0.0
      %v373 = vsel %vm231, %v352, 0.0
      %v374 = vsel %vm231, %v354, 0.0
      %v375 = vsel %vm231, %v356, 0.0
      %v376 = vsel %vm231, %v358, 0.0
      %v377 = vsel %vm231, %v360, 0.0
      %v378 = vsel %vm231, %v362, 0.0
      %379 = vrot.lane.b32.xlu0 %v207, 110
      %v380 = vpop.permute.xlu0 %379
      %381 = vrot.lane.b32.xlu0 %v208, 110
      %v382 = vpop.permute.xlu0 %381
      %383 = vrot.lane.b32.xlu0 %v209, 110
      %v384 = vpop.permute.xlu0 %383
      %385 = vrot.lane.b32.xlu0 %v210, 110
      %v386 = vpop.permute.xlu0 %385
      %387 = vrot.lane.b32.xlu0 %v211, 110
      %v388 = vpop.permute.xlu0 %387
      %389 = vrot.lane.b32.xlu0 %v212, 110
      %v390 = vpop.permute.xlu0 %389
      %391 = vrot.lane.b32.xlu0 %v213, 110
      %v392 = vpop.permute.xlu0 %391
      %393 = vrot.lane.b32.xlu0 %v214, 110
      %v394 = vpop.permute.xlu0 %393
      %v403 = vsel %vm234, %v380, 0.0
      %v404 = vsel %vm234, %v382, 0.0
      %v405 = vsel %vm234, %v384, 0.0
      %v406 = vsel %vm234, %v386, 0.0
      %v407 = vsel %vm234, %v388, 0.0
      %v408 = vsel %vm234, %v390, 0.0
      %v409 = vsel %vm234, %v392, 0.0
      %v410 = vsel %vm234, %v394, 0.0
      %411 = vrot.lane.b32.xlu0 %v207, 127
      %v412 = vpop.permute.xlu0 %411
      %413 = vrot.lane.b32.xlu0 %v208, 127
      %v414 = vpop.permute.xlu0 %413
      %415 = vrot.lane.b32.xlu0 %v209, 127
      %v416 = vpop.permute.xlu0 %415
      %417 = vrot.lane.b32.xlu0 %v210, 127
      %v418 = vpop.permute.xlu0 %417
      %419 = vrot.lane.b32.xlu0 %v211, 127
      %v420 = vpop.permute.xlu0 %419
      %421 = vrot.lane.b32.xlu0 %v212, 127
      %v422 = vpop.permute.xlu0 %421
      %423 = vrot.lane.b32.xlu0 %v213, 127
      %v424 = vpop.permute.xlu0 %423
      %425 = vrot.lane.b32.xlu0 %v214, 127
      %v426 = vpop.permute.xlu0 %425
      %435 = vrot.lane.b32.xlu0 %v207, 119
      %v436 = vpop.permute.xlu0 %435
      %437 = vrot.lane.b32.xlu0 %v208, 119
      %v438 = vpop.permute.xlu0 %437
      %439 = vrot.lane.b32.xlu0 %v209, 119
      %v440 = vpop.permute.xlu0 %439
      %441 = vrot.lane.b32.xlu0 %v210, 119
      %v442 = vpop.permute.xlu0 %441
      %443 = vrot.lane.b32.xlu0 %v211, 119
      %v444 = vpop.permute.xlu0 %443
      %445 = vrot.lane.b32.xlu0 %v212, 119
      %v446 = vpop.permute.xlu0 %445
      %447 = vrot.lane.b32.xlu0 %v213, 119
      %v448 = vpop.permute.xlu0 %447
      %449 = vrot.lane.b32.xlu0 %v214, 119
      %v450 = vpop.permute.xlu0 %449
      %459 = vrot.lane.b32.xlu0 %v207, 111
      %v460 = vpop.permute.xlu0 %459
      %461 = vrot.lane.b32.xlu0 %v208, 111
      %v462 = vpop.permute.xlu0 %461
      %463 = vrot.lane.b32.xlu0 %v209, 111
      %v464 = vpop.permute.xlu0 %463
      %465 = vrot.lane.b32.xlu0 %v210, 111
      %v466 = vpop.permute.xlu0 %465
      %467 = vrot.lane.b32.xlu0 %v211, 111
      %v468 = vpop.permute.xlu0 %467
      %469 = vrot.lane.b32.xlu0 %v212, 111
      %v470 = vpop.permute.xlu0 %469
      %471 = vrot.lane.b32.xlu0 %v213, 111
      %v472 = vpop.permute.xlu0 %471
      %473 = vrot.lane.b32.xlu0 %v214, 111
      %v474 = vpop.permute.xlu0 %473
      %v483 = vpack.c.bf16 %v236, %v235
      %v484 = vpack.c.bf16 %v238, %v237
      %v485 = vpack.c.bf16 %v240, %v239
      %v486 = vpack.c.bf16 %v242, %v241
      %v487 = vpack.c.bf16 %v414, %v412
      %v488 = vpack.c.bf16 %v418, %v416
      %v489 = vpack.c.bf16 %v422, %v420
      %v490 = vpack.c.bf16 %v426, %v424
      %v491 = vpack.c.bf16 %v276, %v275
      %v492 = vpack.c.bf16 %v278, %v277
      %v493 = vpack.c.bf16 %v280, %v279
      %v494 = vpack.c.bf16 %v282, %v281
      %v495 = vpack.c.bf16 %v308, %v307
      %v496 = vpack.c.bf16 %v310, %v309
      %v497 = vpack.c.bf16 %v312, %v311
      %v498 = vpack.c.bf16 %v314, %v313
      %v499 = vpack.c.bf16 %v438, %v436
      %v500 = vpack.c.bf16 %v442, %v440
      %v501 = vpack.c.bf16 %v446, %v444
      %v502 = vpack.c.bf16 %v450, %v448
      %v503 = vpack.c.bf16 %v340, %v339
      %v504 = vpack.c.bf16 %v342, %v341
      %v505 = vpack.c.bf16 %v344, %v343
      %v506 = vpack.c.bf16 %v346, %v345
      %v507 = vpack.c.bf16 %v372, %v371
      %v508 = vpack.c.bf16 %v374, %v373
      %v509 = vpack.c.bf16 %v376, %v375
      %v510 = vpack.c.bf16 %v378, %v377
      %v511 = vpack.c.bf16 %v462, %v460
      %v512 = vpack.c.bf16 %v466, %v464
      %v513 = vpack.c.bf16 %v470, %v468
      %v514 = vpack.c.bf16 %v474, %v472
      %v515 = vpack.c.bf16 %v404, %v403
      %v516 = vpack.c.bf16 %v406, %v405
      %v517 = vpack.c.bf16 %v408, %v407
      %v518 = vpack.c.bf16 %v410, %v409
      %v519 = vld [vmem:[%s1] sm:$0xff]
      %v520 = vld [vmem:[%s1 + $0x8] sm:$0xff]
      %v521 = vld [vmem:[%s1 + $0x10] sm:$0xf]
      %v522 = vld [vmem:[%s1 + $0x14] sm:$0xff]
      %v523 = vld [vmem:[%s1 + $0x1c] sm:$0xff]
      %v524 = vld [vmem:[%s1 + $0x24] sm:$0xf]
      %v525 = vld [vmem:[%s1 + $0x28] sm:$0xff]
      %v526 = vld [vmem:[%s1 + $0x30] sm:$0xff]
      %v527 = vld [vmem:[%s1 + $0x38] sm:$0xf]
      %v528 = vld [vmem:[%s1 + $0x3c] sm:$0xff]
      %v529 = vld [vmem:[%s1 + $0x44] sm:$0xff]
      %v530 = vld [vmem:[%s1 + $0x4c] sm:$0xf]
      %v531 = vld [vmem:[%s1 + $0x50] sm:$0xff]
      %v532 = vld [vmem:[%s1 + $0x58] sm:$0xff]
      %v533 = vld [vmem:[%s1 + $0x60] sm:$0xf]
      %v534 = vld [vmem:[%s1 + $0x64] sm:$0xff]
      %v535 = vld [vmem:[%s1 + $0x6c] sm:$0xff]
      %v536 = vld [vmem:[%s1 + $0x74] sm:$0xf]
      %v537 = vld [vmem:[%s1 + $0x78] sm:$0xff]
      %v538 = vld [vmem:[%s1 + $0x80] sm:$0xff]
      %v539 = vld [vmem:[%s1 + $0x88] sm:$0xf]
      %v540 = vld [vmem:[%s1 + $0x8c] sm:$0xff]
      %v541 = vld [vmem:[%s1 + $0x94] sm:$0xff]
      %v542 = vld [vmem:[%s1 + $0x9c] sm:$0xf]
      %v543 = vld [vmem:[%s1 + $0xa0] sm:$0xff]
      %v544 = vld [vmem:[%s1 + $0xa8] sm:$0xff]
      %v545 = vld [vmem:[%s1 + $0xb0] sm:$0xf]
      %v546 = vld [vmem:[%s1 + $0xb4] sm:$0xff]
      %v547 = vld [vmem:[%s1 + $0xbc] sm:$0xff]
      %v548 = vld [vmem:[%s1 + $0xc4] sm:$0xf]
      %v549 = vld [vmem:[%s1 + $0xc8] sm:$0xff]
      %v550 = vld [vmem:[%s1 + $0xd0] sm:$0xff]
      %v551 = vld [vmem:[%s1 + $0xd8] sm:$0xf]
      %v552 = vld [vmem:[%s1 + $0xdc] sm:$0xff]
      %v553 = vld [vmem:[%s1 + $0xe4] sm:$0xff]
      %v554 = vld [vmem:[%s1 + $0xec] sm:$0xf]
      %v555 = vld [vmem:[%s1 + $0xf0] sm:$0xff]
      %v556 = vld [vmem:[%s1 + $0xf8] sm:$0xff]
      %v557 = vld [vmem:[%s1 + $0x100] sm:$0xf]
      %v558 = vld [vmem:[%s1 + $0x104] sm:$0xff]
      %v559 = vld [vmem:[%s1 + $0x10c] sm:$0xff]
      %v560 = vld [vmem:[%s1 + $0x114] sm:$0xf]
      %v561 = vld [vmem:[%s1 + $0x118] sm:$0xff]
      %v562 = vld [vmem:[%s1 + $0x120] sm:$0xff]
      %v563 = vld [vmem:[%s1 + $0x128] sm:$0xf]
      %v564 = vld [vmem:[%s1 + $0x12c] sm:$0xff]
      %v565 = vld [vmem:[%s1 + $0x134] sm:$0xff]
      %v566 = vld [vmem:[%s1 + $0x13c] sm:$0xf]
      %v567 = vld [vmem:[%s2] sm:$0xff]
      %v568 = vld [vmem:[%s2 + $0x8] sm:$0xff]
      %v569 = vld [vmem:[%s2 + $0x10] sm:$0xff]
      %v570 = vld [vmem:[%s2 + $0x18] sm:$0xff]
      %v571 = vld [vmem:[%s2 + $0x20] sm:$0xff]
      %v572 = vld [vmem:[%s2 + $0x28] sm:$0xff]
      %v573 = vld [vmem:[%s2 + $0x30] sm:$0xff]
      %v574 = vld [vmem:[%s2 + $0x38] sm:$0xff]
      %v575 = vld [vmem:[%s2 + $0x40] sm:$0xff]
      %v576 = vld [vmem:[%s2 + $0x48] sm:$0xff]
      %v577 = vld [vmem:[%s2 + $0x50] sm:$0xff]
      %v578 = vld [vmem:[%s2 + $0x58] sm:$0xff]
      %v579 = vld [vmem:[%s2 + $0x60] sm:$0xff]
      %v580 = vld [vmem:[%s2 + $0x68] sm:$0xff]
      %v581 = vld [vmem:[%s2 + $0x70] sm:$0xff]
      %v582 = vld [vmem:[%s2 + $0x78] sm:$0xff]
      %584 = vset.pattern.permute.xlu0 0
      %585 = vperm.xlu0 %584, %v567
      %v586 = vpop.permute.xlu0 %585
      %589 = vset.pattern.permute.xlu0 0
      %590 = vperm.xlu0 %589, %v568
      %v591 = vpop.permute.xlu0 %590
      %594 = vset.pattern.permute.xlu0 0
      %595 = vperm.xlu0 %594, %v569
      %v596 = vpop.permute.xlu0 %595
      %599 = vset.pattern.permute.xlu0 0
      %600 = vperm.xlu0 %599, %v570
      %v601 = vpop.permute.xlu0 %600
      %604 = vset.pattern.permute.xlu0 0
      %605 = vperm.xlu0 %604, %v571
      %v606 = vpop.permute.xlu0 %605
      %609 = vset.pattern.permute.xlu0 0
      %610 = vperm.xlu0 %609, %v572
      %v611 = vpop.permute.xlu0 %610
      %614 = vset.pattern.permute.xlu0 0
      %615 = vperm.xlu0 %614, %v573
      %v616 = vpop.permute.xlu0 %615
      %619 = vset.pattern.permute.xlu0 0
      %620 = vperm.xlu0 %619, %v574
      %v621 = vpop.permute.xlu0 %620
      %624 = vset.pattern.permute.xlu0 0
      %625 = vperm.xlu0 %624, %v575
      %v626 = vpop.permute.xlu0 %625
      %629 = vset.pattern.permute.xlu0 0
      %630 = vperm.xlu0 %629, %v576
      %v631 = vpop.permute.xlu0 %630
      %634 = vset.pattern.permute.xlu0 0
      %635 = vperm.xlu0 %634, %v577
      %v636 = vpop.permute.xlu0 %635
      %639 = vset.pattern.permute.xlu0 0
      %640 = vperm.xlu0 %639, %v578
      %v641 = vpop.permute.xlu0 %640
      %644 = vset.pattern.permute.xlu0 0
      %645 = vperm.xlu0 %644, %v579
      %v646 = vpop.permute.xlu0 %645
      %649 = vset.pattern.permute.xlu0 0
      %650 = vperm.xlu0 %649, %v580
      %v651 = vpop.permute.xlu0 %650
      %654 = vset.pattern.permute.xlu0 0
      %655 = vperm.xlu0 %654, %v581
      %v656 = vpop.permute.xlu0 %655
      %659 = vset.pattern.permute.xlu0 0
      %660 = vperm.xlu0 %659, %v582
      %v661 = vpop.permute.xlu0 %660
      %v711 = vunpack.c.l.b16 %v519
      %v712 = vunpack.c.h.b16 %v519
      %v713 = vunpack.c.l.b16 %v520
      %v714 = vunpack.c.h.b16 %v520
      %v715 = vunpack.c.l.b16 %v521
      %v716 = vunpack.c.l.b16 %v522
      %v717 = vunpack.c.h.b16 %v522
      %v718 = vunpack.c.l.b16 %v523
      %v719 = vunpack.c.h.b16 %v523
      %v720 = vunpack.c.l.b16 %v524
      %v721 = vunpack.c.l.b16 %v525
      %v722 = vunpack.c.h.b16 %v525
      %v723 = vunpack.c.l.b16 %v526
      %v724 = vunpack.c.h.b16 %v526
      %v725 = vunpack.c.l.b16 %v527
      %v726 = vunpack.c.l.b16 %v528
      %v727 = vunpack.c.h.b16 %v528
      %v728 = vunpack.c.l.b16 %v529
      %v729 = vunpack.c.h.b16 %v529
      %v730 = vunpack.c.l.b16 %v530
      %v731 = vunpack.c.l.b16 %v531
      %v732 = vunpack.c.h.b16 %v531
      %v733 = vunpack.c.l.b16 %v532
      %v734 = vunpack.c.h.b16 %v532
      %v735 = vunpack.c.l.b16 %v533
      %v736 = vunpack.c.l.b16 %v534
      %v737 = vunpack.c.h.b16 %v534
      %v738 = vunpack.c.l.b16 %v535
      %v739 = vunpack.c.h.b16 %v535
      %v740 = vunpack.c.l.b16 %v536
      %v741 = vunpack.c.l.b16 %v537
      %v742 = vunpack.c.h.b16 %v537
      %v743 = vunpack.c.l.b16 %v538
      %v744 = vunpack.c.h.b16 %v538
      %v745 = vunpack.c.l.b16 %v539
      %v746 = vunpack.c.l.b16 %v540
      %v747 = vunpack.c.h.b16 %v540
      %v748 = vunpack.c.l.b16 %v541
      %v749 = vunpack.c.h.b16 %v541
      %v750 = vunpack.c.l.b16 %v542
      %v751 = vunpack.c.l.b16 %v543
      %v752 = vunpack.c.h.b16 %v543
      %v753 = vunpack.c.l.b16 %v544
      %v754 = vunpack.c.h.b16 %v544
      %v755 = vunpack.c.l.b16 %v545
      %v756 = vunpack.c.l.b16 %v546
      %v757 = vunpack.c.h.b16 %v546
      %v758 = vunpack.c.l.b16 %v547
      %v759 = vunpack.c.h.b16 %v547
      %v760 = vunpack.c.l.b16 %v548
      %v761 = vunpack.c.l.b16 %v549
      %v762 = vunpack.c.h.b16 %v549
      %v763 = vunpack.c.l.b16 %v550
      %v764 = vunpack.c.h.b16 %v550
      %v765 = vunpack.c.l.b16 %v551
      %v766 = vunpack.c.l.b16 %v552
      %v767 = vunpack.c.h.b16 %v552
      %v768 = vunpack.c.l.b16 %v553
      %v769 = vunpack.c.h.b16 %v553
      %v770 = vunpack.c.l.b16 %v554
      %v771 = vunpack.c.l.b16 %v555
      %v772 = vunpack.c.h.b16 %v555
      %v773 = vunpack.c.l.b16 %v556
      %v774 = vunpack.c.h.b16 %v556
      %v775 = vunpack.c.l.b16 %v557
      %v776 = vunpack.c.l.b16 %v558
      %v777 = vunpack.c.h.b16 %v558
      %v778 = vunpack.c.l.b16 %v559
      %v779 = vunpack.c.h.b16 %v559
      %v780 = vunpack.c.l.b16 %v560
      %v781 = vunpack.c.l.b16 %v561
      %v782 = vunpack.c.h.b16 %v561
      %v783 = vunpack.c.l.b16 %v562
      %v784 = vunpack.c.h.b16 %v562
      %v785 = vunpack.c.l.b16 %v563
      %v786 = vunpack.c.l.b16 %v564
      %v787 = vunpack.c.h.b16 %v564
      %v788 = vunpack.c.l.b16 %v565
      %v789 = vunpack.c.h.b16 %v565
      %v790 = vunpack.c.l.b16 %v566
      %v791 = vpack.c.b16 %v716, %v711
      %v792 = vpack.c.b16 %v717, %v712
      %v793 = vpack.c.b16 %v718, %v713
      %v794 = vpack.c.b16 %v719, %v714
      %v795 = vpack.c.b16 %v720, %v715
      %v796 = vpack.c.b16 %v726, %v721
      %v797 = vpack.c.b16 %v727, %v722
      %v798 = vpack.c.b16 %v728, %v723
      %v799 = vpack.c.b16 %v729, %v724
      %v800 = vpack.c.b16 %v730, %v725
      %v801 = vpack.c.b16 %v736, %v731
      %v802 = vpack.c.b16 %v737, %v732
      %v803 = vpack.c.b16 %v738, %v733
      %v804 = vpack.c.b16 %v739, %v734
      %v805 = vpack.c.b16 %v740, %v735
      %v806 = vpack.c.b16 %v746, %v741
      %v807 = vpack.c.b16 %v747, %v742
      %v808 = vpack.c.b16 %v748, %v743
      %v809 = vpack.c.b16 %v749, %v744
      %v810 = vpack.c.b16 %v750, %v745
      %v811 = vpack.c.b16 %v756, %v751
      %v812 = vpack.c.b16 %v757, %v752
      %v813 = vpack.c.b16 %v758, %v753
      %v814 = vpack.c.b16 %v759, %v754
      %v815 = vpack.c.b16 %v760, %v755
      %v816 = vpack.c.b16 %v766, %v761
      %v817 = vpack.c.b16 %v767, %v762
      %v818 = vpack.c.b16 %v768, %v763
      %v819 = vpack.c.b16 %v769, %v764
      %v820 = vpack.c.b16 %v770, %v765
      %v821 = vpack.c.b16 %v776, %v771
      %v822 = vpack.c.b16 %v777, %v772
      %v823 = vpack.c.b16 %v778, %v773
      %v824 = vpack.c.b16 %v779, %v774
      %v825 = vpack.c.b16 %v780, %v775
      %v826 = vpack.c.b16 %v786, %v781
      %v827 = vpack.c.b16 %v787, %v782
      %v828 = vpack.c.b16 %v788, %v783
      %v829 = vpack.c.b16 %v789, %v784
      %v830 = vpack.c.b16 %v790, %v785
      %vm863 = vcmask 523264
      %v865 = vsel %vm863, %v795, 0
      %v868 = vsel %vm863, %v800, 0
      %v871 = vsel %vm863, %v805, 0
      %v874 = vsel %vm863, %v810, 0
      %v877 = vsel %vm863, %v815, 0
      %v880 = vsel %vm863, %v820, 0
      %v883 = vsel %vm863, %v825, 0
      %v886 = vsel %vm863, %v830, 0
      %888 = vmatprep.subr.bf16.mxu0 0
      %889 = vmatpush1.bf16.msra.mxu0 %v490
      %890 = vmatprep.subr.bf16.mxu0 0
      %891 = vmatpush1.bf16.msra.mxu0 %v489
      %892 = vmatprep.subr.bf16.mxu0 0
      %893 = vmatpush1.bf16.msra.mxu0 %v488
      %894 = vmatprep.subr.bf16.mxu0 0
      %895 = vmatpush1.bf16.msra.mxu0 %v487
      %896 = vmatprep.subr.bf16.mxu0 0
      %897 = vmatpush1.bf16.msra.mxu0 %v486
      %898 = vmatprep.subr.bf16.mxu0 0
      %899 = vmatpush1.bf16.msra.mxu0 %v485
      %900 = vmatprep.subr.bf16.mxu0 0
      %901 = vmatpush1.bf16.msra.mxu0 %v484
      %902 = vmatprep.subr.bf16.mxu0 0
      %903 = vmatpush1.bf16.msra.mxu0 %v483
      %904 = vmatprep.subr.bf16.mxu0 0
      %905 = vmatpush2.bf16.msra.mxu0 %v498
      %906 = vmatprep.subr.bf16.mxu0 0
      %907 = vmatpush2.bf16.msra.mxu0 %v497
      %908 = vmatprep.subr.bf16.mxu0 0
      %909 = vmatpush2.bf16.msra.mxu0 %v496
      %910 = vmatprep.subr.bf16.mxu0 0
      %911 = vmatpush2.bf16.msra.mxu0 %v495
      %912 = vmatprep.subr.bf16.mxu0 0
      %913 = vmatpush2.bf16.msra.mxu0 %v494
      %914 = vmatprep.subr.bf16.mxu0 0
      %915 = vmatpush2.bf16.msra.mxu0 %v493
      %916 = vmatprep.subr.bf16.mxu0 0
      %917 = vmatpush2.bf16.msra.mxu0 %v492
      %918 = vmatprep.subr.bf16.mxu0 0
      %919 = vmatpush2.bf16.msra.mxu0 %v491
      %920 = vmatprep.mubr.bf16.mxu0 %v792
      %921 = vmatmul.mubr.bf16.gmra.mxu0 %v791
      %v922 = vpop.f32.mrf.mxu0
      %v923 = vadd.f32 %v586, %v922
      %v924 = vpop.f32.mrf.mxu0
      %v925 = vpop.f32.mrf.mxu0
      %v926 = vadd.f32 %v591, %v925
      %v927 = vpop.f32.mrf.mxu0
      %928 = vmatprep.mubr.bf16.mxu0 %v797
      %929 = vmatmul.mubr.bf16.gmra.mxu0 %v796
      %v930 = vpop.f32.mrf.mxu0
      %v931 = vadd.f32 %v596, %v930
      %v932 = vpop.f32.mrf.mxu0
      %v933 = vpop.f32.mrf.mxu0
      %v934 = vadd.f32 %v601, %v933
      %v935 = vpop.f32.mrf.mxu0
      %936 = vmatprep.mubr.bf16.mxu0 %v802
      %937 = vmatmul.mubr.bf16.gmra.mxu0 %v801
      %v938 = vpop.f32.mrf.mxu0
      %v939 = vadd.f32 %v606, %v938
      %v940 = vpop.f32.mrf.mxu0
      %v941 = vpop.f32.mrf.mxu0
      %v942 = vadd.f32 %v611, %v941
      %v943 = vpop.f32.mrf.mxu0
      %944 = vmatprep.mubr.bf16.mxu0 %v807
      %945 = vmatmul.mubr.bf16.gmra.mxu0 %v806
      %v946 = vpop.f32.mrf.mxu0
      %v947 = vadd.f32 %v616, %v946
      %v948 = vpop.f32.mrf.mxu0
      %v949 = vpop.f32.mrf.mxu0
      %v950 = vadd.f32 %v621, %v949
      %v951 = vpop.f32.mrf.mxu0
      %952 = vmatprep.mubr.bf16.mxu0 %v812
      %953 = vmatmul.mubr.bf16.gmra.mxu0 %v811
      %v954 = vpop.f32.mrf.mxu0
      %v955 = vadd.f32 %v626, %v954
      %v956 = vpop.f32.mrf.mxu0
      %v957 = vpop.f32.mrf.mxu0
      %v958 = vadd.f32 %v631, %v957
      %v959 = vpop.f32.mrf.mxu0
      %960 = vmatprep.mubr.bf16.mxu0 %v817
      %961 = vmatmul.mubr.bf16.gmra.mxu0 %v816
      %v962 = vpop.f32.mrf.mxu0
      %v963 = vadd.f32 %v636, %v962
      %v964 = vpop.f32.mrf.mxu0
      %v965 = vpop.f32.mrf.mxu0
      %v966 = vadd.f32 %v641, %v965
      %v967 = vpop.f32.mrf.mxu0
      %968 = vmatprep.mubr.bf16.mxu0 %v822
      %969 = vmatmul.mubr.bf16.gmra.mxu0 %v821
      %v970 = vpop.f32.mrf.mxu0
      %v971 = vadd.f32 %v646, %v970
      %v972 = vpop.f32.mrf.mxu0
      %v973 = vpop.f32.mrf.mxu0
      %v974 = vadd.f32 %v651, %v973
      %v975 = vpop.f32.mrf.mxu0
      %976 = vmatprep.mubr.bf16.mxu0 %v827
      %977 = vmatmul.mubr.bf16.gmra.mxu0 %v826
      %v978 = vpop.f32.mrf.mxu0
      %v979 = vadd.f32 %v656, %v978
      %v980 = vpop.f32.mrf.mxu0
      %v981 = vpop.f32.mrf.mxu0
      %v982 = vadd.f32 %v661, %v981
      %v983 = vpop.f32.mrf.mxu0
      %984 = vdwg.mxu0
      %985 = vmatprep.subr.bf16.mxu0 0
      %986 = vmatpush1.bf16.msra.mxu0 %v506
      %987 = vmatprep.subr.bf16.mxu0 0
      %988 = vmatpush1.bf16.msra.mxu0 %v505
      %989 = vmatprep.subr.bf16.mxu0 0
      %990 = vmatpush1.bf16.msra.mxu0 %v504
      %991 = vmatprep.subr.bf16.mxu0 0
      %992 = vmatpush1.bf16.msra.mxu0 %v503
      %993 = vmatprep.subr.bf16.mxu0 0
      %994 = vmatpush1.bf16.msra.mxu0 %v502
      %995 = vmatprep.subr.bf16.mxu0 0
      %996 = vmatpush1.bf16.msra.mxu0 %v501
      %997 = vmatprep.subr.bf16.mxu0 0
      %998 = vmatpush1.bf16.msra.mxu0 %v500
      %999 = vmatprep.subr.bf16.mxu0 0
      %1000 = vmatpush1.bf16.msra.mxu0 %v499
      %1001 = vmatprep.subr.bf16.mxu0 0
      %1002 = vmatpush2.bf16.msra.mxu0 %v514
      %1003 = vmatprep.subr.bf16.mxu0 0
      %1004 = vmatpush2.bf16.msra.mxu0 %v513
      %1005 = vmatprep.subr.bf16.mxu0 0
      %1006 = vmatpush2.bf16.msra.mxu0 %v512
      %1007 = vmatprep.subr.bf16.mxu0 0
      %1008 = vmatpush2.bf16.msra.mxu0 %v511
      %1009 = vmatprep.subr.bf16.mxu0 0
      %1010 = vmatpush2.bf16.msra.mxu0 %v510
      %1011 = vmatprep.subr.bf16.mxu0 0
      %1012 = vmatpush2.bf16.msra.mxu0 %v509
      %1013 = vmatprep.subr.bf16.mxu0 0
      %1014 = vmatpush2.bf16.msra.mxu0 %v508
      %1015 = vmatprep.subr.bf16.mxu0 0
      %1016 = vmatpush2.bf16.msra.mxu0 %v507
      %1017 = vmatprep.mubr.bf16.mxu0 %v794
      %1018 = vmatmul.mubr.bf16.gmra.mxu0 %v793
      %v1019 = vpop.f32.mrf.mxu0
      %v1020 = vadd.f32 %v923, %v1019
      %v1021 = vpop.f32.mrf.mxu0
      %v1022 = vpop.f32.mrf.mxu0
      %v1023 = vadd.f32 %v926, %v1022
      %v1024 = vpop.f32.mrf.mxu0
      %1025 = vmatprep.mubr.bf16.mxu0 %v799
      %1026 = vmatmul.mubr.bf16.gmra.mxu0 %v798
      %v1027 = vpop.f32.mrf.mxu0
      %v1028 = vadd.f32 %v931, %v1027
      %v1029 = vpop.f32.mrf.mxu0
      %v1030 = vpop.f32.mrf.mxu0
      %v1031 = vadd.f32 %v934, %v1030
      %v1032 = vpop.f32.mrf.mxu0
      %1033 = vmatprep.mubr.bf16.mxu0 %v804
      %1034 = vmatmul.mubr.bf16.gmra.mxu0 %v803
      %v1035 = vpop.f32.mrf.mxu0
      %v1036 = vadd.f32 %v939, %v1035
      %v1037 = vpop.f32.mrf.mxu0
      %v1038 = vpop.f32.mrf.mxu0
      %v1039 = vadd.f32 %v942, %v1038
      %v1040 = vpop.f32.mrf.mxu0
      %1041 = vmatprep.mubr.bf16.mxu0 %v809
      %1042 = vmatmul.mubr.bf16.gmra.mxu0 %v808
      %v1043 = vpop.f32.mrf.mxu0
      %v1044 = vadd.f32 %v947, %v1043
      %v1045 = vpop.f32.mrf.mxu0
      %v1046 = vpop.f32.mrf.mxu0
      %v1047 = vadd.f32 %v950, %v1046
      %v1048 = vpop.f32.mrf.mxu0
      %1049 = vmatprep.mubr.bf16.mxu0 %v814
      %1050 = vmatmul.mubr.bf16.gmra.mxu0 %v813
      %v1051 = vpop.f32.mrf.mxu0
      %v1052 = vadd.f32 %v955, %v1051
      %v1053 = vpop.f32.mrf.mxu0
      %v1054 = vpop.f32.mrf.mxu0
      %v1055 = vadd.f32 %v958, %v1054
      %v1056 = vpop.f32.mrf.mxu0
      %1057 = vmatprep.mubr.bf16.mxu0 %v819
      %1058 = vmatmul.mubr.bf16.gmra.mxu0 %v818
      %v1059 = vpop.f32.mrf.mxu0
      %v1060 = vadd.f32 %v963, %v1059
      %v1061 = vpop.f32.mrf.mxu0
      %v1062 = vpop.f32.mrf.mxu0
      %v1063 = vadd.f32 %v966, %v1062
      %v1064 = vpop.f32.mrf.mxu0
      %1065 = vmatprep.mubr.bf16.mxu0 %v824
      %1066 = vmatmul.mubr.bf16.gmra.mxu0 %v823
      %v1067 = vpop.f32.mrf.mxu0
      %v1068 = vadd.f32 %v971, %v1067
      %v1069 = vpop.f32.mrf.mxu0
      %v1070 = vpop.f32.mrf.mxu0
      %v1071 = vadd.f32 %v974, %v1070
      %v1072 = vpop.f32.mrf.mxu0
      %1073 = vmatprep.mubr.bf16.mxu0 %v829
      %1074 = vmatmul.mubr.bf16.gmra.mxu0 %v828
      %v1075 = vpop.f32.mrf.mxu0
      %v1076 = vadd.f32 %v979, %v1075
      %v1077 = vpop.f32.mrf.mxu0
      %v1078 = vpop.f32.mrf.mxu0
      %v1079 = vadd.f32 %v982, %v1078
      %v1080 = vpop.f32.mrf.mxu0
      %1081 = vdwg.mxu0
      %1082 = vmatprep.subr.bf16.mxu0 0
      %1083 = vmatpush1.bf16.msra.mxu0 0
      %1084 = vmatprep.subr.bf16.mxu0 0
      %1085 = vmatpush1.bf16.msra.mxu0 0
      %1086 = vmatprep.subr.bf16.mxu0 0
      %1087 = vmatpush1.bf16.msra.mxu0 0
      %1088 = vmatprep.subr.bf16.mxu0 0
      %1089 = vmatpush1.bf16.msra.mxu0 0
      %1090 = vmatprep.subr.bf16.mxu0 0
      %1091 = vmatpush1.bf16.msra.mxu0 %v518
      %1092 = vmatprep.subr.bf16.mxu0 0
      %1093 = vmatpush1.bf16.msra.mxu0 %v517
      %1094 = vmatprep.subr.bf16.mxu0 0
      %1095 = vmatpush1.bf16.msra.mxu0 %v516
      %1096 = vmatprep.subr.bf16.mxu0 0
      %1097 = vmatpush1.bf16.msra.mxu0 %v515
      %1098 = vmatprep.subr.bf16.mxu0 0
      %1099 = vmatpush2.bf16.msra.mxu0 0
      %1100 = vmatprep.subr.bf16.mxu0 0
      %1101 = vmatpush2.bf16.msra.mxu0 0
      %1102 = vmatprep.subr.bf16.mxu0 0
      %1103 = vmatpush2.bf16.msra.mxu0 0
      %1104 = vmatprep.subr.bf16.mxu0 0
      %1105 = vmatpush2.bf16.msra.mxu0 0
      %1106 = vmatprep.subr.bf16.mxu0 0
      %1107 = vmatpush2.bf16.msra.mxu0 0
      %1108 = vmatprep.subr.bf16.mxu0 0
      %1109 = vmatpush2.bf16.msra.mxu0 0
      %1110 = vmatprep.subr.bf16.mxu0 0
      %1111 = vmatpush2.bf16.msra.mxu0 0
      %1112 = vmatprep.subr.bf16.mxu0 0
      %1113 = vmatpush2.bf16.msra.mxu0 0
      %1114 = vmatprep.mubr.bf16.mxu0 0
      %1115 = vmatmul.mubr.bf16.gmra.mxu0 %v865
      %v1116 = vpop.f32.mrf.mxu0
      %v1117 = vadd.f32 %v1020, %v1116
      %v1118 = vpop.f32.mrf.mxu0
      %v1119 = vpop.f32.mrf.mxu0
      %v1120 = vadd.f32 %v1023, %v1119
      %v1121 = vpop.f32.mrf.mxu0
      %1122 = vmatprep.mubr.bf16.mxu0 0
      %1123 = vmatmul.mubr.bf16.gmra.mxu0 %v868
      %v1124 = vpop.f32.mrf.mxu0
      %v1125 = vadd.f32 %v1028, %v1124
      %v1126 = vpop.f32.mrf.mxu0
      %v1127 = vpop.f32.mrf.mxu0
      %v1128 = vadd.f32 %v1031, %v1127
      %v1129 = vpop.f32.mrf.mxu0
      %1130 = vmatprep.mubr.bf16.mxu0 0
      %1131 = vmatmul.mubr.bf16.gmra.mxu0 %v871
      %v1132 = vpop.f32.mrf.mxu0
      %v1133 = vadd.f32 %v1036, %v1132
      %v1134 = vpop.f32.mrf.mxu0
      %v1135 = vpop.f32.mrf.mxu0
      %v1136 = vadd.f32 %v1039, %v1135
      %v1137 = vpop.f32.mrf.mxu0
      %1138 = vmatprep.mubr.bf16.mxu0 0
      %1139 = vmatmul.mubr.bf16.gmra.mxu0 %v874
      %v1140 = vpop.f32.mrf.mxu0
      %v1141 = vadd.f32 %v1044, %v1140
      %v1142 = vpop.f32.mrf.mxu0
      %v1143 = vpop.f32.mrf.mxu0
      %v1144 = vadd.f32 %v1047, %v1143
      %v1145 = vpop.f32.mrf.mxu0
      %1146 = vmatprep.mubr.bf16.mxu0 0
      %1147 = vmatmul.mubr.bf16.gmra.mxu0 %v877
      %v1148 = vpop.f32.mrf.mxu0
      %v1149 = vadd.f32 %v1052, %v1148
      %v1150 = vpop.f32.mrf.mxu0
      %v1151 = vpop.f32.mrf.mxu0
      %v1152 = vadd.f32 %v1055, %v1151
      %v1153 = vpop.f32.mrf.mxu0
      %1154 = vmatprep.mubr.bf16.mxu0 0
      %1155 = vmatmul.mubr.bf16.gmra.mxu0 %v880
      %v1156 = vpop.f32.mrf.mxu0
      %v1157 = vadd.f32 %v1060, %v1156
      %v1158 = vpop.f32.mrf.mxu0
      %v1159 = vpop.f32.mrf.mxu0
      %v1160 = vadd.f32 %v1063, %v1159
      %v1161 = vpop.f32.mrf.mxu0
      %1162 = vmatprep.mubr.bf16.mxu0 0
      %1163 = vmatmul.mubr.bf16.gmra.mxu0 %v883
      %v1164 = vpop.f32.mrf.mxu0
      %v1165 = vadd.f32 %v1068, %v1164
      %v1166 = vpop.f32.mrf.mxu0
      %v1167 = vpop.f32.mrf.mxu0
      %v1168 = vadd.f32 %v1071, %v1167
      %v1169 = vpop.f32.mrf.mxu0
      %1170 = vmatprep.mubr.bf16.mxu0 0
      %1171 = vmatmul.mubr.bf16.gmra.mxu0 %v886
      %v1172 = vpop.f32.mrf.mxu0
      %v1173 = vadd.f32 %v1076, %v1172
      %v1174 = vpop.f32.mrf.mxu0
      %v1175 = vpop.f32.mrf.mxu0
      %v1176 = vadd.f32 %v1079, %v1175
      %v1177 = vpop.f32.mrf.mxu0
      %1178 = vdwg.mxu0
      %v1179 = vmax.f32 %v1117, 0.0
      %v1180 = vmax.f32 %v1120, 0.0
      %v1181 = vmax.f32 %v1125, 0.0
      %v1182 = vmax.f32 %v1128, 0.0
      %v1183 = vmax.f32 %v1133, 0.0
      %v1184 = vmax.f32 %v1136, 0.0
      %v1185 = vmax.f32 %v1141, 0.0
      %v1186 = vmax.f32 %v1144, 0.0
      %v1187 = vmax.f32 %v1149, 0.0
      %v1188 = vmax.f32 %v1152, 0.0
      %v1189 = vmax.f32 %v1157, 0.0
      %v1190 = vmax.f32 %v1160, 0.0
      %v1191 = vmax.f32 %v1165, 0.0
      %v1192 = vmax.f32 %v1168, 0.0
      %v1193 = vmax.f32 %v1173, 0.0
      %v1194 = vmax.f32 %v1176, 0.0
      %v1195 = vpack.c.bf16 %v1180, %v1179
      %v1196 = vpack.c.bf16 %v1182, %v1181
      %v1197 = vpack.c.bf16 %v1184, %v1183
      %v1198 = vpack.c.bf16 %v1186, %v1185
      %v1199 = vpack.c.bf16 %v1188, %v1187
      %v1200 = vpack.c.bf16 %v1190, %v1189
      %v1201 = vpack.c.bf16 %v1192, %v1191
      %v1202 = vpack.c.bf16 %v1194, %v1193
      %v1203 = vld [vmem:[%s3] sm:$0xf]
      %v1204 = vld [vmem:[%s3 + $0x4] sm:$0xf]
      %v1205 = vld [vmem:[%s3 + $0x8] sm:$0xf]
      %v1206 = vld [vmem:[%s3 + $0xc] sm:$0xf]
      %v1207 = vld [vmem:[%s3 + $0x10] sm:$0xf]
      %v1208 = vld [vmem:[%s3 + $0x14] sm:$0xf]
      %v1209 = vld [vmem:[%s3 + $0x18] sm:$0xf]
      %v1210 = vld [vmem:[%s3 + $0x1c] sm:$0xf]
      %v1219 = vunpack.c.l.b16 %v1203
      %v1220 = vunpack.c.l.b16 %v1204
      %v1221 = vunpack.c.l.b16 %v1205
      %v1222 = vunpack.c.l.b16 %v1206
      %v1223 = vunpack.c.l.b16 %v1207
      %v1224 = vunpack.c.l.b16 %v1208
      %v1225 = vunpack.c.l.b16 %v1209
      %v1226 = vunpack.c.l.b16 %v1210
      %v1227 = vpack.c.b16 %v1220, %v1219
      %v1228 = vpack.c.b16 %v1222, %v1221
      %v1229 = vpack.c.b16 %v1224, %v1223
      %v1230 = vpack.c.b16 %v1226, %v1225
      %v1236 = vsel %vm863, %v1195, 0
      %v1239 = vsel %vm863, %v1196, 0
      %v1242 = vsel %vm863, %v1197, 0
      %v1245 = vsel %vm863, %v1198, 0
      %v1248 = vsel %vm863, %v1199, 0
      %v1251 = vsel %vm863, %v1200, 0
      %v1254 = vsel %vm863, %v1201, 0
      %v1257 = vsel %vm863, %v1202, 0
      %1259 = vmatprep.subr.bf16.mxu0 0
      %1260 = vmatpush1.bf16.msra.mxu0 0
      %1261 = vmatprep.subr.bf16.mxu0 0
      %1262 = vmatpush1.bf16.msra.mxu0 0
      %1263 = vmatprep.subr.bf16.mxu0 0
      %1264 = vmatpush1.bf16.msra.mxu0 0
      %1265 = vmatprep.subr.bf16.mxu0 0
      %1266 = vmatpush1.bf16.msra.mxu0 0
      %1267 = vmatprep.subr.bf16.mxu0 0
      %1268 = vmatpush1.bf16.msra.mxu0 %v1230
      %1269 = vmatprep.subr.bf16.mxu0 0
      %1270 = vmatpush1.bf16.msra.mxu0 %v1229
      %1271 = vmatprep.subr.bf16.mxu0 0
      %1272 = vmatpush1.bf16.msra.mxu0 %v1228
      %1273 = vmatprep.subr.bf16.mxu0 0
      %1274 = vmatpush1.bf16.msra.mxu0 %v1227
      %1275 = vmatprep.subr.bf16.mxu0 0
      %1276 = vmatpush2.bf16.msra.mxu0 0
      %1277 = vmatprep.subr.bf16.mxu0 0
      %1278 = vmatpush2.bf16.msra.mxu0 0
      %1279 = vmatprep.subr.bf16.mxu0 0
      %1280 = vmatpush2.bf16.msra.mxu0 0
      %1281 = vmatprep.subr.bf16.mxu0 0
      %1282 = vmatpush2.bf16.msra.mxu0 0
      %1283 = vmatprep.subr.bf16.mxu0 0
      %1284 = vmatpush2.bf16.msra.mxu0 0
      %1285 = vmatprep.subr.bf16.mxu0 0
      %1286 = vmatpush2.bf16.msra.mxu0 0
      %1287 = vmatprep.subr.bf16.mxu0 0
      %1288 = vmatpush2.bf16.msra.mxu0 0
      %1289 = vmatprep.subr.bf16.mxu0 0
      %1290 = vmatpush2.bf16.msra.mxu0 0
      %1291 = vmatprep.mubr.bf16.mxu0 0
      %1292 = vmatmul.mubr.bf16.gmra.mxu0 %v1236
      %v1293 = vpop.f32.mrf.mxu0
      %v1294 = vadd.f32 0.0, %v1293
      %v1295 = vpop.f32.mrf.mxu0
      %v1296 = vpop.f32.mrf.mxu0
      %v1297 = vadd.f32 0.0, %v1296
      %v1298 = vpop.f32.mrf.mxu0
      %1299 = vmatprep.mubr.bf16.mxu0 0
      %1300 = vmatmul.mubr.bf16.gmra.mxu0 %v1239
      %v1301 = vpop.f32.mrf.mxu0
      %v1302 = vadd.f32 0.0, %v1301
      %v1303 = vpop.f32.mrf.mxu0
      %v1304 = vpop.f32.mrf.mxu0
      %v1305 = vadd.f32 0.0, %v1304
      %v1306 = vpop.f32.mrf.mxu0
      %1307 = vmatprep.mubr.bf16.mxu0 0
      %1308 = vmatmul.mubr.bf16.gmra.mxu0 %v1242
      %v1309 = vpop.f32.mrf.mxu0
      %v1310 = vadd.f32 0.0, %v1309
      %v1311 = vpop.f32.mrf.mxu0
      %v1312 = vpop.f32.mrf.mxu0
      %v1313 = vadd.f32 0.0, %v1312
      %v1314 = vpop.f32.mrf.mxu0
      %1315 = vmatprep.mubr.bf16.mxu0 0
      %1316 = vmatmul.mubr.bf16.gmra.mxu0 %v1245
      %v1317 = vpop.f32.mrf.mxu0
      %v1318 = vadd.f32 0.0, %v1317
      %v1319 = vpop.f32.mrf.mxu0
      %v1320 = vpop.f32.mrf.mxu0
      %v1321 = vadd.f32 0.0, %v1320
      %v1322 = vpop.f32.mrf.mxu0
      %1323 = vmatprep.mubr.bf16.mxu0 0
      %1324 = vmatmul.mubr.bf16.gmra.mxu0 %v1248
      %v1325 = vpop.f32.mrf.mxu0
      %v1326 = vadd.f32 0.0, %v1325
      %v1327 = vpop.f32.mrf.mxu0
      %v1328 = vpop.f32.mrf.mxu0
      %v1329 = vadd.f32 0.0, %v1328
      %v1330 = vpop.f32.mrf.mxu0
      %1331 = vmatprep.mubr.bf16.mxu0 0
      %1332 = vmatmul.mubr.bf16.gmra.mxu0 %v1251
      %v1333 = vpop.f32.mrf.mxu0
      %v1334 = vadd.f32 0.0, %v1333
      %v1335 = vpop.f32.mrf.mxu0
      %v1336 = vpop.f32.mrf.mxu0
      %v1337 = vadd.f32 0.0, %v1336
      %v1338 = vpop.f32.mrf.mxu0
      %1339 = vmatprep.mubr.bf16.mxu0 0
      %1340 = vmatmul.mubr.bf16.gmra.mxu0 %v1254
      %v1341 = vpop.f32.mrf.mxu0
      %v1342 = vadd.f32 0.0, %v1341
      %v1343 = vpop.f32.mrf.mxu0
      %v1344 = vpop.f32.mrf.mxu0
      %v1345 = vadd.f32 0.0, %v1344
      %v1346 = vpop.f32.mrf.mxu0
      %1347 = vmatprep.mubr.bf16.mxu0 0
      %1348 = vmatmul.mubr.bf16.gmra.mxu0 %v1257
      %v1349 = vpop.f32.mrf.mxu0
      %v1350 = vadd.f32 0.0, %v1349
      %v1351 = vpop.f32.mrf.mxu0
      %v1352 = vpop.f32.mrf.mxu0
      %v1353 = vadd.f32 0.0, %v1352
      %v1354 = vpop.f32.mrf.mxu0
      %1355 = vdwg.mxu0
      %s1356 = scalar_lea.vmem %s3, 32
      %v1357 = vld [vmem:[%s1356] sm:$0xf]
      %v1358 = vld [vmem:[%s1356 + $0x4] sm:$0xf]
      %v1359 = vld [vmem:[%s1356 + $0x8] sm:$0xf]
      %v1360 = vld [vmem:[%s1356 + $0xc] sm:$0xf]
      %v1361 = vld [vmem:[%s1356 + $0x10] sm:$0xf]
      %v1362 = vld [vmem:[%s1356 + $0x14] sm:$0xf]
      %v1363 = vld [vmem:[%s1356 + $0x18] sm:$0xf]
      %v1364 = vld [vmem:[%s1356 + $0x1c] sm:$0xf]
      %v1373 = vunpack.c.l.b16 %v1357
      %v1374 = vunpack.c.l.b16 %v1358
      %v1375 = vunpack.c.l.b16 %v1359
      %v1376 = vunpack.c.l.b16 %v1360
      %v1377 = vunpack.c.l.b16 %v1361
      %v1378 = vunpack.c.l.b16 %v1362
      %v1379 = vunpack.c.l.b16 %v1363
      %v1380 = vunpack.c.l.b16 %v1364
      %v1381 = vpack.c.b16 %v1374, %v1373
      %v1382 = vpack.c.b16 %v1376, %v1375
      %v1383 = vpack.c.b16 %v1378, %v1377
      %v1384 = vpack.c.b16 %v1380, %v1379
      %1389 = vmatprep.subr.bf16.mxu0 0
      %1390 = vmatpush1.bf16.msra.mxu0 0
      %1391 = vmatprep.subr.bf16.mxu0 0
      %1392 = vmatpush1.bf16.msra.mxu0 0
      %1393 = vmatprep.subr.bf16.mxu0 0
      %1394 = vmatpush1.bf16.msra.mxu0 0
      %1395 = vmatprep.subr.bf16.mxu0 0
      %1396 = vmatpush1.bf16.msra.mxu0 0
      %1397 = vmatprep.subr.bf16.mxu0 0
      %1398 = vmatpush1.bf16.msra.mxu0 %v1384
      %1399 = vmatprep.subr.bf16.mxu0 0
      %1400 = vmatpush1.bf16.msra.mxu0 %v1383
      %1401 = vmatprep.subr.bf16.mxu0 0
      %1402 = vmatpush1.bf16.msra.mxu0 %v1382
      %1403 = vmatprep.subr.bf16.mxu0 0
      %1404 = vmatpush1.bf16.msra.mxu0 %v1381
      %1405 = vmatprep.subr.bf16.mxu0 0
      %1406 = vmatpush2.bf16.msra.mxu0 0
      %1407 = vmatprep.subr.bf16.mxu0 0
      %1408 = vmatpush2.bf16.msra.mxu0 0
      %1409 = vmatprep.subr.bf16.mxu0 0
      %1410 = vmatpush2.bf16.msra.mxu0 0
      %1411 = vmatprep.subr.bf16.mxu0 0
      %1412 = vmatpush2.bf16.msra.mxu0 0
      %1413 = vmatprep.subr.bf16.mxu0 0
      %1414 = vmatpush2.bf16.msra.mxu0 0
      %1415 = vmatprep.subr.bf16.mxu0 0
      %1416 = vmatpush2.bf16.msra.mxu0 0
      %1417 = vmatprep.subr.bf16.mxu0 0
      %1418 = vmatpush2.bf16.msra.mxu0 0
      %1419 = vmatprep.subr.bf16.mxu0 0
      %1420 = vmatpush2.bf16.msra.mxu0 0
      %1421 = vmatprep.mubr.bf16.mxu0 0
      %1422 = vmatmul.mubr.bf16.gmra.mxu0 %v1236
      %v1423 = vpop.f32.mrf.mxu0
      %v1424 = vadd.f32 0.0, %v1423
      %v1425 = vpop.f32.mrf.mxu0
      %v1426 = vpop.f32.mrf.mxu0
      %v1427 = vadd.f32 0.0, %v1426
      %v1428 = vpop.f32.mrf.mxu0
      %1429 = vmatprep.mubr.bf16.mxu0 0
      %1430 = vmatmul.mubr.bf16.gmra.mxu0 %v1239
      %v1431 = vpop.f32.mrf.mxu0
      %v1432 = vadd.f32 0.0, %v1431
      %v1433 = vpop.f32.mrf.mxu0
      %v1434 = vpop.f32.mrf.mxu0
      %v1435 = vadd.f32 0.0, %v1434
      %v1436 = vpop.f32.mrf.mxu0
      %1437 = vmatprep.mubr.bf16.mxu0 0
      %1438 = vmatmul.mubr.bf16.gmra.mxu0 %v1242
      %v1439 = vpop.f32.mrf.mxu0
      %v1440 = vadd.f32 0.0, %v1439
      %v1441 = vpop.f32.mrf.mxu0
      %v1442 = vpop.f32.mrf.mxu0
      %v1443 = vadd.f32 0.0, %v1442
      %v1444 = vpop.f32.mrf.mxu0
      %1445 = vmatprep.mubr.bf16.mxu0 0
      %1446 = vmatmul.mubr.bf16.gmra.mxu0 %v1245
      %v1447 = vpop.f32.mrf.mxu0
      %v1448 = vadd.f32 0.0, %v1447
      %v1449 = vpop.f32.mrf.mxu0
      %v1450 = vpop.f32.mrf.mxu0
      %v1451 = vadd.f32 0.0, %v1450
      %v1452 = vpop.f32.mrf.mxu0
      %1453 = vmatprep.mubr.bf16.mxu0 0
      %1454 = vmatmul.mubr.bf16.gmra.mxu0 %v1248
      %v1455 = vpop.f32.mrf.mxu0
      %v1456 = vadd.f32 0.0, %v1455
      %v1457 = vpop.f32.mrf.mxu0
      %v1458 = vpop.f32.mrf.mxu0
      %v1459 = vadd.f32 0.0, %v1458
      %v1460 = vpop.f32.mrf.mxu0
      %1461 = vmatprep.mubr.bf16.mxu0 0
      %1462 = vmatmul.mubr.bf16.gmra.mxu0 %v1251
      %v1463 = vpop.f32.mrf.mxu0
      %v1464 = vadd.f32 0.0, %v1463
      %v1465 = vpop.f32.mrf.mxu0
      %v1466 = vpop.f32.mrf.mxu0
      %v1467 = vadd.f32 0.0, %v1466
      %v1468 = vpop.f32.mrf.mxu0
      %1469 = vmatprep.mubr.bf16.mxu0 0
      %1470 = vmatmul.mubr.bf16.gmra.mxu0 %v1254
      %v1471 = vpop.f32.mrf.mxu0
      %v1472 = vadd.f32 0.0, %v1471
      %v1473 = vpop.f32.mrf.mxu0
      %v1474 = vpop.f32.mrf.mxu0
      %v1475 = vadd.f32 0.0, %v1474
      %v1476 = vpop.f32.mrf.mxu0
      %1477 = vmatprep.mubr.bf16.mxu0 0
      %1478 = vmatmul.mubr.bf16.gmra.mxu0 %v1257
      %v1479 = vpop.f32.mrf.mxu0
      %v1480 = vadd.f32 0.0, %v1479
      %v1481 = vpop.f32.mrf.mxu0
      %v1482 = vpop.f32.mrf.mxu0
      %v1483 = vadd.f32 0.0, %v1482
      %v1484 = vpop.f32.mrf.mxu0
      %1485 = vdwg.mxu0
      %s1486 = scalar_lea.vmem %s3, 64
      %v1487 = vld [vmem:[%s1486] sm:$0xf]
      %v1488 = vld [vmem:[%s1486 + $0x4] sm:$0xf]
      %v1489 = vld [vmem:[%s1486 + $0x8] sm:$0xf]
      %v1490 = vld [vmem:[%s1486 + $0xc] sm:$0xf]
      %v1491 = vld [vmem:[%s1486 + $0x10] sm:$0xf]
      %v1492 = vld [vmem:[%s1486 + $0x14] sm:$0xf]
      %v1493 = vld [vmem:[%s1486 + $0x18] sm:$0xf]
      %v1494 = vld [vmem:[%s1486 + $0x1c] sm:$0xf]
      %v1503 = vunpack.c.l.b16 %v1487
      %v1504 = vunpack.c.l.b16 %v1488
      %v1505 = vunpack.c.l.b16 %v1489
      %v1506 = vunpack.c.l.b16 %v1490
      %v1507 = vunpack.c.l.b16 %v1491
      %v1508 = vunpack.c.l.b16 %v1492
      %v1509 = vunpack.c.l.b16 %v1493
      %v1510 = vunpack.c.l.b16 %v1494
      %v1511 = vpack.c.b16 %v1504, %v1503
      %v1512 = vpack.c.b16 %v1506, %v1505
      %v1513 = vpack.c.b16 %v1508, %v1507
      %v1514 = vpack.c.b16 %v1510, %v1509
      %1519 = vmatprep.subr.bf16.mxu0 0
      %1520 = vmatpush1.bf16.msra.mxu0 0
      %1521 = vmatprep.subr.bf16.mxu0 0
      %1522 = vmatpush1.bf16.msra.mxu0 0
      %1523 = vmatprep.subr.bf16.mxu0 0
      %1524 = vmatpush1.bf16.msra.mxu0 0
      %1525 = vmatprep.subr.bf16.mxu0 0
      %1526 = vmatpush1.bf16.msra.mxu0 0
      %1527 = vmatprep.subr.bf16.mxu0 0
      %1528 = vmatpush1.bf16.msra.mxu0 %v1514
      %1529 = vmatprep.subr.bf16.mxu0 0
      %1530 = vmatpush1.bf16.msra.mxu0 %v1513
      %1531 = vmatprep.subr.bf16.mxu0 0
      %1532 = vmatpush1.bf16.msra.mxu0 %v1512
      %1533 = vmatprep.subr.bf16.mxu0 0
      %1534 = vmatpush1.bf16.msra.mxu0 %v1511
      %1535 = vmatprep.subr.bf16.mxu0 0
      %1536 = vmatpush2.bf16.msra.mxu0 0
      %1537 = vmatprep.subr.bf16.mxu0 0
      %1538 = vmatpush2.bf16.msra.mxu0 0
      %1539 = vmatprep.subr.bf16.mxu0 0
      %1540 = vmatpush2.bf16.msra.mxu0 0
      %1541 = vmatprep.subr.bf16.mxu0 0
      %1542 = vmatpush2.bf16.msra.mxu0 0
      %1543 = vmatprep.subr.bf16.mxu0 0
      %1544 = vmatpush2.bf16.msra.mxu0 0
      %1545 = vmatprep.subr.bf16.mxu0 0
      %1546 = vmatpush2.bf16.msra.mxu0 0
      %1547 = vmatprep.subr.bf16.mxu0 0
      %1548 = vmatpush2.bf16.msra.mxu0 0
      %1549 = vmatprep.subr.bf16.mxu0 0
      %1550 = vmatpush2.bf16.msra.mxu0 0
      %1551 = vmatprep.mubr.bf16.mxu0 0
      %1552 = vmatmul.mubr.bf16.gmra.mxu0 %v1236
      %v1553 = vpop.f32.mrf.mxu0
      %v1554 = vadd.f32 0.0, %v1553
      %v1555 = vpop.f32.mrf.mxu0
      %v1556 = vpop.f32.mrf.mxu0
      %v1557 = vadd.f32 0.0, %v1556
      %v1558 = vpop.f32.mrf.mxu0
      %1559 = vmatprep.mubr.bf16.mxu0 0
      %1560 = vmatmul.mubr.bf16.gmra.mxu0 %v1239
      %v1561 = vpop.f32.mrf.mxu0
      %v1562 = vadd.f32 0.0, %v1561
      %v1563 = vpop.f32.mrf.mxu0
      %v1564 = vpop.f32.mrf.mxu0
      %v1565 = vadd.f32 0.0, %v1564
      %v1566 = vpop.f32.mrf.mxu0
      %1567 = vmatprep.mubr.bf16.mxu0 0
      %1568 = vmatmul.mubr.bf16.gmra.mxu0 %v1242
      %v1569 = vpop.f32.mrf.mxu0
      %v1570 = vadd.f32 0.0, %v1569
      %v1571 = vpop.f32.mrf.mxu0
      %v1572 = vpop.f32.mrf.mxu0
      %v1573 = vadd.f32 0.0, %v1572
      %v1574 = vpop.f32.mrf.mxu0
      %1575 = vmatprep.mubr.bf16.mxu0 0
      %1576 = vmatmul.mubr.bf16.gmra.mxu0 %v1245
      %v1577 = vpop.f32.mrf.mxu0
      %v1578 = vadd.f32 0.0, %v1577
      %v1579 = vpop.f32.mrf.mxu0
      %v1580 = vpop.f32.mrf.mxu0
      %v1581 = vadd.f32 0.0, %v1580
      %v1582 = vpop.f32.mrf.mxu0
      %1583 = vmatprep.mubr.bf16.mxu0 0
      %1584 = vmatmul.mubr.bf16.gmra.mxu0 %v1248
      %v1585 = vpop.f32.mrf.mxu0
      %v1586 = vadd.f32 0.0, %v1585
      %v1587 = vpop.f32.mrf.mxu0
      %v1588 = vpop.f32.mrf.mxu0
      %v1589 = vadd.f32 0.0, %v1588
      %v1590 = vpop.f32.mrf.mxu0
      %1591 = vmatprep.mubr.bf16.mxu0 0
      %1592 = vmatmul.mubr.bf16.gmra.mxu0 %v1251
      %v1593 = vpop.f32.mrf.mxu0
      %v1594 = vadd.f32 0.0, %v1593
      %v1595 = vpop.f32.mrf.mxu0
      %v1596 = vpop.f32.mrf.mxu0
      %v1597 = vadd.f32 0.0, %v1596
      %v1598 = vpop.f32.mrf.mxu0
      %1599 = vmatprep.mubr.bf16.mxu0 0
      %1600 = vmatmul.mubr.bf16.gmra.mxu0 %v1254
      %v1601 = vpop.f32.mrf.mxu0
      %v1602 = vadd.f32 0.0, %v1601
      %v1603 = vpop.f32.mrf.mxu0
      %v1604 = vpop.f32.mrf.mxu0
      %v1605 = vadd.f32 0.0, %v1604
      %v1606 = vpop.f32.mrf.mxu0
      %1607 = vmatprep.mubr.bf16.mxu0 0
      %1608 = vmatmul.mubr.bf16.gmra.mxu0 %v1257
      %v1609 = vpop.f32.mrf.mxu0
      %v1610 = vadd.f32 0.0, %v1609
      %v1611 = vpop.f32.mrf.mxu0
      %v1612 = vpop.f32.mrf.mxu0
      %v1613 = vadd.f32 0.0, %v1612
      %v1614 = vpop.f32.mrf.mxu0
      %1615 = vdwg.mxu0
      %s1616 = scalar_lea.vmem %s3, 96
      %v1617 = vld [vmem:[%s1616] sm:$0xf]
      %v1618 = vld [vmem:[%s1616 + $0x4] sm:$0xf]
      %v1619 = vld [vmem:[%s1616 + $0x8] sm:$0xf]
      %v1620 = vld [vmem:[%s1616 + $0xc] sm:$0xf]
      %v1621 = vld [vmem:[%s1616 + $0x10] sm:$0xf]
      %v1622 = vld [vmem:[%s1616 + $0x14] sm:$0xf]
      %v1623 = vld [vmem:[%s1616 + $0x18] sm:$0xf]
      %v1624 = vld [vmem:[%s1616 + $0x1c] sm:$0xf]
      %v1633 = vunpack.c.l.b16 %v1617
      %v1634 = vunpack.c.l.b16 %v1618
      %v1635 = vunpack.c.l.b16 %v1619
      %v1636 = vunpack.c.l.b16 %v1620
      %v1637 = vunpack.c.l.b16 %v1621
      %v1638 = vunpack.c.l.b16 %v1622
      %v1639 = vunpack.c.l.b16 %v1623
      %v1640 = vunpack.c.l.b16 %v1624
      %v1641 = vpack.c.b16 %v1634, %v1633
      %v1642 = vpack.c.b16 %v1636, %v1635
      %v1643 = vpack.c.b16 %v1638, %v1637
      %v1644 = vpack.c.b16 %v1640, %v1639
      %1649 = vmatprep.subr.bf16.mxu0 0
      %1650 = vmatpush1.bf16.msra.mxu0 0
      %1651 = vmatprep.subr.bf16.mxu0 0
      %1652 = vmatpush1.bf16.msra.mxu0 0
      %1653 = vmatprep.subr.bf16.mxu0 0
      %1654 = vmatpush1.bf16.msra.mxu0 0
      %1655 = vmatprep.subr.bf16.mxu0 0
      %1656 = vmatpush1.bf16.msra.mxu0 0
      %1657 = vmatprep.subr.bf16.mxu0 0
      %1658 = vmatpush1.bf16.msra.mxu0 %v1644
      %1659 = vmatprep.subr.bf16.mxu0 0
      %1660 = vmatpush1.bf16.msra.mxu0 %v1643
      %1661 = vmatprep.subr.bf16.mxu0 0
      %1662 = vmatpush1.bf16.msra.mxu0 %v1642
      %1663 = vmatprep.subr.bf16.mxu0 0
      %1664 = vmatpush1.bf16.msra.mxu0 %v1641
      %1665 = vmatprep.subr.bf16.mxu0 0
      %1666 = vmatpush2.bf16.msra.mxu0 0
      %1667 = vmatprep.subr.bf16.mxu0 0
      %1668 = vmatpush2.bf16.msra.mxu0 0
      %1669 = vmatprep.subr.bf16.mxu0 0
      %1670 = vmatpush2.bf16.msra.mxu0 0
      %1671 = vmatprep.subr.bf16.mxu0 0
      %1672 = vmatpush2.bf16.msra.mxu0 0
      %1673 = vmatprep.subr.bf16.mxu0 0
      %1674 = vmatpush2.bf16.msra.mxu0 0
      %1675 = vmatprep.subr.bf16.mxu0 0
      %1676 = vmatpush2.bf16.msra.mxu0 0
      %1677 = vmatprep.subr.bf16.mxu0 0
      %1678 = vmatpush2.bf16.msra.mxu0 0
      %1679 = vmatprep.subr.bf16.mxu0 0
      %1680 = vmatpush2.bf16.msra.mxu0 0
      %1681 = vmatprep.mubr.bf16.mxu0 0
      %1682 = vmatmul.mubr.bf16.gmra.mxu0 %v1236
      %v1683 = vpop.f32.mrf.mxu0
      %v1684 = vadd.f32 0.0, %v1683
      %v1685 = vpop.f32.mrf.mxu0
      %v1686 = vpop.f32.mrf.mxu0
      %v1687 = vadd.f32 0.0, %v1686
      %v1688 = vpop.f32.mrf.mxu0
      %1689 = vmatprep.mubr.bf16.mxu0 0
      %1690 = vmatmul.mubr.bf16.gmra.mxu0 %v1239
      %v1691 = vpop.f32.mrf.mxu0
      %v1692 = vadd.f32 0.0, %v1691
      %v1693 = vpop.f32.mrf.mxu0
      %v1694 = vpop.f32.mrf.mxu0
      %v1695 = vadd.f32 0.0, %v1694
      %v1696 = vpop.f32.mrf.mxu0
      %1697 = vmatprep.mubr.bf16.mxu0 0
      %1698 = vmatmul.mubr.bf16.gmra.mxu0 %v1242
      %v1699 = vpop.f32.mrf.mxu0
      %v1700 = vadd.f32 0.0, %v1699
      %v1701 = vpop.f32.mrf.mxu0
      %v1702 = vpop.f32.mrf.mxu0
      %v1703 = vadd.f32 0.0, %v1702
      %v1704 = vpop.f32.mrf.mxu0
      %1705 = vmatprep.mubr.bf16.mxu0 0
      %1706 = vmatmul.mubr.bf16.gmra.mxu0 %v1245
      %v1707 = vpop.f32.mrf.mxu0
      %v1708 = vadd.f32 0.0, %v1707
      %v1709 = vpop.f32.mrf.mxu0
      %v1710 = vpop.f32.mrf.mxu0
      %v1711 = vadd.f32 0.0, %v1710
      %v1712 = vpop.f32.mrf.mxu0
      %1713 = vmatprep.mubr.bf16.mxu0 0
      %1714 = vmatmul.mubr.bf16.gmra.mxu0 %v1248
      %v1715 = vpop.f32.mrf.mxu0
      %v1716 = vadd.f32 0.0, %v1715
      %v1717 = vpop.f32.mrf.mxu0
      %v1718 = vpop.f32.mrf.mxu0
      %v1719 = vadd.f32 0.0, %v1718
      %v1720 = vpop.f32.mrf.mxu0
      %1721 = vmatprep.mubr.bf16.mxu0 0
      %1722 = vmatmul.mubr.bf16.gmra.mxu0 %v1251
      %v1723 = vpop.f32.mrf.mxu0
      %v1724 = vadd.f32 0.0, %v1723
      %v1725 = vpop.f32.mrf.mxu0
      %v1726 = vpop.f32.mrf.mxu0
      %v1727 = vadd.f32 0.0, %v1726
      %v1728 = vpop.f32.mrf.mxu0
      %1729 = vmatprep.mubr.bf16.mxu0 0
      %1730 = vmatmul.mubr.bf16.gmra.mxu0 %v1254
      %v1731 = vpop.f32.mrf.mxu0
      %v1732 = vadd.f32 0.0, %v1731
      %v1733 = vpop.f32.mrf.mxu0
      %v1734 = vpop.f32.mrf.mxu0
      %v1735 = vadd.f32 0.0, %v1734
      %v1736 = vpop.f32.mrf.mxu0
      %1737 = vmatprep.mubr.bf16.mxu0 0
      %1738 = vmatmul.mubr.bf16.gmra.mxu0 %v1257
      %v1739 = vpop.f32.mrf.mxu0
      %v1740 = vadd.f32 0.0, %v1739
      %v1741 = vpop.f32.mrf.mxu0
      %v1742 = vpop.f32.mrf.mxu0
      %v1743 = vadd.f32 0.0, %v1742
      %v1744 = vpop.f32.mrf.mxu0
      %1745 = vdwg.mxu0
      %v1746 = vmax.f32 %v1294, %v1424
      %v1747 = vmax.f32 %v1297, %v1427
      %v1748 = vmax.f32 %v1302, %v1432
      %v1749 = vmax.f32 %v1305, %v1435
      %v1750 = vmax.f32 %v1310, %v1440
      %v1751 = vmax.f32 %v1313, %v1443
      %v1752 = vmax.f32 %v1318, %v1448
      %v1753 = vmax.f32 %v1321, %v1451
      %v1754 = vmax.f32 %v1326, %v1456
      %v1755 = vmax.f32 %v1329, %v1459
      %v1756 = vmax.f32 %v1334, %v1464
      %v1757 = vmax.f32 %v1337, %v1467
      %v1758 = vmax.f32 %v1342, %v1472
      %v1759 = vmax.f32 %v1345, %v1475
      %v1760 = vmax.f32 %v1350, %v1480
      %v1761 = vmax.f32 %v1353, %v1483
      %v1762 = vmax.f32 %v1554, %v1684
      %v1763 = vmax.f32 %v1557, %v1687
      %v1764 = vmax.f32 %v1562, %v1692
      %v1765 = vmax.f32 %v1565, %v1695
      %v1766 = vmax.f32 %v1570, %v1700
      %v1767 = vmax.f32 %v1573, %v1703
      %v1768 = vmax.f32 %v1578, %v1708
      %v1769 = vmax.f32 %v1581, %v1711
      %v1770 = vmax.f32 %v1586, %v1716
      %v1771 = vmax.f32 %v1589, %v1719
      %v1772 = vmax.f32 %v1594, %v1724
      %v1773 = vmax.f32 %v1597, %v1727
      %v1774 = vmax.f32 %v1602, %v1732
      %v1775 = vmax.f32 %v1605, %v1735
      %v1776 = vmax.f32 %v1610, %v1740
      %v1777 = vmax.f32 %v1613, %v1743
      %v1778 = vmax.f32 %v1746, %v1762
      %v1779 = vmax.f32 %v1747, %v1763
      %v1780 = vmax.f32 %v1748, %v1764
      %v1781 = vmax.f32 %v1749, %v1765
      %v1782 = vmax.f32 %v1750, %v1766
      %v1783 = vmax.f32 %v1751, %v1767
      %v1784 = vmax.f32 %v1752, %v1768
      %v1785 = vmax.f32 %v1753, %v1769
      %v1786 = vmax.f32 %v1754, %v1770
      %v1787 = vmax.f32 %v1755, %v1771
      %v1788 = vmax.f32 %v1756, %v1772
      %v1789 = vmax.f32 %v1757, %v1773
      %v1790 = vmax.f32 %v1758, %v1774
      %v1791 = vmax.f32 %v1759, %v1775
      %v1792 = vmax.f32 %v1760, %v1776
      %v1793 = vmax.f32 %v1761, %v1777
      %v1794 = vpack.c.bf16 %v1779, %v1778
      %v1795 = vpack.c.bf16 %v1781, %v1780
      %v1796 = vpack.c.bf16 %v1783, %v1782
      %v1797 = vpack.c.bf16 %v1785, %v1784
      %v1798 = vpack.c.bf16 %v1787, %v1786
      %v1799 = vpack.c.bf16 %v1789, %v1788
      %v1800 = vpack.c.bf16 %v1791, %v1790
      %v1801 = vpack.c.bf16 %v1793, %v1792
      %v1810 = vunpack.c.l.b16 %v1794
      %v1811 = vunpack.c.h.b16 %v1794
      %v1812 = vunpack.c.l.b16 %v1795
      %v1813 = vunpack.c.h.b16 %v1795
      %v1814 = vunpack.c.l.b16 %v1796
      %v1815 = vunpack.c.h.b16 %v1796
      %v1816 = vunpack.c.l.b16 %v1797
      %v1817 = vunpack.c.h.b16 %v1797
      %v1818 = vunpack.c.l.b16 %v1798
      %v1819 = vunpack.c.h.b16 %v1798
      %v1820 = vunpack.c.l.b16 %v1799
      %v1821 = vunpack.c.h.b16 %v1799
      %v1822 = vunpack.c.l.b16 %v1800
      %v1823 = vunpack.c.h.b16 %v1800
      %v1824 = vunpack.c.l.b16 %v1801
      %v1825 = vunpack.c.h.b16 %v1801
      %v1826 = vpack.c.b16 %v1810, %v1810
      %v1827 = vpack.c.b16 %v1811, %v1811
      %v1828 = vpack.c.b16 %v1812, %v1812
      %v1829 = vpack.c.b16 %v1813, %v1813
      %v1830 = vpack.c.b16 %v1814, %v1814
      %v1831 = vpack.c.b16 %v1815, %v1815
      %v1832 = vpack.c.b16 %v1816, %v1816
      %v1833 = vpack.c.b16 %v1817, %v1817
      %v1834 = vpack.c.b16 %v1818, %v1818
      %v1835 = vpack.c.b16 %v1819, %v1819
      %v1836 = vpack.c.b16 %v1820, %v1820
      %v1837 = vpack.c.b16 %v1821, %v1821
      %v1838 = vpack.c.b16 %v1822, %v1822
      %v1839 = vpack.c.b16 %v1823, %v1823
      %v1840 = vpack.c.b16 %v1824, %v1824
      %v1841 = vpack.c.b16 %v1825, %v1825
      %vm1858 = vcmask 125952
      %1859 = vst.msk [vmem:[%s197] sm:$0xf] %vm1858, %v1826
      %1860 = vst.msk [vmem:[%s197 + $0x4] sm:$0xf] %vm1858, %v1827
      %1861 = vst.msk [vmem:[%s197 + $0x8] sm:$0xf] %vm1858, %v1828
      %1862 = vst.msk [vmem:[%s197 + $0xc] sm:$0xf] %vm1858, %v1829
      %1863 = vst.msk [vmem:[%s197 + $0x10] sm:$0xf] %vm1858, %v1830
      %1864 = vst.msk [vmem:[%s197 + $0x14] sm:$0xf] %vm1858, %v1831
      %1865 = vst.msk [vmem:[%s197 + $0x18] sm:$0xf] %vm1858, %v1832
      %1866 = vst.msk [vmem:[%s197 + $0x1c] sm:$0xf] %vm1858, %v1833
      %1867 = vst.msk [vmem:[%s197 + $0x20] sm:$0xf] %vm1858, %v1834
      %1868 = vst.msk [vmem:[%s197 + $0x24] sm:$0xf] %vm1858, %v1835
      %1869 = vst.msk [vmem:[%s197 + $0x28] sm:$0xf] %vm1858, %v1836
      %1870 = vst.msk [vmem:[%s197 + $0x2c] sm:$0xf] %vm1858, %v1837
      %1871 = vst.msk [vmem:[%s197 + $0x30] sm:$0xf] %vm1858, %v1838
      %1872 = vst.msk [vmem:[%s197 + $0x34] sm:$0xf] %vm1858, %v1839
      %1873 = vst.msk [vmem:[%s197 + $0x38] sm:$0xf] %vm1858, %v1840
      %1874 = vst.msk [vmem:[%s197 + $0x3c] sm:$0xf] %vm1858, %v1841
      %p1875 = scmp.lt.s32.totalorder %s15, 1
      %s1876 = scalar_select %p1875, %s15, 1
      %s1877 = smul.addr %s1876, 16
      %s1878 = smul.addr %s1877, 4
      %s1879 = scalar_lea.vmem %s4, %s1878
      // Predicated region
      $region37: #{autoencoder_forward.8} parent=35 // pred_check
        %p1880 = pneg %p122
      $region38: #{autoencoder_forward.8} parent=35 // pred_check_branch
        %1882 = sbr.rel (%p1880) target = $region40
      $region39: #{autoencoder_forward.8} parent=35 // pred_region
        _
      $region40: #{autoencoder_forward.8} parent=35 // pred_fallthru
        _
    $region36: #{autoencoder_forward.8} parent=5 // pred_fallthru
      _
    %p1883 = scmp.le.s32.totalorder 2, %s10
    // Predicated region
    $region41: #{autoencoder_forward.8} parent=5 // pred_check
      %p1884 = pneg %p1883
    $region42: #{autoencoder_forward.8} parent=5 // pred_check_branch
      %1886 = sbr.rel (%p1884) target = $region44
    $region43: #{autoencoder_forward.8} parent=5 // pred_region
      %s1887 = ssub.s32 %s10, 2
      // Predicated region
      $region45: #{autoencoder_forward.8} parent=43 // pred_check
        %p1888 = pneg %p128
      $region46: #{autoencoder_forward.8} parent=43 // pred_check_branch
        %1890 = sbr.rel (%p1888) target = $region48
      $region47: #{autoencoder_forward.8} parent=43 // pred_region
        %p1891 = scmp.lt.s32.totalorder %s16, 1
        %s1892 = scalar_select %p1891, %s16, 1
        %s1893 = smul.addr %s1892, 16
        %s1894 = smul.addr %s1893, 4
        %s1895 = scalar_lea.vmem %s4, %s1894
      $region48: #{autoencoder_forward.8} parent=43 // pred_fallthru
        _
    $region44: #{autoencoder_forward.8} parent=5 // pred_fallthru
      _
  $region6: #{autoencoder_forward.8} parent=0 // loop_footer
    %s14 = sadd.s32 1, %s10
  $region7: #{autoencoder_forward.8} parent=0 // loop_footer_branch
    %9 = sbr.rel target = $region3
  $region8: #{autoencoder_forward.8} parent=0 // loop_exit
    _

// kernel: tile.18
$region0: #{tile.18}
  #allocation0 [shape = 's32[1]{0}', space=sflag, size = 0x4, scoped, tag = 'scoped memory for tile.18']
  %s0 = inlined_call_operand.vmem [shape: f32[32], index: 0, kind: input, shape index: {}]
  %s1 = inlined_call_operand.vmem [shape: f32[4,32], index: 1, kind: output, shape index: {}]
  // Predicated region
  $region2: #{tile.18} parent=0 // pred_check
    _
  $region3: #{tile.18} parent=0 // pred_check_branch
    %3 = sbr.rel (0) target = $region5
  $region4: #{tile.18} parent=0 // pred_region
    _
  $region5: #{tile.18} parent=0 // pred_fallthru
    _
  %v4 = vld [vmem:[%s0] ss:$0 sm:$0xff]
  %5 = vst [vmem:[%s1] sm:$0xf] %v4

// kernel: tile.1
$region0: #{tile.1}
  %s0 = inlined_call_operand.vmem [shape: f32[4,32], index: 0, kind: input, shape index: {}]
  %s1 = inlined_call_operand.vmem [shape: f32[128,1], index: 1, kind: output, shape index: {}]
  $region1: #{tile.1} parent=0
    #allocation0 [shape = 'u8[4096]{0}', space=vmem, size = 0x1000, scoped, tag = 'scoped mem for input reshape']
    %s3 = sshll.u32 1, 4
    %s4 = ssub.s32 %s3, 1
    %v5 = vld [vmem:[%s0] sm:%s4]
    %6 = vst [vmem:[#allocation0] sm:%s4] %v5
    %v7 = vld [vmem:[#allocation0] sm:$0xf]
    %vm8 = vcmask 7168
    %9 = vst.msk [vmem:[%s1] sm:$0x1] %vm8, %v7
    %s10 = scalar_lea.vmem %s1, 31
    %11 = vst.msk [vmem:[%s10] sm:$0x2] %vm8, %v7
    %s12 = scalar_lea.vmem %s1, 62
    %13 = vst.msk [vmem:[%s12] sm:$0x4] %vm8, %v7
    %s14 = scalar_lea.vmem %s1, 93
    %15 = vst.msk [vmem:[%s14] sm:$0x8] %vm8, %v7
    %v16 = vld [vmem:[#allocation0] sm:$0xf]
    %17 = vrot.lane.b32.xlu0 %v16, 127
    %v18 = vpop.permute.xlu0 %17
    %vm19 = vcmask 7168
    %s20 = scalar_lea.vmem %s1, 1
    %21 = vst.msk [vmem:[%s20] sm:$0x1] %vm19, %v18
    %s22 = scalar_lea.vmem %s1, 32
    %23 = vst.msk [vmem:[%s22] sm:$0x2] %vm19, %v18
    %s24 = scalar_lea.vmem %s1, 63
    %25 = vst.msk [vmem:[%s24] sm:$0x4] %vm19, %v18
    %s26 = scalar_lea.vmem %s1, 94
    %27 = vst.msk [vmem:[%s26] sm:$0x8] %vm19, %v18
    %v28 = vld [vmem:[#allocation0] sm:$0xf]
    %29 = vrot.lane.b32.xlu0 %v28, 126
    %v30 = vpop.permute.xlu0 %29
    %vm31 = vcmask 7168
    %s32 = scalar_lea.vmem %s1, 2
    %33 = vst.msk [vmem:[%s32] sm:$0x1] %vm31, %v30
    %s34 = scalar_lea.vmem %s1, 33
    %35 = vst.msk [vmem:[%s34] sm:$0x2] %vm31, %v30
    %s36 = scalar_lea.vmem %s1, 64
    %37 = vst.msk [vmem:[%s36] sm:$0x4] %vm31, %v30
    %s38 = scalar_lea.vmem %s1, 95
    %39 = vst.msk [vmem:[%s38] sm:$0x8] %vm31, %v30
    %v40 = vld [vmem:[#allocation0] sm:$0xf]
    %41 = vrot.lane.b32.xlu0 %v40, 125
    %v42 = vpop.permute.xlu0 %41
    %vm43 = vcmask 7168
    %s44 = scalar_lea.vmem %s1, 3
    %45 = vst.msk [vmem:[%s44] sm:$0x1] %vm43, %v42
    %s46 = scalar_lea.vmem %s1, 34
    %47 = vst.msk [vmem:[%s46] sm:$0x2] %vm43, %v42
    %s48 = scalar_lea.vmem %s1, 65
    %49 = vst.msk [vmem:[%s48] sm:$0x4] %vm43, %v42
    %s50 = scalar_lea.vmem %s1, 96
    %51 = vst.msk [vmem:[%s50] sm:$0x8] %vm43, %v42
    %v52 = vld [vmem:[#allocation0] sm:$0xf]
    %53 = vrot.lane.b32.xlu0 %v52, 124
    %v54 = vpop.permute.xlu0 %53
    %vm55 = vcmask 7168
    %s56 = scalar_lea.vmem %s1, 4
    %57 = vst.msk [vmem:[%s56] sm:$0x1] %vm55, %v54
    %s58 = scalar_lea.vmem %s1, 35
    %59 = vst.msk [vmem:[%s58] sm:$0x2] %vm55, %v54
    %s60 = scalar_lea.vmem %s1, 66
    %61 = vst.msk [vmem:[%s60] sm:$0x4] %vm55, %v54
    %s62 = scalar_lea.vmem %s1, 97
    %63 = vst.msk [vmem:[%s62] sm:$0x8] %vm55, %v54
    %v64 = vld [vmem:[#allocation0] sm:$0xf]
    %65 = vrot.lane.b32.xlu0 %v64, 123
    %v66 = vpop.permute.xlu0 %65
    %vm67 = vcmask 7168
    %s68 = scalar_lea.vmem %s1, 5
    %69 = vst.msk [vmem:[%s68] sm:$0x1] %vm67, %v66
    %s70 = scalar_lea.vmem %s1, 36
    %71 = vst.msk [vmem:[%s70] sm:$0x2] %vm67, %v66
    %s72 = scalar_lea.vmem %s1, 67
    %73 = vst.msk [vmem:[%s72] sm:$0x4] %vm67, %v66
    %s74 = scalar_lea.vmem %s1, 98
    %75 = vst.msk [vmem:[%s74] sm:$0x8] %vm67, %v66
    %v76 = vld [vmem:[#allocation0] sm:$0xf]
    %77 = vrot.lane.b32.xlu0 %v76, 122
    %v78 = vpop.permute.xlu0 %77
    %vm79 = vcmask 7168
    %s80 = scalar_lea.vmem %s1, 6
    %81 = vst.msk [vmem:[%s80] sm:$0x1] %vm79, %v78
    %s82 = scalar_lea.vmem %s1, 37
    %83 = vst.msk [vmem:[%s82] sm:$0x2] %vm79, %v78
    %s84 = scalar_lea.vmem %s1, 68
    %85 = vst.msk [vmem:[%s84] sm:$0x4] %vm79, %v78
    %s86 = scalar_lea.vmem %s1, 99
    %87 = vst.msk [vmem:[%s86] sm:$0x8] %vm79, %v78
    %v88 = vld [vmem:[#allocation0] sm:$0xf]
    %89 = vrot.lane.b32.xlu0 %v88, 121
    %v90 = vpop.permute.xlu0 %89
    %vm91 = vcmask 7168
    %s92 = scalar_lea.vmem %s1, 7
    %93 = vst.msk [vmem:[%s92] sm:$0x1] %vm91, %v90
    %s94 = scalar_lea.vmem %s1, 38
    %95 = vst.msk [vmem:[%s94] sm:$0x2] %vm91, %v90
    %s96 = scalar_lea.vmem %s1, 69
    %97 = vst.msk [vmem:[%s96] sm:$0x4] %vm91, %v90
    %s98 = scalar_lea.vmem %s1, 100
    %99 = vst.msk [vmem:[%s98] sm:$0x8] %vm91, %v90
    %v100 = vld [vmem:[#allocation0] sm:$0xf]
    %101 = vrot.lane.b32.xlu0 %v100, 120
    %v102 = vpop.permute.xlu0 %101
    %vm103 = vcmask 7168
    %s104 = scalar_lea.vmem %s1, 8
    %105 = vst.msk [vmem:[%s104] sm:$0x1] %vm103, %v102
    %s106 = scalar_lea.vmem %s1, 39
    %107 = vst.msk [vmem:[%s106] sm:$0x2] %vm103, %v102
    %s108 = scalar_lea.vmem %s1, 70
    %109 = vst.msk [vmem:[%s108] sm:$0x4] %vm103, %v102
    %s110 = scalar_lea.vmem %s1, 101
    %111 = vst.msk [vmem:[%s110] sm:$0x8] %vm103, %v102
    %v112 = vld [vmem:[#allocation0] sm:$0xf]
    %113 = vrot.lane.b32.xlu0 %v112, 119
    %v114 = vpop.permute.xlu0 %113
    %vm115 = vcmask 7168
    %s116 = scalar_lea.vmem %s1, 9
    %117 = vst.msk [vmem:[%s116] sm:$0x1] %vm115, %v114
    %s118 = scalar_lea.vmem %s1, 40
    %119 = vst.msk [vmem:[%s118] sm:$0x2] %vm115, %v114
    %s120 = scalar_lea.vmem %s1, 71
    %121 = vst.msk [vmem:[%s120] sm:$0x4] %vm115, %v114
    %s122 = scalar_lea.vmem %s1, 102
    %123 = vst.msk [vmem:[%s122] sm:$0x8] %vm115, %v114
    %v124 = vld [vmem:[#allocation0] sm:$0xf]
    %125 = vrot.lane.b32.xlu0 %v124, 118
    %v126 = vpop.permute.xlu0 %125
    %vm127 = vcmask 7168
    %s128 = scalar_lea.vmem %s1, 10
    %129 = vst.msk [vmem:[%s128] sm:$0x1] %vm127, %v126
    %s130 = scalar_lea.vmem %s1, 41
    %131 = vst.msk [vmem:[%s130] sm:$0x2] %vm127, %v126
    %s132 = scalar_lea.vmem %s1, 72
    %133 = vst.msk [vmem:[%s132] sm:$0x4] %vm127, %v126
    %s134 = scalar_lea.vmem %s1, 103
    %135 = vst.msk [vmem:[%s134] sm:$0x8] %vm127, %v126
    %v136 = vld [vmem:[#allocation0] sm:$0xf]
    %137 = vrot.lane.b32.xlu0 %v136, 117
    %v138 = vpop.permute.xlu0 %137
    %vm139 = vcmask 7168
    %s140 = scalar_lea.vmem %s1, 11
    %141 = vst.msk [vmem:[%s140] sm:$0x1] %vm139, %v138
    %s142 = scalar_lea.vmem %s1, 42
    %143 = vst.msk [vmem:[%s142] sm:$0x2] %vm139, %v138
    %s144 = scalar_lea.vmem %s1, 73
    %145 = vst.msk [vmem:[%s144] sm:$0x4] %vm139, %v138
    %s146 = scalar_lea.vmem %s1, 104
    %147 = vst.msk [vmem:[%s146] sm:$0x8] %vm139, %v138
    %v148 = vld [vmem:[#allocation0] sm:$0xf]
    %149 = vrot.lane.b32.xlu0 %v148, 116
    %v150 = vpop.permute.xlu0 %149
    %vm151 = vcmask 7168
    %s152 = scalar_lea.vmem %s1, 12
    %153 = vst.msk [vmem:[%s152] sm:$0x1] %vm151, %v150
    %s154 = scalar_lea.vmem %s1, 43
    %155 = vst.msk [vmem:[%s154] sm:$0x2] %vm151, %v150
    %s156 = scalar_lea.vmem %s1, 74
    %157 = vst.msk [vmem:[%s156] sm:$0x4] %vm151, %v150
    %s158 = scalar_lea.vmem %s1, 105
    %159 = vst.msk [vmem:[%s158] sm:$0x8] %vm151, %v150
    %v160 = vld [vmem:[#allocation0] sm:$0xf]
    %161 = vrot.lane.b32.xlu0 %v160, 115
    %v162 = vpop.permute.xlu0 %161
    %vm163 = vcmask 7168
    %s164 = scalar_lea.vmem %s1, 13
    %165 = vst.msk [vmem:[%s164] sm:$0x1] %vm163, %v162
    %s166 = scalar_lea.vmem %s1, 44
    %167 = vst.msk [vmem:[%s166] sm:$0x2] %vm163, %v162
    %s168 = scalar_lea.vmem %s1, 75
    %169 = vst.msk [vmem:[%s168] sm:$0x4] %vm163, %v162
    %s170 = scalar_lea.vmem %s1, 106
    %171 = vst.msk [vmem:[%s170] sm:$0x8] %vm163, %v162
    %v172 = vld [vmem:[#allocation0] sm:$0xf]
    %173 = vrot.lane.b32.xlu0 %v172, 114
    %v174 = vpop.permute.xlu0 %173
    %vm175 = vcmask 7168
    %s176 = scalar_lea.vmem %s1, 14
    %177 = vst.msk [vmem:[%s176] sm:$0x1] %vm175, %v174
    %s178 = scalar_lea.vmem %s1, 45
    %179 = vst.msk [vmem:[%s178] sm:$0x2] %vm175, %v174
    %s180 = scalar_lea.vmem %s1, 76
    %181 = vst.msk [vmem:[%s180] sm:$0x4] %vm175, %v174
    %s182 = scalar_lea.vmem %s1, 107
    %183 = vst.msk [vmem:[%s182] sm:$0x8] %vm175, %v174
    %v184 = vld [vmem:[#allocation0] sm:$0xf]
    %185 = vrot.lane.b32.xlu0 %v184, 113
    %v186 = vpop.permute.xlu0 %185
    %vm187 = vcmask 7168
    %s188 = scalar_lea.vmem %s1, 15
    %189 = vst.msk [vmem:[%s188] sm:$0x1] %vm187, %v186
    %s190 = scalar_lea.vmem %s1, 46
    %191 = vst.msk [vmem:[%s190] sm:$0x2] %vm187, %v186
    %s192 = scalar_lea.vmem %s1, 77
    %193 = vst.msk [vmem:[%s192] sm:$0x4] %vm187, %v186
    %s194 = scalar_lea.vmem %s1, 108
    %195 = vst.msk [vmem:[%s194] sm:$0x8] %vm187, %v186
    %v196 = vld [vmem:[#allocation0] sm:$0xf]
    %197 = vrot.lane.b32.xlu0 %v196, 112
    %v198 = vpop.permute.xlu0 %197
    %vm199 = vcmask 7168
    %s200 = scalar_lea.vmem %s1, 16
    %201 = vst.msk [vmem:[%s200] sm:$0x1] %vm199, %v198
    %s202 = scalar_lea.vmem %s1, 47
    %203 = vst.msk [vmem:[%s202] sm:$0x2] %vm199, %v198
    %s204 = scalar_lea.vmem %s1, 78
    %205 = vst.msk [vmem:[%s204] sm:$0x4] %vm199, %v198
    %s206 = scalar_lea.vmem %s1, 109
    %207 = vst.msk [vmem:[%s206] sm:$0x8] %vm199, %v198
    %v208 = vld [vmem:[#allocation0] sm:$0xf]
    %209 = vrot.lane.b32.xlu0 %v208, 111
    %v210 = vpop.permute.xlu0 %209
    %vm211 = vcmask 7168
    %s212 = scalar_lea.vmem %s1, 17
    %213 = vst.msk [vmem:[%s212] sm:$0x1] %vm211, %v210
    %s214 = scalar_lea.vmem %s1, 48
    %215 = vst.msk [vmem:[%s214] sm:$0x2] %vm211, %v210
    %s216 = scalar_lea.vmem %s1, 79
    %217 = vst.msk [vmem:[%s216] sm:$0x4] %vm211, %v210
    %s218 = scalar_lea.vmem %s1, 110
    %219 = vst.msk [vmem:[%s218] sm:$0x8] %vm211, %v210
    %v220 = vld [vmem:[#allocation0] sm:$0xf]
    %221 = vrot.lane.b32.xlu0 %v220, 110
    %v222 = vpop.permute.xlu0 %221
    %vm223 = vcmask 7168
    %s224 = scalar_lea.vmem %s1, 18
    %225 = vst.msk [vmem:[%s224] sm:$0x1] %vm223, %v222
    %s226 = scalar_lea.vmem %s1, 49
    %227 = vst.msk [vmem:[%s226] sm:$0x2] %vm223, %v222
    %s228 = scalar_lea.vmem %s1, 80
    %229 = vst.msk [vmem:[%s228] sm:$0x4] %vm223, %v222
    %s230 = scalar_lea.vmem %s1, 111
    %231 = vst.msk [vmem:[%s230] sm:$0x8] %vm223, %v222
    %v232 = vld [vmem:[#allocation0] sm:$0xf]
    %233 = vrot.lane.b32.xlu0 %v232, 109
    %v234 = vpop.permute.xlu0 %233
    %vm235 = vcmask 7168
    %s236 = scalar_lea.vmem %s1, 19
    %237 = vst.msk [vmem:[%s236] sm:$0x1] %vm235, %v234
    %s238 = scalar_lea.vmem %s1, 50
    %239 = vst.msk [vmem:[%s238] sm:$0x2] %vm235, %v234
    %s240 = scalar_lea.vmem %s1, 81
    %241 = vst.msk [vmem:[%s240] sm:$0x4] %vm235, %v234
    %s242 = scalar_lea.vmem %s1, 112
    %243 = vst.msk [vmem:[%s242] sm:$0x8] %vm235, %v234
    %v244 = vld [vmem:[#allocation0] sm:$0xf]
    %245 = vrot.lane.b32.xlu0 %v244, 108
    %v246 = vpop.permute.xlu0 %245
    %vm247 = vcmask 7168
    %s248 = scalar_lea.vmem %s1, 20
    %249 = vst.msk [vmem:[%s248] sm:$0x1] %vm247, %v246
    %s250 = scalar_lea.vmem %s1, 51
    %251 = vst.msk [vmem:[%s250] sm:$0x2] %vm247, %v246
    %s252 = scalar_lea.vmem %s1, 82
    %253 = vst.msk [vmem:[%s252] sm:$0x4] %vm247, %v246
    %s254 = scalar_lea.vmem %s1, 113
    %255 = vst.msk [vmem:[%s254] sm:$0x8] %vm247, %v246
    %v256 = vld [vmem:[#allocation0] sm:$0xf]
    %257 = vrot.lane.b32.xlu0 %v256, 107
    %v258 = vpop.permute.xlu0 %257
    %vm259 = vcmask 7168
    %s260 = scalar_lea.vmem %s1, 21
    %261 = vst.msk [vmem:[%s260] sm:$0x1] %vm259, %v258
    %s262 = scalar_lea.vmem %s1, 52
    %263 = vst.msk [vmem:[%s262] sm:$0x2] %vm259, %v258
    %s264 = scalar_lea.vmem %s1, 83
    %265 = vst.msk [vmem:[%s264] sm:$0x4] %vm259, %v258
    %s266 = scalar_lea.vmem %s1, 114
    %267 = vst.msk [vmem:[%s266] sm:$0x8] %vm259, %v258
    %v268 = vld [vmem:[#allocation0] sm:$0xf]
    %269 = vrot.lane.b32.xlu0 %v268, 106
    %v270 = vpop.permute.xlu0 %269
    %vm271 = vcmask 7168
    %s272 = scalar_lea.vmem %s1, 22
    %273 = vst.msk [vmem:[%s272] sm:$0x1] %vm271, %v270
    %s274 = scalar_lea.vmem %s1, 53
    %275 = vst.msk [vmem:[%s274] sm:$0x2] %vm271, %v270
    %s276 = scalar_lea.vmem %s1, 84
    %277 = vst.msk [vmem:[%s276] sm:$0x4] %vm271, %v270
    %s278 = scalar_lea.vmem %s1, 115
    %279 = vst.msk [vmem:[%s278] sm:$0x8] %vm271, %v270
    %v280 = vld [vmem:[#allocation0] sm:$0xf]
    %281 = vrot.lane.b32.xlu0 %v280, 105
    %v282 = vpop.permute.xlu0 %281
    %vm283 = vcmask 7168
    %s284 = scalar_lea.vmem %s1, 23
    %285 = vst.msk [vmem:[%s284] sm:$0x1] %vm283, %v282
    %s286 = scalar_lea.vmem %s1, 54
    %287 = vst.msk [vmem:[%s286] sm:$0x2] %vm283, %v282
    %s288 = scalar_lea.vmem %s1, 85
    %289 = vst.msk [vmem:[%s288] sm:$0x4] %vm283, %v282
    %s290 = scalar_lea.vmem %s1, 116
    %291 = vst.msk [vmem:[%s290] sm:$0x8] %vm283, %v282
    %v292 = vld [vmem:[#allocation0] sm:$0xf]
    %293 = vrot.lane.b32.xlu0 %v292, 104
    %v294 = vpop.permute.xlu0 %293
    %vm295 = vcmask 7168
    %s296 = scalar_lea.vmem %s1, 24
    %297 = vst.msk [vmem:[%s296] sm:$0x1] %vm295, %v294
    %s298 = scalar_lea.vmem %s1, 55
    %299 = vst.msk [vmem:[%s298] sm:$0x2] %vm295, %v294
    %s300 = scalar_lea.vmem %s1, 86
    %301 = vst.msk [vmem:[%s300] sm:$0x4] %vm295, %v294
    %s302 = scalar_lea.vmem %s1, 117
    %303 = vst.msk [vmem:[%s302] sm:$0x8] %vm295, %v294
    %v304 = vld [vmem:[#allocation0] sm:$0xf]
    %305 = vrot.lane.b32.xlu0 %v304, 103
    %v306 = vpop.permute.xlu0 %305
    %vm307 = vcmask 7168
    %s308 = scalar_lea.vmem %s1, 25
    %309 = vst.msk [vmem:[%s308] sm:$0x1] %vm307, %v306
    %s310 = scalar_lea.vmem %s1, 56
    %311 = vst.msk [vmem:[%s310] sm:$0x2] %vm307, %v306
    %s312 = scalar_lea.vmem %s1, 87
    %313 = vst.msk [vmem:[%s312] sm:$0x4] %vm307, %v306
    %s314 = scalar_lea.vmem %s1, 118
    %315 = vst.msk [vmem:[%s314] sm:$0x8] %vm307, %v306
    %v316 = vld [vmem:[#allocation0] sm:$0xf]
    %317 = vrot.lane.b32.xlu0 %v316, 102
    %v318 = vpop.permute.xlu0 %317
    %vm319 = vcmask 7168
    %s320 = scalar_lea.vmem %s1, 26
    %321 = vst.msk [vmem:[%s320] sm:$0x1] %vm319, %v318
    %s322 = scalar_lea.vmem %s1, 57
    %323 = vst.msk [vmem:[%s322] sm:$0x2] %vm319, %v318
    %s324 = scalar_lea.vmem %s1, 88
    %325 = vst.msk [vmem:[%s324] sm:$0x4] %vm319, %v318
    %s326 = scalar_lea.vmem %s1, 119
    %327 = vst.msk [vmem:[%s326] sm:$0x8] %vm319, %v318
    %v328 = vld [vmem:[#allocation0] sm:$0xf]
    %329 = vrot.lane.b32.xlu0 %v328, 101
    %v330 = vpop.permute.xlu0 %329
    %vm331 = vcmask 7168
    %s332 = scalar_lea.vmem %s1, 27
    %333 = vst.msk [vmem:[%s332] sm:$0x1] %vm331, %v330
    %s334 = scalar_lea.vmem %s1, 58
    %335 = vst.msk [vmem:[%s334] sm:$0x2] %vm331, %v330
    %s336 = scalar_lea.vmem %s1, 89
    %337 = vst.msk [vmem:[%s336] sm:$0x4] %vm331, %v330
    %s338 = scalar_lea.vmem %s1, 120
    %339 = vst.msk [vmem:[%s338] sm:$0x8] %vm331, %v330
    %v340 = vld [vmem:[#allocation0] sm:$0xf]
    %341 = vrot.lane.b32.xlu0 %v340, 100
    %v342 = vpop.permute.xlu0 %341
    %vm343 = vcmask 7168
    %s344 = scalar_lea.vmem %s1, 28
    %345 = vst.msk [vmem:[%s344] sm:$0x1] %vm343, %v342
    %s346 = scalar_lea.vmem %s1, 59
    %347 = vst.msk [vmem:[%s346] sm:$0x2] %vm343, %v342
    %s348 = scalar_lea.vmem %s1, 90
    %349 = vst.msk [vmem:[%s348] sm:$0x4] %vm343, %v342
    %s350 = scalar_lea.vmem %s1, 121
    %351 = vst.msk [vmem:[%s350] sm:$0x8] %vm343, %v342
    %v352 = vld [vmem:[#allocation0] sm:$0xf]
    %353 = vrot.lane.b32.xlu0 %v352, 99
    %v354 = vpop.permute.xlu0 %353
    %vm355 = vcmask 7168
    %s356 = scalar_lea.vmem %s1, 29
    %357 = vst.msk [vmem:[%s356] sm:$0x1] %vm355, %v354
    %s358 = scalar_lea.vmem %s1, 60
    %359 = vst.msk [vmem:[%s358] sm:$0x2] %vm355, %v354
    %s360 = scalar_lea.vmem %s1, 91
    %361 = vst.msk [vmem:[%s360] sm:$0x4] %vm355, %v354
    %s362 = scalar_lea.vmem %s1, 122
    %363 = vst.msk [vmem:[%s362] sm:$0x8] %vm355, %v354
    %v364 = vld [vmem:[#allocation0] sm:$0xf]
    %365 = vrot.lane.b32.xlu0 %v364, 98
    %v366 = vpop.permute.xlu0 %365
    %vm367 = vcmask 7168
    %s368 = scalar_lea.vmem %s1, 30
    %369 = vst.msk [vmem:[%s368] sm:$0x1] %vm367, %v366
    %s370 = scalar_lea.vmem %s1, 61
    %371 = vst.msk [vmem:[%s370] sm:$0x2] %vm367, %v366
    %s372 = scalar_lea.vmem %s1, 92
    %373 = vst.msk [vmem:[%s372] sm:$0x4] %vm367, %v366
    %s374 = scalar_lea.vmem %s1, 123
    %375 = vst.msk [vmem:[%s374] sm:$0x8] %vm367, %v366
    %v376 = vld [vmem:[#allocation0] sm:$0xf]
    %377 = vrot.lane.b32.xlu0 %v376, 97
    %v378 = vpop.permute.xlu0 %377
    %vm379 = vcmask 7168
    %s380 = scalar_lea.vmem %s1, 31
    %381 = vst.msk [vmem:[%s380] sm:$0x1] %vm379, %v378
    %s382 = scalar_lea.vmem %s1, 62
    %383 = vst.msk [vmem:[%s382] sm:$0x2] %vm379, %v378
    %s384 = scalar_lea.vmem %s1, 93
    %385 = vst.msk [vmem:[%s384] sm:$0x4] %vm379, %v378
    %s386 = scalar_lea.vmem %s1, 124
    %387 = vst.msk [vmem:[%s386] sm:$0x8] %vm379, %v378

// kernel: autoencoder_forward.9
$region0: #{autoencoder_forward.9}
  #allocation0 [shape = 'u32[]', space=smem, size = 0x4, offset = 0x4, fixed_abs, tag = 'smem constant byte address 0x4 - core index']
  #allocation1 [shape = 'u32[144,128]{1,0:T(1,128)}', space=vmem, size = 0x12000, scoped, tag = 'internal scratch']
  %s0 = inlined_call_operand.vmem [shape: bf16[2,128,21], index: 0, kind: input, shape index: {}]
  %s1 = inlined_call_operand.vmem [shape: bf16[256,512], index: 1, kind: input, shape index: {}]
  %s2 = inlined_call_operand.vmem [shape: f32[256,1], index: 2, kind: input, shape index: {}]
  %s3 = inlined_call_operand.vmem [shape: bf16[2,256,16], index: 3, kind: output, shape index: {}]
  %s4 = sld [smem:[#allocation0]]
  $region45: #{autoencoder_forward.9} parent=0
    _
  %s6 = ssub.s32 1, %s4
  %s7 = scalar_select 0, %s6, %s4
  loop: start=0, step=1, limit=4
  $region2: #{autoencoder_forward.9} parent=0 // loop_pre_header
    _
  $region3: #{autoencoder_forward.9} parent=0 // loop_header
    %s9 = sphi 0, %s13
    %p10 = scmp.ge.s32.totalorder %s9, 4
    %s19 = sphi 0, %s21
    %s22 = sphi 0, %s19
    %s23 = sphi 0, %s22
    %s39 = sphi 0, %s23
    %s43 = sphi 0, %s43
    %s45 = sphi 0, %s43
    %s46 = sphi 0, %s45
    %s60 = sphi 0, %s46
    %s64 = sphi 0, %s64
    %s66 = sphi 0, %s64
    %s67 = sphi 0, %s66
    %s81 = sphi 0, %s67
    %s87 = sphi 0, %s89
    %s90 = sphi 0, %s87
    %s91 = sphi 0, %s90
    %s107 = sphi 0, %s91
  $region4: #{autoencoder_forward.9} parent=0 // loop_header_branch
    %12 = sbr.rel (%p10) target = $region8
  $region5: #{autoencoder_forward.9} parent=0 // loop_body
    %s14 = ssub.s32 %s9, 1
    %s15 = ssub.s32 %s9, 2
    %s16 = sadd.s32 %s9, 1
    %s17 = ssub.s32 %s9, %s16
    %p18 = scmp.eq.s32.totalorder %s17, 0
    %s20 = sadd.s32 %s19, 1
    %s21 = scalar_select %p18, %s19, %s20
    %p24 = pneg %p18
    %p25 = scmp.eq.s32.totalorder %s9, 1
    %p26 = por %p24, %p25
    %p27 = scmp.ne.s32.totalorder %s19, %s22
    %p28 = scmp.eq.s32.totalorder %s9, 0
    %p29 = por %p27, %p28
    %p30 = scmp.ne.s32.totalorder %s19, %s22
    %p31 = scmp.eq.s32.totalorder %s14, 1
    %p32 = por %p30, %p31
    %p33 = scmp.ne.s32.totalorder %s22, %s23
    %p34 = scmp.eq.s32.totalorder %s14, 0
    %p35 = por %p33, %p34
    %p36 = scmp.ne.s32.totalorder %s22, %s23
    %p37 = scmp.eq.s32.totalorder %s15, 1
    %p38 = por %p36, %p37
    %p40 = scmp.ne.s32.totalorder %s23, %s39
    %p41 = scmp.eq.s32.totalorder %s15, 0
    %p42 = por %p40, %p41
    %s44 = sadd.s32 %s43, 1
    %p47 = scmp.eq.s32.totalorder %s9, 1
    %p48 = scmp.ne.s32.totalorder %s43, %s45
    %p49 = scmp.eq.s32.totalorder %s9, 0
    %p50 = por %p48, %p49
    %p51 = scmp.ne.s32.totalorder %s43, %s45
    %p52 = scmp.eq.s32.totalorder %s14, 1
    %p53 = por %p51, %p52
    %p54 = scmp.ne.s32.totalorder %s45, %s46
    %p55 = scmp.eq.s32.totalorder %s14, 0
    %p56 = por %p54, %p55
    %p57 = scmp.ne.s32.totalorder %s45, %s46
    %p58 = scmp.eq.s32.totalorder %s15, 1
    %p59 = por %p57, %p58
    %p61 = scmp.ne.s32.totalorder %s46, %s60
    %p62 = scmp.eq.s32.totalorder %s15, 0
    %p63 = por %p61, %p62
    %s65 = sadd.s32 %s64, 1
    %p68 = scmp.eq.s32.totalorder %s9, 1
    %p69 = scmp.ne.s32.totalorder %s64, %s66
    %p70 = scmp.eq.s32.totalorder %s9, 0
    %p71 = por %p69, %p70
    %p72 = scmp.ne.s32.totalorder %s64, %s66
    %p73 = scmp.eq.s32.totalorder %s14, 1
    %p74 = por %p72, %p73
    %p75 = scmp.ne.s32.totalorder %s66, %s67
    %p76 = scmp.eq.s32.totalorder %s14, 0
    %p77 = por %p75, %p76
    %p78 = scmp.ne.s32.totalorder %s66, %s67
    %p79 = scmp.eq.s32.totalorder %s15, 1
    %p80 = por %p78, %p79
    %p82 = scmp.ne.s32.totalorder %s67, %s81
    %p83 = scmp.eq.s32.totalorder %s15, 0
    %p84 = por %p82, %p83
    %s85 = ssub.s32 %s9, %s16
    %p86 = scmp.eq.s32.totalorder %s85, 0
    %s88 = sadd.s32 %s87, 1
    %s89 = scalar_select %p86, %s87, %s88
    %p92 = pneg %p86
    %p93 = scmp.eq.s32.totalorder %s9, 1
    %p94 = por %p92, %p93
    %p95 = scmp.ne.s32.totalorder %s87, %s90
    %p96 = scmp.eq.s32.totalorder %s9, 0
    %p97 = por %p95, %p96
    %p98 = scmp.ne.s32.totalorder %s87, %s90
    %p99 = scmp.eq.s32.totalorder %s14, 1
    %p100 = por %p98, %p99
    %p101 = scmp.ne.s32.totalorder %s90, %s91
    %p102 = scmp.eq.s32.totalorder %s14, 0
    %p103 = por %p101, %p102
    %p104 = scmp.ne.s32.totalorder %s90, %s91
    %p105 = scmp.eq.s32.totalorder %s15, 1
    %p106 = por %p104, %p105
    %p108 = scmp.ne.s32.totalorder %s91, %s107
    %p109 = scmp.eq.s32.totalorder %s15, 0
    %p110 = por %p108, %p109
    %p111 = scmp.le.s32.totalorder 1, %s9
    %p112 = scmp.lt.s32.totalorder %s9, 3
    %p113 = pnand %p111, %p112
    %p114 = pneg %p113
    // Predicated region
    $region9: #{autoencoder_forward.9} parent=5 // pred_check
      _
    $region10: #{autoencoder_forward.9} parent=5 // pred_check_branch
      %116 = sbr.rel (%p113) target = $region12
    $region11: #{autoencoder_forward.9} parent=5 // pred_region
      %s117 = ssub.s32 %s9, 1
      // Predicated region
      $region13: #{autoencoder_forward.9} parent=11 // pred_check
        %p118 = pneg %p56
      $region14: #{autoencoder_forward.9} parent=11 // pred_check_branch
        %120 = sbr.rel (%p118) target = $region16
      $region15: #{autoencoder_forward.9} parent=11 // pred_region
        _
      $region16: #{autoencoder_forward.9} parent=11 // pred_fallthru
        _
      // Predicated region
      $region17: #{autoencoder_forward.9} parent=11 // pred_check
        %p121 = pneg %p77
      $region18: #{autoencoder_forward.9} parent=11 // pred_check_branch
        %123 = sbr.rel (%p121) target = $region20
      $region19: #{autoencoder_forward.9} parent=11 // pred_region
        _
      $region20: #{autoencoder_forward.9} parent=11 // pred_fallthru
        _
    $region12: #{autoencoder_forward.9} parent=5 // pred_fallthru
      _
    %p124 = scmp.lt.s32.totalorder %s9, 2
    // Predicated region
    $region21: #{autoencoder_forward.9} parent=5 // pred_check
      %p125 = pneg %p124
    $region22: #{autoencoder_forward.9} parent=5 // pred_check_branch
      %127 = sbr.rel (%p125) target = $region24
    $region23: #{autoencoder_forward.9} parent=5 // pred_region
      // Predicated region
      $region25: #{autoencoder_forward.9} parent=23 // pred_check
        %p128 = pneg %p29
      $region26: #{autoencoder_forward.9} parent=23 // pred_check_branch
        %130 = sbr.rel (%p128) target = $region28
      $region27: #{autoencoder_forward.9} parent=23 // pred_region
        %p131 = scmp.lt.s32.totalorder %s9, 1
        %s132 = scalar_select %p131, %s9, 1
        %s133 = smul.addr %s132, 16
        %s134 = smul.addr %s133, 4
        %s135 = scalar_lea.vmem %s0, %s134
      $region28: #{autoencoder_forward.9} parent=23 // pred_fallthru
        _
    $region24: #{autoencoder_forward.9} parent=5 // pred_fallthru
      _
    %p136 = scmp.le.s32.totalorder 1, %s9
    %p137 = scmp.lt.s32.totalorder %s9, 3
    %p138 = pnand %p136, %p137
    %p139 = pneg %p138
    // Predicated region
    $region29: #{autoencoder_forward.9} parent=5 // pred_check
      _
    $region30: #{autoencoder_forward.9} parent=5 // pred_check_branch
      %141 = sbr.rel (%p138) target = $region32
    $region31: #{autoencoder_forward.9} parent=5 // pred_region
      %s142 = ssub.s32 %s9, 1
      %p143 = scmp.lt.s32.totalorder %s14, 1
      %s144 = scalar_select %p143, %s14, 1
      %s145 = smul.addr %s144, 16
      %s146 = smul.addr %s145, 4
      %s147 = scalar_lea.vmem %s0, %s146
      %p148 = pneg %p35
      %p149 = pneg %p32
      %p150 = pneg %p56
      %p151 = pneg %p53
      %p152 = pneg %p77
      %p153 = pneg %p74
      %p154 = pneg %p103
      %p155 = pneg %p100
      %p156 = scmp.lt.s32.totalorder %s14, 1
      %s157 = scalar_select %p156, %s14, 1
      %s158 = smul.addr %s157, 32
      %s159 = smul.addr %s158, 4
      %s160 = scalar_lea.vmem %s3, %s159
      %p161 = scmp.lt.s32.totalorder %s14, 1
      %s162 = scalar_select %p161, %s14, 1
      %s163 = smul.addr %s162, 16
      %s164 = smul.addr %s163, 4
      %s165 = scalar_lea.vmem %s0, %s164
      %p166 = scmp.lt.s32.totalorder %s14, 1
      %s167 = scalar_select %p166, %s14, 1
      %s168 = smul.addr %s167, 32
      %s169 = smul.addr %s168, 4
      %s170 = scalar_lea.vmem %s3, %s169
      %v172 = vld [vmem:[%s165] sm:$0xf]
      %v173 = vld [vmem:[%s165 + $0x4] sm:$0xf]
      %v174 = vld [vmem:[%s165 + $0x8] sm:$0xf]
      %v175 = vld [vmem:[%s165 + $0xc] sm:$0xf]
      %v176 = vld [vmem:[%s165 + $0x10] sm:$0xf]
      %v177 = vld [vmem:[%s165 + $0x14] sm:$0xf]
      %v178 = vld [vmem:[%s165 + $0x18] sm:$0xf]
      %v179 = vld [vmem:[%s165 + $0x1c] sm:$0xf]
      %v180 = vld [vmem:[%s165 + $0x20] sm:$0xf]
      %v181 = vld [vmem:[%s165 + $0x24] sm:$0xf]
      %v182 = vld [vmem:[%s165 + $0x28] sm:$0xf]
      %v183 = vld [vmem:[%s165 + $0x2c] sm:$0xf]
      %v184 = vld [vmem:[%s165 + $0x30] sm:$0xf]
      %v185 = vld [vmem:[%s165 + $0x34] sm:$0xf]
      %v186 = vld [vmem:[%s165 + $0x38] sm:$0xf]
      %v187 = vld [vmem:[%s165 + $0x3c] sm:$0xf]
      %v188 = vunpack.c.l.bf16 %v172
      %v189 = vunpack.c.l.bf16 %v173
      %v190 = vunpack.c.l.bf16 %v174
      %v191 = vunpack.c.l.bf16 %v175
      %v192 = vunpack.c.l.bf16 %v176
      %v193 = vunpack.c.l.bf16 %v177
      %v194 = vunpack.c.l.bf16 %v178
      %v195 = vunpack.c.l.bf16 %v179
      %v196 = vunpack.c.l.bf16 %v180
      %v197 = vunpack.c.l.bf16 %v181
      %v198 = vunpack.c.l.bf16 %v182
      %v199 = vunpack.c.l.bf16 %v183
      %v200 = vunpack.c.l.bf16 %v184
      %v201 = vunpack.c.l.bf16 %v185
      %v202 = vunpack.c.l.bf16 %v186
      %v203 = vunpack.c.l.bf16 %v187
      %v204 = vlaneseq
      %v205 = vand.u32 %v204, 127
      %vm206 = vcmp.lt.s32.totalorder %v205, 0
      %v207 = vsub.s32 0, %v205
      %v208 = vsel %vm206, %v207, %v205
      %v209 = vshrl.u32 %v208, 2
      %v210 = vand.u32 %v208, 3
      %v211 = vsub.s32 0, %v210
      %v212 = vsel %vm206, %v211, %v210
      %vm213 = vcmp.ne.s32.totalorder %v212, 0
      %vm214 = vcmp.lt.s32.totalorder %v212, 0
      %vm215 = vmand %vm214, %vm213
      %v216 = vadd.s32 %v212, 4
      %v217 = vsel %vm215, %v216, %v212
      %vm218 = vcmp.ge.s32.totalorder %v217, 4294967295
      %vm219 = vcmp.lt.s32.totalorder %v217, 3
      %vm220 = vmand %vm218, %vm219
      %237 = vrot.lane.b32.xlu0 %v188, 127
      %v238 = vpop.permute.xlu0 %237
      %239 = vrot.lane.b32.xlu0 %v189, 127
      %v240 = vpop.permute.xlu0 %239
      %241 = vrot.lane.b32.xlu0 %v190, 127
      %v242 = vpop.permute.xlu0 %241
      %243 = vrot.lane.b32.xlu0 %v191, 127
      %v244 = vpop.permute.xlu0 %243
      %245 = vrot.lane.b32.xlu0 %v192, 127
      %v246 = vpop.permute.xlu0 %245
      %247 = vrot.lane.b32.xlu0 %v193, 127
      %v248 = vpop.permute.xlu0 %247
      %249 = vrot.lane.b32.xlu0 %v194, 127
      %v250 = vpop.permute.xlu0 %249
      %251 = vrot.lane.b32.xlu0 %v195, 127
      %v252 = vpop.permute.xlu0 %251
      %253 = vrot.lane.b32.xlu0 %v196, 127
      %v254 = vpop.permute.xlu0 %253
      %255 = vrot.lane.b32.xlu0 %v197, 127
      %v256 = vpop.permute.xlu0 %255
      %257 = vrot.lane.b32.xlu0 %v198, 127
      %v258 = vpop.permute.xlu0 %257
      %259 = vrot.lane.b32.xlu0 %v199, 127
      %v260 = vpop.permute.xlu0 %259
      %261 = vrot.lane.b32.xlu0 %v200, 127
      %v262 = vpop.permute.xlu0 %261
      %263 = vrot.lane.b32.xlu0 %v201, 127
      %v264 = vpop.permute.xlu0 %263
      %265 = vrot.lane.b32.xlu0 %v202, 127
      %v266 = vpop.permute.xlu0 %265
      %267 = vrot.lane.b32.xlu0 %v203, 127
      %v268 = vpop.permute.xlu0 %267
      %v285 = vsel %vm220, %v238, 0.0
      %v286 = vsel %vm220, %v240, 0.0
      %v287 = vsel %vm220, %v242, 0.0
      %v288 = vsel %vm220, %v244, 0.0
      %v289 = vsel %vm220, %v246, 0.0
      %v290 = vsel %vm220, %v248, 0.0
      %v291 = vsel %vm220, %v250, 0.0
      %v292 = vsel %vm220, %v252, 0.0
      %v293 = vsel %vm220, %v254, 0.0
      %v294 = vsel %vm220, %v256, 0.0
      %v295 = vsel %vm220, %v258, 0.0
      %v296 = vsel %vm220, %v260, 0.0
      %v297 = vsel %vm220, %v262, 0.0
      %v298 = vsel %vm220, %v264, 0.0
      %v299 = vsel %vm220, %v266, 0.0
      %v300 = vsel %vm220, %v268, 0.0
      %301 = vrot.lane.b32.xlu0 %v188, 123
      %v302 = vpop.permute.xlu0 %301
      %303 = vrot.lane.b32.xlu0 %v189, 123
      %v304 = vpop.permute.xlu0 %303
      %305 = vrot.lane.b32.xlu0 %v190, 123
      %v306 = vpop.permute.xlu0 %305
      %307 = vrot.lane.b32.xlu0 %v191, 123
      %v308 = vpop.permute.xlu0 %307
      %309 = vrot.lane.b32.xlu0 %v192, 123
      %v310 = vpop.permute.xlu0 %309
      %311 = vrot.lane.b32.xlu0 %v193, 123
      %v312 = vpop.permute.xlu0 %311
      %313 = vrot.lane.b32.xlu0 %v194, 123
      %v314 = vpop.permute.xlu0 %313
      %315 = vrot.lane.b32.xlu0 %v195, 123
      %v316 = vpop.permute.xlu0 %315
      %317 = vrot.lane.b32.xlu0 %v196, 123
      %v318 = vpop.permute.xlu0 %317
      %319 = vrot.lane.b32.xlu0 %v197, 123
      %v320 = vpop.permute.xlu0 %319
      %321 = vrot.lane.b32.xlu0 %v198, 123
      %v322 = vpop.permute.xlu0 %321
      %323 = vrot.lane.b32.xlu0 %v199, 123
      %v324 = vpop.permute.xlu0 %323
      %325 = vrot.lane.b32.xlu0 %v200, 123
      %v326 = vpop.permute.xlu0 %325
      %327 = vrot.lane.b32.xlu0 %v201, 123
      %v328 = vpop.permute.xlu0 %327
      %329 = vrot.lane.b32.xlu0 %v202, 123
      %v330 = vpop.permute.xlu0 %329
      %331 = vrot.lane.b32.xlu0 %v203, 123
      %v332 = vpop.permute.xlu0 %331
      %v349 = vsel %vm220, %v302, 0.0
      %v350 = vsel %vm220, %v304, 0.0
      %v351 = vsel %vm220, %v306, 0.0
      %v352 = vsel %vm220, %v308, 0.0
      %v353 = vsel %vm220, %v310, 0.0
      %v354 = vsel %vm220, %v312, 0.0
      %v355 = vsel %vm220, %v314, 0.0
      %v356 = vsel %vm220, %v316, 0.0
      %v357 = vsel %vm220, %v318, 0.0
      %v358 = vsel %vm220, %v320, 0.0
      %v359 = vsel %vm220, %v322, 0.0
      %v360 = vsel %vm220, %v324, 0.0
      %v361 = vsel %vm220, %v326, 0.0
      %v362 = vsel %vm220, %v328, 0.0
      %v363 = vsel %vm220, %v330, 0.0
      %v364 = vsel %vm220, %v332, 0.0
      %365 = vrot.lane.b32.xlu0 %v188, 124
      %v366 = vpop.permute.xlu0 %365
      %367 = vrot.lane.b32.xlu0 %v189, 124
      %v368 = vpop.permute.xlu0 %367
      %369 = vrot.lane.b32.xlu0 %v190, 124
      %v370 = vpop.permute.xlu0 %369
      %371 = vrot.lane.b32.xlu0 %v191, 124
      %v372 = vpop.permute.xlu0 %371
      %373 = vrot.lane.b32.xlu0 %v192, 124
      %v374 = vpop.permute.xlu0 %373
      %375 = vrot.lane.b32.xlu0 %v193, 124
      %v376 = vpop.permute.xlu0 %375
      %377 = vrot.lane.b32.xlu0 %v194, 124
      %v378 = vpop.permute.xlu0 %377
      %379 = vrot.lane.b32.xlu0 %v195, 124
      %v380 = vpop.permute.xlu0 %379
      %381 = vrot.lane.b32.xlu0 %v196, 124
      %v382 = vpop.permute.xlu0 %381
      %383 = vrot.lane.b32.xlu0 %v197, 124
      %v384 = vpop.permute.xlu0 %383
      %385 = vrot.lane.b32.xlu0 %v198, 124
      %v386 = vpop.permute.xlu0 %385
      %387 = vrot.lane.b32.xlu0 %v199, 124
      %v388 = vpop.permute.xlu0 %387
      %389 = vrot.lane.b32.xlu0 %v200, 124
      %v390 = vpop.permute.xlu0 %389
      %391 = vrot.lane.b32.xlu0 %v201, 124
      %v392 = vpop.permute.xlu0 %391
      %393 = vrot.lane.b32.xlu0 %v202, 124
      %v394 = vpop.permute.xlu0 %393
      %395 = vrot.lane.b32.xlu0 %v203, 124
      %v396 = vpop.permute.xlu0 %395
      %v413 = vpack.c.bf16 %v189, %v188
      %v414 = vpack.c.bf16 %v191, %v190
      %v415 = vpack.c.bf16 %v193, %v192
      %v416 = vpack.c.bf16 %v195, %v194
      %v417 = vpack.c.bf16 %v197, %v196
      %v418 = vpack.c.bf16 %v199, %v198
      %v419 = vpack.c.bf16 %v201, %v200
      %v420 = vpack.c.bf16 %v203, %v202
      %v421 = vpack.c.bf16 %v286, %v285
      %v422 = vpack.c.bf16 %v288, %v287
      %v423 = vpack.c.bf16 %v290, %v289
      %v424 = vpack.c.bf16 %v292, %v291
      %v425 = vpack.c.bf16 %v294, %v293
      %v426 = vpack.c.bf16 %v296, %v295
      %v427 = vpack.c.bf16 %v298, %v297
      %v428 = vpack.c.bf16 %v300, %v299
      %v429 = vpack.c.bf16 %v368, %v366
      %v430 = vpack.c.bf16 %v372, %v370
      %v431 = vpack.c.bf16 %v376, %v374
      %v432 = vpack.c.bf16 %v380, %v378
      %v433 = vpack.c.bf16 %v384, %v382
      %v434 = vpack.c.bf16 %v388, %v386
      %v435 = vpack.c.bf16 %v392, %v390
      %v436 = vpack.c.bf16 %v396, %v394
      %v437 = vpack.c.bf16 %v350, %v349
      %v438 = vpack.c.bf16 %v352, %v351
      %v439 = vpack.c.bf16 %v354, %v353
      %v440 = vpack.c.bf16 %v356, %v355
      %v441 = vpack.c.bf16 %v358, %v357
      %v442 = vpack.c.bf16 %v360, %v359
      %v443 = vpack.c.bf16 %v362, %v361
      %v444 = vpack.c.bf16 %v364, %v363
      %v445 = vld [vmem:[%s1] sm:$0xff]
      %v446 = vld [vmem:[%s1 + $0x8] sm:$0xff]
      %v447 = vld [vmem:[%s1 + $0x10] sm:$0xff]
      %v448 = vld [vmem:[%s1 + $0x18] sm:$0xff]
      %v449 = vld [vmem:[%s1 + $0x20] sm:$0xff]
      %v450 = vld [vmem:[%s1 + $0x28] sm:$0xff]
      %v451 = vld [vmem:[%s1 + $0x30] sm:$0xff]
      %v452 = vld [vmem:[%s1 + $0x38] sm:$0xff]
      %v453 = vld [vmem:[%s1 + $0x40] sm:$0xff]
      %v454 = vld [vmem:[%s1 + $0x48] sm:$0xff]
      %v455 = vld [vmem:[%s1 + $0x50] sm:$0xff]
      %v456 = vld [vmem:[%s1 + $0x58] sm:$0xff]
      %v457 = vld [vmem:[%s1 + $0x60] sm:$0xff]
      %v458 = vld [vmem:[%s1 + $0x68] sm:$0xff]
      %v459 = vld [vmem:[%s1 + $0x70] sm:$0xff]
      %v460 = vld [vmem:[%s1 + $0x78] sm:$0xff]
      %v461 = vld [vmem:[%s1 + $0x80] sm:$0xff]
      %v462 = vld [vmem:[%s1 + $0x88] sm:$0xff]
      %v463 = vld [vmem:[%s1 + $0x90] sm:$0xff]
      %v464 = vld [vmem:[%s1 + $0x98] sm:$0xff]
      %v465 = vld [vmem:[%s1 + $0xa0] sm:$0xff]
      %v466 = vld [vmem:[%s1 + $0xa8] sm:$0xff]
      %v467 = vld [vmem:[%s1 + $0xb0] sm:$0xff]
      %v468 = vld [vmem:[%s1 + $0xb8] sm:$0xff]
      %v469 = vld [vmem:[%s1 + $0xc0] sm:$0xff]
      %v470 = vld [vmem:[%s1 + $0xc8] sm:$0xff]
      %v471 = vld [vmem:[%s1 + $0xd0] sm:$0xff]
      %v472 = vld [vmem:[%s1 + $0xd8] sm:$0xff]
      %v473 = vld [vmem:[%s1 + $0xe0] sm:$0xff]
      %v474 = vld [vmem:[%s1 + $0xe8] sm:$0xff]
      %v475 = vld [vmem:[%s1 + $0xf0] sm:$0xff]
      %v476 = vld [vmem:[%s1 + $0xf8] sm:$0xff]
      %v477 = vld [vmem:[%s1 + $0x100] sm:$0xff]
      %v478 = vld [vmem:[%s1 + $0x108] sm:$0xff]
      %v479 = vld [vmem:[%s1 + $0x110] sm:$0xff]
      %v480 = vld [vmem:[%s1 + $0x118] sm:$0xff]
      %v481 = vld [vmem:[%s1 + $0x120] sm:$0xff]
      %v482 = vld [vmem:[%s1 + $0x128] sm:$0xff]
      %v483 = vld [vmem:[%s1 + $0x130] sm:$0xff]
      %v484 = vld [vmem:[%s1 + $0x138] sm:$0xff]
      %v485 = vld [vmem:[%s1 + $0x140] sm:$0xff]
      %v486 = vld [vmem:[%s1 + $0x148] sm:$0xff]
      %v487 = vld [vmem:[%s1 + $0x150] sm:$0xff]
      %v488 = vld [vmem:[%s1 + $0x158] sm:$0xff]
      %v489 = vld [vmem:[%s1 + $0x160] sm:$0xff]
      %v490 = vld [vmem:[%s1 + $0x168] sm:$0xff]
      %v491 = vld [vmem:[%s1 + $0x170] sm:$0xff]
      %v492 = vld [vmem:[%s1 + $0x178] sm:$0xff]
      %v493 = vld [vmem:[%s1 + $0x180] sm:$0xff]
      %v494 = vld [vmem:[%s1 + $0x188] sm:$0xff]
      %v495 = vld [vmem:[%s1 + $0x190] sm:$0xff]
      %v496 = vld [vmem:[%s1 + $0x198] sm:$0xff]
      %v497 = vld [vmem:[%s1 + $0x1a0] sm:$0xff]
      %v498 = vld [vmem:[%s1 + $0x1a8] sm:$0xff]
      %v499 = vld [vmem:[%s1 + $0x1b0] sm:$0xff]
      %v500 = vld [vmem:[%s1 + $0x1b8] sm:$0xff]
      %v501 = vld [vmem:[%s1 + $0x1c0] sm:$0xff]
      %v502 = vld [vmem:[%s1 + $0x1c8] sm:$0xff]
      %v503 = vld [vmem:[%s1 + $0x1d0] sm:$0xff]
      %v504 = vld [vmem:[%s1 + $0x1d8] sm:$0xff]
      %v505 = vld [vmem:[%s1 + $0x1e0] sm:$0xff]
      %v506 = vld [vmem:[%s1 + $0x1e8] sm:$0xff]
      %v507 = vld [vmem:[%s1 + $0x1f0] sm:$0xff]
      %v508 = vld [vmem:[%s1 + $0x1f8] sm:$0xff]
      %v509 = vld [vmem:[%s2] sm:$0xff]
      %v510 = vld [vmem:[%s2 + $0x8] sm:$0xff]
      %v511 = vld [vmem:[%s2 + $0x10] sm:$0xff]
      %v512 = vld [vmem:[%s2 + $0x18] sm:$0xff]
      %v513 = vld [vmem:[%s2 + $0x20] sm:$0xff]
      %v514 = vld [vmem:[%s2 + $0x28] sm:$0xff]
      %v515 = vld [vmem:[%s2 + $0x30] sm:$0xff]
      %v516 = vld [vmem:[%s2 + $0x38] sm:$0xff]
      %v517 = vld [vmem:[%s2 + $0x40] sm:$0xff]
      %v518 = vld [vmem:[%s2 + $0x48] sm:$0xff]
      %v519 = vld [vmem:[%s2 + $0x50] sm:$0xff]
      %v520 = vld [vmem:[%s2 + $0x58] sm:$0xff]
      %v521 = vld [vmem:[%s2 + $0x60] sm:$0xff]
      %v522 = vld [vmem:[%s2 + $0x68] sm:$0xff]
      %v523 = vld [vmem:[%s2 + $0x70] sm:$0xff]
      %v524 = vld [vmem:[%s2 + $0x78] sm:$0xff]
      %v525 = vld [vmem:[%s2 + $0x80] sm:$0xff]
      %v526 = vld [vmem:[%s2 + $0x88] sm:$0xff]
      %v527 = vld [vmem:[%s2 + $0x90] sm:$0xff]
      %v528 = vld [vmem:[%s2 + $0x98] sm:$0xff]
      %v529 = vld [vmem:[%s2 + $0xa0] sm:$0xff]
      %v530 = vld [vmem:[%s2 + $0xa8] sm:$0xff]
      %v531 = vld [vmem:[%s2 + $0xb0] sm:$0xff]
      %v532 = vld [vmem:[%s2 + $0xb8] sm:$0xff]
      %v533 = vld [vmem:[%s2 + $0xc0] sm:$0xff]
      %v534 = vld [vmem:[%s2 + $0xc8] sm:$0xff]
      %v535 = vld [vmem:[%s2 + $0xd0] sm:$0xff]
      %v536 = vld [vmem:[%s2 + $0xd8] sm:$0xff]
      %v537 = vld [vmem:[%s2 + $0xe0] sm:$0xff]
      %v538 = vld [vmem:[%s2 + $0xe8] sm:$0xff]
      %v539 = vld [vmem:[%s2 + $0xf0] sm:$0xff]
      %v540 = vld [vmem:[%s2 + $0xf8] sm:$0xff]
      %542 = vset.pattern.permute.xlu0 0
      %543 = vperm.xlu0 %542, %v509
      %v544 = vpop.permute.xlu0 %543
      %547 = vset.pattern.permute.xlu0 0
      %548 = vperm.xlu0 %547, %v510
      %v549 = vpop.permute.xlu0 %548
      %552 = vset.pattern.permute.xlu0 0
      %553 = vperm.xlu0 %552, %v511
      %v554 = vpop.permute.xlu0 %553
      %557 = vset.pattern.permute.xlu0 0
      %558 = vperm.xlu0 %557, %v512
      %v559 = vpop.permute.xlu0 %558
      %562 = vset.pattern.permute.xlu0 0
      %563 = vperm.xlu0 %562, %v513
      %v564 = vpop.permute.xlu0 %563
      %567 = vset.pattern.permute.xlu0 0
      %568 = vperm.xlu0 %567, %v514
      %v569 = vpop.permute.xlu0 %568
      %572 = vset.pattern.permute.xlu0 0
      %573 = vperm.xlu0 %572, %v515
      %v574 = vpop.permute.xlu0 %573
      %577 = vset.pattern.permute.xlu0 0
      %578 = vperm.xlu0 %577, %v516
      %v579 = vpop.permute.xlu0 %578
      %582 = vset.pattern.permute.xlu0 0
      %583 = vperm.xlu0 %582, %v517
      %v584 = vpop.permute.xlu0 %583
      %587 = vset.pattern.permute.xlu0 0
      %588 = vperm.xlu0 %587, %v518
      %v589 = vpop.permute.xlu0 %588
      %592 = vset.pattern.permute.xlu0 0
      %593 = vperm.xlu0 %592, %v519
      %v594 = vpop.permute.xlu0 %593
      %597 = vset.pattern.permute.xlu0 0
      %598 = vperm.xlu0 %597, %v520
      %v599 = vpop.permute.xlu0 %598
      %602 = vset.pattern.permute.xlu0 0
      %603 = vperm.xlu0 %602, %v521
      %v604 = vpop.permute.xlu0 %603
      %607 = vset.pattern.permute.xlu0 0
      %608 = vperm.xlu0 %607, %v522
      %v609 = vpop.permute.xlu0 %608
      %612 = vset.pattern.permute.xlu0 0
      %613 = vperm.xlu0 %612, %v523
      %v614 = vpop.permute.xlu0 %613
      %617 = vset.pattern.permute.xlu0 0
      %618 = vperm.xlu0 %617, %v524
      %v619 = vpop.permute.xlu0 %618
      %622 = vset.pattern.permute.xlu0 0
      %623 = vperm.xlu0 %622, %v525
      %v624 = vpop.permute.xlu0 %623
      %627 = vset.pattern.permute.xlu0 0
      %628 = vperm.xlu0 %627, %v526
      %v629 = vpop.permute.xlu0 %628
      %632 = vset.pattern.permute.xlu0 0
      %633 = vperm.xlu0 %632, %v527
      %v634 = vpop.permute.xlu0 %633
      %637 = vset.pattern.permute.xlu0 0
      %638 = vperm.xlu0 %637, %v528
      %v639 = vpop.permute.xlu0 %638
      %642 = vset.pattern.permute.xlu0 0
      %643 = vperm.xlu0 %642, %v529
      %v644 = vpop.permute.xlu0 %643
      %647 = vset.pattern.permute.xlu0 0
      %648 = vperm.xlu0 %647, %v530
      %v649 = vpop.permute.xlu0 %648
      %652 = vset.pattern.permute.xlu0 0
      %653 = vperm.xlu0 %652, %v531
      %v654 = vpop.permute.xlu0 %653
      %657 = vset.pattern.permute.xlu0 0
      %658 = vperm.xlu0 %657, %v532
      %v659 = vpop.permute.xlu0 %658
      %662 = vset.pattern.permute.xlu0 0
      %663 = vperm.xlu0 %662, %v533
      %v664 = vpop.permute.xlu0 %663
      %667 = vset.pattern.permute.xlu0 0
      %668 = vperm.xlu0 %667, %v534
      %v669 = vpop.permute.xlu0 %668
      %672 = vset.pattern.permute.xlu0 0
      %673 = vperm.xlu0 %672, %v535
      %v674 = vpop.permute.xlu0 %673
      %677 = vset.pattern.permute.xlu0 0
      %678 = vperm.xlu0 %677, %v536
      %v679 = vpop.permute.xlu0 %678
      %682 = vset.pattern.permute.xlu0 0
      %683 = vperm.xlu0 %682, %v537
      %v684 = vpop.permute.xlu0 %683
      %687 = vset.pattern.permute.xlu0 0
      %688 = vperm.xlu0 %687, %v538
      %v689 = vpop.permute.xlu0 %688
      %692 = vset.pattern.permute.xlu0 0
      %693 = vperm.xlu0 %692, %v539
      %v694 = vpop.permute.xlu0 %693
      %697 = vset.pattern.permute.xlu0 0
      %698 = vperm.xlu0 %697, %v540
      %v699 = vpop.permute.xlu0 %698
      %v765 = vunpack.c.l.b16 %v445
      %v766 = vunpack.c.h.b16 %v445
      %v767 = vunpack.c.l.b16 %v446
      %v768 = vunpack.c.h.b16 %v446
      %v769 = vunpack.c.l.b16 %v447
      %v770 = vunpack.c.h.b16 %v447
      %v771 = vunpack.c.l.b16 %v448
      %v772 = vunpack.c.h.b16 %v448
      %v773 = vunpack.c.l.b16 %v449
      %v774 = vunpack.c.h.b16 %v449
      %v775 = vunpack.c.l.b16 %v450
      %v776 = vunpack.c.h.b16 %v450
      %v777 = vunpack.c.l.b16 %v451
      %v778 = vunpack.c.h.b16 %v451
      %v779 = vunpack.c.l.b16 %v452
      %v780 = vunpack.c.h.b16 %v452
      %v781 = vunpack.c.l.b16 %v453
      %v782 = vunpack.c.h.b16 %v453
      %v783 = vunpack.c.l.b16 %v454
      %v784 = vunpack.c.h.b16 %v454
      %v785 = vunpack.c.l.b16 %v455
      %v786 = vunpack.c.h.b16 %v455
      %v787 = vunpack.c.l.b16 %v456
      %v788 = vunpack.c.h.b16 %v456
      %v789 = vunpack.c.l.b16 %v457
      %v790 = vunpack.c.h.b16 %v457
      %v791 = vunpack.c.l.b16 %v458
      %v792 = vunpack.c.h.b16 %v458
      %v793 = vunpack.c.l.b16 %v459
      %v794 = vunpack.c.h.b16 %v459
      %v795 = vunpack.c.l.b16 %v460
      %v796 = vunpack.c.h.b16 %v460
      %v797 = vunpack.c.l.b16 %v461
      %v798 = vunpack.c.h.b16 %v461
      %v799 = vunpack.c.l.b16 %v462
      %v800 = vunpack.c.h.b16 %v462
      %v801 = vunpack.c.l.b16 %v463
      %v802 = vunpack.c.h.b16 %v463
      %v803 = vunpack.c.l.b16 %v464
      %v804 = vunpack.c.h.b16 %v464
      %v805 = vunpack.c.l.b16 %v465
      %v806 = vunpack.c.h.b16 %v465
      %v807 = vunpack.c.l.b16 %v466
      %v808 = vunpack.c.h.b16 %v466
      %v809 = vunpack.c.l.b16 %v467
      %v810 = vunpack.c.h.b16 %v467
      %v811 = vunpack.c.l.b16 %v468
      %v812 = vunpack.c.h.b16 %v468
      %v813 = vunpack.c.l.b16 %v469
      %v814 = vunpack.c.h.b16 %v469
      %v815 = vunpack.c.l.b16 %v470
      %v816 = vunpack.c.h.b16 %v470
      %v817 = vunpack.c.l.b16 %v471
      %v818 = vunpack.c.h.b16 %v471
      %v819 = vunpack.c.l.b16 %v472
      %v820 = vunpack.c.h.b16 %v472
      %v821 = vunpack.c.l.b16 %v473
      %v822 = vunpack.c.h.b16 %v473
      %v823 = vunpack.c.l.b16 %v474
      %v824 = vunpack.c.h.b16 %v474
      %v825 = vunpack.c.l.b16 %v475
      %v826 = vunpack.c.h.b16 %v475
      %v827 = vunpack.c.l.b16 %v476
      %v828 = vunpack.c.h.b16 %v476
      %v829 = vunpack.c.l.b16 %v477
      %v830 = vunpack.c.h.b16 %v477
      %v831 = vunpack.c.l.b16 %v478
      %v832 = vunpack.c.h.b16 %v478
      %v833 = vunpack.c.l.b16 %v479
      %v834 = vunpack.c.h.b16 %v479
      %v835 = vunpack.c.l.b16 %v480
      %v836 = vunpack.c.h.b16 %v480
      %v837 = vunpack.c.l.b16 %v481
      %v838 = vunpack.c.h.b16 %v481
      %v839 = vunpack.c.l.b16 %v482
      %v840 = vunpack.c.h.b16 %v482
      %v841 = vunpack.c.l.b16 %v483
      %v842 = vunpack.c.h.b16 %v483
      %v843 = vunpack.c.l.b16 %v484
      %v844 = vunpack.c.h.b16 %v484
      %v845 = vunpack.c.l.b16 %v485
      %v846 = vunpack.c.h.b16 %v485
      %v847 = vunpack.c.l.b16 %v486
      %v848 = vunpack.c.h.b16 %v486
      %v849 = vunpack.c.l.b16 %v487
      %v850 = vunpack.c.h.b16 %v487
      %v851 = vunpack.c.l.b16 %v488
      %v852 = vunpack.c.h.b16 %v488
      %v853 = vunpack.c.l.b16 %v489
      %v854 = vunpack.c.h.b16 %v489
      %v855 = vunpack.c.l.b16 %v490
      %v856 = vunpack.c.h.b16 %v490
      %v857 = vunpack.c.l.b16 %v491
      %v858 = vunpack.c.h.b16 %v491
      %v859 = vunpack.c.l.b16 %v492
      %v860 = vunpack.c.h.b16 %v492
      %v861 = vunpack.c.l.b16 %v493
      %v862 = vunpack.c.h.b16 %v493
      %v863 = vunpack.c.l.b16 %v494
      %v864 = vunpack.c.h.b16 %v494
      %v865 = vunpack.c.l.b16 %v495
      %v866 = vunpack.c.h.b16 %v495
      %v867 = vunpack.c.l.b16 %v496
      %v868 = vunpack.c.h.b16 %v496
      %v869 = vunpack.c.l.b16 %v497
      %v870 = vunpack.c.h.b16 %v497
      %v871 = vunpack.c.l.b16 %v498
      %v872 = vunpack.c.h.b16 %v498
      %v873 = vunpack.c.l.b16 %v499
      %v874 = vunpack.c.h.b16 %v499
      %v875 = vunpack.c.l.b16 %v500
      %v876 = vunpack.c.h.b16 %v500
      %v877 = vunpack.c.l.b16 %v501
      %v878 = vunpack.c.h.b16 %v501
      %v879 = vunpack.c.l.b16 %v502
      %v880 = vunpack.c.h.b16 %v502
      %v881 = vunpack.c.l.b16 %v503
      %v882 = vunpack.c.h.b16 %v503
      %v883 = vunpack.c.l.b16 %v504
      %v884 = vunpack.c.h.b16 %v504
      %v885 = vunpack.c.l.b16 %v505
      %v886 = vunpack.c.h.b16 %v505
      %v887 = vunpack.c.l.b16 %v506
      %v888 = vunpack.c.h.b16 %v506
      %v889 = vunpack.c.l.b16 %v507
      %v890 = vunpack.c.h.b16 %v507
      %v891 = vunpack.c.l.b16 %v508
      %v892 = vunpack.c.h.b16 %v508
      %v893 = vpack.c.b16 %v769, %v765
      %v894 = vpack.c.b16 %v770, %v766
      %v895 = vpack.c.b16 %v771, %v767
      %v896 = vpack.c.b16 %v772, %v768
      %v897 = vpack.c.b16 %v777, %v773
      %v898 = vpack.c.b16 %v778, %v774
      %v899 = vpack.c.b16 %v779, %v775
      %v900 = vpack.c.b16 %v780, %v776
      %v901 = vpack.c.b16 %v785, %v781
      %v902 = vpack.c.b16 %v786, %v782
      %v903 = vpack.c.b16 %v787, %v783
      %v904 = vpack.c.b16 %v788, %v784
      %v905 = vpack.c.b16 %v793, %v789
      %v906 = vpack.c.b16 %v794, %v790
      %v907 = vpack.c.b16 %v795, %v791
      %v908 = vpack.c.b16 %v796, %v792
      %v909 = vpack.c.b16 %v801, %v797
      %v910 = vpack.c.b16 %v802, %v798
      %v911 = vpack.c.b16 %v803, %v799
      %v912 = vpack.c.b16 %v804, %v800
      %v913 = vpack.c.b16 %v809, %v805
      %v914 = vpack.c.b16 %v810, %v806
      %v915 = vpack.c.b16 %v811, %v807
      %v916 = vpack.c.b16 %v812, %v808
      %v917 = vpack.c.b16 %v817, %v813
      %v918 = vpack.c.b16 %v818, %v814
      %v919 = vpack.c.b16 %v819, %v815
      %v920 = vpack.c.b16 %v820, %v816
      %v921 = vpack.c.b16 %v825, %v821
      %v922 = vpack.c.b16 %v826, %v822
      %v923 = vpack.c.b16 %v827, %v823
      %v924 = vpack.c.b16 %v828, %v824
      %v925 = vpack.c.b16 %v833, %v829
      %v926 = vpack.c.b16 %v834, %v830
      %v927 = vpack.c.b16 %v835, %v831
      %v928 = vpack.c.b16 %v836, %v832
      %v929 = vpack.c.b16 %v841, %v837
      %v930 = vpack.c.b16 %v842, %v838
      %v931 = vpack.c.b16 %v843, %v839
      %v932 = vpack.c.b16 %v844, %v840
      %v933 = vpack.c.b16 %v849, %v845
      %v934 = vpack.c.b16 %v850, %v846
      %v935 = vpack.c.b16 %v851, %v847
      %v936 = vpack.c.b16 %v852, %v848
      %v937 = vpack.c.b16 %v857, %v853
      %v938 = vpack.c.b16 %v858, %v854
      %v939 = vpack.c.b16 %v859, %v855
      %v940 = vpack.c.b16 %v860, %v856
      %v941 = vpack.c.b16 %v865, %v861
      %v942 = vpack.c.b16 %v866, %v862
      %v943 = vpack.c.b16 %v867, %v863
      %v944 = vpack.c.b16 %v868, %v864
      %v945 = vpack.c.b16 %v873, %v869
      %v946 = vpack.c.b16 %v874, %v870
      %v947 = vpack.c.b16 %v875, %v871
      %v948 = vpack.c.b16 %v876, %v872
      %v949 = vpack.c.b16 %v881, %v877
      %v950 = vpack.c.b16 %v882, %v878
      %v951 = vpack.c.b16 %v883, %v879
      %v952 = vpack.c.b16 %v884, %v880
      %v953 = vpack.c.b16 %v889, %v885
      %v954 = vpack.c.b16 %v890, %v886
      %v955 = vpack.c.b16 %v891, %v887
      %v956 = vpack.c.b16 %v892, %v888
      %1021 = vmatprep.subr.bf16.mxu0 0
      %1022 = vmatpush1.bf16.msra.mxu0 %v420
      %1023 = vmatprep.subr.bf16.mxu0 0
      %1024 = vmatpush1.bf16.msra.mxu0 %v419
      %1025 = vmatprep.subr.bf16.mxu0 0
      %1026 = vmatpush1.bf16.msra.mxu0 %v418
      %1027 = vmatprep.subr.bf16.mxu0 0
      %1028 = vmatpush1.bf16.msra.mxu0 %v417
      %1029 = vmatprep.subr.bf16.mxu0 0
      %1030 = vmatpush1.bf16.msra.mxu0 %v416
      %1031 = vmatprep.subr.bf16.mxu0 0
      %1032 = vmatpush1.bf16.msra.mxu0 %v415
      %1033 = vmatprep.subr.bf16.mxu0 0
      %1034 = vmatpush1.bf16.msra.mxu0 %v414
      %1035 = vmatprep.subr.bf16.mxu0 0
      %1036 = vmatpush1.bf16.msra.mxu0 %v413
      %1037 = vmatprep.subr.bf16.mxu0 0
      %1038 = vmatpush2.bf16.msra.mxu0 %v428
      %1039 = vmatprep.subr.bf16.mxu0 0
      %1040 = vmatpush2.bf16.msra.mxu0 %v427
      %1041 = vmatprep.subr.bf16.mxu0 0
      %1042 = vmatpush2.bf16.msra.mxu0 %v426
      %1043 = vmatprep.subr.bf16.mxu0 0
      %1044 = vmatpush2.bf16.msra.mxu0 %v425
      %1045 = vmatprep.subr.bf16.mxu0 0
      %1046 = vmatpush2.bf16.msra.mxu0 %v424
      %1047 = vmatprep.subr.bf16.mxu0 0
      %1048 = vmatpush2.bf16.msra.mxu0 %v423
      %1049 = vmatprep.subr.bf16.mxu0 0
      %1050 = vmatpush2.bf16.msra.mxu0 %v422
      %1051 = vmatprep.subr.bf16.mxu0 0
      %1052 = vmatpush2.bf16.msra.mxu0 %v421
      %1053 = vmatprep.mubr.bf16.mxu0 %v894
      %1054 = vmatmul.mubr.bf16.gmra.mxu0 %v893
      %v1055 = vpop.f32.mrf.mxu0
      %v1056 = vadd.f32 %v544, %v1055
      %v1057 = vpop.f32.mrf.mxu0
      %v1058 = vpop.f32.mrf.mxu0
      %v1059 = vadd.f32 %v549, %v1058
      %v1060 = vpop.f32.mrf.mxu0
      %1061 = vmatprep.mubr.bf16.mxu0 %v898
      %1062 = vmatmul.mubr.bf16.gmra.mxu0 %v897
      %v1063 = vpop.f32.mrf.mxu0
      %v1064 = vadd.f32 %v554, %v1063
      %v1065 = vpop.f32.mrf.mxu0
      %v1066 = vpop.f32.mrf.mxu0
      %v1067 = vadd.f32 %v559, %v1066
      %v1068 = vpop.f32.mrf.mxu0
      %1069 = vmatprep.mubr.bf16.mxu0 %v902
      %1070 = vmatmul.mubr.bf16.gmra.mxu0 %v901
      %v1071 = vpop.f32.mrf.mxu0
      %v1072 = vadd.f32 %v564, %v1071
      %v1073 = vpop.f32.mrf.mxu0
      %v1074 = vpop.f32.mrf.mxu0
      %v1075 = vadd.f32 %v569, %v1074
      %v1076 = vpop.f32.mrf.mxu0
      %1077 = vmatprep.mubr.bf16.mxu0 %v906
      %1078 = vmatmul.mubr.bf16.gmra.mxu0 %v905
      %v1079 = vpop.f32.mrf.mxu0
      %v1080 = vadd.f32 %v574, %v1079
      %v1081 = vpop.f32.mrf.mxu0
      %v1082 = vpop.f32.mrf.mxu0
      %v1083 = vadd.f32 %v579, %v1082
      %v1084 = vpop.f32.mrf.mxu0
      %1085 = vmatprep.mubr.bf16.mxu0 %v910
      %1086 = vmatmul.mubr.bf16.gmra.mxu0 %v909
      %v1087 = vpop.f32.mrf.mxu0
      %v1088 = vadd.f32 %v584, %v1087
      %v1089 = vpop.f32.mrf.mxu0
      %v1090 = vpop.f32.mrf.mxu0
      %v1091 = vadd.f32 %v589, %v1090
      %v1092 = vpop.f32.mrf.mxu0
      %1093 = vmatprep.mubr.bf16.mxu0 %v914
      %1094 = vmatmul.mubr.bf16.gmra.mxu0 %v913
      %v1095 = vpop.f32.mrf.mxu0
      %v1096 = vadd.f32 %v594, %v1095
      %v1097 = vpop.f32.mrf.mxu0
      %v1098 = vpop.f32.mrf.mxu0
      %v1099 = vadd.f32 %v599, %v1098
      %v1100 = vpop.f32.mrf.mxu0
      %1101 = vmatprep.mubr.bf16.mxu0 %v918
      %1102 = vmatmul.mubr.bf16.gmra.mxu0 %v917
      %v1103 = vpop.f32.mrf.mxu0
      %v1104 = vadd.f32 %v604, %v1103
      %v1105 = vpop.f32.mrf.mxu0
      %v1106 = vpop.f32.mrf.mxu0
      %v1107 = vadd.f32 %v609, %v1106
      %v1108 = vpop.f32.mrf.mxu0
      %1109 = vmatprep.mubr.bf16.mxu0 %v922
      %1110 = vmatmul.mubr.bf16.gmra.mxu0 %v921
      %v1111 = vpop.f32.mrf.mxu0
      %v1112 = vadd.f32 %v614, %v1111
      %v1113 = vpop.f32.mrf.mxu0
      %v1114 = vpop.f32.mrf.mxu0
      %v1115 = vadd.f32 %v619, %v1114
      %v1116 = vpop.f32.mrf.mxu0
      %1117 = vmatprep.mubr.bf16.mxu0 %v926
      %1118 = vmatmul.mubr.bf16.gmra.mxu0 %v925
      %v1119 = vpop.f32.mrf.mxu0
      %v1120 = vadd.f32 %v624, %v1119
      %v1121 = vpop.f32.mrf.mxu0
      %v1122 = vpop.f32.mrf.mxu0
      %v1123 = vadd.f32 %v629, %v1122
      %v1124 = vpop.f32.mrf.mxu0
      %1125 = vmatprep.mubr.bf16.mxu0 %v930
      %1126 = vmatmul.mubr.bf16.gmra.mxu0 %v929
      %v1127 = vpop.f32.mrf.mxu0
      %v1128 = vadd.f32 %v634, %v1127
      %v1129 = vpop.f32.mrf.mxu0
      %v1130 = vpop.f32.mrf.mxu0
      %v1131 = vadd.f32 %v639, %v1130
      %v1132 = vpop.f32.mrf.mxu0
      %1133 = vmatprep.mubr.bf16.mxu0 %v934
      %1134 = vmatmul.mubr.bf16.gmra.mxu0 %v933
      %v1135 = vpop.f32.mrf.mxu0
      %v1136 = vadd.f32 %v644, %v1135
      %v1137 = vpop.f32.mrf.mxu0
      %v1138 = vpop.f32.mrf.mxu0
      %v1139 = vadd.f32 %v649, %v1138
      %v1140 = vpop.f32.mrf.mxu0
      %1141 = vmatprep.mubr.bf16.mxu0 %v938
      %1142 = vmatmul.mubr.bf16.gmra.mxu0 %v937
      %v1143 = vpop.f32.mrf.mxu0
      %v1144 = vadd.f32 %v654, %v1143
      %v1145 = vpop.f32.mrf.mxu0
      %v1146 = vpop.f32.mrf.mxu0
      %v1147 = vadd.f32 %v659, %v1146
      %v1148 = vpop.f32.mrf.mxu0
      %1149 = vmatprep.mubr.bf16.mxu0 %v942
      %1150 = vmatmul.mubr.bf16.gmra.mxu0 %v941
      %v1151 = vpop.f32.mrf.mxu0
      %v1152 = vadd.f32 %v664, %v1151
      %v1153 = vpop.f32.mrf.mxu0
      %v1154 = vpop.f32.mrf.mxu0
      %v1155 = vadd.f32 %v669, %v1154
      %v1156 = vpop.f32.mrf.mxu0
      %1157 = vmatprep.mubr.bf16.mxu0 %v946
      %1158 = vmatmul.mubr.bf16.gmra.mxu0 %v945
      %v1159 = vpop.f32.mrf.mxu0
      %v1160 = vadd.f32 %v674, %v1159
      %v1161 = vpop.f32.mrf.mxu0
      %v1162 = vpop.f32.mrf.mxu0
      %v1163 = vadd.f32 %v679, %v1162
      %v1164 = vpop.f32.mrf.mxu0
      %1165 = vmatprep.mubr.bf16.mxu0 %v950
      %1166 = vmatmul.mubr.bf16.gmra.mxu0 %v949
      %v1167 = vpop.f32.mrf.mxu0
      %v1168 = vadd.f32 %v684, %v1167
      %v1169 = vpop.f32.mrf.mxu0
      %v1170 = vpop.f32.mrf.mxu0
      %v1171 = vadd.f32 %v689, %v1170
      %v1172 = vpop.f32.mrf.mxu0
      %1173 = vmatprep.mubr.bf16.mxu0 %v954
      %1174 = vmatmul.mubr.bf16.gmra.mxu0 %v953
      %v1175 = vpop.f32.mrf.mxu0
      %v1176 = vadd.f32 %v694, %v1175
      %v1177 = vpop.f32.mrf.mxu0
      %v1178 = vpop.f32.mrf.mxu0
      %v1179 = vadd.f32 %v699, %v1178
      %v1180 = vpop.f32.mrf.mxu0
      %1181 = vdwg.mxu0
      %1182 = vmatprep.subr.bf16.mxu0 0
      %1183 = vmatpush1.bf16.msra.mxu0 %v436
      %1184 = vmatprep.subr.bf16.mxu0 0
      %1185 = vmatpush1.bf16.msra.mxu0 %v435
      %1186 = vmatprep.subr.bf16.mxu0 0
      %1187 = vmatpush1.bf16.msra.mxu0 %v434
      %1188 = vmatprep.subr.bf16.mxu0 0
      %1189 = vmatpush1.bf16.msra.mxu0 %v433
      %1190 = vmatprep.subr.bf16.mxu0 0
      %1191 = vmatpush1.bf16.msra.mxu0 %v432
      %1192 = vmatprep.subr.bf16.mxu0 0
      %1193 = vmatpush1.bf16.msra.mxu0 %v431
      %1194 = vmatprep.subr.bf16.mxu0 0
      %1195 = vmatpush1.bf16.msra.mxu0 %v430
      %1196 = vmatprep.subr.bf16.mxu0 0
      %1197 = vmatpush1.bf16.msra.mxu0 %v429
      %1198 = vmatprep.subr.bf16.mxu0 0
      %1199 = vmatpush2.bf16.msra.mxu0 %v444
      %1200 = vmatprep.subr.bf16.mxu0 0
      %1201 = vmatpush2.bf16.msra.mxu0 %v443
      %1202 = vmatprep.subr.bf16.mxu0 0
      %1203 = vmatpush2.bf16.msra.mxu0 %v442
      %1204 = vmatprep.subr.bf16.mxu0 0
      %1205 = vmatpush2.bf16.msra.mxu0 %v441
      %1206 = vmatprep.subr.bf16.mxu0 0
      %1207 = vmatpush2.bf16.msra.mxu0 %v440
      %1208 = vmatprep.subr.bf16.mxu0 0
      %1209 = vmatpush2.bf16.msra.mxu0 %v439
      %1210 = vmatprep.subr.bf16.mxu0 0
      %1211 = vmatpush2.bf16.msra.mxu0 %v438
      %1212 = vmatprep.subr.bf16.mxu0 0
      %1213 = vmatpush2.bf16.msra.mxu0 %v437
      %1214 = vmatprep.mubr.bf16.mxu0 %v896
      %1215 = vmatmul.mubr.bf16.gmra.mxu0 %v895
      %v1216 = vpop.f32.mrf.mxu0
      %v1217 = vadd.f32 %v1056, %v1216
      %v1218 = vpop.f32.mrf.mxu0
      %v1219 = vpop.f32.mrf.mxu0
      %v1220 = vadd.f32 %v1059, %v1219
      %v1221 = vpop.f32.mrf.mxu0
      %1222 = vmatprep.mubr.bf16.mxu0 %v900
      %1223 = vmatmul.mubr.bf16.gmra.mxu0 %v899
      %v1224 = vpop.f32.mrf.mxu0
      %v1225 = vadd.f32 %v1064, %v1224
      %v1226 = vpop.f32.mrf.mxu0
      %v1227 = vpop.f32.mrf.mxu0
      %v1228 = vadd.f32 %v1067, %v1227
      %v1229 = vpop.f32.mrf.mxu0
      %1230 = vmatprep.mubr.bf16.mxu0 %v904
      %1231 = vmatmul.mubr.bf16.gmra.mxu0 %v903
      %v1232 = vpop.f32.mrf.mxu0
      %v1233 = vadd.f32 %v1072, %v1232
      %v1234 = vpop.f32.mrf.mxu0
      %v1235 = vpop.f32.mrf.mxu0
      %v1236 = vadd.f32 %v1075, %v1235
      %v1237 = vpop.f32.mrf.mxu0
      %1238 = vmatprep.mubr.bf16.mxu0 %v908
      %1239 = vmatmul.mubr.bf16.gmra.mxu0 %v907
      %v1240 = vpop.f32.mrf.mxu0
      %v1241 = vadd.f32 %v1080, %v1240
      %v1242 = vpop.f32.mrf.mxu0
      %v1243 = vpop.f32.mrf.mxu0
      %v1244 = vadd.f32 %v1083, %v1243
      %v1245 = vpop.f32.mrf.mxu0
      %1246 = vmatprep.mubr.bf16.mxu0 %v912
      %1247 = vmatmul.mubr.bf16.gmra.mxu0 %v911
      %v1248 = vpop.f32.mrf.mxu0
      %v1249 = vadd.f32 %v1088, %v1248
      %v1250 = vpop.f32.mrf.mxu0
      %v1251 = vpop.f32.mrf.mxu0
      %v1252 = vadd.f32 %v1091, %v1251
      %v1253 = vpop.f32.mrf.mxu0
      %1254 = vmatprep.mubr.bf16.mxu0 %v916
      %1255 = vmatmul.mubr.bf16.gmra.mxu0 %v915
      %v1256 = vpop.f32.mrf.mxu0
      %v1257 = vadd.f32 %v1096, %v1256
      %v1258 = vpop.f32.mrf.mxu0
      %v1259 = vpop.f32.mrf.mxu0
      %v1260 = vadd.f32 %v1099, %v1259
      %v1261 = vpop.f32.mrf.mxu0
      %1262 = vmatprep.mubr.bf16.mxu0 %v920
      %1263 = vmatmul.mubr.bf16.gmra.mxu0 %v919
      %v1264 = vpop.f32.mrf.mxu0
      %v1265 = vadd.f32 %v1104, %v1264
      %v1266 = vpop.f32.mrf.mxu0
      %v1267 = vpop.f32.mrf.mxu0
      %v1268 = vadd.f32 %v1107, %v1267
      %v1269 = vpop.f32.mrf.mxu0
      %1270 = vmatprep.mubr.bf16.mxu0 %v924
      %1271 = vmatmul.mubr.bf16.gmra.mxu0 %v923
      %v1272 = vpop.f32.mrf.mxu0
      %v1273 = vadd.f32 %v1112, %v1272
      %v1274 = vpop.f32.mrf.mxu0
      %v1275 = vpop.f32.mrf.mxu0
      %v1276 = vadd.f32 %v1115, %v1275
      %v1277 = vpop.f32.mrf.mxu0
      %1278 = vmatprep.mubr.bf16.mxu0 %v928
      %1279 = vmatmul.mubr.bf16.gmra.mxu0 %v927
      %v1280 = vpop.f32.mrf.mxu0
      %v1281 = vadd.f32 %v1120, %v1280
      %v1282 = vpop.f32.mrf.mxu0
      %v1283 = vpop.f32.mrf.mxu0
      %v1284 = vadd.f32 %v1123, %v1283
      %v1285 = vpop.f32.mrf.mxu0
      %1286 = vmatprep.mubr.bf16.mxu0 %v932
      %1287 = vmatmul.mubr.bf16.gmra.mxu0 %v931
      %v1288 = vpop.f32.mrf.mxu0
      %v1289 = vadd.f32 %v1128, %v1288
      %v1290 = vpop.f32.mrf.mxu0
      %v1291 = vpop.f32.mrf.mxu0
      %v1292 = vadd.f32 %v1131, %v1291
      %v1293 = vpop.f32.mrf.mxu0
      %1294 = vmatprep.mubr.bf16.mxu0 %v936
      %1295 = vmatmul.mubr.bf16.gmra.mxu0 %v935
      %v1296 = vpop.f32.mrf.mxu0
      %v1297 = vadd.f32 %v1136, %v1296
      %v1298 = vpop.f32.mrf.mxu0
      %v1299 = vpop.f32.mrf.mxu0
      %v1300 = vadd.f32 %v1139, %v1299
      %v1301 = vpop.f32.mrf.mxu0
      %1302 = vmatprep.mubr.bf16.mxu0 %v940
      %1303 = vmatmul.mubr.bf16.gmra.mxu0 %v939
      %v1304 = vpop.f32.mrf.mxu0
      %v1305 = vadd.f32 %v1144, %v1304
      %v1306 = vpop.f32.mrf.mxu0
      %v1307 = vpop.f32.mrf.mxu0
      %v1308 = vadd.f32 %v1147, %v1307
      %v1309 = vpop.f32.mrf.mxu0
      %1310 = vmatprep.mubr.bf16.mxu0 %v944
      %1311 = vmatmul.mubr.bf16.gmra.mxu0 %v943
      %v1312 = vpop.f32.mrf.mxu0
      %v1313 = vadd.f32 %v1152, %v1312
      %v1314 = vpop.f32.mrf.mxu0
      %v1315 = vpop.f32.mrf.mxu0
      %v1316 = vadd.f32 %v1155, %v1315
      %v1317 = vpop.f32.mrf.mxu0
      %1318 = vmatprep.mubr.bf16.mxu0 %v948
      %1319 = vmatmul.mubr.bf16.gmra.mxu0 %v947
      %v1320 = vpop.f32.mrf.mxu0
      %v1321 = vadd.f32 %v1160, %v1320
      %v1322 = vpop.f32.mrf.mxu0
      %v1323 = vpop.f32.mrf.mxu0
      %v1324 = vadd.f32 %v1163, %v1323
      %v1325 = vpop.f32.mrf.mxu0
      %1326 = vmatprep.mubr.bf16.mxu0 %v952
      %1327 = vmatmul.mubr.bf16.gmra.mxu0 %v951
      %v1328 = vpop.f32.mrf.mxu0
      %v1329 = vadd.f32 %v1168, %v1328
      %v1330 = vpop.f32.mrf.mxu0
      %v1331 = vpop.f32.mrf.mxu0
      %v1332 = vadd.f32 %v1171, %v1331
      %v1333 = vpop.f32.mrf.mxu0
      %1334 = vmatprep.mubr.bf16.mxu0 %v956
      %1335 = vmatmul.mubr.bf16.gmra.mxu0 %v955
      %v1336 = vpop.f32.mrf.mxu0
      %v1337 = vadd.f32 %v1176, %v1336
      %v1338 = vpop.f32.mrf.mxu0
      %v1339 = vpop.f32.mrf.mxu0
      %v1340 = vadd.f32 %v1179, %v1339
      %v1341 = vpop.f32.mrf.mxu0
      %1342 = vdwg.mxu0
      %v1343 = vmax.f32 %v1217, 0.0
      %v1344 = vmax.f32 %v1220, 0.0
      %v1345 = vmax.f32 %v1225, 0.0
      %v1346 = vmax.f32 %v1228, 0.0
      %v1347 = vmax.f32 %v1233, 0.0
      %v1348 = vmax.f32 %v1236, 0.0
      %v1349 = vmax.f32 %v1241, 0.0
      %v1350 = vmax.f32 %v1244, 0.0
      %v1351 = vmax.f32 %v1249, 0.0
      %v1352 = vmax.f32 %v1252, 0.0
      %v1353 = vmax.f32 %v1257, 0.0
      %v1354 = vmax.f32 %v1260, 0.0
      %v1355 = vmax.f32 %v1265, 0.0
      %v1356 = vmax.f32 %v1268, 0.0
      %v1357 = vmax.f32 %v1273, 0.0
      %v1358 = vmax.f32 %v1276, 0.0
      %v1359 = vmax.f32 %v1281, 0.0
      %v1360 = vmax.f32 %v1284, 0.0
      %v1361 = vmax.f32 %v1289, 0.0
      %v1362 = vmax.f32 %v1292, 0.0
      %v1363 = vmax.f32 %v1297, 0.0
      %v1364 = vmax.f32 %v1300, 0.0
      %v1365 = vmax.f32 %v1305, 0.0
      %v1366 = vmax.f32 %v1308, 0.0
      %v1367 = vmax.f32 %v1313, 0.0
      %v1368 = vmax.f32 %v1316, 0.0
      %v1369 = vmax.f32 %v1321, 0.0
      %v1370 = vmax.f32 %v1324, 0.0
      %v1371 = vmax.f32 %v1329, 0.0
      %v1372 = vmax.f32 %v1332, 0.0
      %v1373 = vmax.f32 %v1337, 0.0
      %v1374 = vmax.f32 %v1340, 0.0
      %v1375 = vpack.c.bf16 %v1344, %v1343
      %v1376 = vpack.c.bf16 %v1346, %v1345
      %v1377 = vpack.c.bf16 %v1348, %v1347
      %v1378 = vpack.c.bf16 %v1350, %v1349
      %v1379 = vpack.c.bf16 %v1352, %v1351
      %v1380 = vpack.c.bf16 %v1354, %v1353
      %v1381 = vpack.c.bf16 %v1356, %v1355
      %v1382 = vpack.c.bf16 %v1358, %v1357
      %v1383 = vpack.c.bf16 %v1360, %v1359
      %v1384 = vpack.c.bf16 %v1362, %v1361
      %v1385 = vpack.c.bf16 %v1364, %v1363
      %v1386 = vpack.c.bf16 %v1366, %v1365
      %v1387 = vpack.c.bf16 %v1368, %v1367
      %v1388 = vpack.c.bf16 %v1370, %v1369
      %v1389 = vpack.c.bf16 %v1372, %v1371
      %v1390 = vpack.c.bf16 %v1374, %v1373
      %v1407 = vunpack.c.l.b16 %v1375
      %v1408 = vunpack.c.h.b16 %v1375
      %v1409 = vunpack.c.l.b16 %v1376
      %v1410 = vunpack.c.h.b16 %v1376
      %v1411 = vunpack.c.l.b16 %v1377
      %v1412 = vunpack.c.h.b16 %v1377
      %v1413 = vunpack.c.l.b16 %v1378
      %v1414 = vunpack.c.h.b16 %v1378
      %v1415 = vunpack.c.l.b16 %v1379
      %v1416 = vunpack.c.h.b16 %v1379
      %v1417 = vunpack.c.l.b16 %v1380
      %v1418 = vunpack.c.h.b16 %v1380
      %v1419 = vunpack.c.l.b16 %v1381
      %v1420 = vunpack.c.h.b16 %v1381
      %v1421 = vunpack.c.l.b16 %v1382
      %v1422 = vunpack.c.h.b16 %v1382
      %v1423 = vunpack.c.l.b16 %v1383
      %v1424 = vunpack.c.h.b16 %v1383
      %v1425 = vunpack.c.l.b16 %v1384
      %v1426 = vunpack.c.h.b16 %v1384
      %v1427 = vunpack.c.l.b16 %v1385
      %v1428 = vunpack.c.h.b16 %v1385
      %v1429 = vunpack.c.l.b16 %v1386
      %v1430 = vunpack.c.h.b16 %v1386
      %v1431 = vunpack.c.l.b16 %v1387
      %v1432 = vunpack.c.h.b16 %v1387
      %v1433 = vunpack.c.l.b16 %v1388
      %v1434 = vunpack.c.h.b16 %v1388
      %v1435 = vunpack.c.l.b16 %v1389
      %v1436 = vunpack.c.h.b16 %v1389
      %v1437 = vunpack.c.l.b16 %v1390
      %v1438 = vunpack.c.h.b16 %v1390
      %v1439 = vpack.c.b16 %v1407, %v1407
      %v1440 = vpack.c.b16 %v1408, %v1408
      %v1441 = vpack.c.b16 %v1409, %v1409
      %v1442 = vpack.c.b16 %v1410, %v1410
      %v1443 = vpack.c.b16 %v1411, %v1411
      %v1444 = vpack.c.b16 %v1412, %v1412
      %v1445 = vpack.c.b16 %v1413, %v1413
      %v1446 = vpack.c.b16 %v1414, %v1414
      %v1447 = vpack.c.b16 %v1415, %v1415
      %v1448 = vpack.c.b16 %v1416, %v1416
      %v1449 = vpack.c.b16 %v1417, %v1417
      %v1450 = vpack.c.b16 %v1418, %v1418
      %v1451 = vpack.c.b16 %v1419, %v1419
      %v1452 = vpack.c.b16 %v1420, %v1420
      %v1453 = vpack.c.b16 %v1421, %v1421
      %v1454 = vpack.c.b16 %v1422, %v1422
      %v1455 = vpack.c.b16 %v1423, %v1423
      %v1456 = vpack.c.b16 %v1424, %v1424
      %v1457 = vpack.c.b16 %v1425, %v1425
      %v1458 = vpack.c.b16 %v1426, %v1426
      %v1459 = vpack.c.b16 %v1427, %v1427
      %v1460 = vpack.c.b16 %v1428, %v1428
      %v1461 = vpack.c.b16 %v1429, %v1429
      %v1462 = vpack.c.b16 %v1430, %v1430
      %v1463 = vpack.c.b16 %v1431, %v1431
      %v1464 = vpack.c.b16 %v1432, %v1432
      %v1465 = vpack.c.b16 %v1433, %v1433
      %v1466 = vpack.c.b16 %v1434, %v1434
      %v1467 = vpack.c.b16 %v1435, %v1435
      %v1468 = vpack.c.b16 %v1436, %v1436
      %v1469 = vpack.c.b16 %v1437, %v1437
      %v1470 = vpack.c.b16 %v1438, %v1438
      %vm1503 = vcmask 125952
      %1504 = vst.msk [vmem:[%s170] sm:$0xf] %vm1503, %v1439
      %1505 = vst.msk [vmem:[%s170 + $0x4] sm:$0xf] %vm1503, %v1440
      %1506 = vst.msk [vmem:[%s170 + $0x8] sm:$0xf] %vm1503, %v1441
      %1507 = vst.msk [vmem:[%s170 + $0xc] sm:$0xf] %vm1503, %v1442
      %1508 = vst.msk [vmem:[%s170 + $0x10] sm:$0xf] %vm1503, %v1443
      %1509 = vst.msk [vmem:[%s170 + $0x14] sm:$0xf] %vm1503, %v1444
      %1510 = vst.msk [vmem:[%s170 + $0x18] sm:$0xf] %vm1503, %v1445
      %1511 = vst.msk [vmem:[%s170 + $0x1c] sm:$0xf] %vm1503, %v1446
      %1512 = vst.msk [vmem:[%s170 + $0x20] sm:$0xf] %vm1503, %v1447
      %1513 = vst.msk [vmem:[%s170 + $0x24] sm:$0xf] %vm1503, %v1448
      %1514 = vst.msk [vmem:[%s170 + $0x28] sm:$0xf] %vm1503, %v1449
      %1515 = vst.msk [vmem:[%s170 + $0x2c] sm:$0xf] %vm1503, %v1450
      %1516 = vst.msk [vmem:[%s170 + $0x30] sm:$0xf] %vm1503, %v1451
      %1517 = vst.msk [vmem:[%s170 + $0x34] sm:$0xf] %vm1503, %v1452
      %1518 = vst.msk [vmem:[%s170 + $0x38] sm:$0xf] %vm1503, %v1453
      %1519 = vst.msk [vmem:[%s170 + $0x3c] sm:$0xf] %vm1503, %v1454
      %1520 = vst.msk [vmem:[%s170 + $0x40] sm:$0xf] %vm1503, %v1455
      %1521 = vst.msk [vmem:[%s170 + $0x44] sm:$0xf] %vm1503, %v1456
      %1522 = vst.msk [vmem:[%s170 + $0x48] sm:$0xf] %vm1503, %v1457
      %1523 = vst.msk [vmem:[%s170 + $0x4c] sm:$0xf] %vm1503, %v1458
      %1524 = vst.msk [vmem:[%s170 + $0x50] sm:$0xf] %vm1503, %v1459
      %1525 = vst.msk [vmem:[%s170 + $0x54] sm:$0xf] %vm1503, %v1460
      %1526 = vst.msk [vmem:[%s170 + $0x58] sm:$0xf] %vm1503, %v1461
      %1527 = vst.msk [vmem:[%s170 + $0x5c] sm:$0xf] %vm1503, %v1462
      %1528 = vst.msk [vmem:[%s170 + $0x60] sm:$0xf] %vm1503, %v1463
      %1529 = vst.msk [vmem:[%s170 + $0x64] sm:$0xf] %vm1503, %v1464
      %1530 = vst.msk [vmem:[%s170 + $0x68] sm:$0xf] %vm1503, %v1465
      %1531 = vst.msk [vmem:[%s170 + $0x6c] sm:$0xf] %vm1503, %v1466
      %1532 = vst.msk [vmem:[%s170 + $0x70] sm:$0xf] %vm1503, %v1467
      %1533 = vst.msk [vmem:[%s170 + $0x74] sm:$0xf] %vm1503, %v1468
      %1534 = vst.msk [vmem:[%s170 + $0x78] sm:$0xf] %vm1503, %v1469
      %1535 = vst.msk [vmem:[%s170 + $0x7c] sm:$0xf] %vm1503, %v1470
      %p1536 = scmp.lt.s32.totalorder %s14, 1
      %s1537 = scalar_select %p1536, %s14, 1
      %s1538 = smul.addr %s1537, 32
      %s1539 = smul.addr %s1538, 4
      %s1540 = scalar_lea.vmem %s3, %s1539
      // Predicated region
      $region33: #{autoencoder_forward.9} parent=31 // pred_check
        %p1541 = pneg %p100
      $region34: #{autoencoder_forward.9} parent=31 // pred_check_branch
        %1543 = sbr.rel (%p1541) target = $region36
      $region35: #{autoencoder_forward.9} parent=31 // pred_region
        _
      $region36: #{autoencoder_forward.9} parent=31 // pred_fallthru
        _
    $region32: #{autoencoder_forward.9} parent=5 // pred_fallthru
      _
    %p1544 = scmp.le.s32.totalorder 2, %s9
    // Predicated region
    $region37: #{autoencoder_forward.9} parent=5 // pred_check
      %p1545 = pneg %p1544
    $region38: #{autoencoder_forward.9} parent=5 // pred_check_branch
      %1547 = sbr.rel (%p1545) target = $region40
    $region39: #{autoencoder_forward.9} parent=5 // pred_region
      %s1548 = ssub.s32 %s9, 2
      // Predicated region
      $region41: #{autoencoder_forward.9} parent=39 // pred_check
        %p1549 = pneg %p106
      $region42: #{autoencoder_forward.9} parent=39 // pred_check_branch
        %1551 = sbr.rel (%p1549) target = $region44
      $region43: #{autoencoder_forward.9} parent=39 // pred_region
        %p1552 = scmp.lt.s32.totalorder %s15, 1
        %s1553 = scalar_select %p1552, %s15, 1
        %s1554 = smul.addr %s1553, 32
        %s1555 = smul.addr %s1554, 4
        %s1556 = scalar_lea.vmem %s3, %s1555
      $region44: #{autoencoder_forward.9} parent=39 // pred_fallthru
        _
    $region40: #{autoencoder_forward.9} parent=5 // pred_fallthru
      _
  $region6: #{autoencoder_forward.9} parent=0 // loop_footer
    %s13 = sadd.s32 1, %s9
  $region7: #{autoencoder_forward.9} parent=0 // loop_footer_branch
    %8 = sbr.rel target = $region3
  $region8: #{autoencoder_forward.9} parent=0 // loop_exit
    _

// kernel: autoencoder_forward.10
$region0: #{autoencoder_forward.10}
  #allocation0 [shape = 'u32[]', space=smem, size = 0x4, offset = 0x4, fixed_abs, tag = 'smem constant byte address 0x4 - core index']
  #allocation1 [shape = 'u32[144,128]{1,0:T(1,128)}', space=vmem, size = 0x12000, scoped, tag = 'internal scratch']
  %s0 = inlined_call_operand.vmem [shape: bf16[2,64,73], index: 0, kind: input, shape index: {}]
  %s1 = inlined_call_operand.vmem [shape: bf16[128,256], index: 1, kind: input, shape index: {}]
  %s2 = inlined_call_operand.vmem [shape: f32[128,1], index: 2, kind: input, shape index: {}]
  %s3 = inlined_call_operand.vmem [shape: bf16[2,128,64], index: 3, kind: output, shape index: {}]
  %s4 = sld [smem:[#allocation0]]
  $region45: #{autoencoder_forward.10} parent=0
    _
  %s6 = ssub.s32 1, %s4
  %s7 = scalar_select 0, %s6, %s4
  loop: start=0, step=1, limit=4
  $region2: #{autoencoder_forward.10} parent=0 // loop_pre_header
    _
  $region3: #{autoencoder_forward.10} parent=0 // loop_header
    %s9 = sphi 0, %s13
    %p10 = scmp.ge.s32.totalorder %s9, 4
    %s19 = sphi 0, %s21
    %s22 = sphi 0, %s19
    %s23 = sphi 0, %s22
    %s39 = sphi 0, %s23
    %s43 = sphi 0, %s43
    %s45 = sphi 0, %s43
    %s46 = sphi 0, %s45
    %s60 = sphi 0, %s46
    %s64 = sphi 0, %s64
    %s66 = sphi 0, %s64
    %s67 = sphi 0, %s66
    %s81 = sphi 0, %s67
    %s87 = sphi 0, %s89
    %s90 = sphi 0, %s87
    %s91 = sphi 0, %s90
    %s107 = sphi 0, %s91
  $region4: #{autoencoder_forward.10} parent=0 // loop_header_branch
    %12 = sbr.rel (%p10) target = $region8
  $region5: #{autoencoder_forward.10} parent=0 // loop_body
    %s14 = ssub.s32 %s9, 1
    %s15 = ssub.s32 %s9, 2
    %s16 = sadd.s32 %s9, 1
    %s17 = ssub.s32 %s9, %s16
    %p18 = scmp.eq.s32.totalorder %s17, 0
    %s20 = sadd.s32 %s19, 1
    %s21 = scalar_select %p18, %s19, %s20
    %p24 = pneg %p18
    %p25 = scmp.eq.s32.totalorder %s9, 1
    %p26 = por %p24, %p25
    %p27 = scmp.ne.s32.totalorder %s19, %s22
    %p28 = scmp.eq.s32.totalorder %s9, 0
    %p29 = por %p27, %p28
    %p30 = scmp.ne.s32.totalorder %s19, %s22
    %p31 = scmp.eq.s32.totalorder %s14, 1
    %p32 = por %p30, %p31
    %p33 = scmp.ne.s32.totalorder %s22, %s23
    %p34 = scmp.eq.s32.totalorder %s14, 0
    %p35 = por %p33, %p34
    %p36 = scmp.ne.s32.totalorder %s22, %s23
    %p37 = scmp.eq.s32.totalorder %s15, 1
    %p38 = por %p36, %p37
    %p40 = scmp.ne.s32.totalorder %s23, %s39
    %p41 = scmp.eq.s32.totalorder %s15, 0
    %p42 = por %p40, %p41
    %s44 = sadd.s32 %s43, 1
    %p47 = scmp.eq.s32.totalorder %s9, 1
    %p48 = scmp.ne.s32.totalorder %s43, %s45
    %p49 = scmp.eq.s32.totalorder %s9, 0
    %p50 = por %p48, %p49
    %p51 = scmp.ne.s32.totalorder %s43, %s45
    %p52 = scmp.eq.s32.totalorder %s14, 1
    %p53 = por %p51, %p52
    %p54 = scmp.ne.s32.totalorder %s45, %s46
    %p55 = scmp.eq.s32.totalorder %s14, 0
    %p56 = por %p54, %p55
    %p57 = scmp.ne.s32.totalorder %s45, %s46
    %p58 = scmp.eq.s32.totalorder %s15, 1
    %p59 = por %p57, %p58
    %p61 = scmp.ne.s32.totalorder %s46, %s60
    %p62 = scmp.eq.s32.totalorder %s15, 0
    %p63 = por %p61, %p62
    %s65 = sadd.s32 %s64, 1
    %p68 = scmp.eq.s32.totalorder %s9, 1
    %p69 = scmp.ne.s32.totalorder %s64, %s66
    %p70 = scmp.eq.s32.totalorder %s9, 0
    %p71 = por %p69, %p70
    %p72 = scmp.ne.s32.totalorder %s64, %s66
    %p73 = scmp.eq.s32.totalorder %s14, 1
    %p74 = por %p72, %p73
    %p75 = scmp.ne.s32.totalorder %s66, %s67
    %p76 = scmp.eq.s32.totalorder %s14, 0
    %p77 = por %p75, %p76
    %p78 = scmp.ne.s32.totalorder %s66, %s67
    %p79 = scmp.eq.s32.totalorder %s15, 1
    %p80 = por %p78, %p79
    %p82 = scmp.ne.s32.totalorder %s67, %s81
    %p83 = scmp.eq.s32.totalorder %s15, 0
    %p84 = por %p82, %p83
    %s85 = ssub.s32 %s9, %s16
    %p86 = scmp.eq.s32.totalorder %s85, 0
    %s88 = sadd.s32 %s87, 1
    %s89 = scalar_select %p86, %s87, %s88
    %p92 = pneg %p86
    %p93 = scmp.eq.s32.totalorder %s9, 1
    %p94 = por %p92, %p93
    %p95 = scmp.ne.s32.totalorder %s87, %s90
    %p96 = scmp.eq.s32.totalorder %s9, 0
    %p97 = por %p95, %p96
    %p98 = scmp.ne.s32.totalorder %s87, %s90
    %p99 = scmp.eq.s32.totalorder %s14, 1
    %p100 = por %p98, %p99
    %p101 = scmp.ne.s32.totalorder %s90, %s91
    %p102 = scmp.eq.s32.totalorder %s14, 0
    %p103 = por %p101, %p102
    %p104 = scmp.ne.s32.totalorder %s90, %s91
    %p105 = scmp.eq.s32.totalorder %s15, 1
    %p106 = por %p104, %p105
    %p108 = scmp.ne.s32.totalorder %s91, %s107
    %p109 = scmp.eq.s32.totalorder %s15, 0
    %p110 = por %p108, %p109
    %p111 = scmp.le.s32.totalorder 1, %s9
    %p112 = scmp.lt.s32.totalorder %s9, 3
    %p113 = pnand %p111, %p112
    %p114 = pneg %p113
    // Predicated region
    $region9: #{autoencoder_forward.10} parent=5 // pred_check
      _
    $region10: #{autoencoder_forward.10} parent=5 // pred_check_branch
      %116 = sbr.rel (%p113) target = $region12
    $region11: #{autoencoder_forward.10} parent=5 // pred_region
      %s117 = ssub.s32 %s9, 1
      // Predicated region
      $region13: #{autoencoder_forward.10} parent=11 // pred_check
        %p118 = pneg %p56
      $region14: #{autoencoder_forward.10} parent=11 // pred_check_branch
        %120 = sbr.rel (%p118) target = $region16
      $region15: #{autoencoder_forward.10} parent=11 // pred_region
        _
      $region16: #{autoencoder_forward.10} parent=11 // pred_fallthru
        _
      // Predicated region
      $region17: #{autoencoder_forward.10} parent=11 // pred_check
        %p121 = pneg %p77
      $region18: #{autoencoder_forward.10} parent=11 // pred_check_branch
        %123 = sbr.rel (%p121) target = $region20
      $region19: #{autoencoder_forward.10} parent=11 // pred_region
        _
      $region20: #{autoencoder_forward.10} parent=11 // pred_fallthru
        _
    $region12: #{autoencoder_forward.10} parent=5 // pred_fallthru
      _
    %p124 = scmp.lt.s32.totalorder %s9, 2
    // Predicated region
    $region21: #{autoencoder_forward.10} parent=5 // pred_check
      %p125 = pneg %p124
    $region22: #{autoencoder_forward.10} parent=5 // pred_check_branch
      %127 = sbr.rel (%p125) target = $region24
    $region23: #{autoencoder_forward.10} parent=5 // pred_region
      // Predicated region
      $region25: #{autoencoder_forward.10} parent=23 // pred_check
        %p128 = pneg %p29
      $region26: #{autoencoder_forward.10} parent=23 // pred_check_branch
        %130 = sbr.rel (%p128) target = $region28
      $region27: #{autoencoder_forward.10} parent=23 // pred_region
        %p131 = scmp.lt.s32.totalorder %s9, 1
        %s132 = scalar_select %p131, %s9, 1
        %s133 = smul.addr %s132, 8
        %s134 = smul.addr %s133, 4
        %s135 = scalar_lea.vmem %s0, %s134
      $region28: #{autoencoder_forward.10} parent=23 // pred_fallthru
        _
    $region24: #{autoencoder_forward.10} parent=5 // pred_fallthru
      _
    %p136 = scmp.le.s32.totalorder 1, %s9
    %p137 = scmp.lt.s32.totalorder %s9, 3
    %p138 = pnand %p136, %p137
    %p139 = pneg %p138
    // Predicated region
    $region29: #{autoencoder_forward.10} parent=5 // pred_check
      _
    $region30: #{autoencoder_forward.10} parent=5 // pred_check_branch
      %141 = sbr.rel (%p138) target = $region32
    $region31: #{autoencoder_forward.10} parent=5 // pred_region
      %s142 = ssub.s32 %s9, 1
      %p143 = scmp.lt.s32.totalorder %s14, 1
      %s144 = scalar_select %p143, %s14, 1
      %s145 = smul.addr %s144, 8
      %s146 = smul.addr %s145, 4
      %s147 = scalar_lea.vmem %s0, %s146
      %p148 = pneg %p35
      %p149 = pneg %p32
      %p150 = pneg %p56
      %p151 = pneg %p53
      %p152 = pneg %p77
      %p153 = pneg %p74
      %p154 = pneg %p103
      %p155 = pneg %p100
      %p156 = scmp.lt.s32.totalorder %s14, 1
      %s157 = scalar_select %p156, %s14, 1
      %s158 = smul.addr %s157, 16
      %s159 = smul.addr %s158, 4
      %s160 = scalar_lea.vmem %s3, %s159
      %p161 = scmp.lt.s32.totalorder %s14, 1
      %s162 = scalar_select %p161, %s14, 1
      %s163 = smul.addr %s162, 8
      %s164 = smul.addr %s163, 4
      %s165 = scalar_lea.vmem %s0, %s164
      %p166 = scmp.lt.s32.totalorder %s14, 1
      %s167 = scalar_select %p166, %s14, 1
      %s168 = smul.addr %s167, 16
      %s169 = smul.addr %s168, 4
      %s170 = scalar_lea.vmem %s3, %s169
      %v172 = vld [vmem:[%s165] sm:$0xf]
      %v173 = vld [vmem:[%s165 + $0x4] sm:$0xf]
      %v174 = vld [vmem:[%s165 + $0x8] sm:$0xf]
      %v175 = vld [vmem:[%s165 + $0xc] sm:$0xf]
      %v176 = vld [vmem:[%s165 + $0x10] sm:$0xf]
      %v177 = vld [vmem:[%s165 + $0x14] sm:$0xf]
      %v178 = vld [vmem:[%s165 + $0x18] sm:$0xf]
      %v179 = vld [vmem:[%s165 + $0x1c] sm:$0xf]
      %v180 = vunpack.c.l.bf16 %v172
      %v181 = vunpack.c.l.bf16 %v173
      %v182 = vunpack.c.l.bf16 %v174
      %v183 = vunpack.c.l.bf16 %v175
      %v184 = vunpack.c.l.bf16 %v176
      %v185 = vunpack.c.l.bf16 %v177
      %v186 = vunpack.c.l.bf16 %v178
      %v187 = vunpack.c.l.bf16 %v179
      %v188 = vlaneseq
      %v189 = vand.u32 %v188, 127
      %vm190 = vcmp.lt.s32.totalorder %v189, 0
      %v191 = vsub.s32 0, %v189
      %v192 = vsel %vm190, %v191, %v189
      %v193 = vshrl.u32 %v192, 3
      %v194 = vand.u32 %v192, 7
      %v195 = vsub.s32 0, %v194
      %v196 = vsel %vm190, %v195, %v194
      %vm197 = vcmp.ne.s32.totalorder %v196, 0
      %vm198 = vcmp.lt.s32.totalorder %v196, 0
      %vm199 = vmand %vm198, %vm197
      %v200 = vadd.s32 %v196, 8
      %v201 = vsel %vm199, %v200, %v196
      %vm202 = vcmp.ge.s32.totalorder %v201, 4294967295
      %vm203 = vcmp.lt.s32.totalorder %v201, 7
      %vm204 = vmand %vm202, %vm203
      %213 = vrot.lane.b32.xlu0 %v180, 127
      %v214 = vpop.permute.xlu0 %213
      %215 = vrot.lane.b32.xlu0 %v181, 127
      %v216 = vpop.permute.xlu0 %215
      %217 = vrot.lane.b32.xlu0 %v182, 127
      %v218 = vpop.permute.xlu0 %217
      %219 = vrot.lane.b32.xlu0 %v183, 127
      %v220 = vpop.permute.xlu0 %219
      %221 = vrot.lane.b32.xlu0 %v184, 127
      %v222 = vpop.permute.xlu0 %221
      %223 = vrot.lane.b32.xlu0 %v185, 127
      %v224 = vpop.permute.xlu0 %223
      %225 = vrot.lane.b32.xlu0 %v186, 127
      %v226 = vpop.permute.xlu0 %225
      %227 = vrot.lane.b32.xlu0 %v187, 127
      %v228 = vpop.permute.xlu0 %227
      %v237 = vsel %vm204, %v214, 0.0
      %v238 = vsel %vm204, %v216, 0.0
      %v239 = vsel %vm204, %v218, 0.0
      %v240 = vsel %vm204, %v220, 0.0
      %v241 = vsel %vm204, %v222, 0.0
      %v242 = vsel %vm204, %v224, 0.0
      %v243 = vsel %vm204, %v226, 0.0
      %v244 = vsel %vm204, %v228, 0.0
      %245 = vrot.lane.b32.xlu0 %v180, 119
      %v246 = vpop.permute.xlu0 %245
      %247 = vrot.lane.b32.xlu0 %v181, 119
      %v248 = vpop.permute.xlu0 %247
      %249 = vrot.lane.b32.xlu0 %v182, 119
      %v250 = vpop.permute.xlu0 %249
      %251 = vrot.lane.b32.xlu0 %v183, 119
      %v252 = vpop.permute.xlu0 %251
      %253 = vrot.lane.b32.xlu0 %v184, 119
      %v254 = vpop.permute.xlu0 %253
      %255 = vrot.lane.b32.xlu0 %v185, 119
      %v256 = vpop.permute.xlu0 %255
      %257 = vrot.lane.b32.xlu0 %v186, 119
      %v258 = vpop.permute.xlu0 %257
      %259 = vrot.lane.b32.xlu0 %v187, 119
      %v260 = vpop.permute.xlu0 %259
      %v269 = vsel %vm204, %v246, 0.0
      %v270 = vsel %vm204, %v248, 0.0
      %v271 = vsel %vm204, %v250, 0.0
      %v272 = vsel %vm204, %v252, 0.0
      %v273 = vsel %vm204, %v254, 0.0
      %v274 = vsel %vm204, %v256, 0.0
      %v275 = vsel %vm204, %v258, 0.0
      %v276 = vsel %vm204, %v260, 0.0
      %277 = vrot.lane.b32.xlu0 %v180, 120
      %v278 = vpop.permute.xlu0 %277
      %279 = vrot.lane.b32.xlu0 %v181, 120
      %v280 = vpop.permute.xlu0 %279
      %281 = vrot.lane.b32.xlu0 %v182, 120
      %v282 = vpop.permute.xlu0 %281
      %283 = vrot.lane.b32.xlu0 %v183, 120
      %v284 = vpop.permute.xlu0 %283
      %285 = vrot.lane.b32.xlu0 %v184, 120
      %v286 = vpop.permute.xlu0 %285
      %287 = vrot.lane.b32.xlu0 %v185, 120
      %v288 = vpop.permute.xlu0 %287
      %289 = vrot.lane.b32.xlu0 %v186, 120
      %v290 = vpop.permute.xlu0 %289
      %291 = vrot.lane.b32.xlu0 %v187, 120
      %v292 = vpop.permute.xlu0 %291
      %v301 = vpack.c.bf16 %v181, %v180
      %v302 = vpack.c.bf16 %v183, %v182
      %v303 = vpack.c.bf16 %v185, %v184
      %v304 = vpack.c.bf16 %v187, %v186
      %v305 = vpack.c.bf16 %v238, %v237
      %v306 = vpack.c.bf16 %v240, %v239
      %v307 = vpack.c.bf16 %v242, %v241
      %v308 = vpack.c.bf16 %v244, %v243
      %v309 = vpack.c.bf16 %v280, %v278
      %v310 = vpack.c.bf16 %v284, %v282
      %v311 = vpack.c.bf16 %v288, %v286
      %v312 = vpack.c.bf16 %v292, %v290
      %v313 = vpack.c.bf16 %v270, %v269
      %v314 = vpack.c.bf16 %v272, %v271
      %v315 = vpack.c.bf16 %v274, %v273
      %v316 = vpack.c.bf16 %v276, %v275
      %v317 = vld [vmem:[%s1] sm:$0xff]
      %v318 = vld [vmem:[%s1 + $0x8] sm:$0xff]
      %v319 = vld [vmem:[%s1 + $0x10] sm:$0xff]
      %v320 = vld [vmem:[%s1 + $0x18] sm:$0xff]
      %v321 = vld [vmem:[%s1 + $0x20] sm:$0xff]
      %v322 = vld [vmem:[%s1 + $0x28] sm:$0xff]
      %v323 = vld [vmem:[%s1 + $0x30] sm:$0xff]
      %v324 = vld [vmem:[%s1 + $0x38] sm:$0xff]
      %v325 = vld [vmem:[%s1 + $0x40] sm:$0xff]
      %v326 = vld [vmem:[%s1 + $0x48] sm:$0xff]
      %v327 = vld [vmem:[%s1 + $0x50] sm:$0xff]
      %v328 = vld [vmem:[%s1 + $0x58] sm:$0xff]
      %v329 = vld [vmem:[%s1 + $0x60] sm:$0xff]
      %v330 = vld [vmem:[%s1 + $0x68] sm:$0xff]
      %v331 = vld [vmem:[%s1 + $0x70] sm:$0xff]
      %v332 = vld [vmem:[%s1 + $0x78] sm:$0xff]
      %v333 = vld [vmem:[%s2] sm:$0xff]
      %v334 = vld [vmem:[%s2 + $0x8] sm:$0xff]
      %v335 = vld [vmem:[%s2 + $0x10] sm:$0xff]
      %v336 = vld [vmem:[%s2 + $0x18] sm:$0xff]
      %v337 = vld [vmem:[%s2 + $0x20] sm:$0xff]
      %v338 = vld [vmem:[%s2 + $0x28] sm:$0xff]
      %v339 = vld [vmem:[%s2 + $0x30] sm:$0xff]
      %v340 = vld [vmem:[%s2 + $0x38] sm:$0xff]
      %v341 = vld [vmem:[%s2 + $0x40] sm:$0xff]
      %v342 = vld [vmem:[%s2 + $0x48] sm:$0xff]
      %v343 = vld [vmem:[%s2 + $0x50] sm:$0xff]
      %v344 = vld [vmem:[%s2 + $0x58] sm:$0xff]
      %v345 = vld [vmem:[%s2 + $0x60] sm:$0xff]
      %v346 = vld [vmem:[%s2 + $0x68] sm:$0xff]
      %v347 = vld [vmem:[%s2 + $0x70] sm:$0xff]
      %v348 = vld [vmem:[%s2 + $0x78] sm:$0xff]
      %350 = vset.pattern.permute.xlu0 0
      %351 = vperm.xlu0 %350, %v333
      %v352 = vpop.permute.xlu0 %351
      %355 = vset.pattern.permute.xlu0 0
      %356 = vperm.xlu0 %355, %v334
      %v357 = vpop.permute.xlu0 %356
      %360 = vset.pattern.permute.xlu0 0
      %361 = vperm.xlu0 %360, %v335
      %v362 = vpop.permute.xlu0 %361
      %365 = vset.pattern.permute.xlu0 0
      %366 = vperm.xlu0 %365, %v336
      %v367 = vpop.permute.xlu0 %366
      %370 = vset.pattern.permute.xlu0 0
      %371 = vperm.xlu0 %370, %v337
      %v372 = vpop.permute.xlu0 %371
      %375 = vset.pattern.permute.xlu0 0
      %376 = vperm.xlu0 %375, %v338
      %v377 = vpop.permute.xlu0 %376
      %380 = vset.pattern.permute.xlu0 0
      %381 = vperm.xlu0 %380, %v339
      %v382 = vpop.permute.xlu0 %381
      %385 = vset.pattern.permute.xlu0 0
      %386 = vperm.xlu0 %385, %v340
      %v387 = vpop.permute.xlu0 %386
      %390 = vset.pattern.permute.xlu0 0
      %391 = vperm.xlu0 %390, %v341
      %v392 = vpop.permute.xlu0 %391
      %395 = vset.pattern.permute.xlu0 0
      %396 = vperm.xlu0 %395, %v342
      %v397 = vpop.permute.xlu0 %396
      %400 = vset.pattern.permute.xlu0 0
      %401 = vperm.xlu0 %400, %v343
      %v402 = vpop.permute.xlu0 %401
      %405 = vset.pattern.permute.xlu0 0
      %406 = vperm.xlu0 %405, %v344
      %v407 = vpop.permute.xlu0 %406
      %410 = vset.pattern.permute.xlu0 0
      %411 = vperm.xlu0 %410, %v345
      %v412 = vpop.permute.xlu0 %411
      %415 = vset.pattern.permute.xlu0 0
      %416 = vperm.xlu0 %415, %v346
      %v417 = vpop.permute.xlu0 %416
      %420 = vset.pattern.permute.xlu0 0
      %421 = vperm.xlu0 %420, %v347
      %v422 = vpop.permute.xlu0 %421
      %425 = vset.pattern.permute.xlu0 0
      %426 = vperm.xlu0 %425, %v348
      %v427 = vpop.permute.xlu0 %426
      %v445 = vunpack.c.l.b16 %v317
      %v446 = vunpack.c.h.b16 %v317
      %v447 = vunpack.c.l.b16 %v318
      %v448 = vunpack.c.h.b16 %v318
      %v449 = vunpack.c.l.b16 %v319
      %v450 = vunpack.c.h.b16 %v319
      %v451 = vunpack.c.l.b16 %v320
      %v452 = vunpack.c.h.b16 %v320
      %v453 = vunpack.c.l.b16 %v321
      %v454 = vunpack.c.h.b16 %v321
      %v455 = vunpack.c.l.b16 %v322
      %v456 = vunpack.c.h.b16 %v322
      %v457 = vunpack.c.l.b16 %v323
      %v458 = vunpack.c.h.b16 %v323
      %v459 = vunpack.c.l.b16 %v324
      %v460 = vunpack.c.h.b16 %v324
      %v461 = vunpack.c.l.b16 %v325
      %v462 = vunpack.c.h.b16 %v325
      %v463 = vunpack.c.l.b16 %v326
      %v464 = vunpack.c.h.b16 %v326
      %v465 = vunpack.c.l.b16 %v327
      %v466 = vunpack.c.h.b16 %v327
      %v467 = vunpack.c.l.b16 %v328
      %v468 = vunpack.c.h.b16 %v328
      %v469 = vunpack.c.l.b16 %v329
      %v470 = vunpack.c.h.b16 %v329
      %v471 = vunpack.c.l.b16 %v330
      %v472 = vunpack.c.h.b16 %v330
      %v473 = vunpack.c.l.b16 %v331
      %v474 = vunpack.c.h.b16 %v331
      %v475 = vunpack.c.l.b16 %v332
      %v476 = vunpack.c.h.b16 %v332
      %v477 = vpack.c.b16 %v447, %v445
      %v478 = vpack.c.b16 %v448, %v446
      %v479 = vpack.c.b16 %v451, %v449
      %v480 = vpack.c.b16 %v452, %v450
      %v481 = vpack.c.b16 %v455, %v453
      %v482 = vpack.c.b16 %v456, %v454
      %v483 = vpack.c.b16 %v459, %v457
      %v484 = vpack.c.b16 %v460, %v458
      %v485 = vpack.c.b16 %v463, %v461
      %v486 = vpack.c.b16 %v464, %v462
      %v487 = vpack.c.b16 %v467, %v465
      %v488 = vpack.c.b16 %v468, %v466
      %v489 = vpack.c.b16 %v471, %v469
      %v490 = vpack.c.b16 %v472, %v470
      %v491 = vpack.c.b16 %v475, %v473
      %v492 = vpack.c.b16 %v476, %v474
      %509 = vmatprep.subr.bf16.mxu0 0
      %510 = vmatpush1.bf16.msra.mxu0 %v308
      %511 = vmatprep.subr.bf16.mxu0 0
      %512 = vmatpush1.bf16.msra.mxu0 %v307
      %513 = vmatprep.subr.bf16.mxu0 0
      %514 = vmatpush1.bf16.msra.mxu0 %v306
      %515 = vmatprep.subr.bf16.mxu0 0
      %516 = vmatpush1.bf16.msra.mxu0 %v305
      %517 = vmatprep.subr.bf16.mxu0 0
      %518 = vmatpush1.bf16.msra.mxu0 %v304
      %519 = vmatprep.subr.bf16.mxu0 0
      %520 = vmatpush1.bf16.msra.mxu0 %v303
      %521 = vmatprep.subr.bf16.mxu0 0
      %522 = vmatpush1.bf16.msra.mxu0 %v302
      %523 = vmatprep.subr.bf16.mxu0 0
      %524 = vmatpush1.bf16.msra.mxu0 %v301
      %525 = vmatprep.subr.bf16.mxu0 0
      %526 = vmatpush2.bf16.msra.mxu0 %v316
      %527 = vmatprep.subr.bf16.mxu0 0
      %528 = vmatpush2.bf16.msra.mxu0 %v315
      %529 = vmatprep.subr.bf16.mxu0 0
      %530 = vmatpush2.bf16.msra.mxu0 %v314
      %531 = vmatprep.subr.bf16.mxu0 0
      %532 = vmatpush2.bf16.msra.mxu0 %v313
      %533 = vmatprep.subr.bf16.mxu0 0
      %534 = vmatpush2.bf16.msra.mxu0 %v312
      %535 = vmatprep.subr.bf16.mxu0 0
      %536 = vmatpush2.bf16.msra.mxu0 %v311
      %537 = vmatprep.subr.bf16.mxu0 0
      %538 = vmatpush2.bf16.msra.mxu0 %v310
      %539 = vmatprep.subr.bf16.mxu0 0
      %540 = vmatpush2.bf16.msra.mxu0 %v309
      %541 = vmatprep.mubr.bf16.mxu0 %v478
      %542 = vmatmul.mubr.bf16.gmra.mxu0 %v477
      %v543 = vpop.f32.mrf.mxu0
      %v544 = vadd.f32 %v352, %v543
      %v545 = vpop.f32.mrf.mxu0
      %v546 = vpop.f32.mrf.mxu0
      %v547 = vadd.f32 %v357, %v546
      %v548 = vpop.f32.mrf.mxu0
      %549 = vmatprep.mubr.bf16.mxu0 %v480
      %550 = vmatmul.mubr.bf16.gmra.mxu0 %v479
      %v551 = vpop.f32.mrf.mxu0
      %v552 = vadd.f32 %v362, %v551
      %v553 = vpop.f32.mrf.mxu0
      %v554 = vpop.f32.mrf.mxu0
      %v555 = vadd.f32 %v367, %v554
      %v556 = vpop.f32.mrf.mxu0
      %557 = vmatprep.mubr.bf16.mxu0 %v482
      %558 = vmatmul.mubr.bf16.gmra.mxu0 %v481
      %v559 = vpop.f32.mrf.mxu0
      %v560 = vadd.f32 %v372, %v559
      %v561 = vpop.f32.mrf.mxu0
      %v562 = vpop.f32.mrf.mxu0
      %v563 = vadd.f32 %v377, %v562
      %v564 = vpop.f32.mrf.mxu0
      %565 = vmatprep.mubr.bf16.mxu0 %v484
      %566 = vmatmul.mubr.bf16.gmra.mxu0 %v483
      %v567 = vpop.f32.mrf.mxu0
      %v568 = vadd.f32 %v382, %v567
      %v569 = vpop.f32.mrf.mxu0
      %v570 = vpop.f32.mrf.mxu0
      %v571 = vadd.f32 %v387, %v570
      %v572 = vpop.f32.mrf.mxu0
      %573 = vmatprep.mubr.bf16.mxu0 %v486
      %574 = vmatmul.mubr.bf16.gmra.mxu0 %v485
      %v575 = vpop.f32.mrf.mxu0
      %v576 = vadd.f32 %v392, %v575
      %v577 = vpop.f32.mrf.mxu0
      %v578 = vpop.f32.mrf.mxu0
      %v579 = vadd.f32 %v397, %v578
      %v580 = vpop.f32.mrf.mxu0
      %581 = vmatprep.mubr.bf16.mxu0 %v488
      %582 = vmatmul.mubr.bf16.gmra.mxu0 %v487
      %v583 = vpop.f32.mrf.mxu0
      %v584 = vadd.f32 %v402, %v583
      %v585 = vpop.f32.mrf.mxu0
      %v586 = vpop.f32.mrf.mxu0
      %v587 = vadd.f32 %v407, %v586
      %v588 = vpop.f32.mrf.mxu0
      %589 = vmatprep.mubr.bf16.mxu0 %v490
      %590 = vmatmul.mubr.bf16.gmra.mxu0 %v489
      %v591 = vpop.f32.mrf.mxu0
      %v592 = vadd.f32 %v412, %v591
      %v593 = vpop.f32.mrf.mxu0
      %v594 = vpop.f32.mrf.mxu0
      %v595 = vadd.f32 %v417, %v594
      %v596 = vpop.f32.mrf.mxu0
      %597 = vmatprep.mubr.bf16.mxu0 %v492
      %598 = vmatmul.mubr.bf16.gmra.mxu0 %v491
      %v599 = vpop.f32.mrf.mxu0
      %v600 = vadd.f32 %v422, %v599
      %v601 = vpop.f32.mrf.mxu0
      %v602 = vpop.f32.mrf.mxu0
      %v603 = vadd.f32 %v427, %v602
      %v604 = vpop.f32.mrf.mxu0
      %605 = vdwg.mxu0
      %v606 = vmax.f32 %v544, 0.0
      %v607 = vmax.f32 %v547, 0.0
      %v608 = vmax.f32 %v552, 0.0
      %v609 = vmax.f32 %v555, 0.0
      %v610 = vmax.f32 %v560, 0.0
      %v611 = vmax.f32 %v563, 0.0
      %v612 = vmax.f32 %v568, 0.0
      %v613 = vmax.f32 %v571, 0.0
      %v614 = vmax.f32 %v576, 0.0
      %v615 = vmax.f32 %v579, 0.0
      %v616 = vmax.f32 %v584, 0.0
      %v617 = vmax.f32 %v587, 0.0
      %v618 = vmax.f32 %v592, 0.0
      %v619 = vmax.f32 %v595, 0.0
      %v620 = vmax.f32 %v600, 0.0
      %v621 = vmax.f32 %v603, 0.0
      %v622 = vpack.c.bf16 %v607, %v606
      %v623 = vpack.c.bf16 %v609, %v608
      %v624 = vpack.c.bf16 %v611, %v610
      %v625 = vpack.c.bf16 %v613, %v612
      %v626 = vpack.c.bf16 %v615, %v614
      %v627 = vpack.c.bf16 %v617, %v616
      %v628 = vpack.c.bf16 %v619, %v618
      %v629 = vpack.c.bf16 %v621, %v620
      %v638 = vunpack.c.l.b16 %v622
      %v639 = vunpack.c.h.b16 %v622
      %v640 = vunpack.c.l.b16 %v623
      %v641 = vunpack.c.h.b16 %v623
      %v642 = vunpack.c.l.b16 %v624
      %v643 = vunpack.c.h.b16 %v624
      %v644 = vunpack.c.l.b16 %v625
      %v645 = vunpack.c.h.b16 %v625
      %v646 = vunpack.c.l.b16 %v626
      %v647 = vunpack.c.h.b16 %v626
      %v648 = vunpack.c.l.b16 %v627
      %v649 = vunpack.c.h.b16 %v627
      %v650 = vunpack.c.l.b16 %v628
      %v651 = vunpack.c.h.b16 %v628
      %v652 = vunpack.c.l.b16 %v629
      %v653 = vunpack.c.h.b16 %v629
      %v654 = vpack.c.b16 %v638, %v638
      %v655 = vpack.c.b16 %v639, %v639
      %v656 = vpack.c.b16 %v640, %v640
      %v657 = vpack.c.b16 %v641, %v641
      %v658 = vpack.c.b16 %v642, %v642
      %v659 = vpack.c.b16 %v643, %v643
      %v660 = vpack.c.b16 %v644, %v644
      %v661 = vpack.c.b16 %v645, %v645
      %v662 = vpack.c.b16 %v646, %v646
      %v663 = vpack.c.b16 %v647, %v647
      %v664 = vpack.c.b16 %v648, %v648
      %v665 = vpack.c.b16 %v649, %v649
      %v666 = vpack.c.b16 %v650, %v650
      %v667 = vpack.c.b16 %v651, %v651
      %v668 = vpack.c.b16 %v652, %v652
      %v669 = vpack.c.b16 %v653, %v653
      %vm686 = vcmask 519168
      %687 = vst.msk [vmem:[%s170] sm:$0xf] %vm686, %v654
      %688 = vst.msk [vmem:[%s170 + $0x4] sm:$0xf] %vm686, %v655
      %689 = vst.msk [vmem:[%s170 + $0x8] sm:$0xf] %vm686, %v656
      %690 = vst.msk [vmem:[%s170 + $0xc] sm:$0xf] %vm686, %v657
      %691 = vst.msk [vmem:[%s170 + $0x10] sm:$0xf] %vm686, %v658
      %692 = vst.msk [vmem:[%s170 + $0x14] sm:$0xf] %vm686, %v659
      %693 = vst.msk [vmem:[%s170 + $0x18] sm:$0xf] %vm686, %v660
      %694 = vst.msk [vmem:[%s170 + $0x1c] sm:$0xf] %vm686, %v661
      %695 = vst.msk [vmem:[%s170 + $0x20] sm:$0xf] %vm686, %v662
      %696 = vst.msk [vmem:[%s170 + $0x24] sm:$0xf] %vm686, %v663
      %697 = vst.msk [vmem:[%s170 + $0x28] sm:$0xf] %vm686, %v664
      %698 = vst.msk [vmem:[%s170 + $0x2c] sm:$0xf] %vm686, %v665
      %699 = vst.msk [vmem:[%s170 + $0x30] sm:$0xf] %vm686, %v666
      %700 = vst.msk [vmem:[%s170 + $0x34] sm:$0xf] %vm686, %v667
      %701 = vst.msk [vmem:[%s170 + $0x38] sm:$0xf] %vm686, %v668
      %702 = vst.msk [vmem:[%s170 + $0x3c] sm:$0xf] %vm686, %v669
      %p703 = scmp.lt.s32.totalorder %s14, 1
      %s704 = scalar_select %p703, %s14, 1
      %s705 = smul.addr %s704, 16
      %s706 = smul.addr %s705, 4
      %s707 = scalar_lea.vmem %s3, %s706
      // Predicated region
      $region33: #{autoencoder_forward.10} parent=31 // pred_check
        %p708 = pneg %p100
      $region34: #{autoencoder_forward.10} parent=31 // pred_check_branch
        %710 = sbr.rel (%p708) target = $region36
      $region35: #{autoencoder_forward.10} parent=31 // pred_region
        _
      $region36: #{autoencoder_forward.10} parent=31 // pred_fallthru
        _
    $region32: #{autoencoder_forward.10} parent=5 // pred_fallthru
      _
    %p711 = scmp.le.s32.totalorder 2, %s9
    // Predicated region
    $region37: #{autoencoder_forward.10} parent=5 // pred_check
      %p712 = pneg %p711
    $region38: #{autoencoder_forward.10} parent=5 // pred_check_branch
      %714 = sbr.rel (%p712) target = $region40
    $region39: #{autoencoder_forward.10} parent=5 // pred_region
      %s715 = ssub.s32 %s9, 2
      // Predicated region
      $region41: #{autoencoder_forward.10} parent=39 // pred_check
        %p716 = pneg %p106
      $region42: #{autoencoder_forward.10} parent=39 // pred_check_branch
        %718 = sbr.rel (%p716) target = $region44
      $region43: #{autoencoder_forward.10} parent=39 // pred_region
        %p719 = scmp.lt.s32.totalorder %s15, 1
        %s720 = scalar_select %p719, %s15, 1
        %s721 = smul.addr %s720, 16
        %s722 = smul.addr %s721, 4
        %s723 = scalar_lea.vmem %s3, %s722
      $region44: #{autoencoder_forward.10} parent=39 // pred_fallthru
        _
    $region40: #{autoencoder_forward.10} parent=5 // pred_fallthru
      _
  $region6: #{autoencoder_forward.10} parent=0 // loop_footer
    %s13 = sadd.s32 1, %s9
  $region7: #{autoencoder_forward.10} parent=0 // loop_footer_branch
    %8 = sbr.rel target = $region3
  $region8: #{autoencoder_forward.10} parent=0 // loop_exit
    _

// kernel: autoencoder_forward.11
$region0: #{autoencoder_forward.11}
  #allocation0 [shape = 'u32[]', space=smem, size = 0x4, offset = 0x4, fixed_abs, tag = 'smem constant byte address 0x4 - core index']
  #allocation1 [shape = 'u32[144,128]{1,0:T(1,128)}', space=vmem, size = 0x12000, scoped, tag = 'internal scratch']
  %s0 = inlined_call_operand.vmem [shape: bf16[2,32,290], index: 0, kind: input, shape index: {}]
  %s1 = inlined_call_operand.vmem [shape: bf16[3,288], index: 1, kind: input, shape index: {}]
  %s2 = inlined_call_operand.vmem [shape: f32[3,1], index: 2, kind: input, shape index: {}]
  %s3 = inlined_call_operand.vmem [shape: f32[2,3,256], index: 3, kind: output, shape index: {}]
  %s4 = sld [smem:[#allocation0]]
  $region45: #{autoencoder_forward.11} parent=0
    _
  %s6 = ssub.s32 1, %s4
  %s7 = scalar_select 0, %s6, %s4
  loop: start=0, step=1, limit=4
  $region2: #{autoencoder_forward.11} parent=0 // loop_pre_header
    _
  $region3: #{autoencoder_forward.11} parent=0 // loop_header
    %s9 = sphi 0, %s13
    %p10 = scmp.ge.s32.totalorder %s9, 4
    %s19 = sphi 0, %s21
    %s22 = sphi 0, %s19
    %s23 = sphi 0, %s22
    %s39 = sphi 0, %s23
    %s43 = sphi 0, %s43
    %s45 = sphi 0, %s43
    %s46 = sphi 0, %s45
    %s60 = sphi 0, %s46
    %s64 = sphi 0, %s64
    %s66 = sphi 0, %s64
    %s67 = sphi 0, %s66
    %s81 = sphi 0, %s67
    %s87 = sphi 0, %s89
    %s90 = sphi 0, %s87
    %s91 = sphi 0, %s90
    %s107 = sphi 0, %s91
  $region4: #{autoencoder_forward.11} parent=0 // loop_header_branch
    %12 = sbr.rel (%p10) target = $region8
  $region5: #{autoencoder_forward.11} parent=0 // loop_body
    %s14 = ssub.s32 %s9, 1
    %s15 = ssub.s32 %s9, 2
    %s16 = sadd.s32 %s9, 1
    %s17 = ssub.s32 %s9, %s16
    %p18 = scmp.eq.s32.totalorder %s17, 0
    %s20 = sadd.s32 %s19, 1
    %s21 = scalar_select %p18, %s19, %s20
    %p24 = pneg %p18
    %p25 = scmp.eq.s32.totalorder %s9, 1
    %p26 = por %p24, %p25
    %p27 = scmp.ne.s32.totalorder %s19, %s22
    %p28 = scmp.eq.s32.totalorder %s9, 0
    %p29 = por %p27, %p28
    %p30 = scmp.ne.s32.totalorder %s19, %s22
    %p31 = scmp.eq.s32.totalorder %s14, 1
    %p32 = por %p30, %p31
    %p33 = scmp.ne.s32.totalorder %s22, %s23
    %p34 = scmp.eq.s32.totalorder %s14, 0
    %p35 = por %p33, %p34
    %p36 = scmp.ne.s32.totalorder %s22, %s23
    %p37 = scmp.eq.s32.totalorder %s15, 1
    %p38 = por %p36, %p37
    %p40 = scmp.ne.s32.totalorder %s23, %s39
    %p41 = scmp.eq.s32.totalorder %s15, 0
    %p42 = por %p40, %p41
    %s44 = sadd.s32 %s43, 1
    %p47 = scmp.eq.s32.totalorder %s9, 1
    %p48 = scmp.ne.s32.totalorder %s43, %s45
    %p49 = scmp.eq.s32.totalorder %s9, 0
    %p50 = por %p48, %p49
    %p51 = scmp.ne.s32.totalorder %s43, %s45
    %p52 = scmp.eq.s32.totalorder %s14, 1
    %p53 = por %p51, %p52
    %p54 = scmp.ne.s32.totalorder %s45, %s46
    %p55 = scmp.eq.s32.totalorder %s14, 0
    %p56 = por %p54, %p55
    %p57 = scmp.ne.s32.totalorder %s45, %s46
    %p58 = scmp.eq.s32.totalorder %s15, 1
    %p59 = por %p57, %p58
    %p61 = scmp.ne.s32.totalorder %s46, %s60
    %p62 = scmp.eq.s32.totalorder %s15, 0
    %p63 = por %p61, %p62
    %s65 = sadd.s32 %s64, 1
    %p68 = scmp.eq.s32.totalorder %s9, 1
    %p69 = scmp.ne.s32.totalorder %s64, %s66
    %p70 = scmp.eq.s32.totalorder %s9, 0
    %p71 = por %p69, %p70
    %p72 = scmp.ne.s32.totalorder %s64, %s66
    %p73 = scmp.eq.s32.totalorder %s14, 1
    %p74 = por %p72, %p73
    %p75 = scmp.ne.s32.totalorder %s66, %s67
    %p76 = scmp.eq.s32.totalorder %s14, 0
    %p77 = por %p75, %p76
    %p78 = scmp.ne.s32.totalorder %s66, %s67
    %p79 = scmp.eq.s32.totalorder %s15, 1
    %p80 = por %p78, %p79
    %p82 = scmp.ne.s32.totalorder %s67, %s81
    %p83 = scmp.eq.s32.totalorder %s15, 0
    %p84 = por %p82, %p83
    %s85 = ssub.s32 %s9, %s16
    %p86 = scmp.eq.s32.totalorder %s85, 0
    %s88 = sadd.s32 %s87, 1
    %s89 = scalar_select %p86, %s87, %s88
    %p92 = pneg %p86
    %p93 = scmp.eq.s32.totalorder %s9, 1
    %p94 = por %p92, %p93
    %p95 = scmp.ne.s32.totalorder %s87, %s90
    %p96 = scmp.eq.s32.totalorder %s9, 0
    %p97 = por %p95, %p96
    %p98 = scmp.ne.s32.totalorder %s87, %s90
    %p99 = scmp.eq.s32.totalorder %s14, 1
    %p100 = por %p98, %p99
    %p101 = scmp.ne.s32.totalorder %s90, %s91
    %p102 = scmp.eq.s32.totalorder %s14, 0
    %p103 = por %p101, %p102
    %p104 = scmp.ne.s32.totalorder %s90, %s91
    %p105 = scmp.eq.s32.totalorder %s15, 1
    %p106 = por %p104, %p105
    %p108 = scmp.ne.s32.totalorder %s91, %s107
    %p109 = scmp.eq.s32.totalorder %s15, 0
    %p110 = por %p108, %p109
    %p111 = scmp.le.s32.totalorder 1, %s9
    %p112 = scmp.lt.s32.totalorder %s9, 3
    %p113 = pnand %p111, %p112
    %p114 = pneg %p113
    // Predicated region
    $region9: #{autoencoder_forward.11} parent=5 // pred_check
      _
    $region10: #{autoencoder_forward.11} parent=5 // pred_check_branch
      %116 = sbr.rel (%p113) target = $region12
    $region11: #{autoencoder_forward.11} parent=5 // pred_region
      %s117 = ssub.s32 %s9, 1
      // Predicated region
      $region13: #{autoencoder_forward.11} parent=11 // pred_check
        %p118 = pneg %p56
      $region14: #{autoencoder_forward.11} parent=11 // pred_check_branch
        %120 = sbr.rel (%p118) target = $region16
      $region15: #{autoencoder_forward.11} parent=11 // pred_region
        _
      $region16: #{autoencoder_forward.11} parent=11 // pred_fallthru
        _
      // Predicated region
      $region17: #{autoencoder_forward.11} parent=11 // pred_check
        %p121 = pneg %p77
      $region18: #{autoencoder_forward.11} parent=11 // pred_check_branch
        %123 = sbr.rel (%p121) target = $region20
      $region19: #{autoencoder_forward.11} parent=11 // pred_region
        _
      $region20: #{autoencoder_forward.11} parent=11 // pred_fallthru
        _
    $region12: #{autoencoder_forward.11} parent=5 // pred_fallthru
      _
    %p124 = scmp.lt.s32.totalorder %s9, 2
    // Predicated region
    $region21: #{autoencoder_forward.11} parent=5 // pred_check
      %p125 = pneg %p124
    $region22: #{autoencoder_forward.11} parent=5 // pred_check_branch
      %127 = sbr.rel (%p125) target = $region24
    $region23: #{autoencoder_forward.11} parent=5 // pred_region
      // Predicated region
      $region25: #{autoencoder_forward.11} parent=23 // pred_check
        %p128 = pneg %p29
      $region26: #{autoencoder_forward.11} parent=23 // pred_check_branch
        %130 = sbr.rel (%p128) target = $region28
      $region27: #{autoencoder_forward.11} parent=23 // pred_region
        %p131 = scmp.lt.s32.totalorder %s9, 1
        %s132 = scalar_select %p131, %s9, 1
        %s133 = smul.addr %s132, 12
        %s134 = smul.addr %s133, 4
        %s135 = scalar_lea.vmem %s0, %s134
      $region28: #{autoencoder_forward.11} parent=23 // pred_fallthru
        _
    $region24: #{autoencoder_forward.11} parent=5 // pred_fallthru
      _
    %p136 = scmp.le.s32.totalorder 1, %s9
    %p137 = scmp.lt.s32.totalorder %s9, 3
    %p138 = pnand %p136, %p137
    %p139 = pneg %p138
    // Predicated region
    $region29: #{autoencoder_forward.11} parent=5 // pred_check
      _
    $region30: #{autoencoder_forward.11} parent=5 // pred_check_branch
      %141 = sbr.rel (%p138) target = $region32
    $region31: #{autoencoder_forward.11} parent=5 // pred_region
      %s142 = ssub.s32 %s9, 1
      %p143 = scmp.lt.s32.totalorder %s14, 1
      %s144 = scalar_select %p143, %s14, 1
      %s145 = smul.addr %s144, 12
      %s146 = smul.addr %s145, 4
      %s147 = scalar_lea.vmem %s0, %s146
      %p148 = pneg %p35
      %p149 = pneg %p32
      %p150 = pneg %p56
      %p151 = pneg %p53
      %p152 = pneg %p77
      %p153 = pneg %p74
      %p154 = pneg %p103
      %p155 = pneg %p100
      %p156 = scmp.lt.s32.totalorder %s14, 1
      %s157 = scalar_select %p156, %s14, 1
      %s158 = smul.addr %s157, 2
      %s159 = smul.addr %s158, 4
      %s160 = scalar_lea.vmem %s3, %s159
      %p161 = scmp.lt.s32.totalorder %s14, 1
      %s162 = scalar_select %p161, %s14, 1
      %s163 = smul.addr %s162, 12
      %s164 = smul.addr %s163, 4
      %s165 = scalar_lea.vmem %s0, %s164
      %p166 = scmp.lt.s32.totalorder %s14, 1
      %s167 = scalar_select %p166, %s14, 1
      %s168 = smul.addr %s167, 2
      %s169 = smul.addr %s168, 4
      %s170 = scalar_lea.vmem %s3, %s169
      %v172 = vld [vmem:[%s165] sm:$0xff]
      %v173 = vld [vmem:[%s165 + $0x8] sm:$0xf]
      %v174 = vld [vmem:[%s165 + $0xc] sm:$0xff]
      %v175 = vld [vmem:[%s165 + $0x14] sm:$0xf]
      %v176 = vld [vmem:[%s165 + $0x18] sm:$0xff]
      %v177 = vld [vmem:[%s165 + $0x20] sm:$0xf]
      %v178 = vld [vmem:[%s165 + $0x24] sm:$0xff]
      %v179 = vld [vmem:[%s165 + $0x2c] sm:$0xf]
      %v180 = vunpack.c.l.bf16 %v172
      %v181 = vunpack.c.h.bf16 %v172
      %v182 = vunpack.c.l.bf16 %v173
      %v183 = vunpack.c.l.bf16 %v174
      %v184 = vunpack.c.h.bf16 %v174
      %v185 = vunpack.c.l.bf16 %v175
      %v186 = vunpack.c.l.bf16 %v176
      %v187 = vunpack.c.h.bf16 %v176
      %v188 = vunpack.c.l.bf16 %v177
      %v189 = vunpack.c.l.bf16 %v178
      %v190 = vunpack.c.h.bf16 %v178
      %v191 = vunpack.c.l.bf16 %v179
      %v192 = vlaneseq
      %v193 = vand.u32 %v192, 127
      %v194 = vadd.s32 %v193, 128
      %vm195 = vcmp.lt.s32.totalorder %v193, 0
      %v196 = vsub.s32 0, %v193
      %v197 = vsel %vm195, %v196, %v193
      %v198 = vshrl.u32 %v197, 4
      %v199 = vand.u32 %v197, 15
      %v200 = vsub.s32 0, %v199
      %v201 = vsel %vm195, %v200, %v199
      %vm202 = vcmp.lt.s32.totalorder %v194, 0
      %v203 = vsub.s32 0, %v194
      %v204 = vsel %vm202, %v203, %v194
      %v205 = vshrl.u32 %v204, 4
      %v206 = vand.u32 %v204, 15
      %v207 = vsub.s32 0, %v206
      %v208 = vsel %vm202, %v207, %v206
      %vm209 = vcmp.ne.s32.totalorder %v201, 0
      %vm210 = vcmp.ne.s32.totalorder %v208, 0
      %vm211 = vcmp.lt.s32.totalorder %v201, 0
      %vm212 = vcmp.lt.s32.totalorder %v208, 0
      %vm213 = vmand %vm211, %vm209
      %vm214 = vmand %vm212, %vm210
      %v215 = vadd.s32 %v201, 16
      %v216 = vadd.s32 %v208, 16
      %v217 = vsel %vm213, %v215, %v201
      %v218 = vsel %vm214, %v216, %v208
      %vm219 = vcmp.ge.s32.totalorder %v217, 1
      %vm220 = vcmp.ge.s32.totalorder %v218, 1
      %vm221 = vcmp.lt.s32.totalorder %v217, 17
      %vm222 = vcmp.lt.s32.totalorder %v218, 17
      %vm223 = vmand %vm219, %vm221
      %vm224 = vmand %vm220, %vm222
      %vm225 = vcmp.ge.s32.totalorder %v217, 4294967295
      %vm226 = vcmp.ge.s32.totalorder %v218, 4294967295
      %vm227 = vcmp.lt.s32.totalorder %v217, 15
      %vm228 = vcmp.lt.s32.totalorder %v218, 15
      %vm229 = vmand %vm225, %vm227
      %vm230 = vmand %vm226, %vm228
      %v231 = vsel %vm223, %v180, 0.0
      %v232 = vsel %vm224, %v181, 0.0
      %v233 = vsel %vm223, %v183, 0.0
      %v234 = vsel %vm224, %v184, 0.0
      %v235 = vsel %vm223, %v186, 0.0
      %v236 = vsel %vm224, %v187, 0.0
      %v237 = vsel %vm223, %v189, 0.0
      %v238 = vsel %vm224, %v190, 0.0
      %251 = vrot.lane.b32.xlu0 %v180, 126
      %v252 = vpop.permute.xlu0 %251
      %253 = vrot.lane.b32.xlu0 %v181, 126
      %v254 = vpop.permute.xlu0 %253
      %255 = vrot.lane.b32.xlu0 %v182, 126
      %v256 = vpop.permute.xlu0 %255
      %257 = vrot.lane.b32.xlu0 %v183, 126
      %v258 = vpop.permute.xlu0 %257
      %259 = vrot.lane.b32.xlu0 %v184, 126
      %v260 = vpop.permute.xlu0 %259
      %261 = vrot.lane.b32.xlu0 %v185, 126
      %v262 = vpop.permute.xlu0 %261
      %263 = vrot.lane.b32.xlu0 %v186, 126
      %v264 = vpop.permute.xlu0 %263
      %265 = vrot.lane.b32.xlu0 %v187, 126
      %v266 = vpop.permute.xlu0 %265
      %267 = vrot.lane.b32.xlu0 %v188, 126
      %v268 = vpop.permute.xlu0 %267
      %269 = vrot.lane.b32.xlu0 %v189, 126
      %v270 = vpop.permute.xlu0 %269
      %271 = vrot.lane.b32.xlu0 %v190, 126
      %v272 = vpop.permute.xlu0 %271
      %273 = vrot.lane.b32.xlu0 %v191, 126
      %v274 = vpop.permute.xlu0 %273
      %vm275 = vcmask 1031168
      %v276 = vsel %vm275, %v252, %v254
      %v277 = vsel %vm275, %v254, %v256
      %v278 = vsel %vm275, %v258, %v260
      %v279 = vsel %vm275, %v260, %v262
      %v280 = vsel %vm275, %v264, %v266
      %v281 = vsel %vm275, %v266, %v268
      %v282 = vsel %vm275, %v270, %v272
      %v283 = vsel %vm275, %v272, %v274
      %v292 = vsel %vm229, %v276, 0.0
      %v293 = vsel %vm230, %v277, 0.0
      %v294 = vsel %vm229, %v278, 0.0
      %v295 = vsel %vm230, %v279, 0.0
      %v296 = vsel %vm229, %v280, 0.0
      %v297 = vsel %vm230, %v281, 0.0
      %v298 = vsel %vm229, %v282, 0.0
      %v299 = vsel %vm230, %v283, 0.0
      %300 = vrot.lane.b32.xlu0 %v180, 112
      %v301 = vpop.permute.xlu0 %300
      %302 = vrot.lane.b32.xlu0 %v181, 112
      %v303 = vpop.permute.xlu0 %302
      %304 = vrot.lane.b32.xlu0 %v182, 112
      %v305 = vpop.permute.xlu0 %304
      %306 = vrot.lane.b32.xlu0 %v183, 112
      %v307 = vpop.permute.xlu0 %306
      %308 = vrot.lane.b32.xlu0 %v184, 112
      %v309 = vpop.permute.xlu0 %308
      %310 = vrot.lane.b32.xlu0 %v185, 112
      %v311 = vpop.permute.xlu0 %310
      %312 = vrot.lane.b32.xlu0 %v186, 112
      %v313 = vpop.permute.xlu0 %312
      %314 = vrot.lane.b32.xlu0 %v187, 112
      %v315 = vpop.permute.xlu0 %314
      %316 = vrot.lane.b32.xlu0 %v188, 112
      %v317 = vpop.permute.xlu0 %316
      %318 = vrot.lane.b32.xlu0 %v189, 112
      %v319 = vpop.permute.xlu0 %318
      %320 = vrot.lane.b32.xlu0 %v190, 112
      %v321 = vpop.permute.xlu0 %320
      %322 = vrot.lane.b32.xlu0 %v191, 112
      %v323 = vpop.permute.xlu0 %322
      %vm324 = vcmask 916480
      %v325 = vsel %vm324, %v301, %v303
      %v326 = vsel %vm324, %v303, %v305
      %v327 = vsel %vm324, %v307, %v309
      %v328 = vsel %vm324, %v309, %v311
      %v329 = vsel %vm324, %v313, %v315
      %v330 = vsel %vm324, %v315, %v317
      %v331 = vsel %vm324, %v319, %v321
      %v332 = vsel %vm324, %v321, %v323
      %v341 = vsel %vm223, %v325, 0.0
      %v342 = vsel %vm224, %v326, 0.0
      %v343 = vsel %vm223, %v327, 0.0
      %v344 = vsel %vm224, %v328, 0.0
      %v345 = vsel %vm223, %v329, 0.0
      %v346 = vsel %vm224, %v330, 0.0
      %v347 = vsel %vm223, %v331, 0.0
      %v348 = vsel %vm224, %v332, 0.0
      %349 = vrot.lane.b32.xlu0 %v180, 110
      %v350 = vpop.permute.xlu0 %349
      %351 = vrot.lane.b32.xlu0 %v181, 110
      %v352 = vpop.permute.xlu0 %351
      %353 = vrot.lane.b32.xlu0 %v182, 110
      %v354 = vpop.permute.xlu0 %353
      %355 = vrot.lane.b32.xlu0 %v183, 110
      %v356 = vpop.permute.xlu0 %355
      %357 = vrot.lane.b32.xlu0 %v184, 110
      %v358 = vpop.permute.xlu0 %357
      %359 = vrot.lane.b32.xlu0 %v185, 110
      %v360 = vpop.permute.xlu0 %359
      %361 = vrot.lane.b32.xlu0 %v186, 110
      %v362 = vpop.permute.xlu0 %361
      %363 = vrot.lane.b32.xlu0 %v187, 110
      %v364 = vpop.permute.xlu0 %363
      %365 = vrot.lane.b32.xlu0 %v188, 110
      %v366 = vpop.permute.xlu0 %365
      %367 = vrot.lane.b32.xlu0 %v189, 110
      %v368 = vpop.permute.xlu0 %367
      %369 = vrot.lane.b32.xlu0 %v190, 110
      %v370 = vpop.permute.xlu0 %369
      %371 = vrot.lane.b32.xlu0 %v191, 110
      %v372 = vpop.permute.xlu0 %371
      %vm373 = vcmask 900096
      %v374 = vsel %vm373, %v350, %v352
      %v375 = vsel %vm373, %v352, %v354
      %v376 = vsel %vm373, %v356, %v358
      %v377 = vsel %vm373, %v358, %v360
      %v378 = vsel %vm373, %v362, %v364
      %v379 = vsel %vm373, %v364, %v366
      %v380 = vsel %vm373, %v368, %v370
      %v381 = vsel %vm373, %v370, %v372
      %v390 = vsel %vm229, %v374, 0.0
      %v391 = vsel %vm230, %v375, 0.0
      %v392 = vsel %vm229, %v376, 0.0
      %v393 = vsel %vm230, %v377, 0.0
      %v394 = vsel %vm229, %v378, 0.0
      %v395 = vsel %vm230, %v379, 0.0
      %v396 = vsel %vm229, %v380, 0.0
      %v397 = vsel %vm230, %v381, 0.0
      %398 = vrot.lane.b32.xlu0 %v180, 96
      %v399 = vpop.permute.xlu0 %398
      %400 = vrot.lane.b32.xlu0 %v181, 96
      %v401 = vpop.permute.xlu0 %400
      %402 = vrot.lane.b32.xlu0 %v182, 96
      %v403 = vpop.permute.xlu0 %402
      %404 = vrot.lane.b32.xlu0 %v183, 96
      %v405 = vpop.permute.xlu0 %404
      %406 = vrot.lane.b32.xlu0 %v184, 96
      %v407 = vpop.permute.xlu0 %406
      %408 = vrot.lane.b32.xlu0 %v185, 96
      %v409 = vpop.permute.xlu0 %408
      %410 = vrot.lane.b32.xlu0 %v186, 96
      %v411 = vpop.permute.xlu0 %410
      %412 = vrot.lane.b32.xlu0 %v187, 96
      %v413 = vpop.permute.xlu0 %412
      %414 = vrot.lane.b32.xlu0 %v188, 96
      %v415 = vpop.permute.xlu0 %414
      %416 = vrot.lane.b32.xlu0 %v189, 96
      %v417 = vpop.permute.xlu0 %416
      %418 = vrot.lane.b32.xlu0 %v190, 96
      %v419 = vpop.permute.xlu0 %418
      %420 = vrot.lane.b32.xlu0 %v191, 96
      %v421 = vpop.permute.xlu0 %420
      %vm422 = vcmask 785408
      %v423 = vsel %vm422, %v399, %v401
      %v424 = vsel %vm422, %v401, %v403
      %v425 = vsel %vm422, %v405, %v407
      %v426 = vsel %vm422, %v407, %v409
      %v427 = vsel %vm422, %v411, %v413
      %v428 = vsel %vm422, %v413, %v415
      %v429 = vsel %vm422, %v417, %v419
      %v430 = vsel %vm422, %v419, %v421
      %v439 = vsel %vm223, %v423, 0.0
      %v440 = vsel %vm224, %v424, 0.0
      %v441 = vsel %vm223, %v425, 0.0
      %v442 = vsel %vm224, %v426, 0.0
      %v443 = vsel %vm223, %v427, 0.0
      %v444 = vsel %vm224, %v428, 0.0
      %v445 = vsel %vm223, %v429, 0.0
      %v446 = vsel %vm224, %v430, 0.0
      %447 = vrot.lane.b32.xlu0 %v180, 94
      %v448 = vpop.permute.xlu0 %447
      %449 = vrot.lane.b32.xlu0 %v181, 94
      %v450 = vpop.permute.xlu0 %449
      %451 = vrot.lane.b32.xlu0 %v182, 94
      %v452 = vpop.permute.xlu0 %451
      %453 = vrot.lane.b32.xlu0 %v183, 94
      %v454 = vpop.permute.xlu0 %453
      %455 = vrot.lane.b32.xlu0 %v184, 94
      %v456 = vpop.permute.xlu0 %455
      %457 = vrot.lane.b32.xlu0 %v185, 94
      %v458 = vpop.permute.xlu0 %457
      %459 = vrot.lane.b32.xlu0 %v186, 94
      %v460 = vpop.permute.xlu0 %459
      %461 = vrot.lane.b32.xlu0 %v187, 94
      %v462 = vpop.permute.xlu0 %461
      %463 = vrot.lane.b32.xlu0 %v188, 94
      %v464 = vpop.permute.xlu0 %463
      %465 = vrot.lane.b32.xlu0 %v189, 94
      %v466 = vpop.permute.xlu0 %465
      %467 = vrot.lane.b32.xlu0 %v190, 94
      %v468 = vpop.permute.xlu0 %467
      %469 = vrot.lane.b32.xlu0 %v191, 94
      %v470 = vpop.permute.xlu0 %469
      %vm471 = vcmask 769024
      %v472 = vsel %vm471, %v448, %v450
      %v473 = vsel %vm471, %v450, %v452
      %v474 = vsel %vm471, %v454, %v456
      %v475 = vsel %vm471, %v456, %v458
      %v476 = vsel %vm471, %v460, %v462
      %v477 = vsel %vm471, %v462, %v464
      %v478 = vsel %vm471, %v466, %v468
      %v479 = vsel %vm471, %v468, %v470
      %v488 = vsel %vm229, %v472, 0.0
      %v489 = vsel %vm230, %v473, 0.0
      %v490 = vsel %vm229, %v474, 0.0
      %v491 = vsel %vm230, %v475, 0.0
      %v492 = vsel %vm229, %v476, 0.0
      %v493 = vsel %vm230, %v477, 0.0
      %v494 = vsel %vm229, %v478, 0.0
      %v495 = vsel %vm230, %v479, 0.0
      %496 = vrot.lane.b32.xlu0 %v180, 127
      %v497 = vpop.permute.xlu0 %496
      %498 = vrot.lane.b32.xlu0 %v181, 127
      %v499 = vpop.permute.xlu0 %498
      %500 = vrot.lane.b32.xlu0 %v182, 127
      %v501 = vpop.permute.xlu0 %500
      %502 = vrot.lane.b32.xlu0 %v183, 127
      %v503 = vpop.permute.xlu0 %502
      %504 = vrot.lane.b32.xlu0 %v184, 127
      %v505 = vpop.permute.xlu0 %504
      %506 = vrot.lane.b32.xlu0 %v185, 127
      %v507 = vpop.permute.xlu0 %506
      %508 = vrot.lane.b32.xlu0 %v186, 127
      %v509 = vpop.permute.xlu0 %508
      %510 = vrot.lane.b32.xlu0 %v187, 127
      %v511 = vpop.permute.xlu0 %510
      %512 = vrot.lane.b32.xlu0 %v188, 127
      %v513 = vpop.permute.xlu0 %512
      %514 = vrot.lane.b32.xlu0 %v189, 127
      %v515 = vpop.permute.xlu0 %514
      %516 = vrot.lane.b32.xlu0 %v190, 127
      %v517 = vpop.permute.xlu0 %516
      %518 = vrot.lane.b32.xlu0 %v191, 127
      %v519 = vpop.permute.xlu0 %518
      %vm520 = vcmask 1039360
      %v521 = vsel %vm520, %v497, %v499
      %v522 = vsel %vm520, %v499, %v501
      %v523 = vsel %vm520, %v503, %v505
      %v524 = vsel %vm520, %v505, %v507
      %v525 = vsel %vm520, %v509, %v511
      %v526 = vsel %vm520, %v511, %v513
      %v527 = vsel %vm520, %v515, %v517
      %v528 = vsel %vm520, %v517, %v519
      %537 = vrot.lane.b32.xlu0 %v180, 111
      %v538 = vpop.permute.xlu0 %537
      %539 = vrot.lane.b32.xlu0 %v181, 111
      %v540 = vpop.permute.xlu0 %539
      %541 = vrot.lane.b32.xlu0 %v182, 111
      %v542 = vpop.permute.xlu0 %541
      %543 = vrot.lane.b32.xlu0 %v183, 111
      %v544 = vpop.permute.xlu0 %543
      %545 = vrot.lane.b32.xlu0 %v184, 111
      %v546 = vpop.permute.xlu0 %545
      %547 = vrot.lane.b32.xlu0 %v185, 111
      %v548 = vpop.permute.xlu0 %547
      %549 = vrot.lane.b32.xlu0 %v186, 111
      %v550 = vpop.permute.xlu0 %549
      %551 = vrot.lane.b32.xlu0 %v187, 111
      %v552 = vpop.permute.xlu0 %551
      %553 = vrot.lane.b32.xlu0 %v188, 111
      %v554 = vpop.permute.xlu0 %553
      %555 = vrot.lane.b32.xlu0 %v189, 111
      %v556 = vpop.permute.xlu0 %555
      %557 = vrot.lane.b32.xlu0 %v190, 111
      %v558 = vpop.permute.xlu0 %557
      %559 = vrot.lane.b32.xlu0 %v191, 111
      %v560 = vpop.permute.xlu0 %559
      %vm561 = vcmask 908288
      %v562 = vsel %vm561, %v538, %v540
      %v563 = vsel %vm561, %v540, %v542
      %v564 = vsel %vm561, %v544, %v546
      %v565 = vsel %vm561, %v546, %v548
      %v566 = vsel %vm561, %v550, %v552
      %v567 = vsel %vm561, %v552, %v554
      %v568 = vsel %vm561, %v556, %v558
      %v569 = vsel %vm561, %v558, %v560
      %578 = vrot.lane.b32.xlu0 %v180, 95
      %v579 = vpop.permute.xlu0 %578
      %580 = vrot.lane.b32.xlu0 %v181, 95
      %v581 = vpop.permute.xlu0 %580
      %582 = vrot.lane.b32.xlu0 %v182, 95
      %v583 = vpop.permute.xlu0 %582
      %584 = vrot.lane.b32.xlu0 %v183, 95
      %v585 = vpop.permute.xlu0 %584
      %586 = vrot.lane.b32.xlu0 %v184, 95
      %v587 = vpop.permute.xlu0 %586
      %588 = vrot.lane.b32.xlu0 %v185, 95
      %v589 = vpop.permute.xlu0 %588
      %590 = vrot.lane.b32.xlu0 %v186, 95
      %v591 = vpop.permute.xlu0 %590
      %592 = vrot.lane.b32.xlu0 %v187, 95
      %v593 = vpop.permute.xlu0 %592
      %594 = vrot.lane.b32.xlu0 %v188, 95
      %v595 = vpop.permute.xlu0 %594
      %596 = vrot.lane.b32.xlu0 %v189, 95
      %v597 = vpop.permute.xlu0 %596
      %598 = vrot.lane.b32.xlu0 %v190, 95
      %v599 = vpop.permute.xlu0 %598
      %600 = vrot.lane.b32.xlu0 %v191, 95
      %v601 = vpop.permute.xlu0 %600
      %vm602 = vcmask 777216
      %v603 = vsel %vm602, %v579, %v581
      %v604 = vsel %vm602, %v581, %v583
      %v605 = vsel %vm602, %v585, %v587
      %v606 = vsel %vm602, %v587, %v589
      %v607 = vsel %vm602, %v591, %v593
      %v608 = vsel %vm602, %v593, %v595
      %v609 = vsel %vm602, %v597, %v599
      %v610 = vsel %vm602, %v599, %v601
      %v619 = vpack.c.bf16 %v233, %v231
      %v620 = vpack.c.bf16 %v234, %v232
      %v621 = vpack.c.bf16 %v237, %v235
      %v622 = vpack.c.bf16 %v238, %v236
      %v623 = vpack.c.bf16 %v523, %v521
      %v624 = vpack.c.bf16 %v524, %v522
      %v625 = vpack.c.bf16 %v527, %v525
      %v626 = vpack.c.bf16 %v528, %v526
      %v627 = vpack.c.bf16 %v294, %v292
      %v628 = vpack.c.bf16 %v295, %v293
      %v629 = vpack.c.bf16 %v298, %v296
      %v630 = vpack.c.bf16 %v299, %v297
      %v631 = vpack.c.bf16 %v343, %v341
      %v632 = vpack.c.bf16 %v344, %v342
      %v633 = vpack.c.bf16 %v347, %v345
      %v634 = vpack.c.bf16 %v348, %v346
      %v635 = vpack.c.bf16 %v564, %v562
      %v636 = vpack.c.bf16 %v565, %v563
      %v637 = vpack.c.bf16 %v568, %v566
      %v638 = vpack.c.bf16 %v569, %v567
      %v639 = vpack.c.bf16 %v392, %v390
      %v640 = vpack.c.bf16 %v393, %v391
      %v641 = vpack.c.bf16 %v396, %v394
      %v642 = vpack.c.bf16 %v397, %v395
      %v643 = vpack.c.bf16 %v441, %v439
      %v644 = vpack.c.bf16 %v442, %v440
      %v645 = vpack.c.bf16 %v445, %v443
      %v646 = vpack.c.bf16 %v446, %v444
      %v647 = vpack.c.bf16 %v605, %v603
      %v648 = vpack.c.bf16 %v606, %v604
      %v649 = vpack.c.bf16 %v609, %v607
      %v650 = vpack.c.bf16 %v610, %v608
      %v651 = vpack.c.bf16 %v490, %v488
      %v652 = vpack.c.bf16 %v491, %v489
      %v653 = vpack.c.bf16 %v494, %v492
      %v654 = vpack.c.bf16 %v495, %v493
      %v655 = vld [vmem:[%s1] sm:$0x3f]
      %v656 = vld [vmem:[%s2] sm:$0x7]
      %658 = vset.pattern.permute.xlu0 0
      %659 = vperm.xlu0 %658, %v656
      %v660 = vpop.permute.xlu0 %659
      %v663 = vcombine.high %v655, %v655
      %v665 = vunpack.c.l.s4 1983009808
      %v666 = vunpack.c.0.s8 %v665
      %v667 = vlaneseq
      %v668 = vshrl.u32 %v667, 7
      %v669 = vsub.s32 %v666, %v668
      %v670 = vrot.slane %v655, %v669
      %v672 = vunpack.c.l.s4 1983009808
      %v673 = vunpack.c.0.s8 %v672
      %v674 = vlaneseq
      %v675 = vshrl.u32 %v674, 7
      %v676 = vsub.s32 %v673, %v675
      %v677 = vrot.slane %v663, %v676
      %v678 = vcombine.high %v670, %v670
      %vm681 = vcmask 261120
      %v683 = vsel %vm681, %v677, 0
      %685 = vmatprep.subr.bf16.mxu0 %v634
      %686 = vmatpush1.bf16.msra.mxu0 %v633
      %687 = vmatprep.subr.bf16.mxu0 %v632
      %688 = vmatpush1.bf16.msra.mxu0 %v631
      %689 = vmatprep.subr.bf16.mxu0 %v630
      %690 = vmatpush1.bf16.msra.mxu0 %v629
      %691 = vmatprep.subr.bf16.mxu0 %v628
      %692 = vmatpush1.bf16.msra.mxu0 %v627
      %693 = vmatprep.subr.bf16.mxu0 %v626
      %694 = vmatpush1.bf16.msra.mxu0 %v625
      %695 = vmatprep.subr.bf16.mxu0 %v624
      %696 = vmatpush1.bf16.msra.mxu0 %v623
      %697 = vmatprep.subr.bf16.mxu0 %v622
      %698 = vmatpush1.bf16.msra.mxu0 %v621
      %699 = vmatprep.subr.bf16.mxu0 %v620
      %700 = vmatpush1.bf16.msra.mxu0 %v619
      %701 = vmatprep.subr.bf16.mxu0 %v650
      %702 = vmatpush2.bf16.msra.mxu0 %v649
      %703 = vmatprep.subr.bf16.mxu0 %v648
      %704 = vmatpush2.bf16.msra.mxu0 %v647
      %705 = vmatprep.subr.bf16.mxu0 %v646
      %706 = vmatpush2.bf16.msra.mxu0 %v645
      %707 = vmatprep.subr.bf16.mxu0 %v644
      %708 = vmatpush2.bf16.msra.mxu0 %v643
      %709 = vmatprep.subr.bf16.mxu0 %v642
      %710 = vmatpush2.bf16.msra.mxu0 %v641
      %711 = vmatprep.subr.bf16.mxu0 %v640
      %712 = vmatpush2.bf16.msra.mxu0 %v639
      %713 = vmatprep.subr.bf16.mxu0 %v638
      %714 = vmatpush2.bf16.msra.mxu0 %v637
      %715 = vmatprep.subr.bf16.mxu0 %v636
      %716 = vmatpush2.bf16.msra.mxu0 %v635
      %717 = vmatprep.mubr.bf16.mxu0 %v678
      %718 = vmatmul.mubr.bf16.gmra.mxu0 %v670
      %v719 = vpop.f32.mrf.mxu0
      %v720 = vadd.f32 %v660, %v719
      %v721 = vpop.f32.mrf.mxu0
      %v722 = vadd.f32 %v660, %v721
      %v723 = vpop.f32.mrf.mxu0
      %v724 = vpop.f32.mrf.mxu0
      %725 = vdwg.mxu0
      %726 = vmatprep.subr.bf16.mxu0 0
      %727 = vmatpush1.bf16.msra.mxu0 0
      %728 = vmatprep.subr.bf16.mxu0 0
      %729 = vmatpush1.bf16.msra.mxu0 0
      %730 = vmatprep.subr.bf16.mxu0 0
      %731 = vmatpush1.bf16.msra.mxu0 0
      %732 = vmatprep.subr.bf16.mxu0 0
      %733 = vmatpush1.bf16.msra.mxu0 0
      %734 = vmatprep.subr.bf16.mxu0 0
      %735 = vmatpush1.bf16.msra.mxu0 0
      %736 = vmatprep.subr.bf16.mxu0 0
      %737 = vmatpush1.bf16.msra.mxu0 0
      %738 = vmatprep.subr.bf16.mxu0 %v654
      %739 = vmatpush1.bf16.msra.mxu0 %v653
      %740 = vmatprep.subr.bf16.mxu0 %v652
      %741 = vmatpush1.bf16.msra.mxu0 %v651
      %742 = vmatprep.subr.bf16.mxu0 0
      %743 = vmatpush2.bf16.msra.mxu0 0
      %744 = vmatprep.subr.bf16.mxu0 0
      %745 = vmatpush2.bf16.msra.mxu0 0
      %746 = vmatprep.subr.bf16.mxu0 0
      %747 = vmatpush2.bf16.msra.mxu0 0
      %748 = vmatprep.subr.bf16.mxu0 0
      %749 = vmatpush2.bf16.msra.mxu0 0
      %750 = vmatprep.subr.bf16.mxu0 0
      %751 = vmatpush2.bf16.msra.mxu0 0
      %752 = vmatprep.subr.bf16.mxu0 0
      %753 = vmatpush2.bf16.msra.mxu0 0
      %754 = vmatprep.subr.bf16.mxu0 0
      %755 = vmatpush2.bf16.msra.mxu0 0
      %756 = vmatprep.subr.bf16.mxu0 0
      %757 = vmatpush2.bf16.msra.mxu0 0
      %758 = vmatprep.mubr.bf16.mxu0 0
      %759 = vmatmul.mubr.bf16.gmra.mxu0 %v683
      %v760 = vpop.f32.mrf.mxu0
      %v761 = vadd.f32 %v720, %v760
      %v762 = vpop.f32.mrf.mxu0
      %v763 = vadd.f32 %v722, %v762
      %v764 = vpop.f32.mrf.mxu0
      %v765 = vpop.f32.mrf.mxu0
      %766 = vdwg.mxu0
      %v767 = vsub.f32 0.0, %v761
      %v768 = vsub.f32 0.0, %v763
      %v769 = vmul.f32 %v767, 1.442695
      %v770 = vpow.pop %v769
      %v771 = vmul.f32 %v768, 1.442695
      %v772 = vpow.pop %v771
      %v773 = vadd.f32 %v770, 1.0
      %v774 = vadd.f32 %v772, 1.0
      %v775 = vrcp.pop %v773
      %v776 = vrcp.pop %v774
      %v779 = vcombine.low %v775, %v776
      %781 = vst [vmem:[%s170] sm:$0x77] %v779
      %p782 = scmp.lt.s32.totalorder %s14, 1
      %s783 = scalar_select %p782, %s14, 1
      %s784 = smul.addr %s783, 2
      %s785 = smul.addr %s784, 4
      %s786 = scalar_lea.vmem %s3, %s785
      // Predicated region
      $region33: #{autoencoder_forward.11} parent=31 // pred_check
        %p787 = pneg %p100
      $region34: #{autoencoder_forward.11} parent=31 // pred_check_branch
        %789 = sbr.rel (%p787) target = $region36
      $region35: #{autoencoder_forward.11} parent=31 // pred_region
        _
      $region36: #{autoencoder_forward.11} parent=31 // pred_fallthru
        _
    $region32: #{autoencoder_forward.11} parent=5 // pred_fallthru
      _
    %p790 = scmp.le.s32.totalorder 2, %s9
    // Predicated region
    $region37: #{autoencoder_forward.11} parent=5 // pred_check
      %p791 = pneg %p790
    $region38: #{autoencoder_forward.11} parent=5 // pred_check_branch
      %793 = sbr.rel (%p791) target = $region40
    $region39: #{autoencoder_forward.11} parent=5 // pred_region
      %s794 = ssub.s32 %s9, 2
      // Predicated region
      $region41: #{autoencoder_forward.11} parent=39 // pred_check
        %p795 = pneg %p106
      $region42: #{autoencoder_forward.11} parent=39 // pred_check_branch
        %797 = sbr.rel (%p795) target = $region44
      $region43: #{autoencoder_forward.11} parent=39 // pred_region
        %p798 = scmp.lt.s32.totalorder %s15, 1
        %s799 = scalar_select %p798, %s15, 1
        %s800 = smul.addr %s799, 2
        %s801 = smul.addr %s800, 4
        %s802 = scalar_lea.vmem %s3, %s801
      $region44: #{autoencoder_forward.11} parent=39 // pred_fallthru
        _
    $region40: #{autoencoder_forward.11} parent=5 // pred_fallthru
      _
  $region6: #{autoencoder_forward.11} parent=0 // loop_footer
    %s13 = sadd.s32 1, %s9
  $region7: #{autoencoder_forward.11} parent=0 // loop_footer_branch
    %8 = sbr.rel target = $region3
  $region8: #{autoencoder_forward.11} parent=0 // loop_exit
    _

</llo_original>
